<compile_context>
chip_gen: v5e
topology: v5e:2x2
jax: 0.10.0
libtpu: 0.0.40
codegen_flags: <defaults>
</compile_context>

<pallas_src>
import functools
import math

import jax
import jax.numpy as jnp
from jax.experimental import pallas as pl
from jax.experimental.pallas import tpu as pltpu


LANE = 128          # TPU lane width; all feature dims are zero-padded to a multiple.
NEG_INF = -1e9


def _round_up(x, m):
    return ((x + m - 1) // m) * m


# ----------------------------- in-kernel helpers -----------------------------

def _residual_layernorm(y, gamma, beta, d_real, eps):
    """LayerNorm over the REAL feature width of a zero-padded (T, Dp) tensor."""
    inv_d = 1.0 / d_real
    mu = jnp.sum(y, axis=-1, keepdims=True) * inv_d                # padded cols are 0
    var = jnp.sum(y * y, axis=-1, keepdims=True) * inv_d - mu * mu
    var = jnp.maximum(var, 0.0)
    return (y - mu) * jax.lax.rsqrt(var + eps) * gamma + beta      # gamma=0 on pad cols


def _mha(xq, xkv, bias, wq_ref, bq_ref, wkv_ref, bkv_ref, wo_ref, bo_ref,
         n_heads, scale):
    """Multi-head attention on zero-padded (T, Dp) activations.

    Heads are split with static lane-aligned slices into a leading batch axis and the
    whole attention runs as two batched dot_generals (no per-head MXU loop, no VMEM
    scratch, no masked partial stores)."""
    tq, dp = xq.shape
    dkp = dp // n_heads

    q = jnp.dot(xq.astype(jnp.bfloat16), wq_ref[...],
                preferred_element_type=jnp.float32) + bq_ref[...]
    kv = jnp.dot(xkv.astype(jnp.bfloat16), wkv_ref[...],
                 preferred_element_type=jnp.float32) + bkv_ref[...]
    k = kv[:, :dp]
    v = kv[:, dp:]

    q_bf, k_bf, v_bf = (t.astype(jnp.bfloat16) for t in (q, k, v))
    q3 = jnp.stack([q_bf[:, h * dkp:(h + 1) * dkp] for h in range(n_heads)], axis=0)
    k3 = jnp.stack([k_bf[:, h * dkp:(h + 1) * dkp] for h in range(n_heads)], axis=0)
    v3 = jnp.stack([v_bf[:, h * dkp:(h + 1) * dkp] for h in range(n_heads)], axis=0)

    s = jnp.einsum('hqd,hkd->hqk', q3, k3,
                   preferred_element_type=jnp.float32)             # (H, Tq, Tk)
    s = s * scale + bias[None, :, :]
    s = s - jnp.max(s, axis=-1, keepdims=True)                     # f32 softmax
    p = jnp.exp(s)
    p = p * pl.reciprocal(jnp.sum(p, axis=-1, keepdims=True), approx=True)

    ctx3 = jnp.einsum('hqk,hkd->hqd', p.astype(jnp.bfloat16), v3,
                      preferred_element_type=jnp.float32)          # (H, Tq, dkp)
    ctx = jnp.concatenate([ctx3[h] for h in range(n_heads)], axis=-1)   # (Tq, Dp)
    return jnp.dot(ctx.astype(jnp.bfloat16), wo_ref[...],
                   preferred_element_type=jnp.float32) + bo_ref[...]


def _ffn(x, w1_ref, b1_ref, w2_ref, b2_ref):
    h = jnp.dot(x.astype(jnp.bfloat16), w1_ref[...],
                preferred_element_type=jnp.float32) + b1_ref[...]
    h = jnp.maximum(h, 0.0)
    return jnp.dot(h.astype(jnp.bfloat16), w2_ref[...],
                   preferred_element_type=jnp.float32) + b2_ref[...]


# ----------------------------- Pallas kernels -----------------------------

def _encoder_layer_kernel(x_ref, m_ref,
                          wq_ref, bq_ref, wkv_ref, bkv_ref, wo_ref, bo_ref,
                          g1_ref, be1_ref,
                          w1_ref, bb1_ref, w2_ref, bb2_ref,
                          g2_ref, be2_ref,
                          o_ref, *, n_heads, d_real, scale, eps):
    """Fused encoder layer for one batch element: LN(x+MHA(x)) then LN(h+FFN(h))."""
    x = x_ref[0]                                              # (T, Dp) f32
    t = x.shape[0]
    keep = m_ref[0].astype(jnp.float32)                       # (1, T) padding keep-mask
    bias = jnp.broadcast_to((1.0 - keep) * NEG_INF, (t, t))   # additive, built in-kernel

    attn = _mha(x, x, bias, wq_ref, bq_ref, wkv_ref, bkv_ref, wo_ref, bo_ref,
                n_heads, scale)
    h = _residual_layernorm(attn + x, g1_ref[...], be1_ref[...], d_real, eps)
    f = _ffn(h, w1_ref, bb1_ref, w2_ref, bb2_ref)
    o_ref[0] = _residual_layernorm(f + h, g2_ref[...], be2_ref[...], d_real, eps)


def _decoder_layer_kernel(x_ref, enc_ref, tm_ref, sm_ref,
                          swq_ref, sbq_ref, swkv_ref, sbkv_ref, swo_ref, sbo_ref,
                          g1_ref, be1_ref,
                          cwq_ref, cbq_ref, cwkv_ref, cbkv_ref, cwo_ref, cbo_ref,
                          g2_ref, be2_ref,
                          w1_ref, bb1_ref, w2_ref, bb2_ref,
                          g3_ref, be3_ref,
                          o_ref, *, n_heads, d_real, scale, eps):
    """Fused decoder layer: causal self-attn + cross-attn + FFN, each with add&LN."""
    x = x_ref[0]                                              # (Tt, Dp)
    enc = enc_ref[0]                                          # (Ts, Dp)
    tt = x.shape[0]
    ts = enc.shape[0]

    # Decoder self-attention: causal mask generated in-kernel (iota compare) AND'd with
    # the [1, Tt] target padding keep-mask -> no [B, Tt, Tt] mask DMA.
    tkeep = tm_ref[0].astype(jnp.float32)                     # (1, Tt)
    row = jax.lax.broadcasted_iota(jnp.int32, (tt, tt), 0)
    col = jax.lax.broadcasted_iota(jnp.int32, (tt, tt), 1)
    causal = jnp.where(row >= col, 1.0, 0.0)
    self_bias = (1.0 - causal * tkeep) * NEG_INF              # (Tt, Tt)
    a = _mha(x, x, self_bias, swq_ref, sbq_ref, swkv_ref, sbkv_ref, swo_ref, sbo_ref,
             n_heads, scale)
    h = _residual_layernorm(a + x, g1_ref[...], be1_ref[...], d_real, eps)

    # Cross-attention over encoder output with the source padding keep-mask.
    skeep = sm_ref[0].astype(jnp.float32)                     # (1, Ts)
    cross_bias = jnp.broadcast_to((1.0 - skeep) * NEG_INF, (tt, ts))
    c = _mha(h, enc, cross_bias, cwq_ref, cbq_ref, cwkv_ref, cbkv_ref, cwo_ref, cbo_ref,
             n_heads, scale)
    h2 = _residual_layernorm(c + h, g2_ref[...], be2_ref[...], d_real, eps)

    f = _ffn(h2, w1_ref, bb1_ref, w2_ref, bb2_ref)
    o_ref[0] = _residual_layernorm(f + h2, g3_ref[...], be3_ref[...], d_real, eps)


def _proj_kernel(x_ref, w_ref, b_ref, o_ref):
    o_ref[0] = (jnp.dot(x_ref[0].astype(jnp.bfloat16), w_ref[...],
                        preferred_element_type=jnp.float32) + b_ref[...])


# ----------------------------- kernel wrappers -----------------------------

def _const_spec(arr):
    # Weight/bias blocks are identical for every grid step (constant index_map).
    # TODO(synk): at real sizes use pipeline_mode=pl.Buffered(1) for these constant
    #             blocks (single buffer) and tile Dff / vocab for the v7x 64 MiB budget.
    return pl.BlockSpec(arr.shape, lambda b: (0,) * arr.ndim)


def encoder_layer_pallas(x, keep_mask, lp, n_heads, d_real, eps=1e-5):
    """x: [B,T,Dp] f32, keep_mask: [B,1,T] int8 (1 = attend)."""
    B, T, Dp = x.shape
    ap = lp["self_attn"]
    Dffp = lp["ffn1_w"].shape[1]
    scale = 1.0 / math.sqrt(d_real // n_heads)

    weights = [ap["wq"], ap["bq"], ap["wkv"], ap["bkv"], ap["wo"], ap["bo"],
               lp["ln1_g"], lp["ln1_b"],
               lp["ffn1_w"], lp["ffn1_b"], lp["ffn2_w"], lp["ffn2_b"],
               lp["ln2_g"], lp["ln2_b"]]

    flops = 2 * B * T * Dp * (4 * Dp + 2 * Dffp) + 4 * B * T * T * Dp
    transcendentals = B * n_heads * T * T
    bytes_accessed = (8 * B * T * Dp + B * T
                      + 2 * (4 * Dp * Dp + 2 * Dp * Dffp) + 4 * (7 * Dp + Dffp))

    return pl.pallas_call(
        functools.partial(_encoder_layer_kernel, n_heads=n_heads, d_real=d_real,
                          scale=scale, eps=eps),
        out_shape=jax.ShapeDtypeStruct((B, T, Dp), jnp.float32),
        grid=(B,),
        in_specs=[pl.BlockSpec((1, T, Dp), lambda b: (b, 0, 0)),
                  pl.BlockSpec((1, 1, T), lambda b: (b, 0, 0))]
                 + [_const_spec(w) for w in weights],
        out_specs=pl.BlockSpec((1, T, Dp), lambda b: (b, 0, 0)),
        compiler_params=pltpu.CompilerParams(dimension_semantics=("parallel",)),
        cost_estimate=pl.CostEstimate(flops=flops, transcendentals=transcendentals,
                                      bytes_accessed=bytes_accessed),
    )(x, keep_mask, *weights)


def decoder_layer_pallas(x, enc, src_keep, trg_keep, lp, n_heads, d_real, eps=1e-5):
    """x: [B,Tt,Dp], enc: [B,Ts,Dp], src_keep: [B,1,Ts] int8, trg_keep: [B,1,Tt] int8."""
    B, Tt, Dp = x.shape
    Ts = enc.shape[1]
    sa, ca = lp["self_attn"], lp["cross_attn"]
    Dffp = lp["ffn1_w"].shape[1]
    scale = 1.0 / math.sqrt(d_real // n_heads)

    weights = [sa["wq"], sa["bq"], sa["wkv"], sa["bkv"], sa["wo"], sa["bo"],
               lp["ln1_g"], lp["ln1_b"],
               ca["wq"], ca["bq"], ca["wkv"], ca["bkv"], ca["wo"], ca["bo"],
               lp["ln2_g"], lp["ln2_b"],
               lp["ffn1_w"], lp["ffn1_b"], lp["ffn2_w"], lp["ffn2_b"],
               lp["ln3_g"], lp["ln3_b"]]

    flops = 2 * B * Tt * Dp * (8 * Dp + 2 * Dffp) + 4 * B * Tt * (Tt + Ts) * Dp
    transcendentals = B * n_heads * Tt * (Tt + Ts)
    bytes_accessed = (8 * B * Tt * Dp + 4 * B * Ts * Dp + B * (Tt + Ts)
                      + 2 * (8 * Dp * Dp + 2 * Dp * Dffp) + 4 * (11 * Dp + Dffp))

    return pl.pallas_call(
        functools.partial(_decoder_layer_kernel, n_heads=n_heads, d_real=d_real,
                          scale=scale, eps=eps),
        out_shape=jax.ShapeDtypeStruct((B, Tt, Dp), jnp.float32),
        grid=(B,),
        in_specs=[pl.BlockSpec((1, Tt, Dp), lambda b: (b, 0, 0)),
                  pl.BlockSpec((1, Ts, Dp), lambda b: (b, 0, 0)),
                  pl.BlockSpec((1, 1, Tt), lambda b: (b, 0, 0)),
                  pl.BlockSpec((1, 1, Ts), lambda b: (b, 0, 0))]
                 + [_const_spec(w) for w in weights],
        out_specs=pl.BlockSpec((1, Tt, Dp), lambda b: (b, 0, 0)),
        compiler_params=pltpu.CompilerParams(dimension_semantics=("parallel",)),
        cost_estimate=pl.CostEstimate(flops=flops, transcendentals=transcendentals,
                                      bytes_accessed=bytes_accessed),
    )(x, enc, trg_keep, src_keep, *weights)


def proj_pallas(x, w, b):
    """Final vocabulary projection. x: [B,T,Dp], w: [Dp,Vp] bf16, b: [1,Vp] -> [B,T,Vp]."""
    B, T, Dp = x.shape
    Vp = w.shape[1]
    flops = 2 * B * T * Dp * Vp
    bytes_accessed = 4 * B * T * Dp + 2 * Dp * Vp + 4 * Vp + 4 * B * T * Vp
    return pl.pallas_call(
        _proj_kernel,
        out_shape=jax.ShapeDtypeStruct((B, T, Vp), jnp.float32),
        grid=(B,),
        in_specs=[pl.BlockSpec((1, T, Dp), lambda b: (b, 0, 0)),
                  _const_spec(w), _const_spec(b)],
        out_specs=pl.BlockSpec((1, T, Vp), lambda b: (b, 0, 0)),
        compiler_params=pltpu.CompilerParams(dimension_semantics=("parallel",)),
        cost_estimate=pl.CostEstimate(flops=flops, transcendentals=0,
                                      bytes_accessed=bytes_accessed),
    )(x, w, b)


# ----------------------------- parameters (padded, bf16 weights) -----------------------------

def _pad_axis(x, target, axis):
    pad = target - x.shape[axis]
    if pad <= 0:
        return x
    widths = [(0, 0)] * x.ndim
    widths[axis] = (0, pad)
    return jnp.pad(x, widths)


def _pad_head_axis(x, n_heads, d_pad, axis):
    """Zero-pad a head-grouped axis so each head's dk grows to d_pad // n_heads
    (keeps head boundaries at lane-aligned offsets inside the kernels)."""
    dkp = d_pad // n_heads
    parts = [_pad_axis(p, dkp, axis) for p in jnp.split(x, n_heads, axis=axis)]
    return jnp.concatenate(parts, axis=axis)


def init_linear(key, d_in, d_out, scale=0.05):
    return (jax.random.normal(key, (d_in, d_out), jnp.float32) * scale,
            jnp.zeros((1, d_out), jnp.float32))


def init_attn(key, d_model, d_pad, n_heads):
    ks = jax.random.split(key, 4)
    wq, bq = init_linear(ks[0], d_model, d_model)
    wk, bk = init_linear(ks[1], d_model, d_model)
    wv, bv = init_linear(ks[2], d_model, d_model)
    wo, bo = init_linear(ks[3], d_model, d_model)

    def qkv_pad(w):   # (D, D) -> (Dp, Dp): input rows plain-pad, output cols per-head-pad
        return _pad_axis(_pad_head_axis(w, n_heads, d_pad, axis=1), d_pad, axis=0)

    wq_p, wk_p, wv_p = qkv_pad(wq), qkv_pad(wk), qkv_pad(wv)
    wo_p = _pad_axis(_pad_head_axis(wo, n_heads, d_pad, axis=0), d_pad, axis=1)
    # Weights pre-cast to bf16 in HBM (MXU accumulates in f32); biases stay f32.
    return {
        "wq": wq_p.astype(jnp.bfloat16),
        "bq": _pad_head_axis(bq, n_heads, d_pad, axis=1),
        "wkv": jnp.concatenate([wk_p, wv_p], axis=1).astype(jnp.bfloat16),
        "bkv": jnp.concatenate([_pad_head_axis(bk, n_heads, d_pad, axis=1),
                                _pad_head_axis(bv, n_heads, d_pad, axis=1)], axis=1),
        "wo": wo_p.astype(jnp.bfloat16),
        "bo": _pad_axis(bo, d_pad, axis=1),
    }


def _ln_params(d_model, d_pad):
    return (_pad_axis(jnp.ones((1, d_model), jnp.float32), d_pad, 1),
            jnp.zeros((1, d_pad), jnp.float32))


def _ffn_params(k1, k2, d_model, d_ff, d_pad, dff_pad):
    w1, b1 = init_linear(k1, d_model, d_ff)
    w2, b2 = init_linear(k2, d_ff, d_model)
    return {
        "ffn1_w": _pad_axis(_pad_axis(w1, d_pad, 0), dff_pad, 1).astype(jnp.bfloat16),
        "ffn1_b": _pad_axis(b1, dff_pad, 1),
        "ffn2_w": _pad_axis(_pad_axis(w2, dff_pad, 0), d_pad, 1).astype(jnp.bfloat16),
        "ffn2_b": _pad_axis(b2, d_pad, 1),
    }


def init_encoder_layer(key, d_model, d_ff, d_pad, dff_pad, n_heads):
    ks = jax.random.split(key, 3)
    g1, b1 = _ln_params(d_model, d_pad)
    g2, b2 = _ln_params(d_model, d_pad)
    return {"self_attn": init_attn(ks[0], d_model, d_pad, n_heads),
            "ln1_g": g1, "ln1_b": b1,
            **_ffn_params(ks[1], ks[2], d_model, d_ff, d_pad, dff_pad),
            "ln2_g": g2, "ln2_b": b2}


def init_decoder_layer(key, d_model, d_ff, d_pad, dff_pad, n_heads):
    ks = jax.random.split(key, 4)
    g1, b1 = _ln_params(d_model, d_pad)
    g2, b2 = _ln_params(d_model, d_pad)
    g3, b3 = _ln_params(d_model, d_pad)
    return {"self_attn": init_attn(ks[0], d_model, d_pad, n_heads),
            "ln1_g": g1, "ln1_b": b1,
            "cross_attn": init_attn(ks[1], d_model, d_pad, n_heads),
            "ln2_g": g2, "ln2_b": b2,
            **_ffn_params(ks[2], ks[3], d_model, d_ff, d_pad, dff_pad),
            "ln3_g": g3, "ln3_b": b3}


def sinusoidal_pe(max_len, d_model, d_pad):
    pos = jnp.arange(max_len, dtype=jnp.float32)[:, None]
    i = jnp.arange(0, d_model, 2, dtype=jnp.float32)[None, :]
    angle = pos / jnp.power(10000.0, i / d_model)
    pe = jnp.zeros((max_len, d_model), dtype=jnp.float32)
    pe = pe.at[:, 0::2].set(jnp.sin(angle))
    pe = pe.at[:, 1::2].set(jnp.cos(angle))
    return _pad_axis(pe, d_pad, 1)


def init_transformer(key, opt):
    D, Dff, H = opt["d_model"], opt["d_ffn"], opt["n_heads"]
    Dp = _round_up(D, LANE)
    Dffp = _round_up(Dff, LANE)
    Vp = _round_up(opt["trg_vocab_size"], LANE)
    ks = jax.random.split(key, 3 + 2 * opt["n_layers"])
    proj_w, proj_b = init_linear(ks[2], D, opt["trg_vocab_size"])
    return {
        "src_emb": _pad_axis(jax.random.normal(ks[0], (opt["src_vocab_size"], D),
                                               jnp.float32) * 0.05, Dp, 1),
        "trg_emb": _pad_axis(jax.random.normal(ks[1], (opt["trg_vocab_size"], D),
                                               jnp.float32) * 0.05, Dp, 1),
        "src_pe": sinusoidal_pe(opt["max_src_seq_len"], D, Dp),
        "trg_pe": sinusoidal_pe(opt["max_trg_seq_len"], D, Dp),
        "proj_w": _pad_axis(_pad_axis(proj_w, Dp, 0), Vp, 1).astype(jnp.bfloat16),
        "proj_b": _pad_axis(proj_b, Vp, 1),
        "enc_layers": [init_encoder_layer(ks[3 + i], D, Dff, Dp, Dffp, H)
                       for i in range(opt["n_layers"])],
        "dec_layers": [init_decoder_layer(ks[3 + opt["n_layers"] + i],
                                          D, Dff, Dp, Dffp, H)
                       for i in range(opt["n_layers"])],
    }


# ----------------------------- forward pass (JAX glue) -----------------------------

def transformer_fwd(params, opt, src, trg, src_mask, trg_pad_mask):
    B, Ts = src.shape
    _, Tt = trg.shape
    D = opt["d_model"]
    H = opt["n_heads"]

    # Padding keep-masks (1 = attend) DMA'd as int8; converted to an additive bias
    # in-kernel.  The decoder causal mask is generated in-kernel from iota.
    src_keep = src_mask.astype(jnp.int8)          # [B, 1, Ts]
    trg_keep = trg_pad_mask.astype(jnp.int8)      # [B, 1, Tt]

    # ---------------- encode ----------------
    enc = params["src_emb"][src] * math.sqrt(D) + params["src_pe"][:Ts][None, :, :]
    for lp in params["enc_layers"]:
        enc = encoder_layer_pallas(enc, src_keep, lp, H, D)

    # ---------------- decode ----------------
    dec = params["trg_emb"][trg] * math.sqrt(D) + params["trg_pe"][:Tt][None, :, :]
    for lp in params["dec_layers"]:
        dec = decoder_layer_pallas(dec, enc, src_keep, trg_keep, lp, H, D)

    # ---------------- project ----------------
    logits_p = proj_pallas(dec, params["proj_w"], params["proj_b"])
    return logits_p[:, :, :opt["trg_vocab_size"]]   # drop padded vocab columns


# ----------------------------- main -----------------------------

if __name__ == "__main__":
    opt = {
        "n_layers": 2,
        "d_model": 32,
        "d_ffn": 64,
        "n_heads": 4,
        "max_src_seq_len": 16,
        "max_trg_seq_len": 16,
        "src_vocab_size": 50,
        "trg_vocab_size": 60,
        "dropout": 0.1,  # eval mode -> identity
    }
    B, SRC_LEN, TRG_LEN = 2, 8, 8

    key = jax.random.PRNGKey(0)
    k_param, k_src, k_trg = jax.random.split(key, 3)
    params = init_transformer(k_param, opt)

    src = jax.random.randint(k_src, (B, SRC_LEN), 1, opt["src_vocab_size"], dtype=jnp.int32)
    trg = jax.random.randint(k_trg, (B, TRG_LEN), 1, opt["trg_vocab_size"], dtype=jnp.int32)
    src_mask = jnp.ones((B, 1, SRC_LEN), jnp.int8)       # 1 = valid source token
    trg_pad_mask = jnp.ones((B, 1, TRG_LEN), jnp.int8)   # causal part is built in-kernel

    fwd = jax.jit(lambda p, s, t, sm, tm: transformer_fwd(p, opt, s, t, sm, tm))
    logits = fwd(params, src, trg, src_mask, trg_pad_mask)
    jax.block_until_ready(logits)
    assert logits.shape == (B, TRG_LEN, opt["trg_vocab_size"])
    assert bool(jnp.all(jnp.isfinite(logits)))
    print("KERNEL_OK")
</pallas_src>

<mosaic_0001>
module attributes {stable_mosaic.version = 11 : i64} {
  func.func @_encoder_layer_kernel(%arg0: i32, %arg1: memref<1x8x128xf32, #tpu.memory_space<vmem>>, %arg2: memref<1x1x8xi8, #tpu.memory_space<vmem>>, %arg3: memref<128x128xbf16, #tpu.memory_space<vmem>>, %arg4: memref<1x128xf32, #tpu.memory_space<vmem>>, %arg5: memref<128x256xbf16, #tpu.memory_space<vmem>>, %arg6: memref<1x256xf32, #tpu.memory_space<vmem>>, %arg7: memref<128x128xbf16, #tpu.memory_space<vmem>>, %arg8: memref<1x128xf32, #tpu.memory_space<vmem>>, %arg9: memref<1x128xf32, #tpu.memory_space<vmem>>, %arg10: memref<1x128xf32, #tpu.memory_space<vmem>>, %arg11: memref<128x128xbf16, #tpu.memory_space<vmem>>, %arg12: memref<1x128xf32, #tpu.memory_space<vmem>>, %arg13: memref<128x128xbf16, #tpu.memory_space<vmem>>, %arg14: memref<1x128xf32, #tpu.memory_space<vmem>>, %arg15: memref<1x128xf32, #tpu.memory_space<vmem>>, %arg16: memref<1x128xf32, #tpu.memory_space<vmem>>, %arg17: memref<1x8x128xf32, #tpu.memory_space<vmem>>) attributes {dimension_semantics = [#tpu.dimension_semantics<parallel>], iteration_bounds = array<i64: 2>, scalar_prefetch = 0 : i64, scratch_operands = 0 : i64, tpu.core_type = #tpu.core_type<tc>, window_params = [{transform_indices = @transform_0, window_bounds = array<i64: 1, 8, 128>}, {transform_indices = @transform_1, window_bounds = array<i64: 1, 1, 8>}, {pipeline_mode = #tpu.pipeline_mode<synchronous>, transform_indices = @transform_2, window_bounds = array<i64: 128, 128>}, {pipeline_mode = #tpu.pipeline_mode<synchronous>, transform_indices = @transform_3, window_bounds = array<i64: 1, 128>}, {pipeline_mode = #tpu.pipeline_mode<synchronous>, transform_indices = @transform_4, window_bounds = array<i64: 128, 256>}, {pipeline_mode = #tpu.pipeline_mode<synchronous>, transform_indices = @transform_5, window_bounds = array<i64: 1, 256>}, {pipeline_mode = #tpu.pipeline_mode<synchronous>, transform_indices = @transform_6, window_bounds = array<i64: 128, 128>}, {pipeline_mode = #tpu.pipeline_mode<synchronous>, transform_indices = @transform_7, window_bounds = array<i64: 1, 128>}, {pipeline_mode = #tpu.pipeline_mode<synchronous>, transform_indices = @transform_8, window_bounds = array<i64: 1, 128>}, {pipeline_mode = #tpu.pipeline_mode<synchronous>, transform_indices = @transform_9, window_bounds = array<i64: 1, 128>}, {pipeline_mode = #tpu.pipeline_mode<synchronous>, transform_indices = @transform_10, window_bounds = array<i64: 128, 128>}, {pipeline_mode = #tpu.pipeline_mode<synchronous>, transform_indices = @transform_11, window_bounds = array<i64: 1, 128>}, {pipeline_mode = #tpu.pipeline_mode<synchronous>, transform_indices = @transform_12, window_bounds = array<i64: 128, 128>}, {pipeline_mode = #tpu.pipeline_mode<synchronous>, transform_indices = @transform_13, window_bounds = array<i64: 1, 128>}, {pipeline_mode = #tpu.pipeline_mode<synchronous>, transform_indices = @transform_14, window_bounds = array<i64: 1, 128>}, {pipeline_mode = #tpu.pipeline_mode<synchronous>, transform_indices = @transform_15, window_bounds = array<i64: 1, 128>}, {transform_indices = @transform_16, window_bounds = array<i64: 1, 8, 128>}]} {
    %c0 = arith.constant 0 : index
    %c0_0 = arith.constant 0 : index
    %c0_1 = arith.constant 0 : index
    %0 = vector.load %arg1[%c0, %c0_0, %c0_1] : memref<1x8x128xf32, #tpu.memory_space<vmem>>, vector<1x8x128xf32>
    %1 = vector.shape_cast %0 : vector<1x8x128xf32> to vector<8x128xf32>
    %c0_2 = arith.constant 0 : index
    %c0_3 = arith.constant 0 : index
    %c0_4 = arith.constant 0 : index
    %2 = vector.load %arg2[%c0_2, %c0_3, %c0_4] : memref<1x1x8xi8, #tpu.memory_space<vmem>>, vector<1x1x8xi8>
    %3 = vector.shape_cast %2 : vector<1x1x8xi8> to vector<1x8xi8>
    %4 = arith.sitofp %3 : vector<1x8xi8> to vector<1x8xf32>
    %cst = arith.constant 1.000000e+00 : f32
    %5 = vector.broadcast %cst : f32 to vector<1x8xf32>
    %6 = arith.subf %5, %4 : vector<1x8xf32>
    %cst_5 = arith.constant -1.000000e+09 : f32
    %7 = vector.broadcast %cst_5 : f32 to vector<1x8xf32>
    %8 = arith.mulf %6, %7 : vector<1x8xf32>
    %9 = vector.shape_cast %8 : vector<1x8xf32> to vector<1x8xf32>
    %10 = vector.broadcast %9 : vector<1x8xf32> to vector<8x8xf32>
    %11 = arith.truncf %1 : vector<8x128xf32> to vector<8x128xbf16>
    %c0_6 = arith.constant 0 : index
    %c0_7 = arith.constant 0 : index
    %12 = vector.load %arg3[%c0_6, %c0_7] : memref<128x128xbf16, #tpu.memory_space<vmem>>, vector<128x128xbf16>
    %cst_8 = arith.constant dense<0.000000e+00> : vector<8x128xf32>
    %13 = tpu.matmul %11, %12, %cst_8 {dimension_numbers = #tpu.dot_dimension_numbers<[1], [0], [0], [1], [0, 0, 1, 1], [], []>} : vector<8x128xbf16>, vector<128x128xbf16>, vector<8x128xf32> -> vector<8x128xf32>
    %c0_9 = arith.constant 0 : index
    %c0_10 = arith.constant 0 : index
    %14 = vector.load %arg4[%c0_9, %c0_10] : memref<1x128xf32, #tpu.memory_space<vmem>>, vector<1x128xf32>
    %15 = vector.broadcast %14 : vector<1x128xf32> to vector<8x128xf32>
    %16 = arith.addf %13, %15 : vector<8x128xf32>
    %17 = arith.truncf %1 : vector<8x128xf32> to vector<8x128xbf16>
    %c0_11 = arith.constant 0 : index
    %c0_12 = arith.constant 0 : index
    %18 = vector.load %arg5[%c0_11, %c0_12] : memref<128x256xbf16, #tpu.memory_space<vmem>>, vector<128x256xbf16>
    %cst_13 = arith.constant dense<0.000000e+00> : vector<8x256xf32>
    %19 = tpu.matmul %17, %18, %cst_13 {dimension_numbers = #tpu.dot_dimension_numbers<[1], [0], [0], [1], [0, 0, 1, 1], [], []>} : vector<8x128xbf16>, vector<128x256xbf16>, vector<8x256xf32> -> vector<8x256xf32>
    %c0_14 = arith.constant 0 : index
    %c0_15 = arith.constant 0 : index
    %20 = vector.load %arg6[%c0_14, %c0_15] : memref<1x256xf32, #tpu.memory_space<vmem>>, vector<1x256xf32>
    %21 = vector.broadcast %20 : vector<1x256xf32> to vector<8x256xf32>
    %22 = arith.addf %19, %21 : vector<8x256xf32>
    %23 = vector.extract_strided_slice %22 {offsets = [0, 0], sizes = [8, 128], strides = [1, 1]} : vector<8x256xf32> to vector<8x128xf32>
    %24 = vector.extract_strided_slice %22 {offsets = [0, 128], sizes = [8, 128], strides = [1, 1]} : vector<8x256xf32> to vector<8x128xf32>
    %25 = arith.truncf %16 : vector<8x128xf32> to vector<8x128xbf16>
    %26 = arith.truncf %23 : vector<8x128xf32> to vector<8x128xbf16>
    %27 = arith.truncf %24 : vector<8x128xf32> to vector<8x128xbf16>
    %28 = vector.extract_strided_slice %25 {offsets = [0, 0], sizes = [8, 32], strides = [1, 1]} : vector<8x128xbf16> to vector<8x32xbf16>
    %29 = vector.extract_strided_slice %25 {offsets = [0, 32], sizes = [8, 32], strides = [1, 1]} : vector<8x128xbf16> to vector<8x32xbf16>
    %30 = vector.extract_strided_slice %25 {offsets = [0, 64], sizes = [8, 32], strides = [1, 1]} : vector<8x128xbf16> to vector<8x32xbf16>
    %31 = vector.extract_strided_slice %25 {offsets = [0, 96], sizes = [8, 32], strides = [1, 1]} : vector<8x128xbf16> to vector<8x32xbf16>
    %32 = vector.shape_cast %28 : vector<8x32xbf16> to vector<1x8x32xbf16>
    %33 = vector.shape_cast %29 : vector<8x32xbf16> to vector<1x8x32xbf16>
    %34 = vector.shape_cast %30 : vector<8x32xbf16> to vector<1x8x32xbf16>
    %35 = vector.shape_cast %31 : vector<8x32xbf16> to vector<1x8x32xbf16>
    %36 = tpu.concatenate %32, %33, %34, %35 in 0 : vector<1x8x32xbf16>, vector<1x8x32xbf16>, vector<1x8x32xbf16>, vector<1x8x32xbf16> -> vector<4x8x32xbf16>
    %37 = vector.extract_strided_slice %26 {offsets = [0, 0], sizes = [8, 32], strides = [1, 1]} : vector<8x128xbf16> to vector<8x32xbf16>
    %38 = vector.extract_strided_slice %26 {offsets = [0, 32], sizes = [8, 32], strides = [1, 1]} : vector<8x128xbf16> to vector<8x32xbf16>
    %39 = vector.extract_strided_slice %26 {offsets = [0, 64], sizes = [8, 32], strides = [1, 1]} : vector<8x128xbf16> to vector<8x32xbf16>
    %40 = vector.extract_strided_slice %26 {offsets = [0, 96], sizes = [8, 32], strides = [1, 1]} : vector<8x128xbf16> to vector<8x32xbf16>
    %41 = vector.shape_cast %37 : vector<8x32xbf16> to vector<1x8x32xbf16>
    %42 = vector.shape_cast %38 : vector<8x32xbf16> to vector<1x8x32xbf16>
    %43 = vector.shape_cast %39 : vector<8x32xbf16> to vector<1x8x32xbf16>
    %44 = vector.shape_cast %40 : vector<8x32xbf16> to vector<1x8x32xbf16>
    %45 = tpu.concatenate %41, %42, %43, %44 in 0 : vector<1x8x32xbf16>, vector<1x8x32xbf16>, vector<1x8x32xbf16>, vector<1x8x32xbf16> -> vector<4x8x32xbf16>
    %46 = vector.extract_strided_slice %27 {offsets = [0, 0], sizes = [8, 32], strides = [1, 1]} : vector<8x128xbf16> to vector<8x32xbf16>
    %47 = vector.extract_strided_slice %27 {offsets = [0, 32], sizes = [8, 32], strides = [1, 1]} : vector<8x128xbf16> to vector<8x32xbf16>
    %48 = vector.extract_strided_slice %27 {offsets = [0, 64], sizes = [8, 32], strides = [1, 1]} : vector<8x128xbf16> to vector<8x32xbf16>
    %49 = vector.extract_strided_slice %27 {offsets = [0, 96], sizes = [8, 32], strides = [1, 1]} : vector<8x128xbf16> to vector<8x32xbf16>
    %50 = vector.shape_cast %46 : vector<8x32xbf16> to vector<1x8x32xbf16>
    %51 = vector.shape_cast %47 : vector<8x32xbf16> to vector<1x8x32xbf16>
    %52 = vector.shape_cast %48 : vector<8x32xbf16> to vector<1x8x32xbf16>
    %53 = vector.shape_cast %49 : vector<8x32xbf16> to vector<1x8x32xbf16>
    %54 = tpu.concatenate %50, %51, %52, %53 in 0 : vector<1x8x32xbf16>, vector<1x8x32xbf16>, vector<1x8x32xbf16>, vector<1x8x32xbf16> -> vector<4x8x32xbf16>
    "tpu.trace_start"() <{level = 10 : i32, message = "hqd,hkd->hqk"}> : () -> ()
    %cst_16 = arith.constant dense<0.000000e+00> : vector<4x8x8xf32>
    %55 = tpu.matmul %36, %45, %cst_16 {dimension_numbers = #tpu.dot_dimension_numbers<[2], [2], [1], [1], [0, 0, 0, 1, 1, 1], [0], [0]>} : vector<4x8x32xbf16>, vector<4x8x32xbf16>, vector<4x8x8xf32> -> vector<4x8x8xf32>
    "tpu.trace_stop"() : () -> ()
    %cst_17 = arith.constant 0.353553385 : f32
    %56 = vector.broadcast %cst_17 : f32 to vector<4x8x8xf32>
    %57 = arith.mulf %55, %56 : vector<4x8x8xf32>
    %58 = vector.shape_cast %10 : vector<8x8xf32> to vector<1x8x8xf32>
    %59 = vector.broadcast %58 : vector<1x8x8xf32> to vector<4x8x8xf32>
    %60 = arith.addf %57, %59 : vector<4x8x8xf32>
    %cst_18 = arith.constant dense<0xFF800000> : vector<4x8xf32>
    %61 = vector.multi_reduction <maximumf>, %60, %cst_18 [2] : vector<4x8x8xf32> to vector<4x8xf32>
    %62 = vector.shape_cast %61 : vector<4x8xf32> to vector<4x8x1xf32>
    %63 = vector.broadcast %62 : vector<4x8x1xf32> to vector<4x8x8xf32>
    %64 = arith.subf %60, %63 : vector<4x8x8xf32>
    %65 = math.exp %64 : vector<4x8x8xf32>
    %cst_19 = arith.constant dense<0.000000e+00> : vector<4x8xf32>
    %66 = vector.multi_reduction <add>, %65, %cst_19 [2] : vector<4x8x8xf32> to vector<4x8xf32>
    %67 = vector.shape_cast %66 : vector<4x8xf32> to vector<4x8x1xf32>
    %68 = tpu.reciprocal %67 {approx = true} : vector<4x8x1xf32> -> vector<4x8x1xf32>
    %69 = vector.broadcast %68 : vector<4x8x1xf32> to vector<4x8x8xf32>
    %70 = arith.mulf %65, %69 : vector<4x8x8xf32>
    %71 = arith.truncf %70 : vector<4x8x8xf32> to vector<4x8x8xbf16>
    "tpu.trace_start"() <{level = 10 : i32, message = "hqk,hkd->hqd"}> : () -> ()
    %cst_20 = arith.constant dense<0.000000e+00> : vector<4x8x32xf32>
    %72 = tpu.matmul %71, %54, %cst_20 {dimension_numbers = #tpu.dot_dimension_numbers<[2], [1], [1], [2], [0, 0, 0, 1, 1, 2], [0], [0]>} : vector<4x8x8xbf16>, vector<4x8x32xbf16>, vector<4x8x32xf32> -> vector<4x8x32xf32>
    "tpu.trace_stop"() : () -> ()
    %73 = vector.extract_strided_slice %72 {offsets = [0, 0, 0], sizes = [1, 8, 32], strides = [1, 1, 1]} : vector<4x8x32xf32> to vector<1x8x32xf32>
    %74 = vector.shape_cast %73 : vector<1x8x32xf32> to vector<8x32xf32>
    %75 = vector.extract_strided_slice %72 {offsets = [1, 0, 0], sizes = [1, 8, 32], strides = [1, 1, 1]} : vector<4x8x32xf32> to vector<1x8x32xf32>
    %76 = vector.shape_cast %75 : vector<1x8x32xf32> to vector<8x32xf32>
    %77 = vector.extract_strided_slice %72 {offsets = [2, 0, 0], sizes = [1, 8, 32], strides = [1, 1, 1]} : vector<4x8x32xf32> to vector<1x8x32xf32>
    %78 = vector.shape_cast %77 : vector<1x8x32xf32> to vector<8x32xf32>
    %79 = vector.extract_strided_slice %72 {offsets = [3, 0, 0], sizes = [1, 8, 32], strides = [1, 1, 1]} : vector<4x8x32xf32> to vector<1x8x32xf32>
    %80 = vector.shape_cast %79 : vector<1x8x32xf32> to vector<8x32xf32>
    %81 = tpu.concatenate %74, %76, %78, %80 in 1 : vector<8x32xf32>, vector<8x32xf32>, vector<8x32xf32>, vector<8x32xf32> -> vector<8x128xf32>
    %82 = arith.truncf %81 : vector<8x128xf32> to vector<8x128xbf16>
    %c0_21 = arith.constant 0 : index
    %c0_22 = arith.constant 0 : index
    %83 = vector.load %arg7[%c0_21, %c0_22] : memref<128x128xbf16, #tpu.memory_space<vmem>>, vector<128x128xbf16>
    %cst_23 = arith.constant dense<0.000000e+00> : vector<8x128xf32>
    %84 = tpu.matmul %82, %83, %cst_23 {dimension_numbers = #tpu.dot_dimension_numbers<[1], [0], [0], [1], [0, 0, 1, 1], [], []>} : vector<8x128xbf16>, vector<128x128xbf16>, vector<8x128xf32> -> vector<8x128xf32>
    %c0_24 = arith.constant 0 : index
    %c0_25 = arith.constant 0 : index
    %85 = vector.load %arg8[%c0_24, %c0_25] : memref<1x128xf32, #tpu.memory_space<vmem>>, vector<1x128xf32>
    %86 = vector.broadcast %85 : vector<1x128xf32> to vector<8x128xf32>
    %87 = arith.addf %84, %86 : vector<8x128xf32>
    %88 = arith.addf %87, %1 : vector<8x128xf32>
    %c0_26 = arith.constant 0 : index
    %c0_27 = arith.constant 0 : index
    %89 = vector.load %arg9[%c0_26, %c0_27] : memref<1x128xf32, #tpu.memory_space<vmem>>, vector<1x128xf32>
    %c0_28 = arith.constant 0 : index
    %c0_29 = arith.constant 0 : index
    %90 = vector.load %arg10[%c0_28, %c0_29] : memref<1x128xf32, #tpu.memory_space<vmem>>, vector<1x128xf32>
    %cst_30 = arith.constant dense<0.000000e+00> : vector<8xf32>
    %91 = vector.multi_reduction <add>, %88, %cst_30 [1] : vector<8x128xf32> to vector<8xf32>
    %92 = vector.shape_cast %91 : vector<8xf32> to vector<8x1xf32>
    %cst_31 = arith.constant 3.125000e-02 : f32
    %93 = vector.broadcast %cst_31 : f32 to vector<8x1xf32>
    %94 = arith.mulf %92, %93 : vector<8x1xf32>
    %95 = arith.mulf %88, %88 : vector<8x128xf32>
    %cst_32 = arith.constant dense<0.000000e+00> : vector<8xf32>
    %96 = vector.multi_reduction <add>, %95, %cst_32 [1] : vector<8x128xf32> to vector<8xf32>
    %97 = vector.shape_cast %96 : vector<8xf32> to vector<8x1xf32>
    %cst_33 = arith.constant 3.125000e-02 : f32
    %98 = vector.broadcast %cst_33 : f32 to vector<8x1xf32>
    %99 = arith.mulf %97, %98 : vector<8x1xf32>
    %100 = arith.mulf %94, %94 : vector<8x1xf32>
    %101 = arith.subf %99, %100 : vector<8x1xf32>
    %cst_34 = arith.constant 0.000000e+00 : f32
    %102 = vector.broadcast %cst_34 : f32 to vector<8x1xf32>
    %103 = arith.maximumf %101, %102 : vector<8x1xf32>
    %104 = vector.broadcast %94 : vector<8x1xf32> to vector<8x128xf32>
    %105 = arith.subf %88, %104 : vector<8x128xf32>
    %cst_35 = arith.constant 9.99999974E-6 : f32
    %106 = vector.broadcast %cst_35 : f32 to vector<8x1xf32>
    %107 = arith.addf %103, %106 : vector<8x1xf32>
    %108 = math.rsqrt %107 : vector<8x1xf32>
    %109 = vector.broadcast %108 : vector<8x1xf32> to vector<8x128xf32>
    %110 = arith.mulf %105, %109 : vector<8x128xf32>
    %111 = vector.broadcast %89 : vector<1x128xf32> to vector<8x128xf32>
    %112 = arith.mulf %110, %111 : vector<8x128xf32>
    %113 = vector.broadcast %90 : vector<1x128xf32> to vector<8x128xf32>
    %114 = arith.addf %112, %113 : vector<8x128xf32>
    %115 = arith.truncf %114 : vector<8x128xf32> to vector<8x128xbf16>
    %c0_36 = arith.constant 0 : index
    %c0_37 = arith.constant 0 : index
    %116 = vector.load %arg11[%c0_36, %c0_37] : memref<128x128xbf16, #tpu.memory_space<vmem>>, vector<128x128xbf16>
    %cst_38 = arith.constant dense<0.000000e+00> : vector<8x128xf32>
    %117 = tpu.matmul %115, %116, %cst_38 {dimension_numbers = #tpu.dot_dimension_numbers<[1], [0], [0], [1], [0, 0, 1, 1], [], []>} : vector<8x128xbf16>, vector<128x128xbf16>, vector<8x128xf32> -> vector<8x128xf32>
    %c0_39 = arith.constant 0 : index
    %c0_40 = arith.constant 0 : index
    %118 = vector.load %arg12[%c0_39, %c0_40] : memref<1x128xf32, #tpu.memory_space<vmem>>, vector<1x128xf32>
    %119 = vector.broadcast %118 : vector<1x128xf32> to vector<8x128xf32>
    %120 = arith.addf %117, %119 : vector<8x128xf32>
    %cst_41 = arith.constant 0.000000e+00 : f32
    %121 = vector.broadcast %cst_41 : f32 to vector<8x128xf32>
    %122 = arith.maximumf %120, %121 : vector<8x128xf32>
    %123 = arith.truncf %122 : vector<8x128xf32> to vector<8x128xbf16>
    %c0_42 = arith.constant 0 : index
    %c0_43 = arith.constant 0 : index
    %124 = vector.load %arg13[%c0_42, %c0_43] : memref<128x128xbf16, #tpu.memory_space<vmem>>, vector<128x128xbf16>
    %cst_44 = arith.constant dense<0.000000e+00> : vector<8x128xf32>
    %125 = tpu.matmul %123, %124, %cst_44 {dimension_numbers = #tpu.dot_dimension_numbers<[1], [0], [0], [1], [0, 0, 1, 1], [], []>} : vector<8x128xbf16>, vector<128x128xbf16>, vector<8x128xf32> -> vector<8x128xf32>
    %c0_45 = arith.constant 0 : index
    %c0_46 = arith.constant 0 : index
    %126 = vector.load %arg14[%c0_45, %c0_46] : memref<1x128xf32, #tpu.memory_space<vmem>>, vector<1x128xf32>
    %127 = vector.broadcast %126 : vector<1x128xf32> to vector<8x128xf32>
    %128 = arith.addf %125, %127 : vector<8x128xf32>
    %129 = arith.addf %128, %114 : vector<8x128xf32>
    %c0_47 = arith.constant 0 : index
    %c0_48 = arith.constant 0 : index
    %130 = vector.load %arg15[%c0_47, %c0_48] : memref<1x128xf32, #tpu.memory_space<vmem>>, vector<1x128xf32>
    %c0_49 = arith.constant 0 : index
    %c0_50 = arith.constant 0 : index
    %131 = vector.load %arg16[%c0_49, %c0_50] : memref<1x128xf32, #tpu.memory_space<vmem>>, vector<1x128xf32>
    %cst_51 = arith.constant dense<0.000000e+00> : vector<8xf32>
    %132 = vector.multi_reduction <add>, %129, %cst_51 [1] : vector<8x128xf32> to vector<8xf32>
    %133 = vector.shape_cast %132 : vector<8xf32> to vector<8x1xf32>
    %cst_52 = arith.constant 3.125000e-02 : f32
    %134 = vector.broadcast %cst_52 : f32 to vector<8x1xf32>
    %135 = arith.mulf %133, %134 : vector<8x1xf32>
    %136 = arith.mulf %129, %129 : vector<8x128xf32>
    %cst_53 = arith.constant dense<0.000000e+00> : vector<8xf32>
    %137 = vector.multi_reduction <add>, %136, %cst_53 [1] : vector<8x128xf32> to vector<8xf32>
    %138 = vector.shape_cast %137 : vector<8xf32> to vector<8x1xf32>
    %cst_54 = arith.constant 3.125000e-02 : f32
    %139 = vector.broadcast %cst_54 : f32 to vector<8x1xf32>
    %140 = arith.mulf %138, %139 : vector<8x1xf32>
    %141 = arith.mulf %135, %135 : vector<8x1xf32>
    %142 = arith.subf %140, %141 : vector<8x1xf32>
    %cst_55 = arith.constant 0.000000e+00 : f32
    %143 = vector.broadcast %cst_55 : f32 to vector<8x1xf32>
    %144 = arith.maximumf %142, %143 : vector<8x1xf32>
    %145 = vector.broadcast %135 : vector<8x1xf32> to vector<8x128xf32>
    %146 = arith.subf %129, %145 : vector<8x128xf32>
    %cst_56 = arith.constant 9.99999974E-6 : f32
    %147 = vector.broadcast %cst_56 : f32 to vector<8x1xf32>
    %148 = arith.addf %144, %147 : vector<8x1xf32>
    %149 = math.rsqrt %148 : vector<8x1xf32>
    %150 = vector.broadcast %149 : vector<8x1xf32> to vector<8x128xf32>
    %151 = arith.mulf %146, %150 : vector<8x128xf32>
    %152 = vector.broadcast %130 : vector<1x128xf32> to vector<8x128xf32>
    %153 = arith.mulf %151, %152 : vector<8x128xf32>
    %154 = vector.broadcast %131 : vector<1x128xf32> to vector<8x128xf32>
    %155 = arith.addf %153, %154 : vector<8x128xf32>
    %c0_57 = arith.constant 0 : index
    %c0_58 = arith.constant 0 : index
    %c0_59 = arith.constant 0 : index
    %156 = vector.load %arg17[%c0_57, %c0_58, %c0_59] : memref<1x8x128xf32, #tpu.memory_space<vmem>>, vector<1x8x128xf32>
    %157 = vector.shape_cast %156 : vector<1x8x128xf32> to vector<8x128xf32>
    %158 = vector.shape_cast %155 : vector<8x128xf32> to vector<1x8x128xf32>
    tpu.vector_store %arg17[%c0_57, %c0_58, %c0_59], %158 {strides = array<i32>} : memref<1x8x128xf32, #tpu.memory_space<vmem>>, vector<1x8x128xf32>,
    return
  }
  func.func @transform_0(%arg0: i32) -> (i32, i32, i32) {
    %c0_i32 = arith.constant 0 : i32
    %c0_i32_0 = arith.constant 0 : i32
    %c0_i32_1 = arith.constant 0 : i32
    return %arg0, %c0_i32, %c0_i32_0 : i32, i32, i32
  }
  func.func @transform_1(%arg0: i32) -> (i32, i32, i32) {
    %c0_i32 = arith.constant 0 : i32
    %c0_i32_0 = arith.constant 0 : i32
    %c0_i32_1 = arith.constant 0 : i32
    return %arg0, %c0_i32, %c0_i32_0 : i32, i32, i32
  }
  func.func @transform_2(%arg0: i32) -> (i32, i32) {
    %c0_i32 = arith.constant 0 : i32
    %c0_i32_0 = arith.constant 0 : i32
    %c0_i32_1 = arith.constant 0 : i32
    return %c0_i32, %c0_i32_0 : i32, i32
  }
  func.func @transform_3(%arg0: i32) -> (i32, i32) {
    %c0_i32 = arith.constant 0 : i32
    %c0_i32_0 = arith.constant 0 : i32
    %c0_i32_1 = arith.constant 0 : i32
    return %c0_i32, %c0_i32_0 : i32, i32
  }
  func.func @transform_4(%arg0: i32) -> (i32, i32) {
    %c0_i32 = arith.constant 0 : i32
    %c0_i32_0 = arith.constant 0 : i32
    %c0_i32_1 = arith.constant 0 : i32
    return %c0_i32, %c0_i32_0 : i32, i32
  }
  func.func @transform_5(%arg0: i32) -> (i32, i32) {
    %c0_i32 = arith.constant 0 : i32
    %c0_i32_0 = arith.constant 0 : i32
    %c0_i32_1 = arith.constant 0 : i32
    return %c0_i32, %c0_i32_0 : i32, i32
  }
  func.func @transform_6(%arg0: i32) -> (i32, i32) {
    %c0_i32 = arith.constant 0 : i32
    %c0_i32_0 = arith.constant 0 : i32
    %c0_i32_1 = arith.constant 0 : i32
    return %c0_i32, %c0_i32_0 : i32, i32
  }
  func.func @transform_7(%arg0: i32) -> (i32, i32) {
    %c0_i32 = arith.constant 0 : i32
    %c0_i32_0 = arith.constant 0 : i32
    %c0_i32_1 = arith.constant 0 : i32
    return %c0_i32, %c0_i32_0 : i32, i32
  }
  func.func @transform_8(%arg0: i32) -> (i32, i32) {
    %c0_i32 = arith.constant 0 : i32
    %c0_i32_0 = arith.constant 0 : i32
    %c0_i32_1 = arith.constant 0 : i32
    return %c0_i32, %c0_i32_0 : i32, i32
  }
  func.func @transform_9(%arg0: i32) -> (i32, i32) {
    %c0_i32 = arith.constant 0 : i32
    %c0_i32_0 = arith.constant 0 : i32
    %c0_i32_1 = arith.constant 0 : i32
    return %c0_i32, %c0_i32_0 : i32, i32
  }
  func.func @transform_10(%arg0: i32) -> (i32, i32) {
    %c0_i32 = arith.constant 0 : i32
    %c0_i32_0 = arith.constant 0 : i32
    %c0_i32_1 = arith.constant 0 : i32
    return %c0_i32, %c0_i32_0 : i32, i32
  }
  func.func @transform_11(%arg0: i32) -> (i32, i32) {
    %c0_i32 = arith.constant 0 : i32
    %c0_i32_0 = arith.constant 0 : i32
    %c0_i32_1 = arith.constant 0 : i32
    return %c0_i32, %c0_i32_0 : i32, i32
  }
  func.func @transform_12(%arg0: i32) -> (i32, i32) {
    %c0_i32 = arith.constant 0 : i32
    %c0_i32_0 = arith.constant 0 : i32
    %c0_i32_1 = arith.constant 0 : i32
    return %c0_i32, %c0_i32_0 : i32, i32
  }
  func.func @transform_13(%arg0: i32) -> (i32, i32) {
    %c0_i32 = arith.constant 0 : i32
    %c0_i32_0 = arith.constant 0 : i32
    %c0_i32_1 = arith.constant 0 : i32
    return %c0_i32, %c0_i32_0 : i32, i32
  }
  func.func @transform_14(%arg0: i32) -> (i32, i32) {
    %c0_i32 = arith.constant 0 : i32
    %c0_i32_0 = arith.constant 0 : i32
    %c0_i32_1 = arith.constant 0 : i32
    return %c0_i32, %c0_i32_0 : i32, i32
  }
  func.func @transform_15(%arg0: i32) -> (i32, i32) {
    %c0_i32 = arith.constant 0 : i32
    %c0_i32_0 = arith.constant 0 : i32
    %c0_i32_1 = arith.constant 0 : i32
    return %c0_i32, %c0_i32_0 : i32, i32
  }
  func.func @transform_16(%arg0: i32) -> (i32, i32, i32) {
    %c0_i32 = arith.constant 0 : i32
    %c0_i32_0 = arith.constant 0 : i32
    %c0_i32_1 = arith.constant 0 : i32
    return %arg0, %c0_i32, %c0_i32_0 : i32, i32, i32
  }
}

module attributes {stable_mosaic.version = 11 : i64} {
  func.func @_encoder_layer_kernel(%arg0: i32, %arg1: memref<1x8x128xf32, #tpu.memory_space<vmem>>, %arg2: memref<1x1x8xi8, #tpu.memory_space<vmem>>, %arg3: memref<128x128xbf16, #tpu.memory_space<vmem>>, %arg4: memref<1x128xf32, #tpu.memory_space<vmem>>, %arg5: memref<128x256xbf16, #tpu.memory_space<vmem>>, %arg6: memref<1x256xf32, #tpu.memory_space<vmem>>, %arg7: memref<128x128xbf16, #tpu.memory_space<vmem>>, %arg8: memref<1x128xf32, #tpu.memory_space<vmem>>, %arg9: memref<1x128xf32, #tpu.memory_space<vmem>>, %arg10: memref<1x128xf32, #tpu.memory_space<vmem>>, %arg11: memref<128x128xbf16, #tpu.memory_space<vmem>>, %arg12: memref<1x128xf32, #tpu.memory_space<vmem>>, %arg13: memref<128x128xbf16, #tpu.memory_space<vmem>>, %arg14: memref<1x128xf32, #tpu.memory_space<vmem>>, %arg15: memref<1x128xf32, #tpu.memory_space<vmem>>, %arg16: memref<1x128xf32, #tpu.memory_space<vmem>>, %arg17: memref<1x8x128xf32, #tpu.memory_space<vmem>>) attributes {dimension_semantics = [#tpu.dimension_semantics<parallel>], iteration_bounds = array<i64: 2>, scalar_prefetch = 0 : i64, scratch_operands = 0 : i64, tpu.core_type = #tpu.core_type<tc>, window_params = [{transform_indices = @transform_0, window_bounds = array<i64: 1, 8, 128>}, {transform_indices = @transform_1, window_bounds = array<i64: 1, 1, 8>}, {pipeline_mode = #tpu.pipeline_mode<synchronous>, transform_indices = @transform_2, window_bounds = array<i64: 128, 128>}, {pipeline_mode = #tpu.pipeline_mode<synchronous>, transform_indices = @transform_3, window_bounds = array<i64: 1, 128>}, {pipeline_mode = #tpu.pipeline_mode<synchronous>, transform_indices = @transform_4, window_bounds = array<i64: 128, 256>}, {pipeline_mode = #tpu.pipeline_mode<synchronous>, transform_indices = @transform_5, window_bounds = array<i64: 1, 256>}, {pipeline_mode = #tpu.pipeline_mode<synchronous>, transform_indices = @transform_6, window_bounds = array<i64: 128, 128>}, {pipeline_mode = #tpu.pipeline_mode<synchronous>, transform_indices = @transform_7, window_bounds = array<i64: 1, 128>}, {pipeline_mode = #tpu.pipeline_mode<synchronous>, transform_indices = @transform_8, window_bounds = array<i64: 1, 128>}, {pipeline_mode = #tpu.pipeline_mode<synchronous>, transform_indices = @transform_9, window_bounds = array<i64: 1, 128>}, {pipeline_mode = #tpu.pipeline_mode<synchronous>, transform_indices = @transform_10, window_bounds = array<i64: 128, 128>}, {pipeline_mode = #tpu.pipeline_mode<synchronous>, transform_indices = @transform_11, window_bounds = array<i64: 1, 128>}, {pipeline_mode = #tpu.pipeline_mode<synchronous>, transform_indices = @transform_12, window_bounds = array<i64: 128, 128>}, {pipeline_mode = #tpu.pipeline_mode<synchronous>, transform_indices = @transform_13, window_bounds = array<i64: 1, 128>}, {pipeline_mode = #tpu.pipeline_mode<synchronous>, transform_indices = @transform_14, window_bounds = array<i64: 1, 128>}, {pipeline_mode = #tpu.pipeline_mode<synchronous>, transform_indices = @transform_15, window_bounds = array<i64: 1, 128>}, {transform_indices = @transform_16, window_bounds = array<i64: 1, 8, 128>}]} {
    %c0 = arith.constant 0 : index
    %c0_0 = arith.constant 0 : index
    %c0_1 = arith.constant 0 : index
    %0 = vector.load %arg1[%c0, %c0_0, %c0_1] : memref<1x8x128xf32, #tpu.memory_space<vmem>>, vector<1x8x128xf32>
    %1 = vector.shape_cast %0 : vector<1x8x128xf32> to vector<8x128xf32>
    %c0_2 = arith.constant 0 : index
    %c0_3 = arith.constant 0 : index
    %c0_4 = arith.constant 0 : index
    %2 = vector.load %arg2[%c0_2, %c0_3, %c0_4] : memref<1x1x8xi8, #tpu.memory_space<vmem>>, vector<1x1x8xi8>
    %3 = vector.shape_cast %2 : vector<1x1x8xi8> to vector<1x8xi8>
    %4 = arith.sitofp %3 : vector<1x8xi8> to vector<1x8xf32>
    %cst = arith.constant 1.000000e+00 : f32
    %5 = vector.broadcast %cst : f32 to vector<1x8xf32>
    %6 = arith.subf %5, %4 : vector<1x8xf32>
    %cst_5 = arith.constant -1.000000e+09 : f32
    %7 = vector.broadcast %cst_5 : f32 to vector<1x8xf32>
    %8 = arith.mulf %6, %7 : vector<1x8xf32>
    %9 = vector.shape_cast %8 : vector<1x8xf32> to vector<1x8xf32>
    %10 = vector.broadcast %9 : vector<1x8xf32> to vector<8x8xf32>
    %11 = arith.truncf %1 : vector<8x128xf32> to vector<8x128xbf16>
    %c0_6 = arith.constant 0 : index
    %c0_7 = arith.constant 0 : index
    %12 = vector.load %arg3[%c0_6, %c0_7] : memref<128x128xbf16, #tpu.memory_space<vmem>>, vector<128x128xbf16>
    %cst_8 = arith.constant dense<0.000000e+00> : vector<8x128xf32>
    %13 = tpu.matmul %11, %12, %cst_8 {dimension_numbers = #tpu.dot_dimension_numbers<[1], [0], [0], [1], [0, 0, 1, 1], [], []>} : vector<8x128xbf16>, vector<128x128xbf16>, vector<8x128xf32> -> vector<8x128xf32>
    %c0_9 = arith.constant 0 : index
    %c0_10 = arith.constant 0 : index
    %14 = vector.load %arg4[%c0_9, %c0_10] : memref<1x128xf32, #tpu.memory_space<vmem>>, vector<1x128xf32>
    %15 = vector.broadcast %14 : vector<1x128xf32> to vector<8x128xf32>
    %16 = arith.addf %13, %15 : vector<8x128xf32>
    %17 = arith.truncf %1 : vector<8x128xf32> to vector<8x128xbf16>
    %c0_11 = arith.constant 0 : index
    %c0_12 = arith.constant 0 : index
    %18 = vector.load %arg5[%c0_11, %c0_12] : memref<128x256xbf16, #tpu.memory_space<vmem>>, vector<128x256xbf16>
    %cst_13 = arith.constant dense<0.000000e+00> : vector<8x256xf32>
    %19 = tpu.matmul %17, %18, %cst_13 {dimension_numbers = #tpu.dot_dimension_numbers<[1], [0], [0], [1], [0, 0, 1, 1], [], []>} : vector<8x128xbf16>, vector<128x256xbf16>, vector<8x256xf32> -> vector<8x256xf32>
    %c0_14 = arith.constant 0 : index
    %c0_15 = arith.constant 0 : index
    %20 = vector.load %arg6[%c0_14, %c0_15] : memref<1x256xf32, #tpu.memory_space<vmem>>, vector<1x256xf32>
    %21 = vector.broadcast %20 : vector<1x256xf32> to vector<8x256xf32>
    %22 = arith.addf %19, %21 : vector<8x256xf32>
    %23 = vector.extract_strided_slice %22 {offsets = [0, 0], sizes = [8, 128], strides = [1, 1]} : vector<8x256xf32> to vector<8x128xf32>
    %24 = vector.extract_strided_slice %22 {offsets = [0, 128], sizes = [8, 128], strides = [1, 1]} : vector<8x256xf32> to vector<8x128xf32>
    %25 = arith.truncf %16 : vector<8x128xf32> to vector<8x128xbf16>
    %26 = arith.truncf %23 : vector<8x128xf32> to vector<8x128xbf16>
    %27 = arith.truncf %24 : vector<8x128xf32> to vector<8x128xbf16>
    %28 = vector.extract_strided_slice %25 {offsets = [0, 0], sizes = [8, 32], strides = [1, 1]} : vector<8x128xbf16> to vector<8x32xbf16>
    %29 = vector.extract_strided_slice %25 {offsets = [0, 32], sizes = [8, 32], strides = [1, 1]} : vector<8x128xbf16> to vector<8x32xbf16>
    %30 = vector.extract_strided_slice %25 {offsets = [0, 64], sizes = [8, 32], strides = [1, 1]} : vector<8x128xbf16> to vector<8x32xbf16>
    %31 = vector.extract_strided_slice %25 {offsets = [0, 96], sizes = [8, 32], strides = [1, 1]} : vector<8x128xbf16> to vector<8x32xbf16>
    %32 = vector.shape_cast %28 : vector<8x32xbf16> to vector<1x8x32xbf16>
    %33 = vector.shape_cast %29 : vector<8x32xbf16> to vector<1x8x32xbf16>
    %34 = vector.shape_cast %30 : vector<8x32xbf16> to vector<1x8x32xbf16>
    %35 = vector.shape_cast %31 : vector<8x32xbf16> to vector<1x8x32xbf16>
    %36 = tpu.concatenate %32, %33, %34, %35 in 0 : vector<1x8x32xbf16>, vector<1x8x32xbf16>, vector<1x8x32xbf16>, vector<1x8x32xbf16> -> vector<4x8x32xbf16>
    %37 = vector.extract_strided_slice %26 {offsets = [0, 0], sizes = [8, 32], strides = [1, 1]} : vector<8x128xbf16> to vector<8x32xbf16>
    %38 = vector.extract_strided_slice %26 {offsets = [0, 32], sizes = [8, 32], strides = [1, 1]} : vector<8x128xbf16> to vector<8x32xbf16>
    %39 = vector.extract_strided_slice %26 {offsets = [0, 64], sizes = [8, 32], strides = [1, 1]} : vector<8x128xbf16> to vector<8x32xbf16>
    %40 = vector.extract_strided_slice %26 {offsets = [0, 96], sizes = [8, 32], strides = [1, 1]} : vector<8x128xbf16> to vector<8x32xbf16>
    %41 = vector.shape_cast %37 : vector<8x32xbf16> to vector<1x8x32xbf16>
    %42 = vector.shape_cast %38 : vector<8x32xbf16> to vector<1x8x32xbf16>
    %43 = vector.shape_cast %39 : vector<8x32xbf16> to vector<1x8x32xbf16>
    %44 = vector.shape_cast %40 : vector<8x32xbf16> to vector<1x8x32xbf16>
    %45 = tpu.concatenate %41, %42, %43, %44 in 0 : vector<1x8x32xbf16>, vector<1x8x32xbf16>, vector<1x8x32xbf16>, vector<1x8x32xbf16> -> vector<4x8x32xbf16>
    %46 = vector.extract_strided_slice %27 {offsets = [0, 0], sizes = [8, 32], strides = [1, 1]} : vector<8x128xbf16> to vector<8x32xbf16>
    %47 = vector.extract_strided_slice %27 {offsets = [0, 32], sizes = [8, 32], strides = [1, 1]} : vector<8x128xbf16> to vector<8x32xbf16>
    %48 = vector.extract_strided_slice %27 {offsets = [0, 64], sizes = [8, 32], strides = [1, 1]} : vector<8x128xbf16> to vector<8x32xbf16>
    %49 = vector.extract_strided_slice %27 {offsets = [0, 96], sizes = [8, 32], strides = [1, 1]} : vector<8x128xbf16> to vector<8x32xbf16>
    %50 = vector.shape_cast %46 : vector<8x32xbf16> to vector<1x8x32xbf16>
    %51 = vector.shape_cast %47 : vector<8x32xbf16> to vector<1x8x32xbf16>
    %52 = vector.shape_cast %48 : vector<8x32xbf16> to vector<1x8x32xbf16>
    %53 = vector.shape_cast %49 : vector<8x32xbf16> to vector<1x8x32xbf16>
    %54 = tpu.concatenate %50, %51, %52, %53 in 0 : vector<1x8x32xbf16>, vector<1x8x32xbf16>, vector<1x8x32xbf16>, vector<1x8x32xbf16> -> vector<4x8x32xbf16>
    "tpu.trace_start"() <{level = 10 : i32, message = "hqd,hkd->hqk"}> : () -> ()
    %cst_16 = arith.constant dense<0.000000e+00> : vector<4x8x8xf32>
    %55 = tpu.matmul %36, %45, %cst_16 {dimension_numbers = #tpu.dot_dimension_numbers<[2], [2], [1], [1], [0, 0, 0, 1, 1, 1], [0], [0]>} : vector<4x8x32xbf16>, vector<4x8x32xbf16>, vector<4x8x8xf32> -> vector<4x8x8xf32>
    "tpu.trace_stop"() : () -> ()
    %cst_17 = arith.constant 0.353553385 : f32
    %56 = vector.broadcast %cst_17 : f32 to vector<4x8x8xf32>
    %57 = arith.mulf %55, %56 : vector<4x8x8xf32>
    %58 = vector.shape_cast %10 : vector<8x8xf32> to vector<1x8x8xf32>
    %59 = vector.broadcast %58 : vector<1x8x8xf32> to vector<4x8x8xf32>
    %60 = arith.addf %57, %59 : vector<4x8x8xf32>
    %cst_18 = arith.constant dense<0xFF800000> : vector<4x8xf32>
    %61 = vector.multi_reduction <maximumf>, %60, %cst_18 [2] : vector<4x8x8xf32> to vector<4x8xf32>
    %62 = vector.shape_cast %61 : vector<4x8xf32> to vector<4x8x1xf32>
    %63 = vector.broadcast %62 : vector<4x8x1xf32> to vector<4x8x8xf32>
    %64 = arith.subf %60, %63 : vector<4x8x8xf32>
    %65 = math.exp %64 : vector<4x8x8xf32>
    %cst_19 = arith.constant dense<0.000000e+00> : vector<4x8xf32>
    %66 = vector.multi_reduction <add>, %65, %cst_19 [2] : vector<4x8x8xf32> to vector<4x8xf32>
    %67 = vector.shape_cast %66 : vector<4x8xf32> to vector<4x8x1xf32>
    %68 = tpu.reciprocal %67 {approx = true} : vector<4x8x1xf32> -> vector<4x8x1xf32>
    %69 = vector.broadcast %68 : vector<4x8x1xf32> to vector<4x8x8xf32>
    %70 = arith.mulf %65, %69 : vector<4x8x8xf32>
    %71 = arith.truncf %70 : vector<4x8x8xf32> to vector<4x8x8xbf16>
    "tpu.trace_start"() <{level = 10 : i32, message = "hqk,hkd->hqd"}> : () -> ()
    %cst_20 = arith.constant dense<0.000000e+00> : vector<4x8x32xf32>
    %72 = tpu.matmul %71, %54, %cst_20 {dimension_numbers = #tpu.dot_dimension_numbers<[2], [1], [1], [2], [0, 0, 0, 1, 1, 2], [0], [0]>} : vector<4x8x8xbf16>, vector<4x8x32xbf16>, vector<4x8x32xf32> -> vector<4x8x32xf32>
    "tpu.trace_stop"() : () -> ()
    %73 = vector.extract_strided_slice %72 {offsets = [0, 0, 0], sizes = [1, 8, 32], strides = [1, 1, 1]} : vector<4x8x32xf32> to vector<1x8x32xf32>
    %74 = vector.shape_cast %73 : vector<1x8x32xf32> to vector<8x32xf32>
    %75 = vector.extract_strided_slice %72 {offsets = [1, 0, 0], sizes = [1, 8, 32], strides = [1, 1, 1]} : vector<4x8x32xf32> to vector<1x8x32xf32>
    %76 = vector.shape_cast %75 : vector<1x8x32xf32> to vector<8x32xf32>
    %77 = vector.extract_strided_slice %72 {offsets = [2, 0, 0], sizes = [1, 8, 32], strides = [1, 1, 1]} : vector<4x8x32xf32> to vector<1x8x32xf32>
    %78 = vector.shape_cast %77 : vector<1x8x32xf32> to vector<8x32xf32>
    %79 = vector.extract_strided_slice %72 {offsets = [3, 0, 0], sizes = [1, 8, 32], strides = [1, 1, 1]} : vector<4x8x32xf32> to vector<1x8x32xf32>
    %80 = vector.shape_cast %79 : vector<1x8x32xf32> to vector<8x32xf32>
    %81 = tpu.concatenate %74, %76, %78, %80 in 1 : vector<8x32xf32>, vector<8x32xf32>, vector<8x32xf32>, vector<8x32xf32> -> vector<8x128xf32>
    %82 = arith.truncf %81 : vector<8x128xf32> to vector<8x128xbf16>
    %c0_21 = arith.constant 0 : index
    %c0_22 = arith.constant 0 : index
    %83 = vector.load %arg7[%c0_21, %c0_22] : memref<128x128xbf16, #tpu.memory_space<vmem>>, vector<128x128xbf16>
    %cst_23 = arith.constant dense<0.000000e+00> : vector<8x128xf32>
    %84 = tpu.matmul %82, %83, %cst_23 {dimension_numbers = #tpu.dot_dimension_numbers<[1], [0], [0], [1], [0, 0, 1, 1], [], []>} : vector<8x128xbf16>, vector<128x128xbf16>, vector<8x128xf32> -> vector<8x128xf32>
    %c0_24 = arith.constant 0 : index
    %c0_25 = arith.constant 0 : index
    %85 = vector.load %arg8[%c0_24, %c0_25] : memref<1x128xf32, #tpu.memory_space<vmem>>, vector<1x128xf32>
    %86 = vector.broadcast %85 : vector<1x128xf32> to vector<8x128xf32>
    %87 = arith.addf %84, %86 : vector<8x128xf32>
    %88 = arith.addf %87, %1 : vector<8x128xf32>
    %c0_26 = arith.constant 0 : index
    %c0_27 = arith.constant 0 : index
    %89 = vector.load %arg9[%c0_26, %c0_27] : memref<1x128xf32, #tpu.memory_space<vmem>>, vector<1x128xf32>
    %c0_28 = arith.constant 0 : index
    %c0_29 = arith.constant 0 : index
    %90 = vector.load %arg10[%c0_28, %c0_29] : memref<1x128xf32, #tpu.memory_space<vmem>>, vector<1x128xf32>
    %cst_30 = arith.constant dense<0.000000e+00> : vector<8xf32>
    %91 = vector.multi_reduction <add>, %88, %cst_30 [1] : vector<8x128xf32> to vector<8xf32>
    %92 = vector.shape_cast %91 : vector<8xf32> to vector<8x1xf32>
    %cst_31 = arith.constant 3.125000e-02 : f32
    %93 = vector.broadcast %cst_31 : f32 to vector<8x1xf32>
    %94 = arith.mulf %92, %93 : vector<8x1xf32>
    %95 = arith.mulf %88, %88 : vector<8x128xf32>
    %cst_32 = arith.constant dense<0.000000e+00> : vector<8xf32>
    %96 = vector.multi_reduction <add>, %95, %cst_32 [1] : vector<8x128xf32> to vector<8xf32>
    %97 = vector.shape_cast %96 : vector<8xf32> to vector<8x1xf32>
    %cst_33 = arith.constant 3.125000e-02 : f32
    %98 = vector.broadcast %cst_33 : f32 to vector<8x1xf32>
    %99 = arith.mulf %97, %98 : vector<8x1xf32>
    %100 = arith.mulf %94, %94 : vector<8x1xf32>
    %101 = arith.subf %99, %100 : vector<8x1xf32>
    %cst_34 = arith.constant 0.000000e+00 : f32
    %102 = vector.broadcast %cst_34 : f32 to vector<8x1xf32>
    %103 = arith.maximumf %101, %102 : vector<8x1xf32>
    %104 = vector.broadcast %94 : vector<8x1xf32> to vector<8x128xf32>
    %105 = arith.subf %88, %104 : vector<8x128xf32>
    %cst_35 = arith.constant 9.99999974E-6 : f32
    %106 = vector.broadcast %cst_35 : f32 to vector<8x1xf32>
    %107 = arith.addf %103, %106 : vector<8x1xf32>
    %108 = math.rsqrt %107 : vector<8x1xf32>
    %109 = vector.broadcast %108 : vector<8x1xf32> to vector<8x128xf32>
    %110 = arith.mulf %105, %109 : vector<8x128xf32>
    %111 = vector.broadcast %89 : vector<1x128xf32> to vector<8x128xf32>
    %112 = arith.mulf %110, %111 : vector<8x128xf32>
    %113 = vector.broadcast %90 : vector<1x128xf32> to vector<8x128xf32>
    %114 = arith.addf %112, %113 : vector<8x128xf32>
    %115 = arith.truncf %114 : vector<8x128xf32> to vector<8x128xbf16>
    %c0_36 = arith.constant 0 : index
    %c0_37 = arith.constant 0 : index
    %116 = vector.load %arg11[%c0_36, %c0_37] : memref<128x128xbf16, #tpu.memory_space<vmem>>, vector<128x128xbf16>
    %cst_38 = arith.constant dense<0.000000e+00> : vector<8x128xf32>
    %117 = tpu.matmul %115, %116, %cst_38 {dimension_numbers = #tpu.dot_dimension_numbers<[1], [0], [0], [1], [0, 0, 1, 1], [], []>} : vector<8x128xbf16>, vector<128x128xbf16>, vector<8x128xf32> -> vector<8x128xf32>
    %c0_39 = arith.constant 0 : index
    %c0_40 = arith.constant 0 : index
    %118 = vector.load %arg12[%c0_39, %c0_40] : memref<1x128xf32, #tpu.memory_space<vmem>>, vector<1x128xf32>
    %119 = vector.broadcast %118 : vector<1x128xf32> to vector<8x128xf32>
    %120 = arith.addf %117, %119 : vector<8x128xf32>
    %cst_41 = arith.constant 0.000000e+00 : f32
    %121 = vector.broadcast %cst_41 : f32 to vector<8x128xf32>
    %122 = arith.maximumf %120, %121 : vector<8x128xf32>
    %123 = arith.truncf %122 : vector<8x128xf32> to vector<8x128xbf16>
    %c0_42 = arith.constant 0 : index
    %c0_43 = arith.constant 0 : index
    %124 = vector.load %arg13[%c0_42, %c0_43] : memref<128x128xbf16, #tpu.memory_space<vmem>>, vector<128x128xbf16>
    %cst_44 = arith.constant dense<0.000000e+00> : vector<8x128xf32>
    %125 = tpu.matmul %123, %124, %cst_44 {dimension_numbers = #tpu.dot_dimension_numbers<[1], [0], [0], [1], [0, 0, 1, 1], [], []>} : vector<8x128xbf16>, vector<128x128xbf16>, vector<8x128xf32> -> vector<8x128xf32>
    %c0_45 = arith.constant 0 : index
    %c0_46 = arith.constant 0 : index
    %126 = vector.load %arg14[%c0_45, %c0_46] : memref<1x128xf32, #tpu.memory_space<vmem>>, vector<1x128xf32>
    %127 = vector.broadcast %126 : vector<1x128xf32> to vector<8x128xf32>
    %128 = arith.addf %125, %127 : vector<8x128xf32>
    %129 = arith.addf %128, %114 : vector<8x128xf32>
    %c0_47 = arith.constant 0 : index
    %c0_48 = arith.constant 0 : index
    %130 = vector.load %arg15[%c0_47, %c0_48] : memref<1x128xf32, #tpu.memory_space<vmem>>, vector<1x128xf32>
    %c0_49 = arith.constant 0 : index
    %c0_50 = arith.constant 0 : index
    %131 = vector.load %arg16[%c0_49, %c0_50] : memref<1x128xf32, #tpu.memory_space<vmem>>, vector<1x128xf32>
    %cst_51 = arith.constant dense<0.000000e+00> : vector<8xf32>
    %132 = vector.multi_reduction <add>, %129, %cst_51 [1] : vector<8x128xf32> to vector<8xf32>
    %133 = vector.shape_cast %132 : vector<8xf32> to vector<8x1xf32>
    %cst_52 = arith.constant 3.125000e-02 : f32
    %134 = vector.broadcast %cst_52 : f32 to vector<8x1xf32>
    %135 = arith.mulf %133, %134 : vector<8x1xf32>
    %136 = arith.mulf %129, %129 : vector<8x128xf32>
    %cst_53 = arith.constant dense<0.000000e+00> : vector<8xf32>
    %137 = vector.multi_reduction <add>, %136, %cst_53 [1] : vector<8x128xf32> to vector<8xf32>
    %138 = vector.shape_cast %137 : vector<8xf32> to vector<8x1xf32>
    %cst_54 = arith.constant 3.125000e-02 : f32
    %139 = vector.broadcast %cst_54 : f32 to vector<8x1xf32>
    %140 = arith.mulf %138, %139 : vector<8x1xf32>
    %141 = arith.mulf %135, %135 : vector<8x1xf32>
    %142 = arith.subf %140, %141 : vector<8x1xf32>
    %cst_55 = arith.constant 0.000000e+00 : f32
    %143 = vector.broadcast %cst_55 : f32 to vector<8x1xf32>
    %144 = arith.maximumf %142, %143 : vector<8x1xf32>
    %145 = vector.broadcast %135 : vector<8x1xf32> to vector<8x128xf32>
    %146 = arith.subf %129, %145 : vector<8x128xf32>
    %cst_56 = arith.constant 9.99999974E-6 : f32
    %147 = vector.broadcast %cst_56 : f32 to vector<8x1xf32>
    %148 = arith.addf %144, %147 : vector<8x1xf32>
    %149 = math.rsqrt %148 : vector<8x1xf32>
    %150 = vector.broadcast %149 : vector<8x1xf32> to vector<8x128xf32>
    %151 = arith.mulf %146, %150 : vector<8x128xf32>
    %152 = vector.broadcast %130 : vector<1x128xf32> to vector<8x128xf32>
    %153 = arith.mulf %151, %152 : vector<8x128xf32>
    %154 = vector.broadcast %131 : vector<1x128xf32> to vector<8x128xf32>
    %155 = arith.addf %153, %154 : vector<8x128xf32>
    %c0_57 = arith.constant 0 : index
    %c0_58 = arith.constant 0 : index
    %c0_59 = arith.constant 0 : index
    %156 = vector.load %arg17[%c0_57, %c0_58, %c0_59] : memref<1x8x128xf32, #tpu.memory_space<vmem>>, vector<1x8x128xf32>
    %157 = vector.shape_cast %156 : vector<1x8x128xf32> to vector<8x128xf32>
    %158 = vector.shape_cast %155 : vector<8x128xf32> to vector<1x8x128xf32>
    tpu.vector_store %arg17[%c0_57, %c0_58, %c0_59], %158 {strides = array<i32>} : memref<1x8x128xf32, #tpu.memory_space<vmem>>, vector<1x8x128xf32>,
    return
  }
  func.func @transform_0(%arg0: i32) -> (i32, i32, i32) {
    %c0_i32 = arith.constant 0 : i32
    %c0_i32_0 = arith.constant 0 : i32
    %c0_i32_1 = arith.constant 0 : i32
    return %arg0, %c0_i32, %c0_i32_0 : i32, i32, i32
  }
  func.func @transform_1(%arg0: i32) -> (i32, i32, i32) {
    %c0_i32 = arith.constant 0 : i32
    %c0_i32_0 = arith.constant 0 : i32
    %c0_i32_1 = arith.constant 0 : i32
    return %arg0, %c0_i32, %c0_i32_0 : i32, i32, i32
  }
  func.func @transform_2(%arg0: i32) -> (i32, i32) {
    %c0_i32 = arith.constant 0 : i32
    %c0_i32_0 = arith.constant 0 : i32
    %c0_i32_1 = arith.constant 0 : i32
    return %c0_i32, %c0_i32_0 : i32, i32
  }
  func.func @transform_3(%arg0: i32) -> (i32, i32) {
    %c0_i32 = arith.constant 0 : i32
    %c0_i32_0 = arith.constant 0 : i32
    %c0_i32_1 = arith.constant 0 : i32
    return %c0_i32, %c0_i32_0 : i32, i32
  }
  func.func @transform_4(%arg0: i32) -> (i32, i32) {
    %c0_i32 = arith.constant 0 : i32
    %c0_i32_0 = arith.constant 0 : i32
    %c0_i32_1 = arith.constant 0 : i32
    return %c0_i32, %c0_i32_0 : i32, i32
  }
  func.func @transform_5(%arg0: i32) -> (i32, i32) {
    %c0_i32 = arith.constant 0 : i32
    %c0_i32_0 = arith.constant 0 : i32
    %c0_i32_1 = arith.constant 0 : i32
    return %c0_i32, %c0_i32_0 : i32, i32
  }
  func.func @transform_6(%arg0: i32) -> (i32, i32) {
    %c0_i32 = arith.constant 0 : i32
    %c0_i32_0 = arith.constant 0 : i32
    %c0_i32_1 = arith.constant 0 : i32
    return %c0_i32, %c0_i32_0 : i32, i32
  }
  func.func @transform_7(%arg0: i32) -> (i32, i32) {
    %c0_i32 = arith.constant 0 : i32
    %c0_i32_0 = arith.constant 0 : i32
    %c0_i32_1 = arith.constant 0 : i32
    return %c0_i32, %c0_i32_0 : i32, i32
  }
  func.func @transform_8(%arg0: i32) -> (i32, i32) {
    %c0_i32 = arith.constant 0 : i32
    %c0_i32_0 = arith.constant 0 : i32
    %c0_i32_1 = arith.constant 0 : i32
    return %c0_i32, %c0_i32_0 : i32, i32
  }
  func.func @transform_9(%arg0: i32) -> (i32, i32) {
    %c0_i32 = arith.constant 0 : i32
    %c0_i32_0 = arith.constant 0 : i32
    %c0_i32_1 = arith.constant 0 : i32
    return %c0_i32, %c0_i32_0 : i32, i32
  }
  func.func @transform_10(%arg0: i32) -> (i32, i32) {
    %c0_i32 = arith.constant 0 : i32
    %c0_i32_0 = arith.constant 0 : i32
    %c0_i32_1 = arith.constant 0 : i32
    return %c0_i32, %c0_i32_0 : i32, i32
  }
  func.func @transform_11(%arg0: i32) -> (i32, i32) {
    %c0_i32 = arith.constant 0 : i32
    %c0_i32_0 = arith.constant 0 : i32
    %c0_i32_1 = arith.constant 0 : i32
    return %c0_i32, %c0_i32_0 : i32, i32
  }
  func.func @transform_12(%arg0: i32) -> (i32, i32) {
    %c0_i32 = arith.constant 0 : i32
    %c0_i32_0 = arith.constant 0 : i32
    %c0_i32_1 = arith.constant 0 : i32
    return %c0_i32, %c0_i32_0 : i32, i32
  }
  func.func @transform_13(%arg0: i32) -> (i32, i32) {
    %c0_i32 = arith.constant 0 : i32
    %c0_i32_0 = arith.constant 0 : i32
    %c0_i32_1 = arith.constant 0 : i32
    return %c0_i32, %c0_i32_0 : i32, i32
  }
  func.func @transform_14(%arg0: i32) -> (i32, i32) {
    %c0_i32 = arith.constant 0 : i32
    %c0_i32_0 = arith.constant 0 : i32
    %c0_i32_1 = arith.constant 0 : i32
    return %c0_i32, %c0_i32_0 : i32, i32
  }
  func.func @transform_15(%arg0: i32) -> (i32, i32) {
    %c0_i32 = arith.constant 0 : i32
    %c0_i32_0 = arith.constant 0 : i32
    %c0_i32_1 = arith.constant 0 : i32
    return %c0_i32, %c0_i32_0 : i32, i32
  }
  func.func @transform_16(%arg0: i32) -> (i32, i32, i32) {
    %c0_i32 = arith.constant 0 : i32
    %c0_i32_0 = arith.constant 0 : i32
    %c0_i32_1 = arith.constant 0 : i32
    return %arg0, %c0_i32, %c0_i32_0 : i32, i32, i32
  }
}

module attributes {stable_mosaic.version = 11 : i64} {
  func.func @_decoder_layer_kernel(%arg0: i32, %arg1: memref<1x8x128xf32, #tpu.memory_space<vmem>>, %arg2: memref<1x8x128xf32, #tpu.memory_space<vmem>>, %arg3: memref<1x1x8xi8, #tpu.memory_space<vmem>>, %arg4: memref<1x1x8xi8, #tpu.memory_space<vmem>>, %arg5: memref<128x128xbf16, #tpu.memory_space<vmem>>, %arg6: memref<1x128xf32, #tpu.memory_space<vmem>>, %arg7: memref<128x256xbf16, #tpu.memory_space<vmem>>, %arg8: memref<1x256xf32, #tpu.memory_space<vmem>>, %arg9: memref<128x128xbf16, #tpu.memory_space<vmem>>, %arg10: memref<1x128xf32, #tpu.memory_space<vmem>>, %arg11: memref<1x128xf32, #tpu.memory_space<vmem>>, %arg12: memref<1x128xf32, #tpu.memory_space<vmem>>, %arg13: memref<128x128xbf16, #tpu.memory_space<vmem>>, %arg14: memref<1x128xf32, #tpu.memory_space<vmem>>, %arg15: memref<128x256xbf16, #tpu.memory_space<vmem>>, %arg16: memref<1x256xf32, #tpu.memory_space<vmem>>, %arg17: memref<128x128xbf16, #tpu.memory_space<vmem>>, %arg18: memref<1x128xf32, #tpu.memory_space<vmem>>, %arg19: memref<1x128xf32, #tpu.memory_space<vmem>>, %arg20: memref<1x128xf32, #tpu.memory_space<vmem>>, %arg21: memref<128x128xbf16, #tpu.memory_space<vmem>>, %arg22: memref<1x128xf32, #tpu.memory_space<vmem>>, %arg23: memref<128x128xbf16, #tpu.memory_space<vmem>>, %arg24: memref<1x128xf32, #tpu.memory_space<vmem>>, %arg25: memref<1x128xf32, #tpu.memory_space<vmem>>, %arg26: memref<1x128xf32, #tpu.memory_space<vmem>>, %arg27: memref<1x8x128xf32, #tpu.memory_space<vmem>>) attributes {dimension_semantics = [#tpu.dimension_semantics<parallel>], iteration_bounds = array<i64: 2>, scalar_prefetch = 0 : i64, scratch_operands = 0 : i64, tpu.core_type = #tpu.core_type<tc>, window_params = [{transform_indices = @transform_0, window_bounds = array<i64: 1, 8, 128>}, {transform_indices = @transform_1, window_bounds = array<i64: 1, 8, 128>}, {transform_indices = @transform_2, window_bounds = array<i64: 1, 1, 8>}, {transform_indices = @transform_3, window_bounds = array<i64: 1, 1, 8>}, {pipeline_mode = #tpu.pipeline_mode<synchronous>, transform_indices = @transform_4, window_bounds = array<i64: 128, 128>}, {pipeline_mode = #tpu.pipeline_mode<synchronous>, transform_indices = @transform_5, window_bounds = array<i64: 1, 128>}, {pipeline_mode = #tpu.pipeline_mode<synchronous>, transform_indices = @transform_6, window_bounds = array<i64: 128, 256>}, {pipeline_mode = #tpu.pipeline_mode<synchronous>, transform_indices = @transform_7, window_bounds = array<i64: 1, 256>}, {pipeline_mode = #tpu.pipeline_mode<synchronous>, transform_indices = @transform_8, window_bounds = array<i64: 128, 128>}, {pipeline_mode = #tpu.pipeline_mode<synchronous>, transform_indices = @transform_9, window_bounds = array<i64: 1, 128>}, {pipeline_mode = #tpu.pipeline_mode<synchronous>, transform_indices = @transform_10, window_bounds = array<i64: 1, 128>}, {pipeline_mode = #tpu.pipeline_mode<synchronous>, transform_indices = @transform_11, window_bounds = array<i64: 1, 128>}, {pipeline_mode = #tpu.pipeline_mode<synchronous>, transform_indices = @transform_12, window_bounds = array<i64: 128, 128>}, {pipeline_mode = #tpu.pipeline_mode<synchronous>, transform_indices = @transform_13, window_bounds = array<i64: 1, 128>}, {pipeline_mode = #tpu.pipeline_mode<synchronous>, transform_indices = @transform_14, window_bounds = array<i64: 128, 256>}, {pipeline_mode = #tpu.pipeline_mode<synchronous>, transform_indices = @transform_15, window_bounds = array<i64: 1, 256>}, {pipeline_mode = #tpu.pipeline_mode<synchronous>, transform_indices = @transform_16, window_bounds = array<i64: 128, 128>}, {pipeline_mode = #tpu.pipeline_mode<synchronous>, transform_indices = @transform_17, window_bounds = array<i64: 1, 128>}, {pipeline_mode = #tpu.pipeline_mode<synchronous>, transform_indices = @transform_18, window_bounds = array<i64: 1, 128>}, {pipeline_mode = #tpu.pipeline_mode<synchronous>, transform_indices = @transform_19, window_bounds = array<i64: 1, 128>}, {pipeline_mode = #tpu.pipeline_mode<synchronous>, transform_indices = @transform_20, window_bounds = array<i64: 128, 128>}, {pipeline_mode = #tpu.pipeline_mode<synchronous>, transform_indices = @transform_21, window_bounds = array<i64: 1, 128>}, {pipeline_mode = #tpu.pipeline_mode<synchronous>, transform_indices = @transform_22, window_bounds = array<i64: 128, 128>}, {pipeline_mode = #tpu.pipeline_mode<synchronous>, transform_indices = @transform_23, window_bounds = array<i64: 1, 128>}, {pipeline_mode = #tpu.pipeline_mode<synchronous>, transform_indices = @transform_24, window_bounds = array<i64: 1, 128>}, {pipeline_mode = #tpu.pipeline_mode<synchronous>, transform_indices = @transform_25, window_bounds = array<i64: 1, 128>}, {transform_indices = @transform_26, window_bounds = array<i64: 1, 8, 128>}]} {
    %c0 = arith.constant 0 : index
    %c0_0 = arith.constant 0 : index
    %c0_1 = arith.constant 0 : index
    %0 = vector.load %arg1[%c0, %c0_0, %c0_1] : memref<1x8x128xf32, #tpu.memory_space<vmem>>, vector<1x8x128xf32>
    %1 = vector.shape_cast %0 : vector<1x8x128xf32> to vector<8x128xf32>
    %c0_2 = arith.constant 0 : index
    %c0_3 = arith.constant 0 : index
    %c0_4 = arith.constant 0 : index
    %2 = vector.load %arg2[%c0_2, %c0_3, %c0_4] : memref<1x8x128xf32, #tpu.memory_space<vmem>>, vector<1x8x128xf32>
    %3 = vector.shape_cast %2 : vector<1x8x128xf32> to vector<8x128xf32>
    %c0_5 = arith.constant 0 : index
    %c0_6 = arith.constant 0 : index
    %c0_7 = arith.constant 0 : index
    %4 = vector.load %arg3[%c0_5, %c0_6, %c0_7] : memref<1x1x8xi8, #tpu.memory_space<vmem>>, vector<1x1x8xi8>
    %5 = vector.shape_cast %4 : vector<1x1x8xi8> to vector<1x8xi8>
    %6 = arith.sitofp %5 : vector<1x8xi8> to vector<1x8xf32>
    %7 = tpu.iota {dimensions = array<i32: 0>} : vector<8x8xi32>
    %8 = tpu.iota {dimensions = array<i32: 1>} : vector<8x8xi32>
    %9 = arith.cmpi sge, %7, %8 : vector<8x8xi32>
    %cst = arith.constant 1.000000e+00 : f32
    %cst_8 = arith.constant 0.000000e+00 : f32
    %10 = vector.broadcast %cst : f32 to vector<8x8xf32>
    %11 = vector.broadcast %cst_8 : f32 to vector<8x8xf32>
    %12 = arith.select %9, %10, %11 : vector<8x8xi1>, vector<8x8xf32>
    %13 = vector.broadcast %6 : vector<1x8xf32> to vector<8x8xf32>
    %14 = arith.mulf %12, %13 : vector<8x8xf32>
    %cst_9 = arith.constant 1.000000e+00 : f32
    %15 = vector.broadcast %cst_9 : f32 to vector<8x8xf32>
    %16 = arith.subf %15, %14 : vector<8x8xf32>
    %cst_10 = arith.constant -1.000000e+09 : f32
    %17 = vector.broadcast %cst_10 : f32 to vector<8x8xf32>
    %18 = arith.mulf %16, %17 : vector<8x8xf32>
    %19 = arith.truncf %1 : vector<8x128xf32> to vector<8x128xbf16>
    %c0_11 = arith.constant 0 : index
    %c0_12 = arith.constant 0 : index
    %20 = vector.load %arg5[%c0_11, %c0_12] : memref<128x128xbf16, #tpu.memory_space<vmem>>, vector<128x128xbf16>
    %cst_13 = arith.constant dense<0.000000e+00> : vector<8x128xf32>
    %21 = tpu.matmul %19, %20, %cst_13 {dimension_numbers = #tpu.dot_dimension_numbers<[1], [0], [0], [1], [0, 0, 1, 1], [], []>} : vector<8x128xbf16>, vector<128x128xbf16>, vector<8x128xf32> -> vector<8x128xf32>
    %c0_14 = arith.constant 0 : index
    %c0_15 = arith.constant 0 : index
    %22 = vector.load %arg6[%c0_14, %c0_15] : memref<1x128xf32, #tpu.memory_space<vmem>>, vector<1x128xf32>
    %23 = vector.broadcast %22 : vector<1x128xf32> to vector<8x128xf32>
    %24 = arith.addf %21, %23 : vector<8x128xf32>
    %25 = arith.truncf %1 : vector<8x128xf32> to vector<8x128xbf16>
    %c0_16 = arith.constant 0 : index
    %c0_17 = arith.constant 0 : index
    %26 = vector.load %arg7[%c0_16, %c0_17] : memref<128x256xbf16, #tpu.memory_space<vmem>>, vector<128x256xbf16>
    %cst_18 = arith.constant dense<0.000000e+00> : vector<8x256xf32>
    %27 = tpu.matmul %25, %26, %cst_18 {dimension_numbers = #tpu.dot_dimension_numbers<[1], [0], [0], [1], [0, 0, 1, 1], [], []>} : vector<8x128xbf16>, vector<128x256xbf16>, vector<8x256xf32> -> vector<8x256xf32>
    %c0_19 = arith.constant 0 : index
    %c0_20 = arith.constant 0 : index
    %28 = vector.load %arg8[%c0_19, %c0_20] : memref<1x256xf32, #tpu.memory_space<vmem>>, vector<1x256xf32>
    %29 = vector.broadcast %28 : vector<1x256xf32> to vector<8x256xf32>
    %30 = arith.addf %27, %29 : vector<8x256xf32>
    %31 = vector.extract_strided_slice %30 {offsets = [0, 0], sizes = [8, 128], strides = [1, 1]} : vector<8x256xf32> to vector<8x128xf32>
    %32 = vector.extract_strided_slice %30 {offsets = [0, 128], sizes = [8, 128], strides = [1, 1]} : vector<8x256xf32> to vector<8x128xf32>
    %33 = arith.truncf %24 : vector<8x128xf32> to vector<8x128xbf16>
    %34 = arith.truncf %31 : vector<8x128xf32> to vector<8x128xbf16>
    %35 = arith.truncf %32 : vector<8x128xf32> to vector<8x128xbf16>
    %36 = vector.extract_strided_slice %33 {offsets = [0, 0], sizes = [8, 32], strides = [1, 1]} : vector<8x128xbf16> to vector<8x32xbf16>
    %37 = vector.extract_strided_slice %33 {offsets = [0, 32], sizes = [8, 32], strides = [1, 1]} : vector<8x128xbf16> to vector<8x32xbf16>
    %38 = vector.extract_strided_slice %33 {offsets = [0, 64], sizes = [8, 32], strides = [1, 1]} : vector<8x128xbf16> to vector<8x32xbf16>
    %39 = vector.extract_strided_slice %33 {offsets = [0, 96], sizes = [8, 32], strides = [1, 1]} : vector<8x128xbf16> to vector<8x32xbf16>
    %40 = vector.shape_cast %36 : vector<8x32xbf16> to vector<1x8x32xbf16>
    %41 = vector.shape_cast %37 : vector<8x32xbf16> to vector<1x8x32xbf16>
    %42 = vector.shape_cast %38 : vector<8x32xbf16> to vector<1x8x32xbf16>
    %43 = vector.shape_cast %39 : vector<8x32xbf16> to vector<1x8x32xbf16>
    %44 = tpu.concatenate %40, %41, %42, %43 in 0 : vector<1x8x32xbf16>, vector<1x8x32xbf16>, vector<1x8x32xbf16>, vector<1x8x32xbf16> -> vector<4x8x32xbf16>
    %45 = vector.extract_strided_slice %34 {offsets = [0, 0], sizes = [8, 32], strides = [1, 1]} : vector<8x128xbf16> to vector<8x32xbf16>
    %46 = vector.extract_strided_slice %34 {offsets = [0, 32], sizes = [8, 32], strides = [1, 1]} : vector<8x128xbf16> to vector<8x32xbf16>
    %47 = vector.extract_strided_slice %34 {offsets = [0, 64], sizes = [8, 32], strides = [1, 1]} : vector<8x128xbf16> to vector<8x32xbf16>
    %48 = vector.extract_strided_slice %34 {offsets = [0, 96], sizes = [8, 32], strides = [1, 1]} : vector<8x128xbf16> to vector<8x32xbf16>
    %49 = vector.shape_cast %45 : vector<8x32xbf16> to vector<1x8x32xbf16>
    %50 = vector.shape_cast %46 : vector<8x32xbf16> to vector<1x8x32xbf16>
    %51 = vector.shape_cast %47 : vector<8x32xbf16> to vector<1x8x32xbf16>
    %52 = vector.shape_cast %48 : vector<8x32xbf16> to vector<1x8x32xbf16>
    %53 = tpu.concatenate %49, %50, %51, %52 in 0 : vector<1x8x32xbf16>, vector<1x8x32xbf16>, vector<1x8x32xbf16>, vector<1x8x32xbf16> -> vector<4x8x32xbf16>
    %54 = vector.extract_strided_slice %35 {offsets = [0, 0], sizes = [8, 32], strides = [1, 1]} : vector<8x128xbf16> to vector<8x32xbf16>
    %55 = vector.extract_strided_slice %35 {offsets = [0, 32], sizes = [8, 32], strides = [1, 1]} : vector<8x128xbf16> to vector<8x32xbf16>
    %56 = vector.extract_strided_slice %35 {offsets = [0, 64], sizes = [8, 32], strides = [1, 1]} : vector<8x128xbf16> to vector<8x32xbf16>
    %57 = vector.extract_strided_slice %35 {offsets = [0, 96], sizes = [8, 32], strides = [1, 1]} : vector<8x128xbf16> to vector<8x32xbf16>
    %58 = vector.shape_cast %54 : vector<8x32xbf16> to vector<1x8x32xbf16>
    %59 = vector.shape_cast %55 : vector<8x32xbf16> to vector<1x8x32xbf16>
    %60 = vector.shape_cast %56 : vector<8x32xbf16> to vector<1x8x32xbf16>
    %61 = vector.shape_cast %57 : vector<8x32xbf16> to vector<1x8x32xbf16>
    %62 = tpu.concatenate %58, %59, %60, %61 in 0 : vector<1x8x32xbf16>, vector<1x8x32xbf16>, vector<1x8x32xbf16>, vector<1x8x32xbf16> -> vector<4x8x32xbf16>
    "tpu.trace_start"() <{level = 10 : i32, message = "hqd,hkd->hqk"}> : () -> ()
    %cst_21 = arith.constant dense<0.000000e+00> : vector<4x8x8xf32>
    %63 = tpu.matmul %44, %53, %cst_21 {dimension_numbers = #tpu.dot_dimension_numbers<[2], [2], [1], [1], [0, 0, 0, 1, 1, 1], [0], [0]>} : vector<4x8x32xbf16>, vector<4x8x32xbf16>, vector<4x8x8xf32> -> vector<4x8x8xf32>
    "tpu.trace_stop"() : () -> ()
    %cst_22 = arith.constant 0.353553385 : f32
    %64 = vector.broadcast %cst_22 : f32 to vector<4x8x8xf32>
    %65 = arith.mulf %63, %64 : vector<4x8x8xf32>
    %66 = vector.shape_cast %18 : vector<8x8xf32> to vector<1x8x8xf32>
    %67 = vector.broadcast %66 : vector<1x8x8xf32> to vector<4x8x8xf32>
    %68 = arith.addf %65, %67 : vector<4x8x8xf32>
    %cst_23 = arith.constant dense<0xFF800000> : vector<4x8xf32>
    %69 = vector.multi_reduction <maximumf>, %68, %cst_23 [2] : vector<4x8x8xf32> to vector<4x8xf32>
    %70 = vector.shape_cast %69 : vector<4x8xf32> to vector<4x8x1xf32>
    %71 = vector.broadcast %70 : vector<4x8x1xf32> to vector<4x8x8xf32>
    %72 = arith.subf %68, %71 : vector<4x8x8xf32>
    %73 = math.exp %72 : vector<4x8x8xf32>
    %cst_24 = arith.constant dense<0.000000e+00> : vector<4x8xf32>
    %74 = vector.multi_reduction <add>, %73, %cst_24 [2] : vector<4x8x8xf32> to vector<4x8xf32>
    %75 = vector.shape_cast %74 : vector<4x8xf32> to vector<4x8x1xf32>
    %76 = tpu.reciprocal %75 {approx = true} : vector<4x8x1xf32> -> vector<4x8x1xf32>
    %77 = vector.broadcast %76 : vector<4x8x1xf32> to vector<4x8x8xf32>
    %78 = arith.mulf %73, %77 : vector<4x8x8xf32>
    %79 = arith.truncf %78 : vector<4x8x8xf32> to vector<4x8x8xbf16>
    "tpu.trace_start"() <{level = 10 : i32, message = "hqk,hkd->hqd"}> : () -> ()
    %cst_25 = arith.constant dense<0.000000e+00> : vector<4x8x32xf32>
    %80 = tpu.matmul %79, %62, %cst_25 {dimension_numbers = #tpu.dot_dimension_numbers<[2], [1], [1], [2], [0, 0, 0, 1, 1, 2], [0], [0]>} : vector<4x8x8xbf16>, vector<4x8x32xbf16>, vector<4x8x32xf32> -> vector<4x8x32xf32>
    "tpu.trace_stop"() : () -> ()
    %81 = vector.extract_strided_slice %80 {offsets = [0, 0, 0], sizes = [1, 8, 32], strides = [1, 1, 1]} : vector<4x8x32xf32> to vector<1x8x32xf32>
    %82 = vector.shape_cast %81 : vector<1x8x32xf32> to vector<8x32xf32>
    %83 = vector.extract_strided_slice %80 {offsets = [1, 0, 0], sizes = [1, 8, 32], strides = [1, 1, 1]} : vector<4x8x32xf32> to vector<1x8x32xf32>
    %84 = vector.shape_cast %83 : vector<1x8x32xf32> to vector<8x32xf32>
    %85 = vector.extract_strided_slice %80 {offsets = [2, 0, 0], sizes = [1, 8, 32], strides = [1, 1, 1]} : vector<4x8x32xf32> to vector<1x8x32xf32>
    %86 = vector.shape_cast %85 : vector<1x8x32xf32> to vector<8x32xf32>
    %87 = vector.extract_strided_slice %80 {offsets = [3, 0, 0], sizes = [1, 8, 32], strides = [1, 1, 1]} : vector<4x8x32xf32> to vector<1x8x32xf32>
    %88 = vector.shape_cast %87 : vector<1x8x32xf32> to vector<8x32xf32>
    %89 = tpu.concatenate %82, %84, %86, %88 in 1 : vector<8x32xf32>, vector<8x32xf32>, vector<8x32xf32>, vector<8x32xf32> -> vector<8x128xf32>
    %90 = arith.truncf %89 : vector<8x128xf32> to vector<8x128xbf16>
    %c0_26 = arith.constant 0 : index
    %c0_27 = arith.constant 0 : index
    %91 = vector.load %arg9[%c0_26, %c0_27] : memref<128x128xbf16, #tpu.memory_space<vmem>>, vector<128x128xbf16>
    %cst_28 = arith.constant dense<0.000000e+00> : vector<8x128xf32>
    %92 = tpu.matmul %90, %91, %cst_28 {dimension_numbers = #tpu.dot_dimension_numbers<[1], [0], [0], [1], [0, 0, 1, 1], [], []>} : vector<8x128xbf16>, vector<128x128xbf16>, vector<8x128xf32> -> vector<8x128xf32>
    %c0_29 = arith.constant 0 : index
    %c0_30 = arith.constant 0 : index
    %93 = vector.load %arg10[%c0_29, %c0_30] : memref<1x128xf32, #tpu.memory_space<vmem>>, vector<1x128xf32>
    %94 = vector.broadcast %93 : vector<1x128xf32> to vector<8x128xf32>
    %95 = arith.addf %92, %94 : vector<8x128xf32>
    %96 = arith.addf %95, %1 : vector<8x128xf32>
    %c0_31 = arith.constant 0 : index
    %c0_32 = arith.constant 0 : index
    %97 = vector.load %arg11[%c0_31, %c0_32] : memref<1x128xf32, #tpu.memory_space<vmem>>, vector<1x128xf32>
    %c0_33 = arith.constant 0 : index
    %c0_34 = arith.constant 0 : index
    %98 = vector.load %arg12[%c0_33, %c0_34] : memref<1x128xf32, #tpu.memory_space<vmem>>, vector<1x128xf32>
    %cst_35 = arith.constant dense<0.000000e+00> : vector<8xf32>
    %99 = vector.multi_reduction <add>, %96, %cst_35 [1] : vector<8x128xf32> to vector<8xf32>
    %100 = vector.shape_cast %99 : vector<8xf32> to vector<8x1xf32>
    %cst_36 = arith.constant 3.125000e-02 : f32
    %101 = vector.broadcast %cst_36 : f32 to vector<8x1xf32>
    %102 = arith.mulf %100, %101 : vector<8x1xf32>
    %103 = arith.mulf %96, %96 : vector<8x128xf32>
    %cst_37 = arith.constant dense<0.000000e+00> : vector<8xf32>
    %104 = vector.multi_reduction <add>, %103, %cst_37 [1] : vector<8x128xf32> to vector<8xf32>
    %105 = vector.shape_cast %104 : vector<8xf32> to vector<8x1xf32>
    %cst_38 = arith.constant 3.125000e-02 : f32
    %106 = vector.broadcast %cst_38 : f32 to vector<8x1xf32>
    %107 = arith.mulf %105, %106 : vector<8x1xf32>
    %108 = arith.mulf %102, %102 : vector<8x1xf32>
    %109 = arith.subf %107, %108 : vector<8x1xf32>
    %cst_39 = arith.constant 0.000000e+00 : f32
    %110 = vector.broadcast %cst_39 : f32 to vector<8x1xf32>
    %111 = arith.maximumf %109, %110 : vector<8x1xf32>
    %112 = vector.broadcast %102 : vector<8x1xf32> to vector<8x128xf32>
    %113 = arith.subf %96, %112 : vector<8x128xf32>
    %cst_40 = arith.constant 9.99999974E-6 : f32
    %114 = vector.broadcast %cst_40 : f32 to vector<8x1xf32>
    %115 = arith.addf %111, %114 : vector<8x1xf32>
    %116 = math.rsqrt %115 : vector<8x1xf32>
    %117 = vector.broadcast %116 : vector<8x1xf32> to vector<8x128xf32>
    %118 = arith.mulf %113, %117 : vector<8x128xf32>
    %119 = vector.broadcast %97 : vector<1x128xf32> to vector<8x128xf32>
    %120 = arith.mulf %118, %119 : vector<8x128xf32>
    %121 = vector.broadcast %98 : vector<1x128xf32> to vector<8x128xf32>
    %122 = arith.addf %120, %121 : vector<8x128xf32>
    %c0_41 = arith.constant 0 : index
    %c0_42 = arith.constant 0 : index
    %c0_43 = arith.constant 0 : index
    %123 = vector.load %arg4[%c0_41, %c0_42, %c0_43] : memref<1x1x8xi8, #tpu.memory_space<vmem>>, vector<1x1x8xi8>
    %124 = vector.shape_cast %123 : vector<1x1x8xi8> to vector<1x8xi8>
    %125 = arith.sitofp %124 : vector<1x8xi8> to vector<1x8xf32>
    %cst_44 = arith.constant 1.000000e+00 : f32
    %126 = vector.broadcast %cst_44 : f32 to vector<1x8xf32>
    %127 = arith.subf %126, %125 : vector<1x8xf32>
    %cst_45 = arith.constant -1.000000e+09 : f32
    %128 = vector.broadcast %cst_45 : f32 to vector<1x8xf32>
    %129 = arith.mulf %127, %128 : vector<1x8xf32>
    %130 = vector.shape_cast %129 : vector<1x8xf32> to vector<1x8xf32>
    %131 = vector.broadcast %130 : vector<1x8xf32> to vector<8x8xf32>
    %132 = arith.truncf %122 : vector<8x128xf32> to vector<8x128xbf16>
    %c0_46 = arith.constant 0 : index
    %c0_47 = arith.constant 0 : index
    %133 = vector.load %arg13[%c0_46, %c0_47] : memref<128x128xbf16, #tpu.memory_space<vmem>>, vector<128x128xbf16>
    %cst_48 = arith.constant dense<0.000000e+00> : vector<8x128xf32>
    %134 = tpu.matmul %132, %133, %cst_48 {dimension_numbers = #tpu.dot_dimension_numbers<[1], [0], [0], [1], [0, 0, 1, 1], [], []>} : vector<8x128xbf16>, vector<128x128xbf16>, vector<8x128xf32> -> vector<8x128xf32>
    %c0_49 = arith.constant 0 : index
    %c0_50 = arith.constant 0 : index
    %135 = vector.load %arg14[%c0_49, %c0_50] : memref<1x128xf32, #tpu.memory_space<vmem>>, vector<1x128xf32>
    %136 = vector.broadcast %135 : vector<1x128xf32> to vector<8x128xf32>
    %137 = arith.addf %134, %136 : vector<8x128xf32>
    %138 = arith.truncf %3 : vector<8x128xf32> to vector<8x128xbf16>
    %c0_51 = arith.constant 0 : index
    %c0_52 = arith.constant 0 : index
    %139 = vector.load %arg15[%c0_51, %c0_52] : memref<128x256xbf16, #tpu.memory_space<vmem>>, vector<128x256xbf16>
    %cst_53 = arith.constant dense<0.000000e+00> : vector<8x256xf32>
    %140 = tpu.matmul %138, %139, %cst_53 {dimension_numbers = #tpu.dot_dimension_numbers<[1], [0], [0], [1], [0, 0, 1, 1], [], []>} : vector<8x128xbf16>, vector<128x256xbf16>, vector<8x256xf32> -> vector<8x256xf32>
    %c0_54 = arith.constant 0 : index
    %c0_55 = arith.constant 0 : index
    %141 = vector.load %arg16[%c0_54, %c0_55] : memref<1x256xf32, #tpu.memory_space<vmem>>, vector<1x256xf32>
    %142 = vector.broadcast %141 : vector<1x256xf32> to vector<8x256xf32>
    %143 = arith.addf %140, %142 : vector<8x256xf32>
    %144 = vector.extract_strided_slice %143 {offsets = [0, 0], sizes = [8, 128], strides = [1, 1]} : vector<8x256xf32> to vector<8x128xf32>
    %145 = vector.extract_strided_slice %143 {offsets = [0, 128], sizes = [8, 128], strides = [1, 1]} : vector<8x256xf32> to vector<8x128xf32>
    %146 = arith.truncf %137 : vector<8x128xf32> to vector<8x128xbf16>
    %147 = arith.truncf %144 : vector<8x128xf32> to vector<8x128xbf16>
    %148 = arith.truncf %145 : vector<8x128xf32> to vector<8x128xbf16>
    %149 = vector.extract_strided_slice %146 {offsets = [0, 0], sizes = [8, 32], strides = [1, 1]} : vector<8x128xbf16> to vector<8x32xbf16>
    %150 = vector.extract_strided_slice %146 {offsets = [0, 32], sizes = [8, 32], strides = [1, 1]} : vector<8x128xbf16> to vector<8x32xbf16>
    %151 = vector.extract_strided_slice %146 {offsets = [0, 64], sizes = [8, 32], strides = [1, 1]} : vector<8x128xbf16> to vector<8x32xbf16>
    %152 = vector.extract_strided_slice %146 {offsets = [0, 96], sizes = [8, 32], strides = [1, 1]} : vector<8x128xbf16> to vector<8x32xbf16>
    %153 = vector.shape_cast %149 : vector<8x32xbf16> to vector<1x8x32xbf16>
    %154 = vector.shape_cast %150 : vector<8x32xbf16> to vector<1x8x32xbf16>
    %155 = vector.shape_cast %151 : vector<8x32xbf16> to vector<1x8x32xbf16>
    %156 = vector.shape_cast %152 : vector<8x32xbf16> to vector<1x8x32xbf16>
    %157 = tpu.concatenate %153, %154, %155, %156 in 0 : vector<1x8x32xbf16>, vector<1x8x32xbf16>, vector<1x8x32xbf16>, vector<1x8x32xbf16> -> vector<4x8x32xbf16>
    %158 = vector.extract_strided_slice %147 {offsets = [0, 0], sizes = [8, 32], strides = [1, 1]} : vector<8x128xbf16> to vector<8x32xbf16>
    %159 = vector.extract_strided_slice %147 {offsets = [0, 32], sizes = [8, 32], strides = [1, 1]} : vector<8x128xbf16> to vector<8x32xbf16>
    %160 = vector.extract_strided_slice %147 {offsets = [0, 64], sizes = [8, 32], strides = [1, 1]} : vector<8x128xbf16> to vector<8x32xbf16>
    %161 = vector.extract_strided_slice %147 {offsets = [0, 96], sizes = [8, 32], strides = [1, 1]} : vector<8x128xbf16> to vector<8x32xbf16>
    %162 = vector.shape_cast %158 : vector<8x32xbf16> to vector<1x8x32xbf16>
    %163 = vector.shape_cast %159 : vector<8x32xbf16> to vector<1x8x32xbf16>
    %164 = vector.shape_cast %160 : vector<8x32xbf16> to vector<1x8x32xbf16>
    %165 = vector.shape_cast %161 : vector<8x32xbf16> to vector<1x8x32xbf16>
    %166 = tpu.concatenate %162, %163, %164, %165 in 0 : vector<1x8x32xbf16>, vector<1x8x32xbf16>, vector<1x8x32xbf16>, vector<1x8x32xbf16> -> vector<4x8x32xbf16>
    %167 = vector.extract_strided_slice %148 {offsets = [0, 0], sizes = [8, 32], strides = [1, 1]} : vector<8x128xbf16> to vector<8x32xbf16>
    %168 = vector.extract_strided_slice %148 {offsets = [0, 32], sizes = [8, 32], strides = [1, 1]} : vector<8x128xbf16> to vector<8x32xbf16>
    %169 = vector.extract_strided_slice %148 {offsets = [0, 64], sizes = [8, 32], strides = [1, 1]} : vector<8x128xbf16> to vector<8x32xbf16>
    %170 = vector.extract_strided_slice %148 {offsets = [0, 96], sizes = [8, 32], strides = [1, 1]} : vector<8x128xbf16> to vector<8x32xbf16>
    %171 = vector.shape_cast %167 : vector<8x32xbf16> to vector<1x8x32xbf16>
    %172 = vector.shape_cast %168 : vector<8x32xbf16> to vector<1x8x32xbf16>
    %173 = vector.shape_cast %169 : vector<8x32xbf16> to vector<1x8x32xbf16>
    %174 = vector.shape_cast %170 : vector<8x32xbf16> to vector<1x8x32xbf16>
    %175 = tpu.concatenate %171, %172, %173, %174 in 0 : vector<1x8x32xbf16>, vector<1x8x32xbf16>, vector<1x8x32xbf16>, vector<1x8x32xbf16> -> vector<4x8x32xbf16>
    "tpu.trace_start"() <{level = 10 : i32, message = "hqd,hkd->hqk"}> : () -> ()
    %cst_56 = arith.constant dense<0.000000e+00> : vector<4x8x8xf32>
    %176 = tpu.matmul %157, %166, %cst_56 {dimension_numbers = #tpu.dot_dimension_numbers<[2], [2], [1], [1], [0, 0, 0, 1, 1, 1], [0], [0]>} : vector<4x8x32xbf16>, vector<4x8x32xbf16>, vector<4x8x8xf32> -> vector<4x8x8xf32>
    "tpu.trace_stop"() : () -> ()
    %cst_57 = arith.constant 0.353553385 : f32
    %177 = vector.broadcast %cst_57 : f32 to vector<4x8x8xf32>
    %178 = arith.mulf %176, %177 : vector<4x8x8xf32>
    %179 = vector.shape_cast %131 : vector<8x8xf32> to vector<1x8x8xf32>
    %180 = vector.broadcast %179 : vector<1x8x8xf32> to vector<4x8x8xf32>
    %181 = arith.addf %178, %180 : vector<4x8x8xf32>
    %cst_58 = arith.constant dense<0xFF800000> : vector<4x8xf32>
    %182 = vector.multi_reduction <maximumf>, %181, %cst_58 [2] : vector<4x8x8xf32> to vector<4x8xf32>
    %183 = vector.shape_cast %182 : vector<4x8xf32> to vector<4x8x1xf32>
    %184 = vector.broadcast %183 : vector<4x8x1xf32> to vector<4x8x8xf32>
    %185 = arith.subf %181, %184 : vector<4x8x8xf32>
    %186 = math.exp %185 : vector<4x8x8xf32>
    %cst_59 = arith.constant dense<0.000000e+00> : vector<4x8xf32>
    %187 = vector.multi_reduction <add>, %186, %cst_59 [2] : vector<4x8x8xf32> to vector<4x8xf32>
    %188 = vector.shape_cast %187 : vector<4x8xf32> to vector<4x8x1xf32>
    %189 = tpu.reciprocal %188 {approx = true} : vector<4x8x1xf32> -> vector<4x8x1xf32>
    %190 = vector.broadcast %189 : vector<4x8x1xf32> to vector<4x8x8xf32>
    %191 = arith.mulf %186, %190 : vector<4x8x8xf32>
    %192 = arith.truncf %191 : vector<4x8x8xf32> to vector<4x8x8xbf16>
    "tpu.trace_start"() <{level = 10 : i32, message = "hqk,hkd->hqd"}> : () -> ()
    %cst_60 = arith.constant dense<0.000000e+00> : vector<4x8x32xf32>
    %193 = tpu.matmul %192, %175, %cst_60 {dimension_numbers = #tpu.dot_dimension_numbers<[2], [1], [1], [2], [0, 0, 0, 1, 1, 2], [0], [0]>} : vector<4x8x8xbf16>, vector<4x8x32xbf16>, vector<4x8x32xf32> -> vector<4x8x32xf32>
    "tpu.trace_stop"() : () -> ()
    %194 = vector.extract_strided_slice %193 {offsets = [0, 0, 0], sizes = [1, 8, 32], strides = [1, 1, 1]} : vector<4x8x32xf32> to vector<1x8x32xf32>
    %195 = vector.shape_cast %194 : vector<1x8x32xf32> to vector<8x32xf32>
    %196 = vector.extract_strided_slice %193 {offsets = [1, 0, 0], sizes = [1, 8, 32], strides = [1, 1, 1]} : vector<4x8x32xf32> to vector<1x8x32xf32>
    %197 = vector.shape_cast %196 : vector<1x8x32xf32> to vector<8x32xf32>
    %198 = vector.extract_strided_slice %193 {offsets = [2, 0, 0], sizes = [1, 8, 32], strides = [1, 1, 1]} : vector<4x8x32xf32> to vector<1x8x32xf32>
    %199 = vector.shape_cast %198 : vector<1x8x32xf32> to vector<8x32xf32>
    %200 = vector.extract_strided_slice %193 {offsets = [3, 0, 0], sizes = [1, 8, 32], strides = [1, 1, 1]} : vector<4x8x32xf32> to vector<1x8x32xf32>
    %201 = vector.shape_cast %200 : vector<1x8x32xf32> to vector<8x32xf32>
    %202 = tpu.concatenate %195, %197, %199, %201 in 1 : vector<8x32xf32>, vector<8x32xf32>, vector<8x32xf32>, vector<8x32xf32> -> vector<8x128xf32>
    %203 = arith.truncf %202 : vector<8x128xf32> to vector<8x128xbf16>
    %c0_61 = arith.constant 0 : index
    %c0_62 = arith.constant 0 : index
    %204 = vector.load %arg17[%c0_61, %c0_62] : memref<128x128xbf16, #tpu.memory_space<vmem>>, vector<128x128xbf16>
    %cst_63 = arith.constant dense<0.000000e+00> : vector<8x128xf32>
    %205 = tpu.matmul %203, %204, %cst_63 {dimension_numbers = #tpu.dot_dimension_numbers<[1], [0], [0], [1], [0, 0, 1, 1], [], []>} : vector<8x128xbf16>, vector<128x128xbf16>, vector<8x128xf32> -> vector<8x128xf32>
    %c0_64 = arith.constant 0 : index
    %c0_65 = arith.constant 0 : index
    %206 = vector.load %arg18[%c0_64, %c0_65] : memref<1x128xf32, #tpu.memory_space<vmem>>, vector<1x128xf32>
    %207 = vector.broadcast %206 : vector<1x128xf32> to vector<8x128xf32>
    %208 = arith.addf %205, %207 : vector<8x128xf32>
    %209 = arith.addf %208, %122 : vector<8x128xf32>
    %c0_66 = arith.constant 0 : index
    %c0_67 = arith.constant 0 : index
    %210 = vector.load %arg19[%c0_66, %c0_67] : memref<1x128xf32, #tpu.memory_space<vmem>>, vector<1x128xf32>
    %c0_68 = arith.constant 0 : index
    %c0_69 = arith.constant 0 : index
    %211 = vector.load %arg20[%c0_68, %c0_69] : memref<1x128xf32, #tpu.memory_space<vmem>>, vector<1x128xf32>
    %cst_70 = arith.constant dense<0.000000e+00> : vector<8xf32>
    %212 = vector.multi_reduction <add>, %209, %cst_70 [1] : vector<8x128xf32> to vector<8xf32>
    %213 = vector.shape_cast %212 : vector<8xf32> to vector<8x1xf32>
    %cst_71 = arith.constant 3.125000e-02 : f32
    %214 = vector.broadcast %cst_71 : f32 to vector<8x1xf32>
    %215 = arith.mulf %213, %214 : vector<8x1xf32>
    %216 = arith.mulf %209, %209 : vector<8x128xf32>
    %cst_72 = arith.constant dense<0.000000e+00> : vector<8xf32>
    %217 = vector.multi_reduction <add>, %216, %cst_72 [1] : vector<8x128xf32> to vector<8xf32>
    %218 = vector.shape_cast %217 : vector<8xf32> to vector<8x1xf32>
    %cst_73 = arith.constant 3.125000e-02 : f32
    %219 = vector.broadcast %cst_73 : f32 to vector<8x1xf32>
    %220 = arith.mulf %218, %219 : vector<8x1xf32>
    %221 = arith.mulf %215, %215 : vector<8x1xf32>
    %222 = arith.subf %220, %221 : vector<8x1xf32>
    %cst_74 = arith.constant 0.000000e+00 : f32
    %223 = vector.broadcast %cst_74 : f32 to vector<8x1xf32>
    %224 = arith.maximumf %222, %223 : vector<8x1xf32>
    %225 = vector.broadcast %215 : vector<8x1xf32> to vector<8x128xf32>
    %226 = arith.subf %209, %225 : vector<8x128xf32>
    %cst_75 = arith.constant 9.99999974E-6 : f32
    %227 = vector.broadcast %cst_75 : f32 to vector<8x1xf32>
    %228 = arith.addf %224, %227 : vector<8x1xf32>
    %229 = math.rsqrt %228 : vector<8x1xf32>
    %230 = vector.broadcast %229 : vector<8x1xf32> to vector<8x128xf32>
    %231 = arith.mulf %226, %230 : vector<8x128xf32>
    %232 = vector.broadcast %210 : vector<1x128xf32> to vector<8x128xf32>
    %233 = arith.mulf %231, %232 : vector<8x128xf32>
    %234 = vector.broadcast %211 : vector<1x128xf32> to vector<8x128xf32>
    %235 = arith.addf %233, %234 : vector<8x128xf32>
    %236 = arith.truncf %235 : vector<8x128xf32> to vector<8x128xbf16>
    %c0_76 = arith.constant 0 : index
    %c0_77 = arith.constant 0 : index
    %237 = vector.load %arg21[%c0_76, %c0_77] : memref<128x128xbf16, #tpu.memory_space<vmem>>, vector<128x128xbf16>
    %cst_78 = arith.constant dense<0.000000e+00> : vector<8x128xf32>
    %238 = tpu.matmul %236, %237, %cst_78 {dimension_numbers = #tpu.dot_dimension_numbers<[1], [0], [0], [1], [0, 0, 1, 1], [], []>} : vector<8x128xbf16>, vector<128x128xbf16>, vector<8x128xf32> -> vector<8x128xf32>
    %c0_79 = arith.constant 0 : index
    %c0_80 = arith.constant 0 : index
    %239 = vector.load %arg22[%c0_79, %c0_80] : memref<1x128xf32, #tpu.memory_space<vmem>>, vector<1x128xf32>
    %240 = vector.broadcast %239 : vector<1x128xf32> to vector<8x128xf32>
    %241 = arith.addf %238, %240 : vector<8x128xf32>
    %cst_81 = arith.constant 0.000000e+00 : f32
    %242 = vector.broadcast %cst_81 : f32 to vector<8x128xf32>
    %243 = arith.maximumf %241, %242 : vector<8x128xf32>
    %244 = arith.truncf %243 : vector<8x128xf32> to vector<8x128xbf16>
    %c0_82 = arith.constant 0 : index
    %c0_83 = arith.constant 0 : index
    %245 = vector.load %arg23[%c0_82, %c0_83] : memref<128x128xbf16, #tpu.memory_space<vmem>>, vector<128x128xbf16>
    %cst_84 = arith.constant dense<0.000000e+00> : vector<8x128xf32>
    %246 = tpu.matmul %244, %245, %cst_84 {dimension_numbers = #tpu.dot_dimension_numbers<[1], [0], [0], [1], [0, 0, 1, 1], [], []>} : vector<8x128xbf16>, vector<128x128xbf16>, vector<8x128xf32> -> vector<8x128xf32>
    %c0_85 = arith.constant 0 : index
    %c0_86 = arith.constant 0 : index
    %247 = vector.load %arg24[%c0_85, %c0_86] : memref<1x128xf32, #tpu.memory_space<vmem>>, vector<1x128xf32>
    %248 = vector.broadcast %247 : vector<1x128xf32> to vector<8x128xf32>
    %249 = arith.addf %246, %248 : vector<8x128xf32>
    %250 = arith.addf %249, %235 : vector<8x128xf32>
    %c0_87 = arith.constant 0 : index
    %c0_88 = arith.constant 0 : index
    %251 = vector.load %arg25[%c0_87, %c0_88] : memref<1x128xf32, #tpu.memory_space<vmem>>, vector<1x128xf32>
    %c0_89 = arith.constant 0 : index
    %c0_90 = arith.constant 0 : index
    %252 = vector.load %arg26[%c0_89, %c0_90] : memref<1x128xf32, #tpu.memory_space<vmem>>, vector<1x128xf32>
    %cst_91 = arith.constant dense<0.000000e+00> : vector<8xf32>
    %253 = vector.multi_reduction <add>, %250, %cst_91 [1] : vector<8x128xf32> to vector<8xf32>
    %254 = vector.shape_cast %253 : vector<8xf32> to vector<8x1xf32>
    %cst_92 = arith.constant 3.125000e-02 : f32
    %255 = vector.broadcast %cst_92 : f32 to vector<8x1xf32>
    %256 = arith.mulf %254, %255 : vector<8x1xf32>
    %257 = arith.mulf %250, %250 : vector<8x128xf32>
    %cst_93 = arith.constant dense<0.000000e+00> : vector<8xf32>
    %258 = vector.multi_reduction <add>, %257, %cst_93 [1] : vector<8x128xf32> to vector<8xf32>
    %259 = vector.shape_cast %258 : vector<8xf32> to vector<8x1xf32>
    %cst_94 = arith.constant 3.125000e-02 : f32
    %260 = vector.broadcast %cst_94 : f32 to vector<8x1xf32>
    %261 = arith.mulf %259, %260 : vector<8x1xf32>
    %262 = arith.mulf %256, %256 : vector<8x1xf32>
    %263 = arith.subf %261, %262 : vector<8x1xf32>
    %cst_95 = arith.constant 0.000000e+00 : f32
    %264 = vector.broadcast %cst_95 : f32 to vector<8x1xf32>
    %265 = arith.maximumf %263, %264 : vector<8x1xf32>
    %266 = vector.broadcast %256 : vector<8x1xf32> to vector<8x128xf32>
    %267 = arith.subf %250, %266 : vector<8x128xf32>
    %cst_96 = arith.constant 9.99999974E-6 : f32
    %268 = vector.broadcast %cst_96 : f32 to vector<8x1xf32>
    %269 = arith.addf %265, %268 : vector<8x1xf32>
    %270 = math.rsqrt %269 : vector<8x1xf32>
    %271 = vector.broadcast %270 : vector<8x1xf32> to vector<8x128xf32>
    %272 = arith.mulf %267, %271 : vector<8x128xf32>
    %273 = vector.broadcast %251 : vector<1x128xf32> to vector<8x128xf32>
    %274 = arith.mulf %272, %273 : vector<8x128xf32>
    %275 = vector.broadcast %252 : vector<1x128xf32> to vector<8x128xf32>
    %276 = arith.addf %274, %275 : vector<8x128xf32>
    %c0_97 = arith.constant 0 : index
    %c0_98 = arith.constant 0 : index
    %c0_99 = arith.constant 0 : index
    %277 = vector.load %arg27[%c0_97, %c0_98, %c0_99] : memref<1x8x128xf32, #tpu.memory_space<vmem>>, vector<1x8x128xf32>
    %278 = vector.shape_cast %277 : vector<1x8x128xf32> to vector<8x128xf32>
    %279 = vector.shape_cast %276 : vector<8x128xf32> to vector<1x8x128xf32>
    tpu.vector_store %arg27[%c0_97, %c0_98, %c0_99], %279 {strides = array<i32>} : memref<1x8x128xf32, #tpu.memory_space<vmem>>, vector<1x8x128xf32>,
    return
  }
  func.func @transform_0(%arg0: i32) -> (i32, i32, i32) {
    %c0_i32 = arith.constant 0 : i32
    %c0_i32_0 = arith.constant 0 : i32
    %c0_i32_1 = arith.constant 0 : i32
    return %arg0, %c0_i32, %c0_i32_0 : i32, i32, i32
  }
  func.func @transform_1(%arg0: i32) -> (i32, i32, i32) {
    %c0_i32 = arith.constant 0 : i32
    %c0_i32_0 = arith.constant 0 : i32
    %c0_i32_1 = arith.constant 0 : i32
    return %arg0, %c0_i32, %c0_i32_0 : i32, i32, i32
  }
  func.func @transform_2(%arg0: i32) -> (i32, i32, i32) {
    %c0_i32 = arith.constant 0 : i32
    %c0_i32_0 = arith.constant 0 : i32
    %c0_i32_1 = arith.constant 0 : i32
    return %arg0, %c0_i32, %c0_i32_0 : i32, i32, i32
  }
  func.func @transform_3(%arg0: i32) -> (i32, i32, i32) {
    %c0_i32 = arith.constant 0 : i32
    %c0_i32_0 = arith.constant 0 : i32
    %c0_i32_1 = arith.constant 0 : i32
    return %arg0, %c0_i32, %c0_i32_0 : i32, i32, i32
  }
  func.func @transform_4(%arg0: i32) -> (i32, i32) {
    %c0_i32 = arith.constant 0 : i32
    %c0_i32_0 = arith.constant 0 : i32
    %c0_i32_1 = arith.constant 0 : i32
    return %c0_i32, %c0_i32_0 : i32, i32
  }
  func.func @transform_5(%arg0: i32) -> (i32, i32) {
    %c0_i32 = arith.constant 0 : i32
    %c0_i32_0 = arith.constant 0 : i32
    %c0_i32_1 = arith.constant 0 : i32
    return %c0_i32, %c0_i32_0 : i32, i32
  }
  func.func @transform_6(%arg0: i32) -> (i32, i32) {
    %c0_i32 = arith.constant 0 : i32
    %c0_i32_0 = arith.constant 0 : i32
    %c0_i32_1 = arith.constant 0 : i32
    return %c0_i32, %c0_i32_0 : i32, i32
  }
  func.func @transform_7(%arg0: i32) -> (i32, i32) {
    %c0_i32 = arith.constant 0 : i32
    %c0_i32_0 = arith.constant 0 : i32
    %c0_i32_1 = arith.constant 0 : i32
    return %c0_i32, %c0_i32_0 : i32, i32
  }
  func.func @transform_8(%arg0: i32) -> (i32, i32) {
    %c0_i32 = arith.constant 0 : i32
    %c0_i32_0 = arith.constant 0 : i32
    %c0_i32_1 = arith.constant 0 : i32
    return %c0_i32, %c0_i32_0 : i32, i32
  }
  func.func @transform_9(%arg0: i32) -> (i32, i32) {
    %c0_i32 = arith.constant 0 : i32
    %c0_i32_0 = arith.constant 0 : i32
    %c0_i32_1 = arith.constant 0 : i32
    return %c0_i32, %c0_i32_0 : i32, i32
  }
  func.func @transform_10(%arg0: i32) -> (i32, i32) {
    %c0_i32 = arith.constant 0 : i32
    %c0_i32_0 = arith.constant 0 : i32
    %c0_i32_1 = arith.constant 0 : i32
    return %c0_i32, %c0_i32_0 : i32, i32
  }
  func.func @transform_11(%arg0: i32) -> (i32, i32) {
    %c0_i32 = arith.constant 0 : i32
    %c0_i32_0 = arith.constant 0 : i32
    %c0_i32_1 = arith.constant 0 : i32
    return %c0_i32, %c0_i32_0 : i32, i32
  }
  func.func @transform_12(%arg0: i32) -> (i32, i32) {
    %c0_i32 = arith.constant 0 : i32
    %c0_i32_0 = arith.constant 0 : i32
    %c0_i32_1 = arith.constant 0 : i32
    return %c0_i32, %c0_i32_0 : i32, i32
  }
  func.func @transform_13(%arg0: i32) -> (i32, i32) {
    %c0_i32 = arith.constant 0 : i32
    %c0_i32_0 = arith.constant 0 : i32
    %c0_i32_1 = arith.constant 0 : i32
    return %c0_i32, %c0_i32_0 : i32, i32
  }
  func.func @transform_14(%arg0: i32) -> (i32, i32) {
    %c0_i32 = arith.constant 0 : i32
    %c0_i32_0 = arith.constant 0 : i32
    %c0_i32_1 = arith.constant 0 : i32
    return %c0_i32, %c0_i32_0 : i32, i32
  }
  func.func @transform_15(%arg0: i32) -> (i32, i32) {
    %c0_i32 = arith.constant 0 : i32
    %c0_i32_0 = arith.constant 0 : i32
    %c0_i32_1 = arith.constant 0 : i32
    return %c0_i32, %c0_i32_0 : i32, i32
  }
  func.func @transform_16(%arg0: i32) -> (i32, i32) {
    %c0_i32 = arith.constant 0 : i32
    %c0_i32_0 = arith.constant 0 : i32
    %c0_i32_1 = arith.constant 0 : i32
    return %c0_i32, %c0_i32_0 : i32, i32
  }
  func.func @transform_17(%arg0: i32) -> (i32, i32) {
    %c0_i32 = arith.constant 0 : i32
    %c0_i32_0 = arith.constant 0 : i32
    %c0_i32_1 = arith.constant 0 : i32
    return %c0_i32, %c0_i32_0 : i32, i32
  }
  func.func @transform_18(%arg0: i32) -> (i32, i32) {
    %c0_i32 = arith.constant 0 : i32
    %c0_i32_0 = arith.constant 0 : i32
    %c0_i32_1 = arith.constant 0 : i32
    return %c0_i32, %c0_i32_0 : i32, i32
  }
  func.func @transform_19(%arg0: i32) -> (i32, i32) {
    %c0_i32 = arith.constant 0 : i32
    %c0_i32_0 = arith.constant 0 : i32
    %c0_i32_1 = arith.constant 0 : i32
    return %c0_i32, %c0_i32_0 : i32, i32
  }
  func.func @transform_20(%arg0: i32) -> (i32, i32) {
    %c0_i32 = arith.constant 0 : i32
    %c0_i32_0 = arith.constant 0 : i32
    %c0_i32_1 = arith.constant 0 : i32
    return %c0_i32, %c0_i32_0 : i32, i32
  }
  func.func @transform_21(%arg0: i32) -> (i32, i32) {
    %c0_i32 = arith.constant 0 : i32
    %c0_i32_0 = arith.constant 0 : i32
    %c0_i32_1 = arith.constant 0 : i32
    return %c0_i32, %c0_i32_0 : i32, i32
  }
  func.func @transform_22(%arg0: i32) -> (i32, i32) {
    %c0_i32 = arith.constant 0 : i32
    %c0_i32_0 = arith.constant 0 : i32
    %c0_i32_1 = arith.constant 0 : i32
    return %c0_i32, %c0_i32_0 : i32, i32
  }
  func.func @transform_23(%arg0: i32) -> (i32, i32) {
    %c0_i32 = arith.constant 0 : i32
    %c0_i32_0 = arith.constant 0 : i32
    %c0_i32_1 = arith.constant 0 : i32
    return %c0_i32, %c0_i32_0 : i32, i32
  }
  func.func @transform_24(%arg0: i32) -> (i32, i32) {
    %c0_i32 = arith.constant 0 : i32
    %c0_i32_0 = arith.constant 0 : i32
    %c0_i32_1 = arith.constant 0 : i32
    return %c0_i32, %c0_i32_0 : i32, i32
  }
  func.func @transform_25(%arg0: i32) -> (i32, i32) {
    %c0_i32 = arith.constant 0 : i32
    %c0_i32_0 = arith.constant 0 : i32
    %c0_i32_1 = arith.constant 0 : i32
    return %c0_i32, %c0_i32_0 : i32, i32
  }
  func.func @transform_26(%arg0: i32) -> (i32, i32, i32) {
    %c0_i32 = arith.constant 0 : i32
    %c0_i32_0 = arith.constant 0 : i32
    %c0_i32_1 = arith.constant 0 : i32
    return %arg0, %c0_i32, %c0_i32_0 : i32, i32, i32
  }
}

module attributes {stable_mosaic.version = 11 : i64} {
  func.func @_decoder_layer_kernel(%arg0: i32, %arg1: memref<1x8x128xf32, #tpu.memory_space<vmem>>, %arg2: memref<1x8x128xf32, #tpu.memory_space<vmem>>, %arg3: memref<1x1x8xi8, #tpu.memory_space<vmem>>, %arg4: memref<1x1x8xi8, #tpu.memory_space<vmem>>, %arg5: memref<128x128xbf16, #tpu.memory_space<vmem>>, %arg6: memref<1x128xf32, #tpu.memory_space<vmem>>, %arg7: memref<128x256xbf16, #tpu.memory_space<vmem>>, %arg8: memref<1x256xf32, #tpu.memory_space<vmem>>, %arg9: memref<128x128xbf16, #tpu.memory_space<vmem>>, %arg10: memref<1x128xf32, #tpu.memory_space<vmem>>, %arg11: memref<1x128xf32, #tpu.memory_space<vmem>>, %arg12: memref<1x128xf32, #tpu.memory_space<vmem>>, %arg13: memref<128x128xbf16, #tpu.memory_space<vmem>>, %arg14: memref<1x128xf32, #tpu.memory_space<vmem>>, %arg15: memref<128x256xbf16, #tpu.memory_space<vmem>>, %arg16: memref<1x256xf32, #tpu.memory_space<vmem>>, %arg17: memref<128x128xbf16, #tpu.memory_space<vmem>>, %arg18: memref<1x128xf32, #tpu.memory_space<vmem>>, %arg19: memref<1x128xf32, #tpu.memory_space<vmem>>, %arg20: memref<1x128xf32, #tpu.memory_space<vmem>>, %arg21: memref<128x128xbf16, #tpu.memory_space<vmem>>, %arg22: memref<1x128xf32, #tpu.memory_space<vmem>>, %arg23: memref<128x128xbf16, #tpu.memory_space<vmem>>, %arg24: memref<1x128xf32, #tpu.memory_space<vmem>>, %arg25: memref<1x128xf32, #tpu.memory_space<vmem>>, %arg26: memref<1x128xf32, #tpu.memory_space<vmem>>, %arg27: memref<1x8x128xf32, #tpu.memory_space<vmem>>) attributes {dimension_semantics = [#tpu.dimension_semantics<parallel>], iteration_bounds = array<i64: 2>, scalar_prefetch = 0 : i64, scratch_operands = 0 : i64, tpu.core_type = #tpu.core_type<tc>, window_params = [{transform_indices = @transform_0, window_bounds = array<i64: 1, 8, 128>}, {transform_indices = @transform_1, window_bounds = array<i64: 1, 8, 128>}, {transform_indices = @transform_2, window_bounds = array<i64: 1, 1, 8>}, {transform_indices = @transform_3, window_bounds = array<i64: 1, 1, 8>}, {pipeline_mode = #tpu.pipeline_mode<synchronous>, transform_indices = @transform_4, window_bounds = array<i64: 128, 128>}, {pipeline_mode = #tpu.pipeline_mode<synchronous>, transform_indices = @transform_5, window_bounds = array<i64: 1, 128>}, {pipeline_mode = #tpu.pipeline_mode<synchronous>, transform_indices = @transform_6, window_bounds = array<i64: 128, 256>}, {pipeline_mode = #tpu.pipeline_mode<synchronous>, transform_indices = @transform_7, window_bounds = array<i64: 1, 256>}, {pipeline_mode = #tpu.pipeline_mode<synchronous>, transform_indices = @transform_8, window_bounds = array<i64: 128, 128>}, {pipeline_mode = #tpu.pipeline_mode<synchronous>, transform_indices = @transform_9, window_bounds = array<i64: 1, 128>}, {pipeline_mode = #tpu.pipeline_mode<synchronous>, transform_indices = @transform_10, window_bounds = array<i64: 1, 128>}, {pipeline_mode = #tpu.pipeline_mode<synchronous>, transform_indices = @transform_11, window_bounds = array<i64: 1, 128>}, {pipeline_mode = #tpu.pipeline_mode<synchronous>, transform_indices = @transform_12, window_bounds = array<i64: 128, 128>}, {pipeline_mode = #tpu.pipeline_mode<synchronous>, transform_indices = @transform_13, window_bounds = array<i64: 1, 128>}, {pipeline_mode = #tpu.pipeline_mode<synchronous>, transform_indices = @transform_14, window_bounds = array<i64: 128, 256>}, {pipeline_mode = #tpu.pipeline_mode<synchronous>, transform_indices = @transform_15, window_bounds = array<i64: 1, 256>}, {pipeline_mode = #tpu.pipeline_mode<synchronous>, transform_indices = @transform_16, window_bounds = array<i64: 128, 128>}, {pipeline_mode = #tpu.pipeline_mode<synchronous>, transform_indices = @transform_17, window_bounds = array<i64: 1, 128>}, {pipeline_mode = #tpu.pipeline_mode<synchronous>, transform_indices = @transform_18, window_bounds = array<i64: 1, 128>}, {pipeline_mode = #tpu.pipeline_mode<synchronous>, transform_indices = @transform_19, window_bounds = array<i64: 1, 128>}, {pipeline_mode = #tpu.pipeline_mode<synchronous>, transform_indices = @transform_20, window_bounds = array<i64: 128, 128>}, {pipeline_mode = #tpu.pipeline_mode<synchronous>, transform_indices = @transform_21, window_bounds = array<i64: 1, 128>}, {pipeline_mode = #tpu.pipeline_mode<synchronous>, transform_indices = @transform_22, window_bounds = array<i64: 128, 128>}, {pipeline_mode = #tpu.pipeline_mode<synchronous>, transform_indices = @transform_23, window_bounds = array<i64: 1, 128>}, {pipeline_mode = #tpu.pipeline_mode<synchronous>, transform_indices = @transform_24, window_bounds = array<i64: 1, 128>}, {pipeline_mode = #tpu.pipeline_mode<synchronous>, transform_indices = @transform_25, window_bounds = array<i64: 1, 128>}, {transform_indices = @transform_26, window_bounds = array<i64: 1, 8, 128>}]} {
    %c0 = arith.constant 0 : index
    %c0_0 = arith.constant 0 : index
    %c0_1 = arith.constant 0 : index
    %0 = vector.load %arg1[%c0, %c0_0, %c0_1] : memref<1x8x128xf32, #tpu.memory_space<vmem>>, vector<1x8x128xf32>
    %1 = vector.shape_cast %0 : vector<1x8x128xf32> to vector<8x128xf32>
    %c0_2 = arith.constant 0 : index
    %c0_3 = arith.constant 0 : index
    %c0_4 = arith.constant 0 : index
    %2 = vector.load %arg2[%c0_2, %c0_3, %c0_4] : memref<1x8x128xf32, #tpu.memory_space<vmem>>, vector<1x8x128xf32>
    %3 = vector.shape_cast %2 : vector<1x8x128xf32> to vector<8x128xf32>
    %c0_5 = arith.constant 0 : index
    %c0_6 = arith.constant 0 : index
    %c0_7 = arith.constant 0 : index
    %4 = vector.load %arg3[%c0_5, %c0_6, %c0_7] : memref<1x1x8xi8, #tpu.memory_space<vmem>>, vector<1x1x8xi8>
    %5 = vector.shape_cast %4 : vector<1x1x8xi8> to vector<1x8xi8>
    %6 = arith.sitofp %5 : vector<1x8xi8> to vector<1x8xf32>
    %7 = tpu.iota {dimensions = array<i32: 0>} : vector<8x8xi32>
    %8 = tpu.iota {dimensions = array<i32: 1>} : vector<8x8xi32>
    %9 = arith.cmpi sge, %7, %8 : vector<8x8xi32>
    %cst = arith.constant 1.000000e+00 : f32
    %cst_8 = arith.constant 0.000000e+00 : f32
    %10 = vector.broadcast %cst : f32 to vector<8x8xf32>
    %11 = vector.broadcast %cst_8 : f32 to vector<8x8xf32>
    %12 = arith.select %9, %10, %11 : vector<8x8xi1>, vector<8x8xf32>
    %13 = vector.broadcast %6 : vector<1x8xf32> to vector<8x8xf32>
    %14 = arith.mulf %12, %13 : vector<8x8xf32>
    %cst_9 = arith.constant 1.000000e+00 : f32
    %15 = vector.broadcast %cst_9 : f32 to vector<8x8xf32>
    %16 = arith.subf %15, %14 : vector<8x8xf32>
    %cst_10 = arith.constant -1.000000e+09 : f32
    %17 = vector.broadcast %cst_10 : f32 to vector<8x8xf32>
    %18 = arith.mulf %16, %17 : vector<8x8xf32>
    %19 = arith.truncf %1 : vector<8x128xf32> to vector<8x128xbf16>
    %c0_11 = arith.constant 0 : index
    %c0_12 = arith.constant 0 : index
    %20 = vector.load %arg5[%c0_11, %c0_12] : memref<128x128xbf16, #tpu.memory_space<vmem>>, vector<128x128xbf16>
    %cst_13 = arith.constant dense<0.000000e+00> : vector<8x128xf32>
    %21 = tpu.matmul %19, %20, %cst_13 {dimension_numbers = #tpu.dot_dimension_numbers<[1], [0], [0], [1], [0, 0, 1, 1], [], []>} : vector<8x128xbf16>, vector<128x128xbf16>, vector<8x128xf32> -> vector<8x128xf32>
    %c0_14 = arith.constant 0 : index
    %c0_15 = arith.constant 0 : index
    %22 = vector.load %arg6[%c0_14, %c0_15] : memref<1x128xf32, #tpu.memory_space<vmem>>, vector<1x128xf32>
    %23 = vector.broadcast %22 : vector<1x128xf32> to vector<8x128xf32>
    %24 = arith.addf %21, %23 : vector<8x128xf32>
    %25 = arith.truncf %1 : vector<8x128xf32> to vector<8x128xbf16>
    %c0_16 = arith.constant 0 : index
    %c0_17 = arith.constant 0 : index
    %26 = vector.load %arg7[%c0_16, %c0_17] : memref<128x256xbf16, #tpu.memory_space<vmem>>, vector<128x256xbf16>
    %cst_18 = arith.constant dense<0.000000e+00> : vector<8x256xf32>
    %27 = tpu.matmul %25, %26, %cst_18 {dimension_numbers = #tpu.dot_dimension_numbers<[1], [0], [0], [1], [0, 0, 1, 1], [], []>} : vector<8x128xbf16>, vector<128x256xbf16>, vector<8x256xf32> -> vector<8x256xf32>
    %c0_19 = arith.constant 0 : index
    %c0_20 = arith.constant 0 : index
    %28 = vector.load %arg8[%c0_19, %c0_20] : memref<1x256xf32, #tpu.memory_space<vmem>>, vector<1x256xf32>
    %29 = vector.broadcast %28 : vector<1x256xf32> to vector<8x256xf32>
    %30 = arith.addf %27, %29 : vector<8x256xf32>
    %31 = vector.extract_strided_slice %30 {offsets = [0, 0], sizes = [8, 128], strides = [1, 1]} : vector<8x256xf32> to vector<8x128xf32>
    %32 = vector.extract_strided_slice %30 {offsets = [0, 128], sizes = [8, 128], strides = [1, 1]} : vector<8x256xf32> to vector<8x128xf32>
    %33 = arith.truncf %24 : vector<8x128xf32> to vector<8x128xbf16>
    %34 = arith.truncf %31 : vector<8x128xf32> to vector<8x128xbf16>
    %35 = arith.truncf %32 : vector<8x128xf32> to vector<8x128xbf16>
    %36 = vector.extract_strided_slice %33 {offsets = [0, 0], sizes = [8, 32], strides = [1, 1]} : vector<8x128xbf16> to vector<8x32xbf16>
    %37 = vector.extract_strided_slice %33 {offsets = [0, 32], sizes = [8, 32], strides = [1, 1]} : vector<8x128xbf16> to vector<8x32xbf16>
    %38 = vector.extract_strided_slice %33 {offsets = [0, 64], sizes = [8, 32], strides = [1, 1]} : vector<8x128xbf16> to vector<8x32xbf16>
    %39 = vector.extract_strided_slice %33 {offsets = [0, 96], sizes = [8, 32], strides = [1, 1]} : vector<8x128xbf16> to vector<8x32xbf16>
    %40 = vector.shape_cast %36 : vector<8x32xbf16> to vector<1x8x32xbf16>
    %41 = vector.shape_cast %37 : vector<8x32xbf16> to vector<1x8x32xbf16>
    %42 = vector.shape_cast %38 : vector<8x32xbf16> to vector<1x8x32xbf16>
    %43 = vector.shape_cast %39 : vector<8x32xbf16> to vector<1x8x32xbf16>
    %44 = tpu.concatenate %40, %41, %42, %43 in 0 : vector<1x8x32xbf16>, vector<1x8x32xbf16>, vector<1x8x32xbf16>, vector<1x8x32xbf16> -> vector<4x8x32xbf16>
    %45 = vector.extract_strided_slice %34 {offsets = [0, 0], sizes = [8, 32], strides = [1, 1]} : vector<8x128xbf16> to vector<8x32xbf16>
    %46 = vector.extract_strided_slice %34 {offsets = [0, 32], sizes = [8, 32], strides = [1, 1]} : vector<8x128xbf16> to vector<8x32xbf16>
    %47 = vector.extract_strided_slice %34 {offsets = [0, 64], sizes = [8, 32], strides = [1, 1]} : vector<8x128xbf16> to vector<8x32xbf16>
    %48 = vector.extract_strided_slice %34 {offsets = [0, 96], sizes = [8, 32], strides = [1, 1]} : vector<8x128xbf16> to vector<8x32xbf16>
    %49 = vector.shape_cast %45 : vector<8x32xbf16> to vector<1x8x32xbf16>
    %50 = vector.shape_cast %46 : vector<8x32xbf16> to vector<1x8x32xbf16>
    %51 = vector.shape_cast %47 : vector<8x32xbf16> to vector<1x8x32xbf16>
    %52 = vector.shape_cast %48 : vector<8x32xbf16> to vector<1x8x32xbf16>
    %53 = tpu.concatenate %49, %50, %51, %52 in 0 : vector<1x8x32xbf16>, vector<1x8x32xbf16>, vector<1x8x32xbf16>, vector<1x8x32xbf16> -> vector<4x8x32xbf16>
    %54 = vector.extract_strided_slice %35 {offsets = [0, 0], sizes = [8, 32], strides = [1, 1]} : vector<8x128xbf16> to vector<8x32xbf16>
    %55 = vector.extract_strided_slice %35 {offsets = [0, 32], sizes = [8, 32], strides = [1, 1]} : vector<8x128xbf16> to vector<8x32xbf16>
    %56 = vector.extract_strided_slice %35 {offsets = [0, 64], sizes = [8, 32], strides = [1, 1]} : vector<8x128xbf16> to vector<8x32xbf16>
    %57 = vector.extract_strided_slice %35 {offsets = [0, 96], sizes = [8, 32], strides = [1, 1]} : vector<8x128xbf16> to vector<8x32xbf16>
    %58 = vector.shape_cast %54 : vector<8x32xbf16> to vector<1x8x32xbf16>
    %59 = vector.shape_cast %55 : vector<8x32xbf16> to vector<1x8x32xbf16>
    %60 = vector.shape_cast %56 : vector<8x32xbf16> to vector<1x8x32xbf16>
    %61 = vector.shape_cast %57 : vector<8x32xbf16> to vector<1x8x32xbf16>
    %62 = tpu.concatenate %58, %59, %60, %61 in 0 : vector<1x8x32xbf16>, vector<1x8x32xbf16>, vector<1x8x32xbf16>, vector<1x8x32xbf16> -> vector<4x8x32xbf16>
    "tpu.trace_start"() <{level = 10 : i32, message = "hqd,hkd->hqk"}> : () -> ()
    %cst_21 = arith.constant dense<0.000000e+00> : vector<4x8x8xf32>
    %63 = tpu.matmul %44, %53, %cst_21 {dimension_numbers = #tpu.dot_dimension_numbers<[2], [2], [1], [1], [0, 0, 0, 1, 1, 1], [0], [0]>} : vector<4x8x32xbf16>, vector<4x8x32xbf16>, vector<4x8x8xf32> -> vector<4x8x8xf32>
    "tpu.trace_stop"() : () -> ()
    %cst_22 = arith.constant 0.353553385 : f32
    %64 = vector.broadcast %cst_22 : f32 to vector<4x8x8xf32>
    %65 = arith.mulf %63, %64 : vector<4x8x8xf32>
    %66 = vector.shape_cast %18 : vector<8x8xf32> to vector<1x8x8xf32>
    %67 = vector.broadcast %66 : vector<1x8x8xf32> to vector<4x8x8xf32>
    %68 = arith.addf %65, %67 : vector<4x8x8xf32>
    %cst_23 = arith.constant dense<0xFF800000> : vector<4x8xf32>
    %69 = vector.multi_reduction <maximumf>, %68, %cst_23 [2] : vector<4x8x8xf32> to vector<4x8xf32>
    %70 = vector.shape_cast %69 : vector<4x8xf32> to vector<4x8x1xf32>
    %71 = vector.broadcast %70 : vector<4x8x1xf32> to vector<4x8x8xf32>
    %72 = arith.subf %68, %71 : vector<4x8x8xf32>
    %73 = math.exp %72 : vector<4x8x8xf32>
    %cst_24 = arith.constant dense<0.000000e+00> : vector<4x8xf32>
    %74 = vector.multi_reduction <add>, %73, %cst_24 [2] : vector<4x8x8xf32> to vector<4x8xf32>
    %75 = vector.shape_cast %74 : vector<4x8xf32> to vector<4x8x1xf32>
    %76 = tpu.reciprocal %75 {approx = true} : vector<4x8x1xf32> -> vector<4x8x1xf32>
    %77 = vector.broadcast %76 : vector<4x8x1xf32> to vector<4x8x8xf32>
    %78 = arith.mulf %73, %77 : vector<4x8x8xf32>
    %79 = arith.truncf %78 : vector<4x8x8xf32> to vector<4x8x8xbf16>
    "tpu.trace_start"() <{level = 10 : i32, message = "hqk,hkd->hqd"}> : () -> ()
    %cst_25 = arith.constant dense<0.000000e+00> : vector<4x8x32xf32>
    %80 = tpu.matmul %79, %62, %cst_25 {dimension_numbers = #tpu.dot_dimension_numbers<[2], [1], [1], [2], [0, 0, 0, 1, 1, 2], [0], [0]>} : vector<4x8x8xbf16>, vector<4x8x32xbf16>, vector<4x8x32xf32> -> vector<4x8x32xf32>
    "tpu.trace_stop"() : () -> ()
    %81 = vector.extract_strided_slice %80 {offsets = [0, 0, 0], sizes = [1, 8, 32], strides = [1, 1, 1]} : vector<4x8x32xf32> to vector<1x8x32xf32>
    %82 = vector.shape_cast %81 : vector<1x8x32xf32> to vector<8x32xf32>
    %83 = vector.extract_strided_slice %80 {offsets = [1, 0, 0], sizes = [1, 8, 32], strides = [1, 1, 1]} : vector<4x8x32xf32> to vector<1x8x32xf32>
    %84 = vector.shape_cast %83 : vector<1x8x32xf32> to vector<8x32xf32>
    %85 = vector.extract_strided_slice %80 {offsets = [2, 0, 0], sizes = [1, 8, 32], strides = [1, 1, 1]} : vector<4x8x32xf32> to vector<1x8x32xf32>
    %86 = vector.shape_cast %85 : vector<1x8x32xf32> to vector<8x32xf32>
    %87 = vector.extract_strided_slice %80 {offsets = [3, 0, 0], sizes = [1, 8, 32], strides = [1, 1, 1]} : vector<4x8x32xf32> to vector<1x8x32xf32>
    %88 = vector.shape_cast %87 : vector<1x8x32xf32> to vector<8x32xf32>
    %89 = tpu.concatenate %82, %84, %86, %88 in 1 : vector<8x32xf32>, vector<8x32xf32>, vector<8x32xf32>, vector<8x32xf32> -> vector<8x128xf32>
    %90 = arith.truncf %89 : vector<8x128xf32> to vector<8x128xbf16>
    %c0_26 = arith.constant 0 : index
    %c0_27 = arith.constant 0 : index
    %91 = vector.load %arg9[%c0_26, %c0_27] : memref<128x128xbf16, #tpu.memory_space<vmem>>, vector<128x128xbf16>
    %cst_28 = arith.constant dense<0.000000e+00> : vector<8x128xf32>
    %92 = tpu.matmul %90, %91, %cst_28 {dimension_numbers = #tpu.dot_dimension_numbers<[1], [0], [0], [1], [0, 0, 1, 1], [], []>} : vector<8x128xbf16>, vector<128x128xbf16>, vector<8x128xf32> -> vector<8x128xf32>
    %c0_29 = arith.constant 0 : index
    %c0_30 = arith.constant 0 : index
    %93 = vector.load %arg10[%c0_29, %c0_30] : memref<1x128xf32, #tpu.memory_space<vmem>>, vector<1x128xf32>
    %94 = vector.broadcast %93 : vector<1x128xf32> to vector<8x128xf32>
    %95 = arith.addf %92, %94 : vector<8x128xf32>
    %96 = arith.addf %95, %1 : vector<8x128xf32>
    %c0_31 = arith.constant 0 : index
    %c0_32 = arith.constant 0 : index
    %97 = vector.load %arg11[%c0_31, %c0_32] : memref<1x128xf32, #tpu.memory_space<vmem>>, vector<1x128xf32>
    %c0_33 = arith.constant 0 : index
    %c0_34 = arith.constant 0 : index
    %98 = vector.load %arg12[%c0_33, %c0_34] : memref<1x128xf32, #tpu.memory_space<vmem>>, vector<1x128xf32>
    %cst_35 = arith.constant dense<0.000000e+00> : vector<8xf32>
    %99 = vector.multi_reduction <add>, %96, %cst_35 [1] : vector<8x128xf32> to vector<8xf32>
    %100 = vector.shape_cast %99 : vector<8xf32> to vector<8x1xf32>
    %cst_36 = arith.constant 3.125000e-02 : f32
    %101 = vector.broadcast %cst_36 : f32 to vector<8x1xf32>
    %102 = arith.mulf %100, %101 : vector<8x1xf32>
    %103 = arith.mulf %96, %96 : vector<8x128xf32>
    %cst_37 = arith.constant dense<0.000000e+00> : vector<8xf32>
    %104 = vector.multi_reduction <add>, %103, %cst_37 [1] : vector<8x128xf32> to vector<8xf32>
    %105 = vector.shape_cast %104 : vector<8xf32> to vector<8x1xf32>
    %cst_38 = arith.constant 3.125000e-02 : f32
    %106 = vector.broadcast %cst_38 : f32 to vector<8x1xf32>
    %107 = arith.mulf %105, %106 : vector<8x1xf32>
    %108 = arith.mulf %102, %102 : vector<8x1xf32>
    %109 = arith.subf %107, %108 : vector<8x1xf32>
    %cst_39 = arith.constant 0.000000e+00 : f32
    %110 = vector.broadcast %cst_39 : f32 to vector<8x1xf32>
    %111 = arith.maximumf %109, %110 : vector<8x1xf32>
    %112 = vector.broadcast %102 : vector<8x1xf32> to vector<8x128xf32>
    %113 = arith.subf %96, %112 : vector<8x128xf32>
    %cst_40 = arith.constant 9.99999974E-6 : f32
    %114 = vector.broadcast %cst_40 : f32 to vector<8x1xf32>
    %115 = arith.addf %111, %114 : vector<8x1xf32>
    %116 = math.rsqrt %115 : vector<8x1xf32>
    %117 = vector.broadcast %116 : vector<8x1xf32> to vector<8x128xf32>
    %118 = arith.mulf %113, %117 : vector<8x128xf32>
    %119 = vector.broadcast %97 : vector<1x128xf32> to vector<8x128xf32>
    %120 = arith.mulf %118, %119 : vector<8x128xf32>
    %121 = vector.broadcast %98 : vector<1x128xf32> to vector<8x128xf32>
    %122 = arith.addf %120, %121 : vector<8x128xf32>
    %c0_41 = arith.constant 0 : index
    %c0_42 = arith.constant 0 : index
    %c0_43 = arith.constant 0 : index
    %123 = vector.load %arg4[%c0_41, %c0_42, %c0_43] : memref<1x1x8xi8, #tpu.memory_space<vmem>>, vector<1x1x8xi8>
    %124 = vector.shape_cast %123 : vector<1x1x8xi8> to vector<1x8xi8>
    %125 = arith.sitofp %124 : vector<1x8xi8> to vector<1x8xf32>
    %cst_44 = arith.constant 1.000000e+00 : f32
    %126 = vector.broadcast %cst_44 : f32 to vector<1x8xf32>
    %127 = arith.subf %126, %125 : vector<1x8xf32>
    %cst_45 = arith.constant -1.000000e+09 : f32
    %128 = vector.broadcast %cst_45 : f32 to vector<1x8xf32>
    %129 = arith.mulf %127, %128 : vector<1x8xf32>
    %130 = vector.shape_cast %129 : vector<1x8xf32> to vector<1x8xf32>
    %131 = vector.broadcast %130 : vector<1x8xf32> to vector<8x8xf32>
    %132 = arith.truncf %122 : vector<8x128xf32> to vector<8x128xbf16>
    %c0_46 = arith.constant 0 : index
    %c0_47 = arith.constant 0 : index
    %133 = vector.load %arg13[%c0_46, %c0_47] : memref<128x128xbf16, #tpu.memory_space<vmem>>, vector<128x128xbf16>
    %cst_48 = arith.constant dense<0.000000e+00> : vector<8x128xf32>
    %134 = tpu.matmul %132, %133, %cst_48 {dimension_numbers = #tpu.dot_dimension_numbers<[1], [0], [0], [1], [0, 0, 1, 1], [], []>} : vector<8x128xbf16>, vector<128x128xbf16>, vector<8x128xf32> -> vector<8x128xf32>
    %c0_49 = arith.constant 0 : index
    %c0_50 = arith.constant 0 : index
    %135 = vector.load %arg14[%c0_49, %c0_50] : memref<1x128xf32, #tpu.memory_space<vmem>>, vector<1x128xf32>
    %136 = vector.broadcast %135 : vector<1x128xf32> to vector<8x128xf32>
    %137 = arith.addf %134, %136 : vector<8x128xf32>
    %138 = arith.truncf %3 : vector<8x128xf32> to vector<8x128xbf16>
    %c0_51 = arith.constant 0 : index
    %c0_52 = arith.constant 0 : index
    %139 = vector.load %arg15[%c0_51, %c0_52] : memref<128x256xbf16, #tpu.memory_space<vmem>>, vector<128x256xbf16>
    %cst_53 = arith.constant dense<0.000000e+00> : vector<8x256xf32>
    %140 = tpu.matmul %138, %139, %cst_53 {dimension_numbers = #tpu.dot_dimension_numbers<[1], [0], [0], [1], [0, 0, 1, 1], [], []>} : vector<8x128xbf16>, vector<128x256xbf16>, vector<8x256xf32> -> vector<8x256xf32>
    %c0_54 = arith.constant 0 : index
    %c0_55 = arith.constant 0 : index
    %141 = vector.load %arg16[%c0_54, %c0_55] : memref<1x256xf32, #tpu.memory_space<vmem>>, vector<1x256xf32>
    %142 = vector.broadcast %141 : vector<1x256xf32> to vector<8x256xf32>
    %143 = arith.addf %140, %142 : vector<8x256xf32>
    %144 = vector.extract_strided_slice %143 {offsets = [0, 0], sizes = [8, 128], strides = [1, 1]} : vector<8x256xf32> to vector<8x128xf32>
    %145 = vector.extract_strided_slice %143 {offsets = [0, 128], sizes = [8, 128], strides = [1, 1]} : vector<8x256xf32> to vector<8x128xf32>
    %146 = arith.truncf %137 : vector<8x128xf32> to vector<8x128xbf16>
    %147 = arith.truncf %144 : vector<8x128xf32> to vector<8x128xbf16>
    %148 = arith.truncf %145 : vector<8x128xf32> to vector<8x128xbf16>
    %149 = vector.extract_strided_slice %146 {offsets = [0, 0], sizes = [8, 32], strides = [1, 1]} : vector<8x128xbf16> to vector<8x32xbf16>
    %150 = vector.extract_strided_slice %146 {offsets = [0, 32], sizes = [8, 32], strides = [1, 1]} : vector<8x128xbf16> to vector<8x32xbf16>
    %151 = vector.extract_strided_slice %146 {offsets = [0, 64], sizes = [8, 32], strides = [1, 1]} : vector<8x128xbf16> to vector<8x32xbf16>
    %152 = vector.extract_strided_slice %146 {offsets = [0, 96], sizes = [8, 32], strides = [1, 1]} : vector<8x128xbf16> to vector<8x32xbf16>
    %153 = vector.shape_cast %149 : vector<8x32xbf16> to vector<1x8x32xbf16>
    %154 = vector.shape_cast %150 : vector<8x32xbf16> to vector<1x8x32xbf16>
    %155 = vector.shape_cast %151 : vector<8x32xbf16> to vector<1x8x32xbf16>
    %156 = vector.shape_cast %152 : vector<8x32xbf16> to vector<1x8x32xbf16>
    %157 = tpu.concatenate %153, %154, %155, %156 in 0 : vector<1x8x32xbf16>, vector<1x8x32xbf16>, vector<1x8x32xbf16>, vector<1x8x32xbf16> -> vector<4x8x32xbf16>
    %158 = vector.extract_strided_slice %147 {offsets = [0, 0], sizes = [8, 32], strides = [1, 1]} : vector<8x128xbf16> to vector<8x32xbf16>
    %159 = vector.extract_strided_slice %147 {offsets = [0, 32], sizes = [8, 32], strides = [1, 1]} : vector<8x128xbf16> to vector<8x32xbf16>
    %160 = vector.extract_strided_slice %147 {offsets = [0, 64], sizes = [8, 32], strides = [1, 1]} : vector<8x128xbf16> to vector<8x32xbf16>
    %161 = vector.extract_strided_slice %147 {offsets = [0, 96], sizes = [8, 32], strides = [1, 1]} : vector<8x128xbf16> to vector<8x32xbf16>
    %162 = vector.shape_cast %158 : vector<8x32xbf16> to vector<1x8x32xbf16>
    %163 = vector.shape_cast %159 : vector<8x32xbf16> to vector<1x8x32xbf16>
    %164 = vector.shape_cast %160 : vector<8x32xbf16> to vector<1x8x32xbf16>
    %165 = vector.shape_cast %161 : vector<8x32xbf16> to vector<1x8x32xbf16>
    %166 = tpu.concatenate %162, %163, %164, %165 in 0 : vector<1x8x32xbf16>, vector<1x8x32xbf16>, vector<1x8x32xbf16>, vector<1x8x32xbf16> -> vector<4x8x32xbf16>
    %167 = vector.extract_strided_slice %148 {offsets = [0, 0], sizes = [8, 32], strides = [1, 1]} : vector<8x128xbf16> to vector<8x32xbf16>
    %168 = vector.extract_strided_slice %148 {offsets = [0, 32], sizes = [8, 32], strides = [1, 1]} : vector<8x128xbf16> to vector<8x32xbf16>
    %169 = vector.extract_strided_slice %148 {offsets = [0, 64], sizes = [8, 32], strides = [1, 1]} : vector<8x128xbf16> to vector<8x32xbf16>
    %170 = vector.extract_strided_slice %148 {offsets = [0, 96], sizes = [8, 32], strides = [1, 1]} : vector<8x128xbf16> to vector<8x32xbf16>
    %171 = vector.shape_cast %167 : vector<8x32xbf16> to vector<1x8x32xbf16>
    %172 = vector.shape_cast %168 : vector<8x32xbf16> to vector<1x8x32xbf16>
    %173 = vector.shape_cast %169 : vector<8x32xbf16> to vector<1x8x32xbf16>
    %174 = vector.shape_cast %170 : vector<8x32xbf16> to vector<1x8x32xbf16>
    %175 = tpu.concatenate %171, %172, %173, %174 in 0 : vector<1x8x32xbf16>, vector<1x8x32xbf16>, vector<1x8x32xbf16>, vector<1x8x32xbf16> -> vector<4x8x32xbf16>
    "tpu.trace_start"() <{level = 10 : i32, message = "hqd,hkd->hqk"}> : () -> ()
    %cst_56 = arith.constant dense<0.000000e+00> : vector<4x8x8xf32>
    %176 = tpu.matmul %157, %166, %cst_56 {dimension_numbers = #tpu.dot_dimension_numbers<[2], [2], [1], [1], [0, 0, 0, 1, 1, 1], [0], [0]>} : vector<4x8x32xbf16>, vector<4x8x32xbf16>, vector<4x8x8xf32> -> vector<4x8x8xf32>
    "tpu.trace_stop"() : () -> ()
    %cst_57 = arith.constant 0.353553385 : f32
    %177 = vector.broadcast %cst_57 : f32 to vector<4x8x8xf32>
    %178 = arith.mulf %176, %177 : vector<4x8x8xf32>
    %179 = vector.shape_cast %131 : vector<8x8xf32> to vector<1x8x8xf32>
    %180 = vector.broadcast %179 : vector<1x8x8xf32> to vector<4x8x8xf32>
    %181 = arith.addf %178, %180 : vector<4x8x8xf32>
    %cst_58 = arith.constant dense<0xFF800000> : vector<4x8xf32>
    %182 = vector.multi_reduction <maximumf>, %181, %cst_58 [2] : vector<4x8x8xf32> to vector<4x8xf32>
    %183 = vector.shape_cast %182 : vector<4x8xf32> to vector<4x8x1xf32>
    %184 = vector.broadcast %183 : vector<4x8x1xf32> to vector<4x8x8xf32>
    %185 = arith.subf %181, %184 : vector<4x8x8xf32>
    %186 = math.exp %185 : vector<4x8x8xf32>
    %cst_59 = arith.constant dense<0.000000e+00> : vector<4x8xf32>
    %187 = vector.multi_reduction <add>, %186, %cst_59 [2] : vector<4x8x8xf32> to vector<4x8xf32>
    %188 = vector.shape_cast %187 : vector<4x8xf32> to vector<4x8x1xf32>
    %189 = tpu.reciprocal %188 {approx = true} : vector<4x8x1xf32> -> vector<4x8x1xf32>
    %190 = vector.broadcast %189 : vector<4x8x1xf32> to vector<4x8x8xf32>
    %191 = arith.mulf %186, %190 : vector<4x8x8xf32>
    %192 = arith.truncf %191 : vector<4x8x8xf32> to vector<4x8x8xbf16>
    "tpu.trace_start"() <{level = 10 : i32, message = "hqk,hkd->hqd"}> : () -> ()
    %cst_60 = arith.constant dense<0.000000e+00> : vector<4x8x32xf32>
    %193 = tpu.matmul %192, %175, %cst_60 {dimension_numbers = #tpu.dot_dimension_numbers<[2], [1], [1], [2], [0, 0, 0, 1, 1, 2], [0], [0]>} : vector<4x8x8xbf16>, vector<4x8x32xbf16>, vector<4x8x32xf32> -> vector<4x8x32xf32>
    "tpu.trace_stop"() : () -> ()
    %194 = vector.extract_strided_slice %193 {offsets = [0, 0, 0], sizes = [1, 8, 32], strides = [1, 1, 1]} : vector<4x8x32xf32> to vector<1x8x32xf32>
    %195 = vector.shape_cast %194 : vector<1x8x32xf32> to vector<8x32xf32>
    %196 = vector.extract_strided_slice %193 {offsets = [1, 0, 0], sizes = [1, 8, 32], strides = [1, 1, 1]} : vector<4x8x32xf32> to vector<1x8x32xf32>
    %197 = vector.shape_cast %196 : vector<1x8x32xf32> to vector<8x32xf32>
    %198 = vector.extract_strided_slice %193 {offsets = [2, 0, 0], sizes = [1, 8, 32], strides = [1, 1, 1]} : vector<4x8x32xf32> to vector<1x8x32xf32>
    %199 = vector.shape_cast %198 : vector<1x8x32xf32> to vector<8x32xf32>
    %200 = vector.extract_strided_slice %193 {offsets = [3, 0, 0], sizes = [1, 8, 32], strides = [1, 1, 1]} : vector<4x8x32xf32> to vector<1x8x32xf32>
    %201 = vector.shape_cast %200 : vector<1x8x32xf32> to vector<8x32xf32>
    %202 = tpu.concatenate %195, %197, %199, %201 in 1 : vector<8x32xf32>, vector<8x32xf32>, vector<8x32xf32>, vector<8x32xf32> -> vector<8x128xf32>
    %203 = arith.truncf %202 : vector<8x128xf32> to vector<8x128xbf16>
    %c0_61 = arith.constant 0 : index
    %c0_62 = arith.constant 0 : index
    %204 = vector.load %arg17[%c0_61, %c0_62] : memref<128x128xbf16, #tpu.memory_space<vmem>>, vector<128x128xbf16>
    %cst_63 = arith.constant dense<0.000000e+00> : vector<8x128xf32>
    %205 = tpu.matmul %203, %204, %cst_63 {dimension_numbers = #tpu.dot_dimension_numbers<[1], [0], [0], [1], [0, 0, 1, 1], [], []>} : vector<8x128xbf16>, vector<128x128xbf16>, vector<8x128xf32> -> vector<8x128xf32>
    %c0_64 = arith.constant 0 : index
    %c0_65 = arith.constant 0 : index
    %206 = vector.load %arg18[%c0_64, %c0_65] : memref<1x128xf32, #tpu.memory_space<vmem>>, vector<1x128xf32>
    %207 = vector.broadcast %206 : vector<1x128xf32> to vector<8x128xf32>
    %208 = arith.addf %205, %207 : vector<8x128xf32>
    %209 = arith.addf %208, %122 : vector<8x128xf32>
    %c0_66 = arith.constant 0 : index
    %c0_67 = arith.constant 0 : index
    %210 = vector.load %arg19[%c0_66, %c0_67] : memref<1x128xf32, #tpu.memory_space<vmem>>, vector<1x128xf32>
    %c0_68 = arith.constant 0 : index
    %c0_69 = arith.constant 0 : index
    %211 = vector.load %arg20[%c0_68, %c0_69] : memref<1x128xf32, #tpu.memory_space<vmem>>, vector<1x128xf32>
    %cst_70 = arith.constant dense<0.000000e+00> : vector<8xf32>
    %212 = vector.multi_reduction <add>, %209, %cst_70 [1] : vector<8x128xf32> to vector<8xf32>
    %213 = vector.shape_cast %212 : vector<8xf32> to vector<8x1xf32>
    %cst_71 = arith.constant 3.125000e-02 : f32
    %214 = vector.broadcast %cst_71 : f32 to vector<8x1xf32>
    %215 = arith.mulf %213, %214 : vector<8x1xf32>
    %216 = arith.mulf %209, %209 : vector<8x128xf32>
    %cst_72 = arith.constant dense<0.000000e+00> : vector<8xf32>
    %217 = vector.multi_reduction <add>, %216, %cst_72 [1] : vector<8x128xf32> to vector<8xf32>
    %218 = vector.shape_cast %217 : vector<8xf32> to vector<8x1xf32>
    %cst_73 = arith.constant 3.125000e-02 : f32
    %219 = vector.broadcast %cst_73 : f32 to vector<8x1xf32>
    %220 = arith.mulf %218, %219 : vector<8x1xf32>
    %221 = arith.mulf %215, %215 : vector<8x1xf32>
    %222 = arith.subf %220, %221 : vector<8x1xf32>
    %cst_74 = arith.constant 0.000000e+00 : f32
    %223 = vector.broadcast %cst_74 : f32 to vector<8x1xf32>
    %224 = arith.maximumf %222, %223 : vector<8x1xf32>
    %225 = vector.broadcast %215 : vector<8x1xf32> to vector<8x128xf32>
    %226 = arith.subf %209, %225 : vector<8x128xf32>
    %cst_75 = arith.constant 9.99999974E-6 : f32
    %227 = vector.broadcast %cst_75 : f32 to vector<8x1xf32>
    %228 = arith.addf %224, %227 : vector<8x1xf32>
    %229 = math.rsqrt %228 : vector<8x1xf32>
    %230 = vector.broadcast %229 : vector<8x1xf32> to vector<8x128xf32>
    %231 = arith.mulf %226, %230 : vector<8x128xf32>
    %232 = vector.broadcast %210 : vector<1x128xf32> to vector<8x128xf32>
    %233 = arith.mulf %231, %232 : vector<8x128xf32>
    %234 = vector.broadcast %211 : vector<1x128xf32> to vector<8x128xf32>
    %235 = arith.addf %233, %234 : vector<8x128xf32>
    %236 = arith.truncf %235 : vector<8x128xf32> to vector<8x128xbf16>
    %c0_76 = arith.constant 0 : index
    %c0_77 = arith.constant 0 : index
    %237 = vector.load %arg21[%c0_76, %c0_77] : memref<128x128xbf16, #tpu.memory_space<vmem>>, vector<128x128xbf16>
    %cst_78 = arith.constant dense<0.000000e+00> : vector<8x128xf32>
    %238 = tpu.matmul %236, %237, %cst_78 {dimension_numbers = #tpu.dot_dimension_numbers<[1], [0], [0], [1], [0, 0, 1, 1], [], []>} : vector<8x128xbf16>, vector<128x128xbf16>, vector<8x128xf32> -> vector<8x128xf32>
    %c0_79 = arith.constant 0 : index
    %c0_80 = arith.constant 0 : index
    %239 = vector.load %arg22[%c0_79, %c0_80] : memref<1x128xf32, #tpu.memory_space<vmem>>, vector<1x128xf32>
    %240 = vector.broadcast %239 : vector<1x128xf32> to vector<8x128xf32>
    %241 = arith.addf %238, %240 : vector<8x128xf32>
    %cst_81 = arith.constant 0.000000e+00 : f32
    %242 = vector.broadcast %cst_81 : f32 to vector<8x128xf32>
    %243 = arith.maximumf %241, %242 : vector<8x128xf32>
    %244 = arith.truncf %243 : vector<8x128xf32> to vector<8x128xbf16>
    %c0_82 = arith.constant 0 : index
    %c0_83 = arith.constant 0 : index
    %245 = vector.load %arg23[%c0_82, %c0_83] : memref<128x128xbf16, #tpu.memory_space<vmem>>, vector<128x128xbf16>
    %cst_84 = arith.constant dense<0.000000e+00> : vector<8x128xf32>
    %246 = tpu.matmul %244, %245, %cst_84 {dimension_numbers = #tpu.dot_dimension_numbers<[1], [0], [0], [1], [0, 0, 1, 1], [], []>} : vector<8x128xbf16>, vector<128x128xbf16>, vector<8x128xf32> -> vector<8x128xf32>
    %c0_85 = arith.constant 0 : index
    %c0_86 = arith.constant 0 : index
    %247 = vector.load %arg24[%c0_85, %c0_86] : memref<1x128xf32, #tpu.memory_space<vmem>>, vector<1x128xf32>
    %248 = vector.broadcast %247 : vector<1x128xf32> to vector<8x128xf32>
    %249 = arith.addf %246, %248 : vector<8x128xf32>
    %250 = arith.addf %249, %235 : vector<8x128xf32>
    %c0_87 = arith.constant 0 : index
    %c0_88 = arith.constant 0 : index
    %251 = vector.load %arg25[%c0_87, %c0_88] : memref<1x128xf32, #tpu.memory_space<vmem>>, vector<1x128xf32>
    %c0_89 = arith.constant 0 : index
    %c0_90 = arith.constant 0 : index
    %252 = vector.load %arg26[%c0_89, %c0_90] : memref<1x128xf32, #tpu.memory_space<vmem>>, vector<1x128xf32>
    %cst_91 = arith.constant dense<0.000000e+00> : vector<8xf32>
    %253 = vector.multi_reduction <add>, %250, %cst_91 [1] : vector<8x128xf32> to vector<8xf32>
    %254 = vector.shape_cast %253 : vector<8xf32> to vector<8x1xf32>
    %cst_92 = arith.constant 3.125000e-02 : f32
    %255 = vector.broadcast %cst_92 : f32 to vector<8x1xf32>
    %256 = arith.mulf %254, %255 : vector<8x1xf32>
    %257 = arith.mulf %250, %250 : vector<8x128xf32>
    %cst_93 = arith.constant dense<0.000000e+00> : vector<8xf32>
    %258 = vector.multi_reduction <add>, %257, %cst_93 [1] : vector<8x128xf32> to vector<8xf32>
    %259 = vector.shape_cast %258 : vector<8xf32> to vector<8x1xf32>
    %cst_94 = arith.constant 3.125000e-02 : f32
    %260 = vector.broadcast %cst_94 : f32 to vector<8x1xf32>
    %261 = arith.mulf %259, %260 : vector<8x1xf32>
    %262 = arith.mulf %256, %256 : vector<8x1xf32>
    %263 = arith.subf %261, %262 : vector<8x1xf32>
    %cst_95 = arith.constant 0.000000e+00 : f32
    %264 = vector.broadcast %cst_95 : f32 to vector<8x1xf32>
    %265 = arith.maximumf %263, %264 : vector<8x1xf32>
    %266 = vector.broadcast %256 : vector<8x1xf32> to vector<8x128xf32>
    %267 = arith.subf %250, %266 : vector<8x128xf32>
    %cst_96 = arith.constant 9.99999974E-6 : f32
    %268 = vector.broadcast %cst_96 : f32 to vector<8x1xf32>
    %269 = arith.addf %265, %268 : vector<8x1xf32>
    %270 = math.rsqrt %269 : vector<8x1xf32>
    %271 = vector.broadcast %270 : vector<8x1xf32> to vector<8x128xf32>
    %272 = arith.mulf %267, %271 : vector<8x128xf32>
    %273 = vector.broadcast %251 : vector<1x128xf32> to vector<8x128xf32>
    %274 = arith.mulf %272, %273 : vector<8x128xf32>
    %275 = vector.broadcast %252 : vector<1x128xf32> to vector<8x128xf32>
    %276 = arith.addf %274, %275 : vector<8x128xf32>
    %c0_97 = arith.constant 0 : index
    %c0_98 = arith.constant 0 : index
    %c0_99 = arith.constant 0 : index
    %277 = vector.load %arg27[%c0_97, %c0_98, %c0_99] : memref<1x8x128xf32, #tpu.memory_space<vmem>>, vector<1x8x128xf32>
    %278 = vector.shape_cast %277 : vector<1x8x128xf32> to vector<8x128xf32>
    %279 = vector.shape_cast %276 : vector<8x128xf32> to vector<1x8x128xf32>
    tpu.vector_store %arg27[%c0_97, %c0_98, %c0_99], %279 {strides = array<i32>} : memref<1x8x128xf32, #tpu.memory_space<vmem>>, vector<1x8x128xf32>,
    return
  }
  func.func @transform_0(%arg0: i32) -> (i32, i32, i32) {
    %c0_i32 = arith.constant 0 : i32
    %c0_i32_0 = arith.constant 0 : i32
    %c0_i32_1 = arith.constant 0 : i32
    return %arg0, %c0_i32, %c0_i32_0 : i32, i32, i32
  }
  func.func @transform_1(%arg0: i32) -> (i32, i32, i32) {
    %c0_i32 = arith.constant 0 : i32
    %c0_i32_0 = arith.constant 0 : i32
    %c0_i32_1 = arith.constant 0 : i32
    return %arg0, %c0_i32, %c0_i32_0 : i32, i32, i32
  }
  func.func @transform_2(%arg0: i32) -> (i32, i32, i32) {
    %c0_i32 = arith.constant 0 : i32
    %c0_i32_0 = arith.constant 0 : i32
    %c0_i32_1 = arith.constant 0 : i32
    return %arg0, %c0_i32, %c0_i32_0 : i32, i32, i32
  }
  func.func @transform_3(%arg0: i32) -> (i32, i32, i32) {
    %c0_i32 = arith.constant 0 : i32
    %c0_i32_0 = arith.constant 0 : i32
    %c0_i32_1 = arith.constant 0 : i32
    return %arg0, %c0_i32, %c0_i32_0 : i32, i32, i32
  }
  func.func @transform_4(%arg0: i32) -> (i32, i32) {
    %c0_i32 = arith.constant 0 : i32
    %c0_i32_0 = arith.constant 0 : i32
    %c0_i32_1 = arith.constant 0 : i32
    return %c0_i32, %c0_i32_0 : i32, i32
  }
  func.func @transform_5(%arg0: i32) -> (i32, i32) {
    %c0_i32 = arith.constant 0 : i32
    %c0_i32_0 = arith.constant 0 : i32
    %c0_i32_1 = arith.constant 0 : i32
    return %c0_i32, %c0_i32_0 : i32, i32
  }
  func.func @transform_6(%arg0: i32) -> (i32, i32) {
    %c0_i32 = arith.constant 0 : i32
    %c0_i32_0 = arith.constant 0 : i32
    %c0_i32_1 = arith.constant 0 : i32
    return %c0_i32, %c0_i32_0 : i32, i32
  }
  func.func @transform_7(%arg0: i32) -> (i32, i32) {
    %c0_i32 = arith.constant 0 : i32
    %c0_i32_0 = arith.constant 0 : i32
    %c0_i32_1 = arith.constant 0 : i32
    return %c0_i32, %c0_i32_0 : i32, i32
  }
  func.func @transform_8(%arg0: i32) -> (i32, i32) {
    %c0_i32 = arith.constant 0 : i32
    %c0_i32_0 = arith.constant 0 : i32
    %c0_i32_1 = arith.constant 0 : i32
    return %c0_i32, %c0_i32_0 : i32, i32
  }
  func.func @transform_9(%arg0: i32) -> (i32, i32) {
    %c0_i32 = arith.constant 0 : i32
    %c0_i32_0 = arith.constant 0 : i32
    %c0_i32_1 = arith.constant 0 : i32
    return %c0_i32, %c0_i32_0 : i32, i32
  }
  func.func @transform_10(%arg0: i32) -> (i32, i32) {
    %c0_i32 = arith.constant 0 : i32
    %c0_i32_0 = arith.constant 0 : i32
    %c0_i32_1 = arith.constant 0 : i32
    return %c0_i32, %c0_i32_0 : i32, i32
  }
  func.func @transform_11(%arg0: i32) -> (i32, i32) {
    %c0_i32 = arith.constant 0 : i32
    %c0_i32_0 = arith.constant 0 : i32
    %c0_i32_1 = arith.constant 0 : i32
    return %c0_i32, %c0_i32_0 : i32, i32
  }
  func.func @transform_12(%arg0: i32) -> (i32, i32) {
    %c0_i32 = arith.constant 0 : i32
    %c0_i32_0 = arith.constant 0 : i32
    %c0_i32_1 = arith.constant 0 : i32
    return %c0_i32, %c0_i32_0 : i32, i32
  }
  func.func @transform_13(%arg0: i32) -> (i32, i32) {
    %c0_i32 = arith.constant 0 : i32
    %c0_i32_0 = arith.constant 0 : i32
    %c0_i32_1 = arith.constant 0 : i32
    return %c0_i32, %c0_i32_0 : i32, i32
  }
  func.func @transform_14(%arg0: i32) -> (i32, i32) {
    %c0_i32 = arith.constant 0 : i32
    %c0_i32_0 = arith.constant 0 : i32
    %c0_i32_1 = arith.constant 0 : i32
    return %c0_i32, %c0_i32_0 : i32, i32
  }
  func.func @transform_15(%arg0: i32) -> (i32, i32) {
    %c0_i32 = arith.constant 0 : i32
    %c0_i32_0 = arith.constant 0 : i32
    %c0_i32_1 = arith.constant 0 : i32
    return %c0_i32, %c0_i32_0 : i32, i32
  }
  func.func @transform_16(%arg0: i32) -> (i32, i32) {
    %c0_i32 = arith.constant 0 : i32
    %c0_i32_0 = arith.constant 0 : i32
    %c0_i32_1 = arith.constant 0 : i32
    return %c0_i32, %c0_i32_0 : i32, i32
  }
  func.func @transform_17(%arg0: i32) -> (i32, i32) {
    %c0_i32 = arith.constant 0 : i32
    %c0_i32_0 = arith.constant 0 : i32
    %c0_i32_1 = arith.constant 0 : i32
    return %c0_i32, %c0_i32_0 : i32, i32
  }
  func.func @transform_18(%arg0: i32) -> (i32, i32) {
    %c0_i32 = arith.constant 0 : i32
    %c0_i32_0 = arith.constant 0 : i32
    %c0_i32_1 = arith.constant 0 : i32
    return %c0_i32, %c0_i32_0 : i32, i32
  }
  func.func @transform_19(%arg0: i32) -> (i32, i32) {
    %c0_i32 = arith.constant 0 : i32
    %c0_i32_0 = arith.constant 0 : i32
    %c0_i32_1 = arith.constant 0 : i32
    return %c0_i32, %c0_i32_0 : i32, i32
  }
  func.func @transform_20(%arg0: i32) -> (i32, i32) {
    %c0_i32 = arith.constant 0 : i32
    %c0_i32_0 = arith.constant 0 : i32
    %c0_i32_1 = arith.constant 0 : i32
    return %c0_i32, %c0_i32_0 : i32, i32
  }
  func.func @transform_21(%arg0: i32) -> (i32, i32) {
    %c0_i32 = arith.constant 0 : i32
    %c0_i32_0 = arith.constant 0 : i32
    %c0_i32_1 = arith.constant 0 : i32
    return %c0_i32, %c0_i32_0 : i32, i32
  }
  func.func @transform_22(%arg0: i32) -> (i32, i32) {
    %c0_i32 = arith.constant 0 : i32
    %c0_i32_0 = arith.constant 0 : i32
    %c0_i32_1 = arith.constant 0 : i32
    return %c0_i32, %c0_i32_0 : i32, i32
  }
  func.func @transform_23(%arg0: i32) -> (i32, i32) {
    %c0_i32 = arith.constant 0 : i32
    %c0_i32_0 = arith.constant 0 : i32
    %c0_i32_1 = arith.constant 0 : i32
    return %c0_i32, %c0_i32_0 : i32, i32
  }
  func.func @transform_24(%arg0: i32) -> (i32, i32) {
    %c0_i32 = arith.constant 0 : i32
    %c0_i32_0 = arith.constant 0 : i32
    %c0_i32_1 = arith.constant 0 : i32
    return %c0_i32, %c0_i32_0 : i32, i32
  }
  func.func @transform_25(%arg0: i32) -> (i32, i32) {
    %c0_i32 = arith.constant 0 : i32
    %c0_i32_0 = arith.constant 0 : i32
    %c0_i32_1 = arith.constant 0 : i32
    return %c0_i32, %c0_i32_0 : i32, i32
  }
  func.func @transform_26(%arg0: i32) -> (i32, i32, i32) {
    %c0_i32 = arith.constant 0 : i32
    %c0_i32_0 = arith.constant 0 : i32
    %c0_i32_1 = arith.constant 0 : i32
    return %arg0, %c0_i32, %c0_i32_0 : i32, i32, i32
  }
}

module attributes {stable_mosaic.version = 11 : i64} {
  func.func @_proj_kernel(%arg0: i32, %arg1: memref<1x8x128xf32, #tpu.memory_space<vmem>>, %arg2: memref<128x128xbf16, #tpu.memory_space<vmem>>, %arg3: memref<1x128xf32, #tpu.memory_space<vmem>>, %arg4: memref<1x8x128xf32, #tpu.memory_space<vmem>>) attributes {dimension_semantics = [#tpu.dimension_semantics<parallel>], iteration_bounds = array<i64: 2>, scalar_prefetch = 0 : i64, scratch_operands = 0 : i64, tpu.core_type = #tpu.core_type<tc>, window_params = [{transform_indices = @transform_0, window_bounds = array<i64: 1, 8, 128>}, {pipeline_mode = #tpu.pipeline_mode<synchronous>, transform_indices = @transform_1, window_bounds = array<i64: 128, 128>}, {pipeline_mode = #tpu.pipeline_mode<synchronous>, transform_indices = @transform_2, window_bounds = array<i64: 1, 128>}, {transform_indices = @transform_3, window_bounds = array<i64: 1, 8, 128>}]} {
    %c0 = arith.constant 0 : index
    %c0_0 = arith.constant 0 : index
    %c0_1 = arith.constant 0 : index
    %0 = vector.load %arg1[%c0, %c0_0, %c0_1] : memref<1x8x128xf32, #tpu.memory_space<vmem>>, vector<1x8x128xf32>
    %1 = vector.shape_cast %0 : vector<1x8x128xf32> to vector<8x128xf32>
    %2 = arith.truncf %1 : vector<8x128xf32> to vector<8x128xbf16>
    %c0_2 = arith.constant 0 : index
    %c0_3 = arith.constant 0 : index
    %3 = vector.load %arg2[%c0_2, %c0_3] : memref<128x128xbf16, #tpu.memory_space<vmem>>, vector<128x128xbf16>
    %cst = arith.constant dense<0.000000e+00> : vector<8x128xf32>
    %4 = tpu.matmul %2, %3, %cst {dimension_numbers = #tpu.dot_dimension_numbers<[1], [0], [0], [1], [0, 0, 1, 1], [], []>} : vector<8x128xbf16>, vector<128x128xbf16>, vector<8x128xf32> -> vector<8x128xf32>
    %c0_4 = arith.constant 0 : index
    %c0_5 = arith.constant 0 : index
    %5 = vector.load %arg3[%c0_4, %c0_5] : memref<1x128xf32, #tpu.memory_space<vmem>>, vector<1x128xf32>
    %6 = vector.broadcast %5 : vector<1x128xf32> to vector<8x128xf32>
    %7 = arith.addf %4, %6 : vector<8x128xf32>
    %c0_6 = arith.constant 0 : index
    %c0_7 = arith.constant 0 : index
    %c0_8 = arith.constant 0 : index
    %8 = vector.load %arg4[%c0_6, %c0_7, %c0_8] : memref<1x8x128xf32, #tpu.memory_space<vmem>>, vector<1x8x128xf32>
    %9 = vector.shape_cast %8 : vector<1x8x128xf32> to vector<8x128xf32>
    %10 = vector.shape_cast %7 : vector<8x128xf32> to vector<1x8x128xf32>
    tpu.vector_store %arg4[%c0_6, %c0_7, %c0_8], %10 {strides = array<i32>} : memref<1x8x128xf32, #tpu.memory_space<vmem>>, vector<1x8x128xf32>,
    return
  }
  func.func @transform_0(%arg0: i32) -> (i32, i32, i32) {
    %c0_i32 = arith.constant 0 : i32
    %c0_i32_0 = arith.constant 0 : i32
    %c0_i32_1 = arith.constant 0 : i32
    return %arg0, %c0_i32, %c0_i32_0 : i32, i32, i32
  }
  func.func @transform_1(%arg0: i32) -> (i32, i32) {
    %c0_i32 = arith.constant 0 : i32
    %c0_i32_0 = arith.constant 0 : i32
    %c0_i32_1 = arith.constant 0 : i32
    return %c0_i32, %c0_i32_0 : i32, i32
  }
  func.func @transform_2(%arg0: i32) -> (i32, i32) {
    %c0_i32 = arith.constant 0 : i32
    %c0_i32_0 = arith.constant 0 : i32
    %c0_i32_1 = arith.constant 0 : i32
    return %c0_i32, %c0_i32_0 : i32, i32
  }
  func.func @transform_3(%arg0: i32) -> (i32, i32, i32) {
    %c0_i32 = arith.constant 0 : i32
    %c0_i32_0 = arith.constant 0 : i32
    %c0_i32_1 = arith.constant 0 : i32
    return %arg0, %c0_i32, %c0_i32_0 : i32, i32, i32
  }
}

</mosaic_0001>

<llo_original>
// kernel: _lambda_.5
$region0: #{_lambda_.5}
  #allocation0 [shape = 'u32[]', space=smem, size = 0x4, offset = 0x4, fixed_abs, tag = 'smem constant byte address 0x4 - core index']
  #allocation1 [shape = 'u32[72,128]{1,0:T(1,128)}', space=vmem, size = 0x9000, scoped, tag = 'internal scratch']
  %s0 = inlined_call_operand.vmem [shape: f32[2,8,128], index: 0, kind: input, shape index: {}]
  %s1 = inlined_call_operand.vmem [shape: s8[2,1,8], index: 1, kind: input, shape index: {}]
  %s2 = inlined_call_operand.vmem [shape: bf16[128,128], index: 2, kind: input, shape index: {}]
  %s3 = inlined_call_operand.vmem [shape: f32[1,128], index: 3, kind: input, shape index: {}]
  %s4 = inlined_call_operand.vmem [shape: bf16[128,256], index: 4, kind: input, shape index: {}]
  %s5 = inlined_call_operand.vmem [shape: f32[1,256], index: 5, kind: input, shape index: {}]
  %s6 = inlined_call_operand.vmem [shape: bf16[128,128], index: 6, kind: input, shape index: {}]
  %s7 = inlined_call_operand.vmem [shape: f32[1,128], index: 7, kind: input, shape index: {}]
  %s8 = inlined_call_operand.vmem [shape: f32[1,128], index: 8, kind: input, shape index: {}]
  %s9 = inlined_call_operand.vmem [shape: f32[1,128], index: 9, kind: input, shape index: {}]
  %s10 = inlined_call_operand.vmem [shape: bf16[128,128], index: 10, kind: input, shape index: {}]
  %s11 = inlined_call_operand.vmem [shape: f32[1,128], index: 11, kind: input, shape index: {}]
  %s12 = inlined_call_operand.vmem [shape: bf16[128,128], index: 12, kind: input, shape index: {}]
  %s13 = inlined_call_operand.vmem [shape: f32[1,128], index: 13, kind: input, shape index: {}]
  %s14 = inlined_call_operand.vmem [shape: f32[1,128], index: 14, kind: input, shape index: {}]
  %s15 = inlined_call_operand.vmem [shape: f32[1,128], index: 15, kind: input, shape index: {}]
  %s16 = inlined_call_operand.vmem [shape: f32[2,8,128], index: 16, kind: output, shape index: {}]
  %s17 = sld [smem:[#allocation0]]
  $region97: #{_lambda_.5} parent=0
    _
  %s19 = ssub.s32 1, %s17
  %s20 = scalar_select 0, %s19, %s17
  loop: start=0, step=1, limit=4
  $region2: #{_lambda_.5} parent=0 // loop_pre_header
    _
  $region3: #{_lambda_.5} parent=0 // loop_header
    %s22 = sphi 0, %s26
    %p23 = scmp.ge.s32.totalorder %s22, 4
    %s32 = sphi 0, %s34
    %s35 = sphi 0, %s32
    %s36 = sphi 0, %s35
    %s52 = sphi 0, %s36
    %s58 = sphi 0, %s60
    %s61 = sphi 0, %s58
    %s62 = sphi 0, %s61
    %s78 = sphi 0, %s62
    %s82 = sphi 0, %s82
    %s84 = sphi 0, %s82
    %s85 = sphi 0, %s84
    %s99 = sphi 0, %s85
    %s103 = sphi 0, %s103
    %s105 = sphi 0, %s103
    %s106 = sphi 0, %s105
    %s120 = sphi 0, %s106
    %s124 = sphi 0, %s124
    %s126 = sphi 0, %s124
    %s127 = sphi 0, %s126
    %s141 = sphi 0, %s127
    %s145 = sphi 0, %s145
    %s147 = sphi 0, %s145
    %s148 = sphi 0, %s147
    %s162 = sphi 0, %s148
    %s166 = sphi 0, %s166
    %s168 = sphi 0, %s166
    %s169 = sphi 0, %s168
    %s183 = sphi 0, %s169
    %s187 = sphi 0, %s187
    %s189 = sphi 0, %s187
    %s190 = sphi 0, %s189
    %s204 = sphi 0, %s190
    %s208 = sphi 0, %s208
    %s210 = sphi 0, %s208
    %s211 = sphi 0, %s210
    %s225 = sphi 0, %s211
    %s229 = sphi 0, %s229
    %s231 = sphi 0, %s229
    %s232 = sphi 0, %s231
    %s246 = sphi 0, %s232
    %s250 = sphi 0, %s250
    %s252 = sphi 0, %s250
    %s253 = sphi 0, %s252
    %s267 = sphi 0, %s253
    %s271 = sphi 0, %s271
    %s273 = sphi 0, %s271
    %s274 = sphi 0, %s273
    %s288 = sphi 0, %s274
    %s292 = sphi 0, %s292
    %s294 = sphi 0, %s292
    %s295 = sphi 0, %s294
    %s309 = sphi 0, %s295
    %s313 = sphi 0, %s313
    %s315 = sphi 0, %s313
    %s316 = sphi 0, %s315
    %s330 = sphi 0, %s316
    %s334 = sphi 0, %s334
    %s336 = sphi 0, %s334
    %s337 = sphi 0, %s336
    %s351 = sphi 0, %s337
    %s355 = sphi 0, %s355
    %s357 = sphi 0, %s355
    %s358 = sphi 0, %s357
    %s372 = sphi 0, %s358
    %s378 = sphi 0, %s380
    %s381 = sphi 0, %s378
    %s382 = sphi 0, %s381
    %s398 = sphi 0, %s382
  $region4: #{_lambda_.5} parent=0 // loop_header_branch
    %25 = sbr.rel (%p23) target = $region8
  $region5: #{_lambda_.5} parent=0 // loop_body
    %s27 = ssub.s32 %s22, 1
    %s28 = ssub.s32 %s22, 2
    %s29 = sadd.s32 %s22, 1
    %s30 = ssub.s32 %s22, %s29
    %p31 = scmp.eq.s32.totalorder %s30, 0
    %s33 = sadd.s32 %s32, 1
    %s34 = scalar_select %p31, %s32, %s33
    %p37 = pneg %p31
    %p38 = scmp.eq.s32.totalorder %s22, 1
    %p39 = por %p37, %p38
    %p40 = scmp.ne.s32.totalorder %s32, %s35
    %p41 = scmp.eq.s32.totalorder %s22, 0
    %p42 = por %p40, %p41
    %p43 = scmp.ne.s32.totalorder %s32, %s35
    %p44 = scmp.eq.s32.totalorder %s27, 1
    %p45 = por %p43, %p44
    %p46 = scmp.ne.s32.totalorder %s35, %s36
    %p47 = scmp.eq.s32.totalorder %s27, 0
    %p48 = por %p46, %p47
    %p49 = scmp.ne.s32.totalorder %s35, %s36
    %p50 = scmp.eq.s32.totalorder %s28, 1
    %p51 = por %p49, %p50
    %p53 = scmp.ne.s32.totalorder %s36, %s52
    %p54 = scmp.eq.s32.totalorder %s28, 0
    %p55 = por %p53, %p54
    %s56 = ssub.s32 %s22, %s29
    %p57 = scmp.eq.s32.totalorder %s56, 0
    %s59 = sadd.s32 %s58, 1
    %s60 = scalar_select %p57, %s58, %s59
    %p63 = pneg %p57
    %p64 = scmp.eq.s32.totalorder %s22, 1
    %p65 = por %p63, %p64
    %p66 = scmp.ne.s32.totalorder %s58, %s61
    %p67 = scmp.eq.s32.totalorder %s22, 0
    %p68 = por %p66, %p67
    %p69 = scmp.ne.s32.totalorder %s58, %s61
    %p70 = scmp.eq.s32.totalorder %s27, 1
    %p71 = por %p69, %p70
    %p72 = scmp.ne.s32.totalorder %s61, %s62
    %p73 = scmp.eq.s32.totalorder %s27, 0
    %p74 = por %p72, %p73
    %p75 = scmp.ne.s32.totalorder %s61, %s62
    %p76 = scmp.eq.s32.totalorder %s28, 1
    %p77 = por %p75, %p76
    %p79 = scmp.ne.s32.totalorder %s62, %s78
    %p80 = scmp.eq.s32.totalorder %s28, 0
    %p81 = por %p79, %p80
    %s83 = sadd.s32 %s82, 1
    %p86 = scmp.eq.s32.totalorder %s22, 1
    %p87 = scmp.ne.s32.totalorder %s82, %s84
    %p88 = scmp.eq.s32.totalorder %s22, 0
    %p89 = por %p87, %p88
    %p90 = scmp.ne.s32.totalorder %s82, %s84
    %p91 = scmp.eq.s32.totalorder %s27, 1
    %p92 = por %p90, %p91
    %p93 = scmp.ne.s32.totalorder %s84, %s85
    %p94 = scmp.eq.s32.totalorder %s27, 0
    %p95 = por %p93, %p94
    %p96 = scmp.ne.s32.totalorder %s84, %s85
    %p97 = scmp.eq.s32.totalorder %s28, 1
    %p98 = por %p96, %p97
    %p100 = scmp.ne.s32.totalorder %s85, %s99
    %p101 = scmp.eq.s32.totalorder %s28, 0
    %p102 = por %p100, %p101
    %s104 = sadd.s32 %s103, 1
    %p107 = scmp.eq.s32.totalorder %s22, 1
    %p108 = scmp.ne.s32.totalorder %s103, %s105
    %p109 = scmp.eq.s32.totalorder %s22, 0
    %p110 = por %p108, %p109
    %p111 = scmp.ne.s32.totalorder %s103, %s105
    %p112 = scmp.eq.s32.totalorder %s27, 1
    %p113 = por %p111, %p112
    %p114 = scmp.ne.s32.totalorder %s105, %s106
    %p115 = scmp.eq.s32.totalorder %s27, 0
    %p116 = por %p114, %p115
    %p117 = scmp.ne.s32.totalorder %s105, %s106
    %p118 = scmp.eq.s32.totalorder %s28, 1
    %p119 = por %p117, %p118
    %p121 = scmp.ne.s32.totalorder %s106, %s120
    %p122 = scmp.eq.s32.totalorder %s28, 0
    %p123 = por %p121, %p122
    %s125 = sadd.s32 %s124, 1
    %p128 = scmp.eq.s32.totalorder %s22, 1
    %p129 = scmp.ne.s32.totalorder %s124, %s126
    %p130 = scmp.eq.s32.totalorder %s22, 0
    %p131 = por %p129, %p130
    %p132 = scmp.ne.s32.totalorder %s124, %s126
    %p133 = scmp.eq.s32.totalorder %s27, 1
    %p134 = por %p132, %p133
    %p135 = scmp.ne.s32.totalorder %s126, %s127
    %p136 = scmp.eq.s32.totalorder %s27, 0
    %p137 = por %p135, %p136
    %p138 = scmp.ne.s32.totalorder %s126, %s127
    %p139 = scmp.eq.s32.totalorder %s28, 1
    %p140 = por %p138, %p139
    %p142 = scmp.ne.s32.totalorder %s127, %s141
    %p143 = scmp.eq.s32.totalorder %s28, 0
    %p144 = por %p142, %p143
    %s146 = sadd.s32 %s145, 1
    %p149 = scmp.eq.s32.totalorder %s22, 1
    %p150 = scmp.ne.s32.totalorder %s145, %s147
    %p151 = scmp.eq.s32.totalorder %s22, 0
    %p152 = por %p150, %p151
    %p153 = scmp.ne.s32.totalorder %s145, %s147
    %p154 = scmp.eq.s32.totalorder %s27, 1
    %p155 = por %p153, %p154
    %p156 = scmp.ne.s32.totalorder %s147, %s148
    %p157 = scmp.eq.s32.totalorder %s27, 0
    %p158 = por %p156, %p157
    %p159 = scmp.ne.s32.totalorder %s147, %s148
    %p160 = scmp.eq.s32.totalorder %s28, 1
    %p161 = por %p159, %p160
    %p163 = scmp.ne.s32.totalorder %s148, %s162
    %p164 = scmp.eq.s32.totalorder %s28, 0
    %p165 = por %p163, %p164
    %s167 = sadd.s32 %s166, 1
    %p170 = scmp.eq.s32.totalorder %s22, 1
    %p171 = scmp.ne.s32.totalorder %s166, %s168
    %p172 = scmp.eq.s32.totalorder %s22, 0
    %p173 = por %p171, %p172
    %p174 = scmp.ne.s32.totalorder %s166, %s168
    %p175 = scmp.eq.s32.totalorder %s27, 1
    %p176 = por %p174, %p175
    %p177 = scmp.ne.s32.totalorder %s168, %s169
    %p178 = scmp.eq.s32.totalorder %s27, 0
    %p179 = por %p177, %p178
    %p180 = scmp.ne.s32.totalorder %s168, %s169
    %p181 = scmp.eq.s32.totalorder %s28, 1
    %p182 = por %p180, %p181
    %p184 = scmp.ne.s32.totalorder %s169, %s183
    %p185 = scmp.eq.s32.totalorder %s28, 0
    %p186 = por %p184, %p185
    %s188 = sadd.s32 %s187, 1
    %p191 = scmp.eq.s32.totalorder %s22, 1
    %p192 = scmp.ne.s32.totalorder %s187, %s189
    %p193 = scmp.eq.s32.totalorder %s22, 0
    %p194 = por %p192, %p193
    %p195 = scmp.ne.s32.totalorder %s187, %s189
    %p196 = scmp.eq.s32.totalorder %s27, 1
    %p197 = por %p195, %p196
    %p198 = scmp.ne.s32.totalorder %s189, %s190
    %p199 = scmp.eq.s32.totalorder %s27, 0
    %p200 = por %p198, %p199
    %p201 = scmp.ne.s32.totalorder %s189, %s190
    %p202 = scmp.eq.s32.totalorder %s28, 1
    %p203 = por %p201, %p202
    %p205 = scmp.ne.s32.totalorder %s190, %s204
    %p206 = scmp.eq.s32.totalorder %s28, 0
    %p207 = por %p205, %p206
    %s209 = sadd.s32 %s208, 1
    %p212 = scmp.eq.s32.totalorder %s22, 1
    %p213 = scmp.ne.s32.totalorder %s208, %s210
    %p214 = scmp.eq.s32.totalorder %s22, 0
    %p215 = por %p213, %p214
    %p216 = scmp.ne.s32.totalorder %s208, %s210
    %p217 = scmp.eq.s32.totalorder %s27, 1
    %p218 = por %p216, %p217
    %p219 = scmp.ne.s32.totalorder %s210, %s211
    %p220 = scmp.eq.s32.totalorder %s27, 0
    %p221 = por %p219, %p220
    %p222 = scmp.ne.s32.totalorder %s210, %s211
    %p223 = scmp.eq.s32.totalorder %s28, 1
    %p224 = por %p222, %p223
    %p226 = scmp.ne.s32.totalorder %s211, %s225
    %p227 = scmp.eq.s32.totalorder %s28, 0
    %p228 = por %p226, %p227
    %s230 = sadd.s32 %s229, 1
    %p233 = scmp.eq.s32.totalorder %s22, 1
    %p234 = scmp.ne.s32.totalorder %s229, %s231
    %p235 = scmp.eq.s32.totalorder %s22, 0
    %p236 = por %p234, %p235
    %p237 = scmp.ne.s32.totalorder %s229, %s231
    %p238 = scmp.eq.s32.totalorder %s27, 1
    %p239 = por %p237, %p238
    %p240 = scmp.ne.s32.totalorder %s231, %s232
    %p241 = scmp.eq.s32.totalorder %s27, 0
    %p242 = por %p240, %p241
    %p243 = scmp.ne.s32.totalorder %s231, %s232
    %p244 = scmp.eq.s32.totalorder %s28, 1
    %p245 = por %p243, %p244
    %p247 = scmp.ne.s32.totalorder %s232, %s246
    %p248 = scmp.eq.s32.totalorder %s28, 0
    %p249 = por %p247, %p248
    %s251 = sadd.s32 %s250, 1
    %p254 = scmp.eq.s32.totalorder %s22, 1
    %p255 = scmp.ne.s32.totalorder %s250, %s252
    %p256 = scmp.eq.s32.totalorder %s22, 0
    %p257 = por %p255, %p256
    %p258 = scmp.ne.s32.totalorder %s250, %s252
    %p259 = scmp.eq.s32.totalorder %s27, 1
    %p260 = por %p258, %p259
    %p261 = scmp.ne.s32.totalorder %s252, %s253
    %p262 = scmp.eq.s32.totalorder %s27, 0
    %p263 = por %p261, %p262
    %p264 = scmp.ne.s32.totalorder %s252, %s253
    %p265 = scmp.eq.s32.totalorder %s28, 1
    %p266 = por %p264, %p265
    %p268 = scmp.ne.s32.totalorder %s253, %s267
    %p269 = scmp.eq.s32.totalorder %s28, 0
    %p270 = por %p268, %p269
    %s272 = sadd.s32 %s271, 1
    %p275 = scmp.eq.s32.totalorder %s22, 1
    %p276 = scmp.ne.s32.totalorder %s271, %s273
    %p277 = scmp.eq.s32.totalorder %s22, 0
    %p278 = por %p276, %p277
    %p279 = scmp.ne.s32.totalorder %s271, %s273
    %p280 = scmp.eq.s32.totalorder %s27, 1
    %p281 = por %p279, %p280
    %p282 = scmp.ne.s32.totalorder %s273, %s274
    %p283 = scmp.eq.s32.totalorder %s27, 0
    %p284 = por %p282, %p283
    %p285 = scmp.ne.s32.totalorder %s273, %s274
    %p286 = scmp.eq.s32.totalorder %s28, 1
    %p287 = por %p285, %p286
    %p289 = scmp.ne.s32.totalorder %s274, %s288
    %p290 = scmp.eq.s32.totalorder %s28, 0
    %p291 = por %p289, %p290
    %s293 = sadd.s32 %s292, 1
    %p296 = scmp.eq.s32.totalorder %s22, 1
    %p297 = scmp.ne.s32.totalorder %s292, %s294
    %p298 = scmp.eq.s32.totalorder %s22, 0
    %p299 = por %p297, %p298
    %p300 = scmp.ne.s32.totalorder %s292, %s294
    %p301 = scmp.eq.s32.totalorder %s27, 1
    %p302 = por %p300, %p301
    %p303 = scmp.ne.s32.totalorder %s294, %s295
    %p304 = scmp.eq.s32.totalorder %s27, 0
    %p305 = por %p303, %p304
    %p306 = scmp.ne.s32.totalorder %s294, %s295
    %p307 = scmp.eq.s32.totalorder %s28, 1
    %p308 = por %p306, %p307
    %p310 = scmp.ne.s32.totalorder %s295, %s309
    %p311 = scmp.eq.s32.totalorder %s28, 0
    %p312 = por %p310, %p311
    %s314 = sadd.s32 %s313, 1
    %p317 = scmp.eq.s32.totalorder %s22, 1
    %p318 = scmp.ne.s32.totalorder %s313, %s315
    %p319 = scmp.eq.s32.totalorder %s22, 0
    %p320 = por %p318, %p319
    %p321 = scmp.ne.s32.totalorder %s313, %s315
    %p322 = scmp.eq.s32.totalorder %s27, 1
    %p323 = por %p321, %p322
    %p324 = scmp.ne.s32.totalorder %s315, %s316
    %p325 = scmp.eq.s32.totalorder %s27, 0
    %p326 = por %p324, %p325
    %p327 = scmp.ne.s32.totalorder %s315, %s316
    %p328 = scmp.eq.s32.totalorder %s28, 1
    %p329 = por %p327, %p328
    %p331 = scmp.ne.s32.totalorder %s316, %s330
    %p332 = scmp.eq.s32.totalorder %s28, 0
    %p333 = por %p331, %p332
    %s335 = sadd.s32 %s334, 1
    %p338 = scmp.eq.s32.totalorder %s22, 1
    %p339 = scmp.ne.s32.totalorder %s334, %s336
    %p340 = scmp.eq.s32.totalorder %s22, 0
    %p341 = por %p339, %p340
    %p342 = scmp.ne.s32.totalorder %s334, %s336
    %p343 = scmp.eq.s32.totalorder %s27, 1
    %p344 = por %p342, %p343
    %p345 = scmp.ne.s32.totalorder %s336, %s337
    %p346 = scmp.eq.s32.totalorder %s27, 0
    %p347 = por %p345, %p346
    %p348 = scmp.ne.s32.totalorder %s336, %s337
    %p349 = scmp.eq.s32.totalorder %s28, 1
    %p350 = por %p348, %p349
    %p352 = scmp.ne.s32.totalorder %s337, %s351
    %p353 = scmp.eq.s32.totalorder %s28, 0
    %p354 = por %p352, %p353
    %s356 = sadd.s32 %s355, 1
    %p359 = scmp.eq.s32.totalorder %s22, 1
    %p360 = scmp.ne.s32.totalorder %s355, %s357
    %p361 = scmp.eq.s32.totalorder %s22, 0
    %p362 = por %p360, %p361
    %p363 = scmp.ne.s32.totalorder %s355, %s357
    %p364 = scmp.eq.s32.totalorder %s27, 1
    %p365 = por %p363, %p364
    %p366 = scmp.ne.s32.totalorder %s357, %s358
    %p367 = scmp.eq.s32.totalorder %s27, 0
    %p368 = por %p366, %p367
    %p369 = scmp.ne.s32.totalorder %s357, %s358
    %p370 = scmp.eq.s32.totalorder %s28, 1
    %p371 = por %p369, %p370
    %p373 = scmp.ne.s32.totalorder %s358, %s372
    %p374 = scmp.eq.s32.totalorder %s28, 0
    %p375 = por %p373, %p374
    %s376 = ssub.s32 %s22, %s29
    %p377 = scmp.eq.s32.totalorder %s376, 0
    %s379 = sadd.s32 %s378, 1
    %s380 = scalar_select %p377, %s378, %s379
    %p383 = pneg %p377
    %p384 = scmp.eq.s32.totalorder %s22, 1
    %p385 = por %p383, %p384
    %p386 = scmp.ne.s32.totalorder %s378, %s381
    %p387 = scmp.eq.s32.totalorder %s22, 0
    %p388 = por %p386, %p387
    %p389 = scmp.ne.s32.totalorder %s378, %s381
    %p390 = scmp.eq.s32.totalorder %s27, 1
    %p391 = por %p389, %p390
    %p392 = scmp.ne.s32.totalorder %s381, %s382
    %p393 = scmp.eq.s32.totalorder %s27, 0
    %p394 = por %p392, %p393
    %p395 = scmp.ne.s32.totalorder %s381, %s382
    %p396 = scmp.eq.s32.totalorder %s28, 1
    %p397 = por %p395, %p396
    %p399 = scmp.ne.s32.totalorder %s382, %s398
    %p400 = scmp.eq.s32.totalorder %s28, 0
    %p401 = por %p399, %p400
    %p402 = scmp.le.s32.totalorder 1, %s22
    %p403 = scmp.lt.s32.totalorder %s22, 3
    %p404 = pnand %p402, %p403
    %p405 = pneg %p404
    // Predicated region
    $region9: #{_lambda_.5} parent=5 // pred_check
      _
    $region10: #{_lambda_.5} parent=5 // pred_check_branch
      %407 = sbr.rel (%p404) target = $region12
    $region11: #{_lambda_.5} parent=5 // pred_region
      %s408 = ssub.s32 %s22, 1
      // Predicated region
      $region13: #{_lambda_.5} parent=11 // pred_check
        %p409 = pneg %p95
      $region14: #{_lambda_.5} parent=11 // pred_check_branch
        %411 = sbr.rel (%p409) target = $region16
      $region15: #{_lambda_.5} parent=11 // pred_region
        _
      $region16: #{_lambda_.5} parent=11 // pred_fallthru
        _
      // Predicated region
      $region17: #{_lambda_.5} parent=11 // pred_check
        %p412 = pneg %p116
      $region18: #{_lambda_.5} parent=11 // pred_check_branch
        %414 = sbr.rel (%p412) target = $region20
      $region19: #{_lambda_.5} parent=11 // pred_region
        _
      $region20: #{_lambda_.5} parent=11 // pred_fallthru
        _
      // Predicated region
      $region21: #{_lambda_.5} parent=11 // pred_check
        %p415 = pneg %p137
      $region22: #{_lambda_.5} parent=11 // pred_check_branch
        %417 = sbr.rel (%p415) target = $region24
      $region23: #{_lambda_.5} parent=11 // pred_region
        _
      $region24: #{_lambda_.5} parent=11 // pred_fallthru
        _
      // Predicated region
      $region25: #{_lambda_.5} parent=11 // pred_check
        %p418 = pneg %p158
      $region26: #{_lambda_.5} parent=11 // pred_check_branch
        %420 = sbr.rel (%p418) target = $region28
      $region27: #{_lambda_.5} parent=11 // pred_region
        _
      $region28: #{_lambda_.5} parent=11 // pred_fallthru
        _
      // Predicated region
      $region29: #{_lambda_.5} parent=11 // pred_check
        %p421 = pneg %p179
      $region30: #{_lambda_.5} parent=11 // pred_check_branch
        %423 = sbr.rel (%p421) target = $region32
      $region31: #{_lambda_.5} parent=11 // pred_region
        _
      $region32: #{_lambda_.5} parent=11 // pred_fallthru
        _
      // Predicated region
      $region33: #{_lambda_.5} parent=11 // pred_check
        %p424 = pneg %p200
      $region34: #{_lambda_.5} parent=11 // pred_check_branch
        %426 = sbr.rel (%p424) target = $region36
      $region35: #{_lambda_.5} parent=11 // pred_region
        _
      $region36: #{_lambda_.5} parent=11 // pred_fallthru
        _
      // Predicated region
      $region37: #{_lambda_.5} parent=11 // pred_check
        %p427 = pneg %p221
      $region38: #{_lambda_.5} parent=11 // pred_check_branch
        %429 = sbr.rel (%p427) target = $region40
      $region39: #{_lambda_.5} parent=11 // pred_region
        _
      $region40: #{_lambda_.5} parent=11 // pred_fallthru
        _
      // Predicated region
      $region41: #{_lambda_.5} parent=11 // pred_check
        %p430 = pneg %p242
      $region42: #{_lambda_.5} parent=11 // pred_check_branch
        %432 = sbr.rel (%p430) target = $region44
      $region43: #{_lambda_.5} parent=11 // pred_region
        _
      $region44: #{_lambda_.5} parent=11 // pred_fallthru
        _
      // Predicated region
      $region45: #{_lambda_.5} parent=11 // pred_check
        %p433 = pneg %p263
      $region46: #{_lambda_.5} parent=11 // pred_check_branch
        %435 = sbr.rel (%p433) target = $region48
      $region47: #{_lambda_.5} parent=11 // pred_region
        _
      $region48: #{_lambda_.5} parent=11 // pred_fallthru
        _
      // Predicated region
      $region49: #{_lambda_.5} parent=11 // pred_check
        %p436 = pneg %p284
      $region50: #{_lambda_.5} parent=11 // pred_check_branch
        %438 = sbr.rel (%p436) target = $region52
      $region51: #{_lambda_.5} parent=11 // pred_region
        _
      $region52: #{_lambda_.5} parent=11 // pred_fallthru
        _
      // Predicated region
      $region53: #{_lambda_.5} parent=11 // pred_check
        %p439 = pneg %p305
      $region54: #{_lambda_.5} parent=11 // pred_check_branch
        %441 = sbr.rel (%p439) target = $region56
      $region55: #{_lambda_.5} parent=11 // pred_region
        _
      $region56: #{_lambda_.5} parent=11 // pred_fallthru
        _
      // Predicated region
      $region57: #{_lambda_.5} parent=11 // pred_check
        %p442 = pneg %p326
      $region58: #{_lambda_.5} parent=11 // pred_check_branch
        %444 = sbr.rel (%p442) target = $region60
      $region59: #{_lambda_.5} parent=11 // pred_region
        _
      $region60: #{_lambda_.5} parent=11 // pred_fallthru
        _
      // Predicated region
      $region61: #{_lambda_.5} parent=11 // pred_check
        %p445 = pneg %p347
      $region62: #{_lambda_.5} parent=11 // pred_check_branch
        %447 = sbr.rel (%p445) target = $region64
      $region63: #{_lambda_.5} parent=11 // pred_region
        _
      $region64: #{_lambda_.5} parent=11 // pred_fallthru
        _
      // Predicated region
      $region65: #{_lambda_.5} parent=11 // pred_check
        %p448 = pneg %p368
      $region66: #{_lambda_.5} parent=11 // pred_check_branch
        %450 = sbr.rel (%p448) target = $region68
      $region67: #{_lambda_.5} parent=11 // pred_region
        _
      $region68: #{_lambda_.5} parent=11 // pred_fallthru
        _
    $region12: #{_lambda_.5} parent=5 // pred_fallthru
      _
    %p451 = scmp.lt.s32.totalorder %s22, 2
    // Predicated region
    $region69: #{_lambda_.5} parent=5 // pred_check
      %p452 = pneg %p451
    $region70: #{_lambda_.5} parent=5 // pred_check_branch
      %454 = sbr.rel (%p452) target = $region72
    $region71: #{_lambda_.5} parent=5 // pred_region
      // Predicated region
      $region73: #{_lambda_.5} parent=71 // pred_check
        %p455 = pneg %p42
      $region74: #{_lambda_.5} parent=71 // pred_check_branch
        %457 = sbr.rel (%p455) target = $region76
      $region75: #{_lambda_.5} parent=71 // pred_region
        %p458 = scmp.lt.s32.totalorder %s22, 1
        %s459 = scalar_select %p458, %s22, 1
        %s460 = smul.addr %s459, 8
        %s461 = scalar_lea.vmem %s0, %s460
      $region76: #{_lambda_.5} parent=71 // pred_fallthru
        _
      // Predicated region
      $region77: #{_lambda_.5} parent=71 // pred_check
        %p462 = pneg %p68
      $region78: #{_lambda_.5} parent=71 // pred_check_branch
        %464 = sbr.rel (%p462) target = $region80
      $region79: #{_lambda_.5} parent=71 // pred_region
        %p465 = scmp.lt.s32.totalorder %s22, 1
        %s466 = scalar_select %p465, %s22, 1
        %s467 = scalar_lea.vmem %s1, %s466
      $region80: #{_lambda_.5} parent=71 // pred_fallthru
        _
    $region72: #{_lambda_.5} parent=5 // pred_fallthru
      _
    %p468 = scmp.le.s32.totalorder 1, %s22
    %p469 = scmp.lt.s32.totalorder %s22, 3
    %p470 = pnand %p468, %p469
    %p471 = pneg %p470
    // Predicated region
    $region81: #{_lambda_.5} parent=5 // pred_check
      _
    $region82: #{_lambda_.5} parent=5 // pred_check_branch
      %473 = sbr.rel (%p470) target = $region84
    $region83: #{_lambda_.5} parent=5 // pred_region
      %s474 = ssub.s32 %s22, 1
      %p475 = scmp.lt.s32.totalorder %s27, 1
      %s476 = scalar_select %p475, %s27, 1
      %s477 = smul.addr %s476, 8
      %s478 = scalar_lea.vmem %s0, %s477
      %p479 = pneg %p48
      %p480 = pneg %p45
      %p481 = scmp.lt.s32.totalorder %s27, 1
      %s482 = scalar_select %p481, %s27, 1
      %s483 = scalar_lea.vmem %s1, %s482
      %p484 = pneg %p74
      %p485 = pneg %p71
      %p486 = pneg %p95
      %p487 = pneg %p92
      %p488 = pneg %p116
      %p489 = pneg %p113
      %p490 = pneg %p137
      %p491 = pneg %p134
      %p492 = pneg %p158
      %p493 = pneg %p155
      %p494 = pneg %p179
      %p495 = pneg %p176
      %p496 = pneg %p200
      %p497 = pneg %p197
      %p498 = pneg %p221
      %p499 = pneg %p218
      %p500 = pneg %p242
      %p501 = pneg %p239
      %p502 = pneg %p263
      %p503 = pneg %p260
      %p504 = pneg %p284
      %p505 = pneg %p281
      %p506 = pneg %p305
      %p507 = pneg %p302
      %p508 = pneg %p326
      %p509 = pneg %p323
      %p510 = pneg %p347
      %p511 = pneg %p344
      %p512 = pneg %p368
      %p513 = pneg %p365
      %p514 = pneg %p394
      %p515 = pneg %p391
      %p516 = scmp.lt.s32.totalorder %s27, 1
      %s517 = scalar_select %p516, %s27, 1
      %s518 = smul.addr %s517, 8
      %s519 = scalar_lea.vmem %s16, %s518
      %p520 = scmp.lt.s32.totalorder %s27, 1
      %s521 = scalar_select %p520, %s27, 1
      %s522 = smul.addr %s521, 8
      %s523 = scalar_lea.vmem %s0, %s522
      %p524 = scmp.lt.s32.totalorder %s27, 1
      %s525 = scalar_select %p524, %s27, 1
      %s526 = scalar_lea.vmem %s1, %s525
      %p527 = scmp.lt.s32.totalorder %s27, 1
      %s528 = scalar_select %p527, %s27, 1
      %s529 = smul.addr %s528, 8
      %s530 = scalar_lea.vmem %s16, %s529
      %v532 = vld [vmem:[%s523] sm:$0xff]
      %v533 = vld [vmem:[%s526] sm:$0x1]
      %v534 = vunpack.c.0.s8 %v533
      %v535 = vcvt.s32.f32 %v534
      %v536 = vsub.f32 1.0, %v535
      %v537 = vmul.f32 %v536, -1e+09
      %v538 = vpack.c.bf16 %v532, %v532
      %v539 = vld [vmem:[%s2] sm:$0xf]
      %v540 = vld [vmem:[%s2 + $0x4] sm:$0xf]
      %v541 = vld [vmem:[%s2 + $0x8] sm:$0xf]
      %v542 = vld [vmem:[%s2 + $0xc] sm:$0xf]
      %v543 = vld [vmem:[%s2 + $0x10] sm:$0xf]
      %v544 = vld [vmem:[%s2 + $0x14] sm:$0xf]
      %v545 = vld [vmem:[%s2 + $0x18] sm:$0xf]
      %v546 = vld [vmem:[%s2 + $0x1c] sm:$0xf]
      %v547 = vld [vmem:[%s2 + $0x20] sm:$0xf]
      %v548 = vld [vmem:[%s2 + $0x24] sm:$0xf]
      %v549 = vld [vmem:[%s2 + $0x28] sm:$0xf]
      %v550 = vld [vmem:[%s2 + $0x2c] sm:$0xf]
      %v551 = vld [vmem:[%s2 + $0x30] sm:$0xf]
      %v552 = vld [vmem:[%s2 + $0x34] sm:$0xf]
      %v553 = vld [vmem:[%s2 + $0x38] sm:$0xf]
      %v554 = vld [vmem:[%s2 + $0x3c] sm:$0xf]
      %v555 = vld [vmem:[%s3] sm:$0x1]
      %v557 = vperm.slane %v555, 0
      %v575 = vunpack.c.l.b16 %v539
      %v576 = vunpack.c.l.b16 %v540
      %v577 = vunpack.c.l.b16 %v541
      %v578 = vunpack.c.l.b16 %v542
      %v579 = vunpack.c.l.b16 %v543
      %v580 = vunpack.c.l.b16 %v544
      %v581 = vunpack.c.l.b16 %v545
      %v582 = vunpack.c.l.b16 %v546
      %v583 = vunpack.c.l.b16 %v547
      %v584 = vunpack.c.l.b16 %v548
      %v585 = vunpack.c.l.b16 %v549
      %v586 = vunpack.c.l.b16 %v550
      %v587 = vunpack.c.l.b16 %v551
      %v588 = vunpack.c.l.b16 %v552
      %v589 = vunpack.c.l.b16 %v553
      %v590 = vunpack.c.l.b16 %v554
      %v591 = vpack.c.b16 %v576, %v575
      %v592 = vpack.c.b16 %v578, %v577
      %v593 = vpack.c.b16 %v580, %v579
      %v594 = vpack.c.b16 %v582, %v581
      %v595 = vpack.c.b16 %v584, %v583
      %v596 = vpack.c.b16 %v586, %v585
      %v597 = vpack.c.b16 %v588, %v587
      %v598 = vpack.c.b16 %v590, %v589
      %607 = vmatpush.bf16.msra.mxu0 %v598
      %608 = vmatpush.bf16.msra.mxu0 %v597
      %609 = vmatpush.bf16.msra.mxu0 %v596
      %610 = vmatpush.bf16.msra.mxu0 %v595
      %611 = vmatpush.bf16.msra.mxu0 %v594
      %612 = vmatpush.bf16.msra.mxu0 %v593
      %613 = vmatpush.bf16.msra.mxu0 %v592
      %614 = vmatpush.bf16.msra.mxu0 %v591
      %615 = vmatmul.bf16.gmra.mxu0 %v538
      %v616 = vpop.f32.mrf.mxu0
      %v617 = vadd.f32 %v557, %v616
      %v618 = vpop.f32.mrf.mxu0
      %619 = vdwg.mxu0
      %v620 = vld [vmem:[%s4] sm:$0xff]
      %v621 = vld [vmem:[%s4 + $0x8] sm:$0xff]
      %v622 = vld [vmem:[%s4 + $0x10] sm:$0xff]
      %v623 = vld [vmem:[%s4 + $0x18] sm:$0xff]
      %v624 = vld [vmem:[%s4 + $0x20] sm:$0xff]
      %v625 = vld [vmem:[%s4 + $0x28] sm:$0xff]
      %v626 = vld [vmem:[%s4 + $0x30] sm:$0xff]
      %v627 = vld [vmem:[%s4 + $0x38] sm:$0xff]
      %v628 = vld [vmem:[%s4 + $0x40] sm:$0xff]
      %v629 = vld [vmem:[%s4 + $0x48] sm:$0xff]
      %v630 = vld [vmem:[%s4 + $0x50] sm:$0xff]
      %v631 = vld [vmem:[%s4 + $0x58] sm:$0xff]
      %v632 = vld [vmem:[%s4 + $0x60] sm:$0xff]
      %v633 = vld [vmem:[%s4 + $0x68] sm:$0xff]
      %v634 = vld [vmem:[%s4 + $0x70] sm:$0xff]
      %v635 = vld [vmem:[%s4 + $0x78] sm:$0xff]
      %v636 = vld [vmem:[%s5] sm:$0x3]
      %v638 = vperm.slane %v636, 0
      %v639 = vperm.slane %v636, 1
      %v658 = vunpack.c.l.b16 %v620
      %v659 = vunpack.c.h.b16 %v620
      %v660 = vunpack.c.l.b16 %v621
      %v661 = vunpack.c.h.b16 %v621
      %v662 = vunpack.c.l.b16 %v622
      %v663 = vunpack.c.h.b16 %v622
      %v664 = vunpack.c.l.b16 %v623
      %v665 = vunpack.c.h.b16 %v623
      %v666 = vunpack.c.l.b16 %v624
      %v667 = vunpack.c.h.b16 %v624
      %v668 = vunpack.c.l.b16 %v625
      %v669 = vunpack.c.h.b16 %v625
      %v670 = vunpack.c.l.b16 %v626
      %v671 = vunpack.c.h.b16 %v626
      %v672 = vunpack.c.l.b16 %v627
      %v673 = vunpack.c.h.b16 %v627
      %v674 = vunpack.c.l.b16 %v628
      %v675 = vunpack.c.h.b16 %v628
      %v676 = vunpack.c.l.b16 %v629
      %v677 = vunpack.c.h.b16 %v629
      %v678 = vunpack.c.l.b16 %v630
      %v679 = vunpack.c.h.b16 %v630
      %v680 = vunpack.c.l.b16 %v631
      %v681 = vunpack.c.h.b16 %v631
      %v682 = vunpack.c.l.b16 %v632
      %v683 = vunpack.c.h.b16 %v632
      %v684 = vunpack.c.l.b16 %v633
      %v685 = vunpack.c.h.b16 %v633
      %v686 = vunpack.c.l.b16 %v634
      %v687 = vunpack.c.h.b16 %v634
      %v688 = vunpack.c.l.b16 %v635
      %v689 = vunpack.c.h.b16 %v635
      %v690 = vpack.c.b16 %v660, %v658
      %v691 = vpack.c.b16 %v661, %v659
      %v692 = vpack.c.b16 %v664, %v662
      %v693 = vpack.c.b16 %v665, %v663
      %v694 = vpack.c.b16 %v668, %v666
      %v695 = vpack.c.b16 %v669, %v667
      %v696 = vpack.c.b16 %v672, %v670
      %v697 = vpack.c.b16 %v673, %v671
      %v698 = vpack.c.b16 %v676, %v674
      %v699 = vpack.c.b16 %v677, %v675
      %v700 = vpack.c.b16 %v680, %v678
      %v701 = vpack.c.b16 %v681, %v679
      %v702 = vpack.c.b16 %v684, %v682
      %v703 = vpack.c.b16 %v685, %v683
      %v704 = vpack.c.b16 %v688, %v686
      %v705 = vpack.c.b16 %v689, %v687
      %722 = vmatpush.bf16.msra.mxu0 %v704
      %723 = vmatpush.bf16.msra.mxu0 %v702
      %724 = vmatpush.bf16.msra.mxu0 %v700
      %725 = vmatpush.bf16.msra.mxu0 %v698
      %726 = vmatpush.bf16.msra.mxu0 %v696
      %727 = vmatpush.bf16.msra.mxu0 %v694
      %728 = vmatpush.bf16.msra.mxu0 %v692
      %729 = vmatpush.bf16.msra.mxu0 %v690
      %730 = vmatmul.bf16.gmra.mxu0 %v538
      %v731 = vpop.f32.mrf.mxu0
      %v732 = vadd.f32 %v638, %v731
      %v733 = vpop.f32.mrf.mxu0
      %734 = vdwg.mxu0
      %735 = vmatpush.bf16.msra.mxu0 %v705
      %736 = vmatpush.bf16.msra.mxu0 %v703
      %737 = vmatpush.bf16.msra.mxu0 %v701
      %738 = vmatpush.bf16.msra.mxu0 %v699
      %739 = vmatpush.bf16.msra.mxu0 %v697
      %740 = vmatpush.bf16.msra.mxu0 %v695
      %741 = vmatpush.bf16.msra.mxu0 %v693
      %742 = vmatpush.bf16.msra.mxu0 %v691
      %743 = vmatmul.bf16.gmra.mxu0 %v538
      %v744 = vpop.f32.mrf.mxu0
      %v745 = vadd.f32 %v639, %v744
      %v746 = vpop.f32.mrf.mxu0
      %747 = vdwg.mxu0
      %v748 = vpack.c.bf16 %v617, %v617
      %v749 = vpack.c.bf16 %v732, %v732
      %v750 = vpack.c.bf16 %v745, %v745
      %752 = vrot.lane.b32.xlu0 %v748, 96
      %v753 = vpop.permute.xlu0 %752
      %754 = vrot.lane.b32.xlu0 %v748, 64
      %v755 = vpop.permute.xlu0 %754
      %756 = vrot.lane.b32.xlu0 %v748, 32
      %v757 = vpop.permute.xlu0 %756
      %759 = vrot.lane.b32.xlu0 %v749, 96
      %v760 = vpop.permute.xlu0 %759
      %761 = vrot.lane.b32.xlu0 %v749, 64
      %v762 = vpop.permute.xlu0 %761
      %763 = vrot.lane.b32.xlu0 %v749, 32
      %v764 = vpop.permute.xlu0 %763
      %766 = vrot.lane.b32.xlu0 %v750, 96
      %v767 = vpop.permute.xlu0 %766
      %768 = vrot.lane.b32.xlu0 %v750, 64
      %v769 = vpop.permute.xlu0 %768
      %770 = vrot.lane.b32.xlu0 %v750, 32
      %v771 = vpop.permute.xlu0 %770
      %vm772 = vcmask 261120
      %v774 = vsel %vm772, %v748, 0
      %v777 = vsel %vm772, %v749, 0
      %779 = vmatpush.bf16.xpose.msra.mxu0 0
      %780 = vmatpush.bf16.xpose.msra.mxu0 0
      %781 = vmatpush.bf16.xpose.msra.mxu0 0
      %782 = vmatpush.bf16.xpose.msra.mxu0 0
      %783 = vmatpush.bf16.xpose.msra.mxu0 0
      %784 = vmatpush.bf16.xpose.msra.mxu0 0
      %785 = vmatpush.bf16.xpose.msra.mxu0 0
      %786 = vmatpush.bf16.xpose.msra.mxu0 %v777
      %787 = vmatmul.bf16.gmra.mxu0 %v774
      %v788 = vpop.f32.mrf.mxu0
      %v789 = vadd.f32 0.0, %v788
      %v790 = vpop.f32.mrf.mxu0
      %791 = vdwg.mxu0
      %v793 = vsel %vm772, %v753, 0
      %v796 = vsel %vm772, %v760, 0
      %798 = vmatpush.bf16.xpose.msra.mxu0 0
      %799 = vmatpush.bf16.xpose.msra.mxu0 0
      %800 = vmatpush.bf16.xpose.msra.mxu0 0
      %801 = vmatpush.bf16.xpose.msra.mxu0 0
      %802 = vmatpush.bf16.xpose.msra.mxu0 0
      %803 = vmatpush.bf16.xpose.msra.mxu0 0
      %804 = vmatpush.bf16.xpose.msra.mxu0 0
      %805 = vmatpush.bf16.xpose.msra.mxu0 %v796
      %806 = vmatmul.bf16.gmra.mxu0 %v793
      %v807 = vpop.f32.mrf.mxu0
      %v808 = vadd.f32 0.0, %v807
      %v809 = vpop.f32.mrf.mxu0
      %810 = vdwg.mxu0
      %v812 = vsel %vm772, %v755, 0
      %v815 = vsel %vm772, %v762, 0
      %817 = vmatpush.bf16.xpose.msra.mxu0 0
      %818 = vmatpush.bf16.xpose.msra.mxu0 0
      %819 = vmatpush.bf16.xpose.msra.mxu0 0
      %820 = vmatpush.bf16.xpose.msra.mxu0 0
      %821 = vmatpush.bf16.xpose.msra.mxu0 0
      %822 = vmatpush.bf16.xpose.msra.mxu0 0
      %823 = vmatpush.bf16.xpose.msra.mxu0 0
      %824 = vmatpush.bf16.xpose.msra.mxu0 %v815
      %825 = vmatmul.bf16.gmra.mxu0 %v812
      %v826 = vpop.f32.mrf.mxu0
      %v827 = vadd.f32 0.0, %v826
      %v828 = vpop.f32.mrf.mxu0
      %829 = vdwg.mxu0
      %v831 = vsel %vm772, %v757, 0
      %v834 = vsel %vm772, %v764, 0
      %836 = vmatpush.bf16.xpose.msra.mxu0 0
      %837 = vmatpush.bf16.xpose.msra.mxu0 0
      %838 = vmatpush.bf16.xpose.msra.mxu0 0
      %839 = vmatpush.bf16.xpose.msra.mxu0 0
      %840 = vmatpush.bf16.xpose.msra.mxu0 0
      %841 = vmatpush.bf16.xpose.msra.mxu0 0
      %842 = vmatpush.bf16.xpose.msra.mxu0 0
      %843 = vmatpush.bf16.xpose.msra.mxu0 %v834
      %844 = vmatmul.bf16.gmra.mxu0 %v831
      %v845 = vpop.f32.mrf.mxu0
      %v846 = vadd.f32 0.0, %v845
      %v847 = vpop.f32.mrf.mxu0
      %848 = vdwg.mxu0
      %v849 = vmul.f32 %v789, 0.35355338
      %v850 = vmul.f32 %v808, 0.35355338
      %v851 = vmul.f32 %v827, 0.35355338
      %v852 = vmul.f32 %v846, 0.35355338
      %v853 = vperm.slane %v537, 0
      %v854 = vadd.f32 %v849, %v853
      %v855 = vadd.f32 %v850, %v853
      %v856 = vadd.f32 %v851, %v853
      %v857 = vadd.f32 %v852, %v853
      %vm858 = vcmask 64512
      %v859 = vsel %vm858, %v854, -inf
      %860 = vmax.xlane.f32.xlu0 %v859
      %v861 = vpop.xlane.xlu0 %860
      %v862 = vsel %vm858, %v855, -inf
      %863 = vmax.xlane.f32.xlu0 %v862
      %v864 = vpop.xlane.xlu0 %863
      %v865 = vsel %vm858, %v856, -inf
      %866 = vmax.xlane.f32.xlu0 %v865
      %v867 = vpop.xlane.xlu0 %866
      %v868 = vsel %vm858, %v857, -inf
      %869 = vmax.xlane.f32.xlu0 %v868
      %v870 = vpop.xlane.xlu0 %869
      %v871 = vsub.f32 %v854, %v861
      %v872 = vsub.f32 %v855, %v864
      %v873 = vsub.f32 %v856, %v867
      %v874 = vsub.f32 %v857, %v870
      %v875 = vmul.f32 %v871, 1.442695
      %v876 = vpow.pop %v875
      %v877 = vmul.f32 %v872, 1.442695
      %v878 = vpow.pop %v877
      %v879 = vmul.f32 %v873, 1.442695
      %v880 = vpow.pop %v879
      %v881 = vmul.f32 %v874, 1.442695
      %v882 = vpow.pop %v881
      %v883 = vsel %vm858, %v876, 0.0
      %884 = vadd.xlane.f32.xlu0 %v883
      %v885 = vpop.xlane.xlu0 %884
      %v886 = vsel %vm858, %v878, 0.0
      %887 = vadd.xlane.f32.xlu0 %v886
      %v888 = vpop.xlane.xlu0 %887
      %v889 = vsel %vm858, %v880, 0.0
      %890 = vadd.xlane.f32.xlu0 %v889
      %v891 = vpop.xlane.xlu0 %890
      %v892 = vsel %vm858, %v882, 0.0
      %893 = vadd.xlane.f32.xlu0 %v892
      %v894 = vpop.xlane.xlu0 %893
      %v895 = vrcp.pop %v885
      %v896 = vrcp.pop %v888
      %v897 = vrcp.pop %v891
      %v898 = vrcp.pop %v894
      %v899 = vmul.f32 %v876, %v895
      %v900 = vmul.f32 %v878, %v896
      %v901 = vmul.f32 %v880, %v897
      %v902 = vmul.f32 %v882, %v898
      %v903 = vpack.c.bf16 %v899, %v899
      %v904 = vpack.c.bf16 %v900, %v900
      %v905 = vpack.c.bf16 %v901, %v901
      %v906 = vpack.c.bf16 %v902, %v902
      %v908 = vsel %vm858, %v903, 0
      %vm910 = vcmask 1043456
      %v912 = vsel %vm910, %v750, 0
      %914 = vmatpush.bf16.msra.mxu0 0
      %915 = vmatpush.bf16.msra.mxu0 0
      %916 = vmatpush.bf16.msra.mxu0 0
      %917 = vmatpush.bf16.msra.mxu0 0
      %918 = vmatpush.bf16.msra.mxu0 0
      %919 = vmatpush.bf16.msra.mxu0 0
      %920 = vmatpush.bf16.msra.mxu0 0
      %921 = vmatpush.bf16.msra.mxu0 %v912
      %922 = vmatmul.bf16.gmra.mxu0 %v908
      %v923 = vpop.f32.mrf.mxu0
      %v924 = vadd.f32 0.0, %v923
      %v925 = vpop.f32.mrf.mxu0
      %926 = vdwg.mxu0
      %v928 = vsel %vm858, %v904, 0
      %v931 = vsel %vm910, %v767, 0
      %933 = vmatpush.bf16.msra.mxu0 0
      %934 = vmatpush.bf16.msra.mxu0 0
      %935 = vmatpush.bf16.msra.mxu0 0
      %936 = vmatpush.bf16.msra.mxu0 0
      %937 = vmatpush.bf16.msra.mxu0 0
      %938 = vmatpush.bf16.msra.mxu0 0
      %939 = vmatpush.bf16.msra.mxu0 0
      %940 = vmatpush.bf16.msra.mxu0 %v931
      %941 = vmatmul.bf16.gmra.mxu0 %v928
      %v942 = vpop.f32.mrf.mxu0
      %v943 = vadd.f32 0.0, %v942
      %v944 = vpop.f32.mrf.mxu0
      %945 = vdwg.mxu0
      %v947 = vsel %vm858, %v905, 0
      %v950 = vsel %vm910, %v769, 0
      %952 = vmatpush.bf16.msra.mxu0 0
      %953 = vmatpush.bf16.msra.mxu0 0
      %954 = vmatpush.bf16.msra.mxu0 0
      %955 = vmatpush.bf16.msra.mxu0 0
      %956 = vmatpush.bf16.msra.mxu0 0
      %957 = vmatpush.bf16.msra.mxu0 0
      %958 = vmatpush.bf16.msra.mxu0 0
      %959 = vmatpush.bf16.msra.mxu0 %v950
      %960 = vmatmul.bf16.gmra.mxu0 %v947
      %v961 = vpop.f32.mrf.mxu0
      %v962 = vadd.f32 0.0, %v961
      %v963 = vpop.f32.mrf.mxu0
      %964 = vdwg.mxu0
      %v966 = vsel %vm858, %v906, 0
      %v969 = vsel %vm910, %v771, 0
      %971 = vmatpush.bf16.msra.mxu0 0
      %972 = vmatpush.bf16.msra.mxu0 0
      %973 = vmatpush.bf16.msra.mxu0 0
      %974 = vmatpush.bf16.msra.mxu0 0
      %975 = vmatpush.bf16.msra.mxu0 0
      %976 = vmatpush.bf16.msra.mxu0 0
      %977 = vmatpush.bf16.msra.mxu0 0
      %978 = vmatpush.bf16.msra.mxu0 %v969
      %979 = vmatmul.bf16.gmra.mxu0 %v966
      %v980 = vpop.f32.mrf.mxu0
      %v981 = vadd.f32 0.0, %v980
      %v982 = vpop.f32.mrf.mxu0
      %983 = vdwg.mxu0
      %985 = vrot.lane.b32.xlu0 %v943, 32
      %v986 = vpop.permute.xlu0 %985
      %989 = vrot.lane.b32.xlu0 %v962, 64
      %v990 = vpop.permute.xlu0 %989
      %993 = vrot.lane.b32.xlu0 %v981, 96
      %v994 = vpop.permute.xlu0 %993
      %v996 = vsel %vm772, %v924, %v986
      %vm997 = vcmask 523264
      %v998 = vsel %vm997, %v996, %v990
      %vm999 = vcmask 785408
      %v1000 = vsel %vm999, %v998, %v994
      %v1001 = vpack.c.bf16 %v1000, %v1000
      %v1002 = vld [vmem:[%s6] sm:$0xf]
      %v1003 = vld [vmem:[%s6 + $0x4] sm:$0xf]
      %v1004 = vld [vmem:[%s6 + $0x8] sm:$0xf]
      %v1005 = vld [vmem:[%s6 + $0xc] sm:$0xf]
      %v1006 = vld [vmem:[%s6 + $0x10] sm:$0xf]
      %v1007 = vld [vmem:[%s6 + $0x14] sm:$0xf]
      %v1008 = vld [vmem:[%s6 + $0x18] sm:$0xf]
      %v1009 = vld [vmem:[%s6 + $0x1c] sm:$0xf]
      %v1010 = vld [vmem:[%s6 + $0x20] sm:$0xf]
      %v1011 = vld [vmem:[%s6 + $0x24] sm:$0xf]
      %v1012 = vld [vmem:[%s6 + $0x28] sm:$0xf]
      %v1013 = vld [vmem:[%s6 + $0x2c] sm:$0xf]
      %v1014 = vld [vmem:[%s6 + $0x30] sm:$0xf]
      %v1015 = vld [vmem:[%s6 + $0x34] sm:$0xf]
      %v1016 = vld [vmem:[%s6 + $0x38] sm:$0xf]
      %v1017 = vld [vmem:[%s6 + $0x3c] sm:$0xf]
      %v1018 = vld [vmem:[%s7] sm:$0x1]
      %v1020 = vperm.slane %v1018, 0
      %v1038 = vunpack.c.l.b16 %v1002
      %v1039 = vunpack.c.l.b16 %v1003
      %v1040 = vunpack.c.l.b16 %v1004
      %v1041 = vunpack.c.l.b16 %v1005
      %v1042 = vunpack.c.l.b16 %v1006
      %v1043 = vunpack.c.l.b16 %v1007
      %v1044 = vunpack.c.l.b16 %v1008
      %v1045 = vunpack.c.l.b16 %v1009
      %v1046 = vunpack.c.l.b16 %v1010
      %v1047 = vunpack.c.l.b16 %v1011
      %v1048 = vunpack.c.l.b16 %v1012
      %v1049 = vunpack.c.l.b16 %v1013
      %v1050 = vunpack.c.l.b16 %v1014
      %v1051 = vunpack.c.l.b16 %v1015
      %v1052 = vunpack.c.l.b16 %v1016
      %v1053 = vunpack.c.l.b16 %v1017
      %v1054 = vpack.c.b16 %v1039, %v1038
      %v1055 = vpack.c.b16 %v1041, %v1040
      %v1056 = vpack.c.b16 %v1043, %v1042
      %v1057 = vpack.c.b16 %v1045, %v1044
      %v1058 = vpack.c.b16 %v1047, %v1046
      %v1059 = vpack.c.b16 %v1049, %v1048
      %v1060 = vpack.c.b16 %v1051, %v1050
      %v1061 = vpack.c.b16 %v1053, %v1052
      %1070 = vmatpush.bf16.msra.mxu0 %v1061
      %1071 = vmatpush.bf16.msra.mxu0 %v1060
      %1072 = vmatpush.bf16.msra.mxu0 %v1059
      %1073 = vmatpush.bf16.msra.mxu0 %v1058
      %1074 = vmatpush.bf16.msra.mxu0 %v1057
      %1075 = vmatpush.bf16.msra.mxu0 %v1056
      %1076 = vmatpush.bf16.msra.mxu0 %v1055
      %1077 = vmatpush.bf16.msra.mxu0 %v1054
      %1078 = vmatmul.bf16.gmra.mxu0 %v1001
      %v1079 = vpop.f32.mrf.mxu0
      %v1080 = vadd.f32 %v1020, %v1079
      %v1081 = vpop.f32.mrf.mxu0
      %1082 = vdwg.mxu0
      %v1083 = vadd.f32 %v1080, %v532
      %v1084 = vld [vmem:[%s8] sm:$0x1]
      %v1085 = vld [vmem:[%s9] sm:$0x1]
      %1086 = vadd.xlane.f32.xlu0 %v1083
      %v1087 = vpop.xlane.xlu0 %1086
      %v1088 = vmul.f32 %v1087, 0.03125
      %v1089 = vmul.f32 %v1083, %v1083
      %1090 = vadd.xlane.f32.xlu0 %v1089
      %v1091 = vpop.xlane.xlu0 %1090
      %v1092 = vmul.f32 %v1091, 0.03125
      %v1093 = vmul.f32 %v1088, %v1088
      %v1094 = vsub.f32 %v1092, %v1093
      %v1095 = vmax.f32 %v1094, 0.0
      %v1096 = vsub.f32 %v1083, %v1088
      %v1097 = vadd.f32 %v1095, 1e-05
      %v1098 = vrsqrt.pop %v1097
      %v1099 = vmul.f32 %v1098, %v1097
      %v1100 = vmul.f32 %v1099, %v1098
      %v1101 = vmul.f32 0.5, %v1100
      %v1102 = vsub.f32 1.5, %v1101
      %v1103 = vmul.f32 %v1098, %v1102
      %vm1104 = vweird.f32 %v1097
      %vm1105 = vweird.f32 %v1098
      %vm1106 = vmor %vm1104, %vm1105
      %v1107 = vsel %vm1106, %v1098, %v1103
      %v1108 = vmul.f32 %v1096, %v1107
      %v1110 = vperm.slane %v1084, 0
      %v1112 = vmul.f32 %v1108, %v1110
      %v1114 = vperm.slane %v1085, 0
      %v1116 = vadd.f32 %v1112, %v1114
      %v1117 = vpack.c.bf16 %v1116, %v1116
      %v1118 = vld [vmem:[%s10] sm:$0xf]
      %v1119 = vld [vmem:[%s10 + $0x4] sm:$0xf]
      %v1120 = vld [vmem:[%s10 + $0x8] sm:$0xf]
      %v1121 = vld [vmem:[%s10 + $0xc] sm:$0xf]
      %v1122 = vld [vmem:[%s10 + $0x10] sm:$0xf]
      %v1123 = vld [vmem:[%s10 + $0x14] sm:$0xf]
      %v1124 = vld [vmem:[%s10 + $0x18] sm:$0xf]
      %v1125 = vld [vmem:[%s10 + $0x1c] sm:$0xf]
      %v1126 = vld [vmem:[%s10 + $0x20] sm:$0xf]
      %v1127 = vld [vmem:[%s10 + $0x24] sm:$0xf]
      %v1128 = vld [vmem:[%s10 + $0x28] sm:$0xf]
      %v1129 = vld [vmem:[%s10 + $0x2c] sm:$0xf]
      %v1130 = vld [vmem:[%s10 + $0x30] sm:$0xf]
      %v1131 = vld [vmem:[%s10 + $0x34] sm:$0xf]
      %v1132 = vld [vmem:[%s10 + $0x38] sm:$0xf]
      %v1133 = vld [vmem:[%s10 + $0x3c] sm:$0xf]
      %v1134 = vld [vmem:[%s11] sm:$0x1]
      %v1136 = vperm.slane %v1134, 0
      %v1154 = vunpack.c.l.b16 %v1118
      %v1155 = vunpack.c.l.b16 %v1119
      %v1156 = vunpack.c.l.b16 %v1120
      %v1157 = vunpack.c.l.b16 %v1121
      %v1158 = vunpack.c.l.b16 %v1122
      %v1159 = vunpack.c.l.b16 %v1123
      %v1160 = vunpack.c.l.b16 %v1124
      %v1161 = vunpack.c.l.b16 %v1125
      %v1162 = vunpack.c.l.b16 %v1126
      %v1163 = vunpack.c.l.b16 %v1127
      %v1164 = vunpack.c.l.b16 %v1128
      %v1165 = vunpack.c.l.b16 %v1129
      %v1166 = vunpack.c.l.b16 %v1130
      %v1167 = vunpack.c.l.b16 %v1131
      %v1168 = vunpack.c.l.b16 %v1132
      %v1169 = vunpack.c.l.b16 %v1133
      %v1170 = vpack.c.b16 %v1155, %v1154
      %v1171 = vpack.c.b16 %v1157, %v1156
      %v1172 = vpack.c.b16 %v1159, %v1158
      %v1173 = vpack.c.b16 %v1161, %v1160
      %v1174 = vpack.c.b16 %v1163, %v1162
      %v1175 = vpack.c.b16 %v1165, %v1164
      %v1176 = vpack.c.b16 %v1167, %v1166
      %v1177 = vpack.c.b16 %v1169, %v1168
      %1186 = vmatpush.bf16.msra.mxu0 %v1177
      %1187 = vmatpush.bf16.msra.mxu0 %v1176
      %1188 = vmatpush.bf16.msra.mxu0 %v1175
      %1189 = vmatpush.bf16.msra.mxu0 %v1174
      %1190 = vmatpush.bf16.msra.mxu0 %v1173
      %1191 = vmatpush.bf16.msra.mxu0 %v1172
      %1192 = vmatpush.bf16.msra.mxu0 %v1171
      %1193 = vmatpush.bf16.msra.mxu0 %v1170
      %1194 = vmatmul.bf16.gmra.mxu0 %v1117
      %v1195 = vpop.f32.mrf.mxu0
      %v1196 = vadd.f32 %v1136, %v1195
      %v1197 = vpop.f32.mrf.mxu0
      %1198 = vdwg.mxu0
      %v1199 = vmax.f32 %v1196, 0.0
      %v1200 = vpack.c.bf16 %v1199, %v1199
      %v1201 = vld [vmem:[%s12] sm:$0xf]
      %v1202 = vld [vmem:[%s12 + $0x4] sm:$0xf]
      %v1203 = vld [vmem:[%s12 + $0x8] sm:$0xf]
      %v1204 = vld [vmem:[%s12 + $0xc] sm:$0xf]
      %v1205 = vld [vmem:[%s12 + $0x10] sm:$0xf]
      %v1206 = vld [vmem:[%s12 + $0x14] sm:$0xf]
      %v1207 = vld [vmem:[%s12 + $0x18] sm:$0xf]
      %v1208 = vld [vmem:[%s12 + $0x1c] sm:$0xf]
      %v1209 = vld [vmem:[%s12 + $0x20] sm:$0xf]
      %v1210 = vld [vmem:[%s12 + $0x24] sm:$0xf]
      %v1211 = vld [vmem:[%s12 + $0x28] sm:$0xf]
      %v1212 = vld [vmem:[%s12 + $0x2c] sm:$0xf]
      %v1213 = vld [vmem:[%s12 + $0x30] sm:$0xf]
      %v1214 = vld [vmem:[%s12 + $0x34] sm:$0xf]
      %v1215 = vld [vmem:[%s12 + $0x38] sm:$0xf]
      %v1216 = vld [vmem:[%s12 + $0x3c] sm:$0xf]
      %v1217 = vld [vmem:[%s13] sm:$0x1]
      %v1219 = vperm.slane %v1217, 0
      %v1237 = vunpack.c.l.b16 %v1201
      %v1238 = vunpack.c.l.b16 %v1202
      %v1239 = vunpack.c.l.b16 %v1203
      %v1240 = vunpack.c.l.b16 %v1204
      %v1241 = vunpack.c.l.b16 %v1205
      %v1242 = vunpack.c.l.b16 %v1206
      %v1243 = vunpack.c.l.b16 %v1207
      %v1244 = vunpack.c.l.b16 %v1208
      %v1245 = vunpack.c.l.b16 %v1209
      %v1246 = vunpack.c.l.b16 %v1210
      %v1247 = vunpack.c.l.b16 %v1211
      %v1248 = vunpack.c.l.b16 %v1212
      %v1249 = vunpack.c.l.b16 %v1213
      %v1250 = vunpack.c.l.b16 %v1214
      %v1251 = vunpack.c.l.b16 %v1215
      %v1252 = vunpack.c.l.b16 %v1216
      %v1253 = vpack.c.b16 %v1238, %v1237
      %v1254 = vpack.c.b16 %v1240, %v1239
      %v1255 = vpack.c.b16 %v1242, %v1241
      %v1256 = vpack.c.b16 %v1244, %v1243
      %v1257 = vpack.c.b16 %v1246, %v1245
      %v1258 = vpack.c.b16 %v1248, %v1247
      %v1259 = vpack.c.b16 %v1250, %v1249
      %v1260 = vpack.c.b16 %v1252, %v1251
      %1269 = vmatpush.bf16.msra.mxu0 %v1260
      %1270 = vmatpush.bf16.msra.mxu0 %v1259
      %1271 = vmatpush.bf16.msra.mxu0 %v1258
      %1272 = vmatpush.bf16.msra.mxu0 %v1257
      %1273 = vmatpush.bf16.msra.mxu0 %v1256
      %1274 = vmatpush.bf16.msra.mxu0 %v1255
      %1275 = vmatpush.bf16.msra.mxu0 %v1254
      %1276 = vmatpush.bf16.msra.mxu0 %v1253
      %1277 = vmatmul.bf16.gmra.mxu0 %v1200
      %v1278 = vpop.f32.mrf.mxu0
      %v1279 = vadd.f32 %v1219, %v1278
      %v1280 = vpop.f32.mrf.mxu0
      %1281 = vdwg.mxu0
      %v1282 = vadd.f32 %v1279, %v1116
      %v1283 = vld [vmem:[%s14] sm:$0x1]
      %v1284 = vld [vmem:[%s15] sm:$0x1]
      %1285 = vadd.xlane.f32.xlu0 %v1282
      %v1286 = vpop.xlane.xlu0 %1285
      %v1287 = vmul.f32 %v1286, 0.03125
      %v1288 = vmul.f32 %v1282, %v1282
      %1289 = vadd.xlane.f32.xlu0 %v1288
      %v1290 = vpop.xlane.xlu0 %1289
      %v1291 = vmul.f32 %v1290, 0.03125
      %v1292 = vmul.f32 %v1287, %v1287
      %v1293 = vsub.f32 %v1291, %v1292
      %v1294 = vmax.f32 %v1293, 0.0
      %v1295 = vsub.f32 %v1282, %v1287
      %v1296 = vadd.f32 %v1294, 1e-05
      %v1297 = vrsqrt.pop %v1296
      %v1298 = vmul.f32 %v1297, %v1296
      %v1299 = vmul.f32 %v1298, %v1297
      %v1300 = vmul.f32 0.5, %v1299
      %v1301 = vsub.f32 1.5, %v1300
      %v1302 = vmul.f32 %v1297, %v1301
      %vm1303 = vweird.f32 %v1296
      %vm1304 = vweird.f32 %v1297
      %vm1305 = vmor %vm1303, %vm1304
      %v1306 = vsel %vm1305, %v1297, %v1302
      %v1307 = vmul.f32 %v1295, %v1306
      %v1309 = vperm.slane %v1283, 0
      %v1311 = vmul.f32 %v1307, %v1309
      %v1313 = vperm.slane %v1284, 0
      %v1315 = vadd.f32 %v1311, %v1313
      %1316 = vst [vmem:[%s530] sm:$0xff] %v1315
      %p1317 = scmp.lt.s32.totalorder %s27, 1
      %s1318 = scalar_select %p1317, %s27, 1
      %s1319 = smul.addr %s1318, 8
      %s1320 = scalar_lea.vmem %s16, %s1319
      // Predicated region
      $region85: #{_lambda_.5} parent=83 // pred_check
        %p1321 = pneg %p391
      $region86: #{_lambda_.5} parent=83 // pred_check_branch
        %1323 = sbr.rel (%p1321) target = $region88
      $region87: #{_lambda_.5} parent=83 // pred_region
        _
      $region88: #{_lambda_.5} parent=83 // pred_fallthru
        _
    $region84: #{_lambda_.5} parent=5 // pred_fallthru
      _
    %p1324 = scmp.le.s32.totalorder 2, %s22
    // Predicated region
    $region89: #{_lambda_.5} parent=5 // pred_check
      %p1325 = pneg %p1324
    $region90: #{_lambda_.5} parent=5 // pred_check_branch
      %1327 = sbr.rel (%p1325) target = $region92
    $region91: #{_lambda_.5} parent=5 // pred_region
      %s1328 = ssub.s32 %s22, 2
      // Predicated region
      $region93: #{_lambda_.5} parent=91 // pred_check
        %p1329 = pneg %p397
      $region94: #{_lambda_.5} parent=91 // pred_check_branch
        %1331 = sbr.rel (%p1329) target = $region96
      $region95: #{_lambda_.5} parent=91 // pred_region
        %p1332 = scmp.lt.s32.totalorder %s28, 1
        %s1333 = scalar_select %p1332, %s28, 1
        %s1334 = smul.addr %s1333, 8
        %s1335 = scalar_lea.vmem %s16, %s1334
      $region96: #{_lambda_.5} parent=91 // pred_fallthru
        _
    $region92: #{_lambda_.5} parent=5 // pred_fallthru
      _
  $region6: #{_lambda_.5} parent=0 // loop_footer
    %s26 = sadd.s32 1, %s22
  $region7: #{_lambda_.5} parent=0 // loop_footer_branch
    %21 = sbr.rel target = $region3
  $region8: #{_lambda_.5} parent=0 // loop_exit
    _

// kernel: _lambda_.6
$region0: #{_lambda_.6}
  #allocation0 [shape = 'u32[]', space=smem, size = 0x4, offset = 0x4, fixed_abs, tag = 'smem constant byte address 0x4 - core index']
  #allocation1 [shape = 'u32[72,128]{1,0:T(1,128)}', space=vmem, size = 0x9000, scoped, tag = 'internal scratch']
  %s0 = inlined_call_operand.vmem [shape: f32[2,8,128], index: 0, kind: input, shape index: {}]
  %s1 = inlined_call_operand.vmem [shape: s8[2,1,8], index: 1, kind: input, shape index: {}]
  %s2 = inlined_call_operand.vmem [shape: bf16[128,128], index: 2, kind: input, shape index: {}]
  %s3 = inlined_call_operand.vmem [shape: f32[1,128], index: 3, kind: input, shape index: {}]
  %s4 = inlined_call_operand.vmem [shape: bf16[128,256], index: 4, kind: input, shape index: {}]
  %s5 = inlined_call_operand.vmem [shape: f32[1,256], index: 5, kind: input, shape index: {}]
  %s6 = inlined_call_operand.hbm [shape: bf16[128,128], index: 6, kind: input, shape index: {}]
  %s7 = inlined_call_operand.vmem [shape: f32[1,128], index: 7, kind: input, shape index: {}]
  %s8 = inlined_call_operand.vmem [shape: f32[1,128], index: 8, kind: input, shape index: {}]
  %s9 = inlined_call_operand.vmem [shape: f32[1,128], index: 9, kind: input, shape index: {}]
  %s10 = inlined_call_operand.hbm [shape: bf16[128,128], index: 10, kind: input, shape index: {}]
  %s11 = inlined_call_operand.vmem [shape: f32[1,128], index: 11, kind: input, shape index: {}]
  %s12 = inlined_call_operand.hbm [shape: bf16[128,128], index: 12, kind: input, shape index: {}]
  %s13 = inlined_call_operand.vmem [shape: f32[1,128], index: 13, kind: input, shape index: {}]
  %s14 = inlined_call_operand.vmem [shape: f32[1,128], index: 14, kind: input, shape index: {}]
  %s15 = inlined_call_operand.vmem [shape: f32[1,128], index: 15, kind: input, shape index: {}]
  %s16 = inlined_call_operand.vmem [shape: f32[2,8,128], index: 16, kind: output, shape index: {}]
  %s17 = sld [smem:[#allocation0]]
  $region109: #{_lambda_.6} parent=0
    _
  %s19 = ssub.s32 1, %s17
  %s20 = scalar_select 0, %s19, %s17
  $region1: #{_lambda_.6} parent=0
    #allocation2 [shape = 'u8[32768]{0}', space=vmem, size = 0x8000, scoped, tag = 'input window, operand 6, single buffered']
    #allocation3 [shape = 's32[2]{0}', space=sflag, size = 0x8, scoped, tag = 'scoped memory for _lambda_.6']
    #allocation4 [shape = 'u8[32768]{0}', space=vmem, size = 0x8000, scoped, tag = 'input window, operand 10, single buffered']
    #allocation5 [shape = 's32[1]{0}', space=sflag, size = 0x4, scoped, tag = 'scoped memory for _lambda_.6']
    #allocation6 [shape = 'u8[32768]{0}', space=vmem, size = 0x8000, scoped, tag = 'input window, operand 12, single buffered']
    %21 = vsyncpa [#allocation3], 0
    %22 = vsyncpa [#allocation5], 0
    loop: start=0, step=1, limit=4
    $region2: #{_lambda_.6} parent=1 // loop_pre_header
      _
    $region3: #{_lambda_.6} parent=1 // loop_header
      %s24 = sphi 0, %s28
      %p25 = scmp.ge.s32.totalorder %s24, 4
      %s34 = sphi 0, %s36
      %s37 = sphi 0, %s34
      %s38 = sphi 0, %s37
      %s54 = sphi 0, %s38
      %s60 = sphi 0, %s62
      %s63 = sphi 0, %s60
      %s64 = sphi 0, %s63
      %s80 = sphi 0, %s64
      %s84 = sphi 0, %s84
      %s86 = sphi 0, %s84
      %s87 = sphi 0, %s86
      %s101 = sphi 0, %s87
      %s105 = sphi 0, %s105
      %s107 = sphi 0, %s105
      %s108 = sphi 0, %s107
      %s122 = sphi 0, %s108
      %s126 = sphi 0, %s126
      %s128 = sphi 0, %s126
      %s129 = sphi 0, %s128
      %s143 = sphi 0, %s129
      %s147 = sphi 0, %s147
      %s149 = sphi 0, %s147
      %s150 = sphi 0, %s149
      %s164 = sphi 0, %s150
      %s168 = sphi 0, %s168
      %s170 = sphi 0, %s168
      %s171 = sphi 0, %s170
      %s185 = sphi 0, %s171
      %s189 = sphi 0, %s189
      %s191 = sphi 0, %s189
      %s192 = sphi 0, %s191
      %s206 = sphi 0, %s192
      %s210 = sphi 0, %s210
      %s212 = sphi 0, %s210
      %s213 = sphi 0, %s212
      %s227 = sphi 0, %s213
      %s231 = sphi 0, %s231
      %s233 = sphi 0, %s231
      %s234 = sphi 0, %s233
      %s248 = sphi 0, %s234
      %s252 = sphi 0, %s252
      %s254 = sphi 0, %s252
      %s255 = sphi 0, %s254
      %s269 = sphi 0, %s255
      %s273 = sphi 0, %s273
      %s275 = sphi 0, %s273
      %s276 = sphi 0, %s275
      %s290 = sphi 0, %s276
      %s294 = sphi 0, %s294
      %s296 = sphi 0, %s294
      %s297 = sphi 0, %s296
      %s311 = sphi 0, %s297
      %s315 = sphi 0, %s315
      %s317 = sphi 0, %s315
      %s318 = sphi 0, %s317
      %s332 = sphi 0, %s318
      %s336 = sphi 0, %s336
      %s338 = sphi 0, %s336
      %s339 = sphi 0, %s338
      %s353 = sphi 0, %s339
      %s357 = sphi 0, %s357
      %s359 = sphi 0, %s357
      %s360 = sphi 0, %s359
      %s374 = sphi 0, %s360
      %s380 = sphi 0, %s382
      %s383 = sphi 0, %s380
      %s384 = sphi 0, %s383
      %s400 = sphi 0, %s384
    $region4: #{_lambda_.6} parent=1 // loop_header_branch
      %27 = sbr.rel (%p25) target = $region8
    $region5: #{_lambda_.6} parent=1 // loop_body
      %s29 = ssub.s32 %s24, 1
      %s30 = ssub.s32 %s24, 2
      %s31 = sadd.s32 %s24, 1
      %s32 = ssub.s32 %s24, %s31
      %p33 = scmp.eq.s32.totalorder %s32, 0
      %s35 = sadd.s32 %s34, 1
      %s36 = scalar_select %p33, %s34, %s35
      %p39 = pneg %p33
      %p40 = scmp.eq.s32.totalorder %s24, 1
      %p41 = por %p39, %p40
      %p42 = scmp.ne.s32.totalorder %s34, %s37
      %p43 = scmp.eq.s32.totalorder %s24, 0
      %p44 = por %p42, %p43
      %p45 = scmp.ne.s32.totalorder %s34, %s37
      %p46 = scmp.eq.s32.totalorder %s29, 1
      %p47 = por %p45, %p46
      %p48 = scmp.ne.s32.totalorder %s37, %s38
      %p49 = scmp.eq.s32.totalorder %s29, 0
      %p50 = por %p48, %p49
      %p51 = scmp.ne.s32.totalorder %s37, %s38
      %p52 = scmp.eq.s32.totalorder %s30, 1
      %p53 = por %p51, %p52
      %p55 = scmp.ne.s32.totalorder %s38, %s54
      %p56 = scmp.eq.s32.totalorder %s30, 0
      %p57 = por %p55, %p56
      %s58 = ssub.s32 %s24, %s31
      %p59 = scmp.eq.s32.totalorder %s58, 0
      %s61 = sadd.s32 %s60, 1
      %s62 = scalar_select %p59, %s60, %s61
      %p65 = pneg %p59
      %p66 = scmp.eq.s32.totalorder %s24, 1
      %p67 = por %p65, %p66
      %p68 = scmp.ne.s32.totalorder %s60, %s63
      %p69 = scmp.eq.s32.totalorder %s24, 0
      %p70 = por %p68, %p69
      %p71 = scmp.ne.s32.totalorder %s60, %s63
      %p72 = scmp.eq.s32.totalorder %s29, 1
      %p73 = por %p71, %p72
      %p74 = scmp.ne.s32.totalorder %s63, %s64
      %p75 = scmp.eq.s32.totalorder %s29, 0
      %p76 = por %p74, %p75
      %p77 = scmp.ne.s32.totalorder %s63, %s64
      %p78 = scmp.eq.s32.totalorder %s30, 1
      %p79 = por %p77, %p78
      %p81 = scmp.ne.s32.totalorder %s64, %s80
      %p82 = scmp.eq.s32.totalorder %s30, 0
      %p83 = por %p81, %p82
      %s85 = sadd.s32 %s84, 1
      %p88 = scmp.eq.s32.totalorder %s24, 1
      %p89 = scmp.ne.s32.totalorder %s84, %s86
      %p90 = scmp.eq.s32.totalorder %s24, 0
      %p91 = por %p89, %p90
      %p92 = scmp.ne.s32.totalorder %s84, %s86
      %p93 = scmp.eq.s32.totalorder %s29, 1
      %p94 = por %p92, %p93
      %p95 = scmp.ne.s32.totalorder %s86, %s87
      %p96 = scmp.eq.s32.totalorder %s29, 0
      %p97 = por %p95, %p96
      %p98 = scmp.ne.s32.totalorder %s86, %s87
      %p99 = scmp.eq.s32.totalorder %s30, 1
      %p100 = por %p98, %p99
      %p102 = scmp.ne.s32.totalorder %s87, %s101
      %p103 = scmp.eq.s32.totalorder %s30, 0
      %p104 = por %p102, %p103
      %s106 = sadd.s32 %s105, 1
      %p109 = scmp.eq.s32.totalorder %s24, 1
      %p110 = scmp.ne.s32.totalorder %s105, %s107
      %p111 = scmp.eq.s32.totalorder %s24, 0
      %p112 = por %p110, %p111
      %p113 = scmp.ne.s32.totalorder %s105, %s107
      %p114 = scmp.eq.s32.totalorder %s29, 1
      %p115 = por %p113, %p114
      %p116 = scmp.ne.s32.totalorder %s107, %s108
      %p117 = scmp.eq.s32.totalorder %s29, 0
      %p118 = por %p116, %p117
      %p119 = scmp.ne.s32.totalorder %s107, %s108
      %p120 = scmp.eq.s32.totalorder %s30, 1
      %p121 = por %p119, %p120
      %p123 = scmp.ne.s32.totalorder %s108, %s122
      %p124 = scmp.eq.s32.totalorder %s30, 0
      %p125 = por %p123, %p124
      %s127 = sadd.s32 %s126, 1
      %p130 = scmp.eq.s32.totalorder %s24, 1
      %p131 = scmp.ne.s32.totalorder %s126, %s128
      %p132 = scmp.eq.s32.totalorder %s24, 0
      %p133 = por %p131, %p132
      %p134 = scmp.ne.s32.totalorder %s126, %s128
      %p135 = scmp.eq.s32.totalorder %s29, 1
      %p136 = por %p134, %p135
      %p137 = scmp.ne.s32.totalorder %s128, %s129
      %p138 = scmp.eq.s32.totalorder %s29, 0
      %p139 = por %p137, %p138
      %p140 = scmp.ne.s32.totalorder %s128, %s129
      %p141 = scmp.eq.s32.totalorder %s30, 1
      %p142 = por %p140, %p141
      %p144 = scmp.ne.s32.totalorder %s129, %s143
      %p145 = scmp.eq.s32.totalorder %s30, 0
      %p146 = por %p144, %p145
      %s148 = sadd.s32 %s147, 1
      %p151 = scmp.eq.s32.totalorder %s24, 1
      %p152 = scmp.ne.s32.totalorder %s147, %s149
      %p153 = scmp.eq.s32.totalorder %s24, 0
      %p154 = por %p152, %p153
      %p155 = scmp.ne.s32.totalorder %s147, %s149
      %p156 = scmp.eq.s32.totalorder %s29, 1
      %p157 = por %p155, %p156
      %p158 = scmp.ne.s32.totalorder %s149, %s150
      %p159 = scmp.eq.s32.totalorder %s29, 0
      %p160 = por %p158, %p159
      %p161 = scmp.ne.s32.totalorder %s149, %s150
      %p162 = scmp.eq.s32.totalorder %s30, 1
      %p163 = por %p161, %p162
      %p165 = scmp.ne.s32.totalorder %s150, %s164
      %p166 = scmp.eq.s32.totalorder %s30, 0
      %p167 = por %p165, %p166
      %s169 = sadd.s32 %s168, 1
      %p172 = scmp.eq.s32.totalorder %s24, 1
      %p173 = scmp.ne.s32.totalorder %s168, %s170
      %p174 = scmp.eq.s32.totalorder %s24, 0
      %p175 = por %p173, %p174
      %p176 = scmp.ne.s32.totalorder %s168, %s170
      %p177 = scmp.eq.s32.totalorder %s29, 1
      %p178 = por %p176, %p177
      %p179 = scmp.ne.s32.totalorder %s170, %s171
      %p180 = scmp.eq.s32.totalorder %s29, 0
      %p181 = por %p179, %p180
      %p182 = scmp.ne.s32.totalorder %s170, %s171
      %p183 = scmp.eq.s32.totalorder %s30, 1
      %p184 = por %p182, %p183
      %p186 = scmp.ne.s32.totalorder %s171, %s185
      %p187 = scmp.eq.s32.totalorder %s30, 0
      %p188 = por %p186, %p187
      %s190 = sadd.s32 %s189, 1
      %p193 = scmp.eq.s32.totalorder %s24, 1
      %p194 = scmp.ne.s32.totalorder %s189, %s191
      %p195 = scmp.eq.s32.totalorder %s24, 0
      %p196 = por %p194, %p195
      %p197 = scmp.ne.s32.totalorder %s189, %s191
      %p198 = scmp.eq.s32.totalorder %s29, 1
      %p199 = por %p197, %p198
      %p200 = scmp.ne.s32.totalorder %s191, %s192
      %p201 = scmp.eq.s32.totalorder %s29, 0
      %p202 = por %p200, %p201
      %p203 = scmp.ne.s32.totalorder %s191, %s192
      %p204 = scmp.eq.s32.totalorder %s30, 1
      %p205 = por %p203, %p204
      %p207 = scmp.ne.s32.totalorder %s192, %s206
      %p208 = scmp.eq.s32.totalorder %s30, 0
      %p209 = por %p207, %p208
      %s211 = sadd.s32 %s210, 1
      %p214 = scmp.eq.s32.totalorder %s24, 1
      %p215 = scmp.ne.s32.totalorder %s210, %s212
      %p216 = scmp.eq.s32.totalorder %s24, 0
      %p217 = por %p215, %p216
      %p218 = scmp.ne.s32.totalorder %s210, %s212
      %p219 = scmp.eq.s32.totalorder %s29, 1
      %p220 = por %p218, %p219
      %p221 = scmp.ne.s32.totalorder %s212, %s213
      %p222 = scmp.eq.s32.totalorder %s29, 0
      %p223 = por %p221, %p222
      %p224 = scmp.ne.s32.totalorder %s212, %s213
      %p225 = scmp.eq.s32.totalorder %s30, 1
      %p226 = por %p224, %p225
      %p228 = scmp.ne.s32.totalorder %s213, %s227
      %p229 = scmp.eq.s32.totalorder %s30, 0
      %p230 = por %p228, %p229
      %s232 = sadd.s32 %s231, 1
      %p235 = scmp.eq.s32.totalorder %s24, 1
      %p236 = scmp.ne.s32.totalorder %s231, %s233
      %p237 = scmp.eq.s32.totalorder %s24, 0
      %p238 = por %p236, %p237
      %p239 = scmp.ne.s32.totalorder %s231, %s233
      %p240 = scmp.eq.s32.totalorder %s29, 1
      %p241 = por %p239, %p240
      %p242 = scmp.ne.s32.totalorder %s233, %s234
      %p243 = scmp.eq.s32.totalorder %s29, 0
      %p244 = por %p242, %p243
      %p245 = scmp.ne.s32.totalorder %s233, %s234
      %p246 = scmp.eq.s32.totalorder %s30, 1
      %p247 = por %p245, %p246
      %p249 = scmp.ne.s32.totalorder %s234, %s248
      %p250 = scmp.eq.s32.totalorder %s30, 0
      %p251 = por %p249, %p250
      %s253 = sadd.s32 %s252, 1
      %p256 = scmp.eq.s32.totalorder %s24, 1
      %p257 = scmp.ne.s32.totalorder %s252, %s254
      %p258 = scmp.eq.s32.totalorder %s24, 0
      %p259 = por %p257, %p258
      %p260 = scmp.ne.s32.totalorder %s252, %s254
      %p261 = scmp.eq.s32.totalorder %s29, 1
      %p262 = por %p260, %p261
      %p263 = scmp.ne.s32.totalorder %s254, %s255
      %p264 = scmp.eq.s32.totalorder %s29, 0
      %p265 = por %p263, %p264
      %p266 = scmp.ne.s32.totalorder %s254, %s255
      %p267 = scmp.eq.s32.totalorder %s30, 1
      %p268 = por %p266, %p267
      %p270 = scmp.ne.s32.totalorder %s255, %s269
      %p271 = scmp.eq.s32.totalorder %s30, 0
      %p272 = por %p270, %p271
      %s274 = sadd.s32 %s273, 1
      %p277 = scmp.eq.s32.totalorder %s24, 1
      %p278 = scmp.ne.s32.totalorder %s273, %s275
      %p279 = scmp.eq.s32.totalorder %s24, 0
      %p280 = por %p278, %p279
      %p281 = scmp.ne.s32.totalorder %s273, %s275
      %p282 = scmp.eq.s32.totalorder %s29, 1
      %p283 = por %p281, %p282
      %p284 = scmp.ne.s32.totalorder %s275, %s276
      %p285 = scmp.eq.s32.totalorder %s29, 0
      %p286 = por %p284, %p285
      %p287 = scmp.ne.s32.totalorder %s275, %s276
      %p288 = scmp.eq.s32.totalorder %s30, 1
      %p289 = por %p287, %p288
      %p291 = scmp.ne.s32.totalorder %s276, %s290
      %p292 = scmp.eq.s32.totalorder %s30, 0
      %p293 = por %p291, %p292
      %s295 = sadd.s32 %s294, 1
      %p298 = scmp.eq.s32.totalorder %s24, 1
      %p299 = scmp.ne.s32.totalorder %s294, %s296
      %p300 = scmp.eq.s32.totalorder %s24, 0
      %p301 = por %p299, %p300
      %p302 = scmp.ne.s32.totalorder %s294, %s296
      %p303 = scmp.eq.s32.totalorder %s29, 1
      %p304 = por %p302, %p303
      %p305 = scmp.ne.s32.totalorder %s296, %s297
      %p306 = scmp.eq.s32.totalorder %s29, 0
      %p307 = por %p305, %p306
      %p308 = scmp.ne.s32.totalorder %s296, %s297
      %p309 = scmp.eq.s32.totalorder %s30, 1
      %p310 = por %p308, %p309
      %p312 = scmp.ne.s32.totalorder %s297, %s311
      %p313 = scmp.eq.s32.totalorder %s30, 0
      %p314 = por %p312, %p313
      %s316 = sadd.s32 %s315, 1
      %p319 = scmp.eq.s32.totalorder %s24, 1
      %p320 = scmp.ne.s32.totalorder %s315, %s317
      %p321 = scmp.eq.s32.totalorder %s24, 0
      %p322 = por %p320, %p321
      %p323 = scmp.ne.s32.totalorder %s315, %s317
      %p324 = scmp.eq.s32.totalorder %s29, 1
      %p325 = por %p323, %p324
      %p326 = scmp.ne.s32.totalorder %s317, %s318
      %p327 = scmp.eq.s32.totalorder %s29, 0
      %p328 = por %p326, %p327
      %p329 = scmp.ne.s32.totalorder %s317, %s318
      %p330 = scmp.eq.s32.totalorder %s30, 1
      %p331 = por %p329, %p330
      %p333 = scmp.ne.s32.totalorder %s318, %s332
      %p334 = scmp.eq.s32.totalorder %s30, 0
      %p335 = por %p333, %p334
      %s337 = sadd.s32 %s336, 1
      %p340 = scmp.eq.s32.totalorder %s24, 1
      %p341 = scmp.ne.s32.totalorder %s336, %s338
      %p342 = scmp.eq.s32.totalorder %s24, 0
      %p343 = por %p341, %p342
      %p344 = scmp.ne.s32.totalorder %s336, %s338
      %p345 = scmp.eq.s32.totalorder %s29, 1
      %p346 = por %p344, %p345
      %p347 = scmp.ne.s32.totalorder %s338, %s339
      %p348 = scmp.eq.s32.totalorder %s29, 0
      %p349 = por %p347, %p348
      %p350 = scmp.ne.s32.totalorder %s338, %s339
      %p351 = scmp.eq.s32.totalorder %s30, 1
      %p352 = por %p350, %p351
      %p354 = scmp.ne.s32.totalorder %s339, %s353
      %p355 = scmp.eq.s32.totalorder %s30, 0
      %p356 = por %p354, %p355
      %s358 = sadd.s32 %s357, 1
      %p361 = scmp.eq.s32.totalorder %s24, 1
      %p362 = scmp.ne.s32.totalorder %s357, %s359
      %p363 = scmp.eq.s32.totalorder %s24, 0
      %p364 = por %p362, %p363
      %p365 = scmp.ne.s32.totalorder %s357, %s359
      %p366 = scmp.eq.s32.totalorder %s29, 1
      %p367 = por %p365, %p366
      %p368 = scmp.ne.s32.totalorder %s359, %s360
      %p369 = scmp.eq.s32.totalorder %s29, 0
      %p370 = por %p368, %p369
      %p371 = scmp.ne.s32.totalorder %s359, %s360
      %p372 = scmp.eq.s32.totalorder %s30, 1
      %p373 = por %p371, %p372
      %p375 = scmp.ne.s32.totalorder %s360, %s374
      %p376 = scmp.eq.s32.totalorder %s30, 0
      %p377 = por %p375, %p376
      %s378 = ssub.s32 %s24, %s31
      %p379 = scmp.eq.s32.totalorder %s378, 0
      %s381 = sadd.s32 %s380, 1
      %s382 = scalar_select %p379, %s380, %s381
      %p385 = pneg %p379
      %p386 = scmp.eq.s32.totalorder %s24, 1
      %p387 = por %p385, %p386
      %p388 = scmp.ne.s32.totalorder %s380, %s383
      %p389 = scmp.eq.s32.totalorder %s24, 0
      %p390 = por %p388, %p389
      %p391 = scmp.ne.s32.totalorder %s380, %s383
      %p392 = scmp.eq.s32.totalorder %s29, 1
      %p393 = por %p391, %p392
      %p394 = scmp.ne.s32.totalorder %s383, %s384
      %p395 = scmp.eq.s32.totalorder %s29, 0
      %p396 = por %p394, %p395
      %p397 = scmp.ne.s32.totalorder %s383, %s384
      %p398 = scmp.eq.s32.totalorder %s30, 1
      %p399 = por %p397, %p398
      %p401 = scmp.ne.s32.totalorder %s384, %s400
      %p402 = scmp.eq.s32.totalorder %s30, 0
      %p403 = por %p401, %p402
      %p404 = scmp.le.s32.totalorder 1, %s24
      %p405 = scmp.lt.s32.totalorder %s24, 3
      %p406 = pnand %p404, %p405
      %p407 = pneg %p406
      // Predicated region
      $region9: #{_lambda_.6} parent=5 // pred_check
        _
      $region10: #{_lambda_.6} parent=5 // pred_check_branch
        %409 = sbr.rel (%p406) target = $region12
      $region11: #{_lambda_.6} parent=5 // pred_region
        %s410 = ssub.s32 %s24, 1
        // Predicated region
        $region13: #{_lambda_.6} parent=11 // pred_check
          %p411 = pneg %p97
        $region14: #{_lambda_.6} parent=11 // pred_check_branch
          %413 = sbr.rel (%p411) target = $region16
        $region15: #{_lambda_.6} parent=11 // pred_region
          _
        $region16: #{_lambda_.6} parent=11 // pred_fallthru
          _
        // Predicated region
        $region17: #{_lambda_.6} parent=11 // pred_check
          %p414 = pneg %p118
        $region18: #{_lambda_.6} parent=11 // pred_check_branch
          %416 = sbr.rel (%p414) target = $region20
        $region19: #{_lambda_.6} parent=11 // pred_region
          _
        $region20: #{_lambda_.6} parent=11 // pred_fallthru
          _
        // Predicated region
        $region21: #{_lambda_.6} parent=11 // pred_check
          %p417 = pneg %p139
        $region22: #{_lambda_.6} parent=11 // pred_check_branch
          %419 = sbr.rel (%p417) target = $region24
        $region23: #{_lambda_.6} parent=11 // pred_region
          _
        $region24: #{_lambda_.6} parent=11 // pred_fallthru
          _
        // Predicated region
        $region25: #{_lambda_.6} parent=11 // pred_check
          %p420 = pneg %p160
        $region26: #{_lambda_.6} parent=11 // pred_check_branch
          %422 = sbr.rel (%p420) target = $region28
        $region27: #{_lambda_.6} parent=11 // pred_region
          _
        $region28: #{_lambda_.6} parent=11 // pred_fallthru
          _
        // Predicated region
        $region29: #{_lambda_.6} parent=11 // pred_check
          %p423 = pneg %p181
        $region30: #{_lambda_.6} parent=11 // pred_check_branch
          %425 = sbr.rel (%p423) target = $region32
        $region31: #{_lambda_.6} parent=11 // pred_region
          %427 = vsyncadd [#allocation3], 0
          %s428 = sshll.u32 %s6, 4
          %s429 = int_to_ptr.hbm [resolvable:$true] %s428
          %s430 = sshll.u32 [#allocation2], 4
          %s431 = int_to_ptr.vmem [resolvable:$true] %s430
          %436 = dma.hbm_to_vmem [thread:$0]  %s429, 1024, %s431, [#allocation3], 64, 64, 4
        $region32: #{_lambda_.6} parent=11 // pred_fallthru
          _
        // Predicated region
        $region33: #{_lambda_.6} parent=11 // pred_check
          %p437 = pneg %p202
        $region34: #{_lambda_.6} parent=11 // pred_check_branch
          %439 = sbr.rel (%p437) target = $region36
        $region35: #{_lambda_.6} parent=11 // pred_region
          _
        $region36: #{_lambda_.6} parent=11 // pred_fallthru
          _
        // Predicated region
        $region37: #{_lambda_.6} parent=11 // pred_check
          %p440 = pneg %p223
        $region38: #{_lambda_.6} parent=11 // pred_check_branch
          %442 = sbr.rel (%p440) target = $region40
        $region39: #{_lambda_.6} parent=11 // pred_region
          _
        $region40: #{_lambda_.6} parent=11 // pred_fallthru
          _
        // Predicated region
        $region41: #{_lambda_.6} parent=11 // pred_check
          %p443 = pneg %p244
        $region42: #{_lambda_.6} parent=11 // pred_check_branch
          %445 = sbr.rel (%p443) target = $region44
        $region43: #{_lambda_.6} parent=11 // pred_region
          _
        $region44: #{_lambda_.6} parent=11 // pred_fallthru
          _
        // Predicated region
        $region45: #{_lambda_.6} parent=11 // pred_check
          %p446 = pneg %p265
        $region46: #{_lambda_.6} parent=11 // pred_check_branch
          %448 = sbr.rel (%p446) target = $region48
        $region47: #{_lambda_.6} parent=11 // pred_region
          %450 = vsyncadd [#allocation5], 0
          %s451 = sshll.u32 %s10, 4
          %s452 = int_to_ptr.hbm [resolvable:$true] %s451
          %s453 = sshll.u32 [#allocation4], 4
          %s454 = int_to_ptr.vmem [resolvable:$true] %s453
          %459 = dma.hbm_to_vmem [thread:$0]  %s452, 1024, %s454, [#allocation5], 64, 64, 4
        $region48: #{_lambda_.6} parent=11 // pred_fallthru
          _
        // Predicated region
        $region49: #{_lambda_.6} parent=11 // pred_check
          %p460 = pneg %p286
        $region50: #{_lambda_.6} parent=11 // pred_check_branch
          %462 = sbr.rel (%p460) target = $region52
        $region51: #{_lambda_.6} parent=11 // pred_region
          _
        $region52: #{_lambda_.6} parent=11 // pred_fallthru
          _
        // Predicated region
        $region53: #{_lambda_.6} parent=11 // pred_check
          %p463 = pneg %p307
        $region54: #{_lambda_.6} parent=11 // pred_check_branch
          %465 = sbr.rel (%p463) target = $region56
        $region55: #{_lambda_.6} parent=11 // pred_region
          %467 = vsyncadd [#allocation5], 0
          %s468 = sshll.u32 %s12, 4
          %s469 = int_to_ptr.hbm [resolvable:$true] %s468
          %s470 = sshll.u32 [#allocation6], 4
          %s471 = int_to_ptr.vmem [resolvable:$true] %s470
          %476 = dma.hbm_to_vmem [thread:$0]  %s469, 1024, %s471, [#allocation5], 64, 64, 4
        $region56: #{_lambda_.6} parent=11 // pred_fallthru
          _
        // Predicated region
        $region57: #{_lambda_.6} parent=11 // pred_check
          %p477 = pneg %p328
        $region58: #{_lambda_.6} parent=11 // pred_check_branch
          %479 = sbr.rel (%p477) target = $region60
        $region59: #{_lambda_.6} parent=11 // pred_region
          _
        $region60: #{_lambda_.6} parent=11 // pred_fallthru
          _
        // Predicated region
        $region61: #{_lambda_.6} parent=11 // pred_check
          %p480 = pneg %p349
        $region62: #{_lambda_.6} parent=11 // pred_check_branch
          %482 = sbr.rel (%p480) target = $region64
        $region63: #{_lambda_.6} parent=11 // pred_region
          _
        $region64: #{_lambda_.6} parent=11 // pred_fallthru
          _
        // Predicated region
        $region65: #{_lambda_.6} parent=11 // pred_check
          %p483 = pneg %p370
        $region66: #{_lambda_.6} parent=11 // pred_check_branch
          %485 = sbr.rel (%p483) target = $region68
        $region67: #{_lambda_.6} parent=11 // pred_region
          _
        $region68: #{_lambda_.6} parent=11 // pred_fallthru
          _
      $region12: #{_lambda_.6} parent=5 // pred_fallthru
        _
      %p486 = scmp.lt.s32.totalorder %s24, 2
      // Predicated region
      $region69: #{_lambda_.6} parent=5 // pred_check
        %p487 = pneg %p486
      $region70: #{_lambda_.6} parent=5 // pred_check_branch
        %489 = sbr.rel (%p487) target = $region72
      $region71: #{_lambda_.6} parent=5 // pred_region
        // Predicated region
        $region73: #{_lambda_.6} parent=71 // pred_check
          %p490 = pneg %p44
        $region74: #{_lambda_.6} parent=71 // pred_check_branch
          %492 = sbr.rel (%p490) target = $region76
        $region75: #{_lambda_.6} parent=71 // pred_region
          %p493 = scmp.lt.s32.totalorder %s24, 1
          %s494 = scalar_select %p493, %s24, 1
          %s495 = smul.addr %s494, 8
          %s496 = scalar_lea.vmem %s0, %s495
        $region76: #{_lambda_.6} parent=71 // pred_fallthru
          _
        // Predicated region
        $region77: #{_lambda_.6} parent=71 // pred_check
          %p497 = pneg %p70
        $region78: #{_lambda_.6} parent=71 // pred_check_branch
          %499 = sbr.rel (%p497) target = $region80
        $region79: #{_lambda_.6} parent=71 // pred_region
          %p500 = scmp.lt.s32.totalorder %s24, 1
          %s501 = scalar_select %p500, %s24, 1
          %s502 = scalar_lea.vmem %s1, %s501
        $region80: #{_lambda_.6} parent=71 // pred_fallthru
          _
      $region72: #{_lambda_.6} parent=5 // pred_fallthru
        _
      %p503 = scmp.le.s32.totalorder 1, %s24
      %p504 = scmp.lt.s32.totalorder %s24, 3
      %p505 = pnand %p503, %p504
      %p506 = pneg %p505
      // Predicated region
      $region81: #{_lambda_.6} parent=5 // pred_check
        _
      $region82: #{_lambda_.6} parent=5 // pred_check_branch
        %508 = sbr.rel (%p505) target = $region84
      $region83: #{_lambda_.6} parent=5 // pred_region
        %s509 = ssub.s32 %s24, 1
        // Predicated region
        $region85: #{_lambda_.6} parent=83 // pred_check
          %p510 = pneg %p181
        $region86: #{_lambda_.6} parent=83 // pred_check_branch
          %512 = sbr.rel (%p510) target = $region88
        $region87: #{_lambda_.6} parent=83 // pred_region
          %514 = dma.done [#allocation3], 1024
        $region88: #{_lambda_.6} parent=83 // pred_fallthru
          _
        // Predicated region
        $region89: #{_lambda_.6} parent=83 // pred_check
          %p515 = pneg %p265
        $region90: #{_lambda_.6} parent=83 // pred_check_branch
          %517 = sbr.rel (%p515) target = $region92
        $region91: #{_lambda_.6} parent=83 // pred_region
          %519 = dma.done [#allocation5], 1024
        $region92: #{_lambda_.6} parent=83 // pred_fallthru
          _
        // Predicated region
        $region93: #{_lambda_.6} parent=83 // pred_check
          %p520 = pneg %p307
        $region94: #{_lambda_.6} parent=83 // pred_check_branch
          %522 = sbr.rel (%p520) target = $region96
        $region95: #{_lambda_.6} parent=83 // pred_region
          %524 = dma.done [#allocation5], 1024
        $region96: #{_lambda_.6} parent=83 // pred_fallthru
          _
        %p525 = scmp.lt.s32.totalorder %s29, 1
        %s526 = scalar_select %p525, %s29, 1
        %s527 = smul.addr %s526, 8
        %s528 = scalar_lea.vmem %s0, %s527
        %p529 = pneg %p50
        %p530 = pneg %p47
        %p531 = scmp.lt.s32.totalorder %s29, 1
        %s532 = scalar_select %p531, %s29, 1
        %s533 = scalar_lea.vmem %s1, %s532
        %p534 = pneg %p76
        %p535 = pneg %p73
        %p536 = pneg %p97
        %p537 = pneg %p94
        %p538 = pneg %p118
        %p539 = pneg %p115
        %p540 = pneg %p139
        %p541 = pneg %p136
        %p542 = pneg %p160
        %p543 = pneg %p157
        %p544 = pneg %p181
        %p545 = pneg %p178
        %p546 = pneg %p202
        %p547 = pneg %p199
        %p548 = pneg %p223
        %p549 = pneg %p220
        %p550 = pneg %p244
        %p551 = pneg %p241
        %p552 = pneg %p265
        %p553 = pneg %p262
        %p554 = pneg %p286
        %p555 = pneg %p283
        %p556 = pneg %p307
        %p557 = pneg %p304
        %p558 = pneg %p328
        %p559 = pneg %p325
        %p560 = pneg %p349
        %p561 = pneg %p346
        %p562 = pneg %p370
        %p563 = pneg %p367
        %p564 = pneg %p396
        %p565 = pneg %p393
        %p566 = scmp.lt.s32.totalorder %s29, 1
        %s567 = scalar_select %p566, %s29, 1
        %s568 = smul.addr %s567, 8
        %s569 = scalar_lea.vmem %s16, %s568
        %p570 = scmp.lt.s32.totalorder %s29, 1
        %s571 = scalar_select %p570, %s29, 1
        %s572 = smul.addr %s571, 8
        %s573 = scalar_lea.vmem %s0, %s572
        %p574 = scmp.lt.s32.totalorder %s29, 1
        %s575 = scalar_select %p574, %s29, 1
        %s576 = scalar_lea.vmem %s1, %s575
        %p577 = scmp.lt.s32.totalorder %s29, 1
        %s578 = scalar_select %p577, %s29, 1
        %s579 = smul.addr %s578, 8
        %s580 = scalar_lea.vmem %s16, %s579
        %v582 = vld [vmem:[%s573] sm:$0xff]
        %v583 = vld [vmem:[%s576] sm:$0x1]
        %v584 = vunpack.c.0.s8 %v583
        %v585 = vcvt.s32.f32 %v584
        %v586 = vsub.f32 1.0, %v585
        %v587 = vmul.f32 %v586, -1e+09
        %v588 = vpack.c.bf16 %v582, %v582
        %v589 = vld [vmem:[%s2] sm:$0xf]
        %v590 = vld [vmem:[%s2 + $0x4] sm:$0xf]
        %v591 = vld [vmem:[%s2 + $0x8] sm:$0xf]
        %v592 = vld [vmem:[%s2 + $0xc] sm:$0xf]
        %v593 = vld [vmem:[%s2 + $0x10] sm:$0xf]
        %v594 = vld [vmem:[%s2 + $0x14] sm:$0xf]
        %v595 = vld [vmem:[%s2 + $0x18] sm:$0xf]
        %v596 = vld [vmem:[%s2 + $0x1c] sm:$0xf]
        %v597 = vld [vmem:[%s2 + $0x20] sm:$0xf]
        %v598 = vld [vmem:[%s2 + $0x24] sm:$0xf]
        %v599 = vld [vmem:[%s2 + $0x28] sm:$0xf]
        %v600 = vld [vmem:[%s2 + $0x2c] sm:$0xf]
        %v601 = vld [vmem:[%s2 + $0x30] sm:$0xf]
        %v602 = vld [vmem:[%s2 + $0x34] sm:$0xf]
        %v603 = vld [vmem:[%s2 + $0x38] sm:$0xf]
        %v604 = vld [vmem:[%s2 + $0x3c] sm:$0xf]
        %v605 = vld [vmem:[%s3] sm:$0x1]
        %v607 = vperm.slane %v605, 0
        %v625 = vunpack.c.l.b16 %v589
        %v626 = vunpack.c.l.b16 %v590
        %v627 = vunpack.c.l.b16 %v591
        %v628 = vunpack.c.l.b16 %v592
        %v629 = vunpack.c.l.b16 %v593
        %v630 = vunpack.c.l.b16 %v594
        %v631 = vunpack.c.l.b16 %v595
        %v632 = vunpack.c.l.b16 %v596
        %v633 = vunpack.c.l.b16 %v597
        %v634 = vunpack.c.l.b16 %v598
        %v635 = vunpack.c.l.b16 %v599
        %v636 = vunpack.c.l.b16 %v600
        %v637 = vunpack.c.l.b16 %v601
        %v638 = vunpack.c.l.b16 %v602
        %v639 = vunpack.c.l.b16 %v603
        %v640 = vunpack.c.l.b16 %v604
        %v641 = vpack.c.b16 %v626, %v625
        %v642 = vpack.c.b16 %v628, %v627
        %v643 = vpack.c.b16 %v630, %v629
        %v644 = vpack.c.b16 %v632, %v631
        %v645 = vpack.c.b16 %v634, %v633
        %v646 = vpack.c.b16 %v636, %v635
        %v647 = vpack.c.b16 %v638, %v637
        %v648 = vpack.c.b16 %v640, %v639
        %657 = vmatpush.bf16.msra.mxu0 %v648
        %658 = vmatpush.bf16.msra.mxu0 %v647
        %659 = vmatpush.bf16.msra.mxu0 %v646
        %660 = vmatpush.bf16.msra.mxu0 %v645
        %661 = vmatpush.bf16.msra.mxu0 %v644
        %662 = vmatpush.bf16.msra.mxu0 %v643
        %663 = vmatpush.bf16.msra.mxu0 %v642
        %664 = vmatpush.bf16.msra.mxu0 %v641
        %665 = vmatmul.bf16.gmra.mxu0 %v588
        %v666 = vpop.f32.mrf.mxu0
        %v667 = vadd.f32 %v607, %v666
        %v668 = vpop.f32.mrf.mxu0
        %669 = vdwg.mxu0
        %v670 = vld [vmem:[%s4] sm:$0xff]
        %v671 = vld [vmem:[%s4 + $0x8] sm:$0xff]
        %v672 = vld [vmem:[%s4 + $0x10] sm:$0xff]
        %v673 = vld [vmem:[%s4 + $0x18] sm:$0xff]
        %v674 = vld [vmem:[%s4 + $0x20] sm:$0xff]
        %v675 = vld [vmem:[%s4 + $0x28] sm:$0xff]
        %v676 = vld [vmem:[%s4 + $0x30] sm:$0xff]
        %v677 = vld [vmem:[%s4 + $0x38] sm:$0xff]
        %v678 = vld [vmem:[%s4 + $0x40] sm:$0xff]
        %v679 = vld [vmem:[%s4 + $0x48] sm:$0xff]
        %v680 = vld [vmem:[%s4 + $0x50] sm:$0xff]
        %v681 = vld [vmem:[%s4 + $0x58] sm:$0xff]
        %v682 = vld [vmem:[%s4 + $0x60] sm:$0xff]
        %v683 = vld [vmem:[%s4 + $0x68] sm:$0xff]
        %v684 = vld [vmem:[%s4 + $0x70] sm:$0xff]
        %v685 = vld [vmem:[%s4 + $0x78] sm:$0xff]
        %v686 = vld [vmem:[%s5] sm:$0x3]
        %v688 = vperm.slane %v686, 0
        %v689 = vperm.slane %v686, 1
        %v708 = vunpack.c.l.b16 %v670
        %v709 = vunpack.c.h.b16 %v670
        %v710 = vunpack.c.l.b16 %v671
        %v711 = vunpack.c.h.b16 %v671
        %v712 = vunpack.c.l.b16 %v672
        %v713 = vunpack.c.h.b16 %v672
        %v714 = vunpack.c.l.b16 %v673
        %v715 = vunpack.c.h.b16 %v673
        %v716 = vunpack.c.l.b16 %v674
        %v717 = vunpack.c.h.b16 %v674
        %v718 = vunpack.c.l.b16 %v675
        %v719 = vunpack.c.h.b16 %v675
        %v720 = vunpack.c.l.b16 %v676
        %v721 = vunpack.c.h.b16 %v676
        %v722 = vunpack.c.l.b16 %v677
        %v723 = vunpack.c.h.b16 %v677
        %v724 = vunpack.c.l.b16 %v678
        %v725 = vunpack.c.h.b16 %v678
        %v726 = vunpack.c.l.b16 %v679
        %v727 = vunpack.c.h.b16 %v679
        %v728 = vunpack.c.l.b16 %v680
        %v729 = vunpack.c.h.b16 %v680
        %v730 = vunpack.c.l.b16 %v681
        %v731 = vunpack.c.h.b16 %v681
        %v732 = vunpack.c.l.b16 %v682
        %v733 = vunpack.c.h.b16 %v682
        %v734 = vunpack.c.l.b16 %v683
        %v735 = vunpack.c.h.b16 %v683
        %v736 = vunpack.c.l.b16 %v684
        %v737 = vunpack.c.h.b16 %v684
        %v738 = vunpack.c.l.b16 %v685
        %v739 = vunpack.c.h.b16 %v685
        %v740 = vpack.c.b16 %v710, %v708
        %v741 = vpack.c.b16 %v711, %v709
        %v742 = vpack.c.b16 %v714, %v712
        %v743 = vpack.c.b16 %v715, %v713
        %v744 = vpack.c.b16 %v718, %v716
        %v745 = vpack.c.b16 %v719, %v717
        %v746 = vpack.c.b16 %v722, %v720
        %v747 = vpack.c.b16 %v723, %v721
        %v748 = vpack.c.b16 %v726, %v724
        %v749 = vpack.c.b16 %v727, %v725
        %v750 = vpack.c.b16 %v730, %v728
        %v751 = vpack.c.b16 %v731, %v729
        %v752 = vpack.c.b16 %v734, %v732
        %v753 = vpack.c.b16 %v735, %v733
        %v754 = vpack.c.b16 %v738, %v736
        %v755 = vpack.c.b16 %v739, %v737
        %772 = vmatpush.bf16.msra.mxu0 %v754
        %773 = vmatpush.bf16.msra.mxu0 %v752
        %774 = vmatpush.bf16.msra.mxu0 %v750
        %775 = vmatpush.bf16.msra.mxu0 %v748
        %776 = vmatpush.bf16.msra.mxu0 %v746
        %777 = vmatpush.bf16.msra.mxu0 %v744
        %778 = vmatpush.bf16.msra.mxu0 %v742
        %779 = vmatpush.bf16.msra.mxu0 %v740
        %780 = vmatmul.bf16.gmra.mxu0 %v588
        %v781 = vpop.f32.mrf.mxu0
        %v782 = vadd.f32 %v688, %v781
        %v783 = vpop.f32.mrf.mxu0
        %784 = vdwg.mxu0
        %785 = vmatpush.bf16.msra.mxu0 %v755
        %786 = vmatpush.bf16.msra.mxu0 %v753
        %787 = vmatpush.bf16.msra.mxu0 %v751
        %788 = vmatpush.bf16.msra.mxu0 %v749
        %789 = vmatpush.bf16.msra.mxu0 %v747
        %790 = vmatpush.bf16.msra.mxu0 %v745
        %791 = vmatpush.bf16.msra.mxu0 %v743
        %792 = vmatpush.bf16.msra.mxu0 %v741
        %793 = vmatmul.bf16.gmra.mxu0 %v588
        %v794 = vpop.f32.mrf.mxu0
        %v795 = vadd.f32 %v689, %v794
        %v796 = vpop.f32.mrf.mxu0
        %797 = vdwg.mxu0
        %v798 = vpack.c.bf16 %v667, %v667
        %v799 = vpack.c.bf16 %v782, %v782
        %v800 = vpack.c.bf16 %v795, %v795
        %802 = vrot.lane.b32.xlu0 %v798, 96
        %v803 = vpop.permute.xlu0 %802
        %804 = vrot.lane.b32.xlu0 %v798, 64
        %v805 = vpop.permute.xlu0 %804
        %806 = vrot.lane.b32.xlu0 %v798, 32
        %v807 = vpop.permute.xlu0 %806
        %809 = vrot.lane.b32.xlu0 %v799, 96
        %v810 = vpop.permute.xlu0 %809
        %811 = vrot.lane.b32.xlu0 %v799, 64
        %v812 = vpop.permute.xlu0 %811
        %813 = vrot.lane.b32.xlu0 %v799, 32
        %v814 = vpop.permute.xlu0 %813
        %816 = vrot.lane.b32.xlu0 %v800, 96
        %v817 = vpop.permute.xlu0 %816
        %818 = vrot.lane.b32.xlu0 %v800, 64
        %v819 = vpop.permute.xlu0 %818
        %820 = vrot.lane.b32.xlu0 %v800, 32
        %v821 = vpop.permute.xlu0 %820
        %vm822 = vcmask 261120
        %v824 = vsel %vm822, %v798, 0
        %v827 = vsel %vm822, %v799, 0
        %829 = vmatpush.bf16.xpose.msra.mxu0 0
        %830 = vmatpush.bf16.xpose.msra.mxu0 0
        %831 = vmatpush.bf16.xpose.msra.mxu0 0
        %832 = vmatpush.bf16.xpose.msra.mxu0 0
        %833 = vmatpush.bf16.xpose.msra.mxu0 0
        %834 = vmatpush.bf16.xpose.msra.mxu0 0
        %835 = vmatpush.bf16.xpose.msra.mxu0 0
        %836 = vmatpush.bf16.xpose.msra.mxu0 %v827
        %837 = vmatmul.bf16.gmra.mxu0 %v824
        %v838 = vpop.f32.mrf.mxu0
        %v839 = vadd.f32 0.0, %v838
        %v840 = vpop.f32.mrf.mxu0
        %841 = vdwg.mxu0
        %v843 = vsel %vm822, %v803, 0
        %v846 = vsel %vm822, %v810, 0
        %848 = vmatpush.bf16.xpose.msra.mxu0 0
        %849 = vmatpush.bf16.xpose.msra.mxu0 0
        %850 = vmatpush.bf16.xpose.msra.mxu0 0
        %851 = vmatpush.bf16.xpose.msra.mxu0 0
        %852 = vmatpush.bf16.xpose.msra.mxu0 0
        %853 = vmatpush.bf16.xpose.msra.mxu0 0
        %854 = vmatpush.bf16.xpose.msra.mxu0 0
        %855 = vmatpush.bf16.xpose.msra.mxu0 %v846
        %856 = vmatmul.bf16.gmra.mxu0 %v843
        %v857 = vpop.f32.mrf.mxu0
        %v858 = vadd.f32 0.0, %v857
        %v859 = vpop.f32.mrf.mxu0
        %860 = vdwg.mxu0
        %v862 = vsel %vm822, %v805, 0
        %v865 = vsel %vm822, %v812, 0
        %867 = vmatpush.bf16.xpose.msra.mxu0 0
        %868 = vmatpush.bf16.xpose.msra.mxu0 0
        %869 = vmatpush.bf16.xpose.msra.mxu0 0
        %870 = vmatpush.bf16.xpose.msra.mxu0 0
        %871 = vmatpush.bf16.xpose.msra.mxu0 0
        %872 = vmatpush.bf16.xpose.msra.mxu0 0
        %873 = vmatpush.bf16.xpose.msra.mxu0 0
        %874 = vmatpush.bf16.xpose.msra.mxu0 %v865
        %875 = vmatmul.bf16.gmra.mxu0 %v862
        %v876 = vpop.f32.mrf.mxu0
        %v877 = vadd.f32 0.0, %v876
        %v878 = vpop.f32.mrf.mxu0
        %879 = vdwg.mxu0
        %v881 = vsel %vm822, %v807, 0
        %v884 = vsel %vm822, %v814, 0
        %886 = vmatpush.bf16.xpose.msra.mxu0 0
        %887 = vmatpush.bf16.xpose.msra.mxu0 0
        %888 = vmatpush.bf16.xpose.msra.mxu0 0
        %889 = vmatpush.bf16.xpose.msra.mxu0 0
        %890 = vmatpush.bf16.xpose.msra.mxu0 0
        %891 = vmatpush.bf16.xpose.msra.mxu0 0
        %892 = vmatpush.bf16.xpose.msra.mxu0 0
        %893 = vmatpush.bf16.xpose.msra.mxu0 %v884
        %894 = vmatmul.bf16.gmra.mxu0 %v881
        %v895 = vpop.f32.mrf.mxu0
        %v896 = vadd.f32 0.0, %v895
        %v897 = vpop.f32.mrf.mxu0
        %898 = vdwg.mxu0
        %v899 = vmul.f32 %v839, 0.35355338
        %v900 = vmul.f32 %v858, 0.35355338
        %v901 = vmul.f32 %v877, 0.35355338
        %v902 = vmul.f32 %v896, 0.35355338
        %v903 = vperm.slane %v587, 0
        %v904 = vadd.f32 %v899, %v903
        %v905 = vadd.f32 %v900, %v903
        %v906 = vadd.f32 %v901, %v903
        %v907 = vadd.f32 %v902, %v903
        %vm908 = vcmask 64512
        %v909 = vsel %vm908, %v904, -inf
        %910 = vmax.xlane.f32.xlu0 %v909
        %v911 = vpop.xlane.xlu0 %910
        %v912 = vsel %vm908, %v905, -inf
        %913 = vmax.xlane.f32.xlu0 %v912
        %v914 = vpop.xlane.xlu0 %913
        %v915 = vsel %vm908, %v906, -inf
        %916 = vmax.xlane.f32.xlu0 %v915
        %v917 = vpop.xlane.xlu0 %916
        %v918 = vsel %vm908, %v907, -inf
        %919 = vmax.xlane.f32.xlu0 %v918
        %v920 = vpop.xlane.xlu0 %919
        %v921 = vsub.f32 %v904, %v911
        %v922 = vsub.f32 %v905, %v914
        %v923 = vsub.f32 %v906, %v917
        %v924 = vsub.f32 %v907, %v920
        %v925 = vmul.f32 %v921, 1.442695
        %v926 = vpow.pop %v925
        %v927 = vmul.f32 %v922, 1.442695
        %v928 = vpow.pop %v927
        %v929 = vmul.f32 %v923, 1.442695
        %v930 = vpow.pop %v929
        %v931 = vmul.f32 %v924, 1.442695
        %v932 = vpow.pop %v931
        %v933 = vsel %vm908, %v926, 0.0
        %934 = vadd.xlane.f32.xlu0 %v933
        %v935 = vpop.xlane.xlu0 %934
        %v936 = vsel %vm908, %v928, 0.0
        %937 = vadd.xlane.f32.xlu0 %v936
        %v938 = vpop.xlane.xlu0 %937
        %v939 = vsel %vm908, %v930, 0.0
        %940 = vadd.xlane.f32.xlu0 %v939
        %v941 = vpop.xlane.xlu0 %940
        %v942 = vsel %vm908, %v932, 0.0
        %943 = vadd.xlane.f32.xlu0 %v942
        %v944 = vpop.xlane.xlu0 %943
        %v945 = vrcp.pop %v935
        %v946 = vrcp.pop %v938
        %v947 = vrcp.pop %v941
        %v948 = vrcp.pop %v944
        %v949 = vmul.f32 %v926, %v945
        %v950 = vmul.f32 %v928, %v946
        %v951 = vmul.f32 %v930, %v947
        %v952 = vmul.f32 %v932, %v948
        %v953 = vpack.c.bf16 %v949, %v949
        %v954 = vpack.c.bf16 %v950, %v950
        %v955 = vpack.c.bf16 %v951, %v951
        %v956 = vpack.c.bf16 %v952, %v952
        %v958 = vsel %vm908, %v953, 0
        %vm960 = vcmask 1043456
        %v962 = vsel %vm960, %v800, 0
        %964 = vmatpush.bf16.msra.mxu0 0
        %965 = vmatpush.bf16.msra.mxu0 0
        %966 = vmatpush.bf16.msra.mxu0 0
        %967 = vmatpush.bf16.msra.mxu0 0
        %968 = vmatpush.bf16.msra.mxu0 0
        %969 = vmatpush.bf16.msra.mxu0 0
        %970 = vmatpush.bf16.msra.mxu0 0
        %971 = vmatpush.bf16.msra.mxu0 %v962
        %972 = vmatmul.bf16.gmra.mxu0 %v958
        %v973 = vpop.f32.mrf.mxu0
        %v974 = vadd.f32 0.0, %v973
        %v975 = vpop.f32.mrf.mxu0
        %976 = vdwg.mxu0
        %v978 = vsel %vm908, %v954, 0
        %v981 = vsel %vm960, %v817, 0
        %983 = vmatpush.bf16.msra.mxu0 0
        %984 = vmatpush.bf16.msra.mxu0 0
        %985 = vmatpush.bf16.msra.mxu0 0
        %986 = vmatpush.bf16.msra.mxu0 0
        %987 = vmatpush.bf16.msra.mxu0 0
        %988 = vmatpush.bf16.msra.mxu0 0
        %989 = vmatpush.bf16.msra.mxu0 0
        %990 = vmatpush.bf16.msra.mxu0 %v981
        %991 = vmatmul.bf16.gmra.mxu0 %v978
        %v992 = vpop.f32.mrf.mxu0
        %v993 = vadd.f32 0.0, %v992
        %v994 = vpop.f32.mrf.mxu0
        %995 = vdwg.mxu0
        %v997 = vsel %vm908, %v955, 0
        %v1000 = vsel %vm960, %v819, 0
        %1002 = vmatpush.bf16.msra.mxu0 0
        %1003 = vmatpush.bf16.msra.mxu0 0
        %1004 = vmatpush.bf16.msra.mxu0 0
        %1005 = vmatpush.bf16.msra.mxu0 0
        %1006 = vmatpush.bf16.msra.mxu0 0
        %1007 = vmatpush.bf16.msra.mxu0 0
        %1008 = vmatpush.bf16.msra.mxu0 0
        %1009 = vmatpush.bf16.msra.mxu0 %v1000
        %1010 = vmatmul.bf16.gmra.mxu0 %v997
        %v1011 = vpop.f32.mrf.mxu0
        %v1012 = vadd.f32 0.0, %v1011
        %v1013 = vpop.f32.mrf.mxu0
        %1014 = vdwg.mxu0
        %v1016 = vsel %vm908, %v956, 0
        %v1019 = vsel %vm960, %v821, 0
        %1021 = vmatpush.bf16.msra.mxu0 0
        %1022 = vmatpush.bf16.msra.mxu0 0
        %1023 = vmatpush.bf16.msra.mxu0 0
        %1024 = vmatpush.bf16.msra.mxu0 0
        %1025 = vmatpush.bf16.msra.mxu0 0
        %1026 = vmatpush.bf16.msra.mxu0 0
        %1027 = vmatpush.bf16.msra.mxu0 0
        %1028 = vmatpush.bf16.msra.mxu0 %v1019
        %1029 = vmatmul.bf16.gmra.mxu0 %v1016
        %v1030 = vpop.f32.mrf.mxu0
        %v1031 = vadd.f32 0.0, %v1030
        %v1032 = vpop.f32.mrf.mxu0
        %1033 = vdwg.mxu0
        %1035 = vrot.lane.b32.xlu0 %v993, 32
        %v1036 = vpop.permute.xlu0 %1035
        %1039 = vrot.lane.b32.xlu0 %v1012, 64
        %v1040 = vpop.permute.xlu0 %1039
        %1043 = vrot.lane.b32.xlu0 %v1031, 96
        %v1044 = vpop.permute.xlu0 %1043
        %v1046 = vsel %vm822, %v974, %v1036
        %vm1047 = vcmask 523264
        %v1048 = vsel %vm1047, %v1046, %v1040
        %vm1049 = vcmask 785408
        %v1050 = vsel %vm1049, %v1048, %v1044
        %v1051 = vpack.c.bf16 %v1050, %v1050
        %v1052 = vld [vmem:[#allocation2] sm:$0xf]
        %v1053 = vld [vmem:[#allocation2 + $0x4] sm:$0xf]
        %v1054 = vld [vmem:[#allocation2 + $0x8] sm:$0xf]
        %v1055 = vld [vmem:[#allocation2 + $0xc] sm:$0xf]
        %v1056 = vld [vmem:[#allocation2 + $0x10] sm:$0xf]
        %v1057 = vld [vmem:[#allocation2 + $0x14] sm:$0xf]
        %v1058 = vld [vmem:[#allocation2 + $0x18] sm:$0xf]
        %v1059 = vld [vmem:[#allocation2 + $0x1c] sm:$0xf]
        %v1060 = vld [vmem:[#allocation2 + $0x20] sm:$0xf]
        %v1061 = vld [vmem:[#allocation2 + $0x24] sm:$0xf]
        %v1062 = vld [vmem:[#allocation2 + $0x28] sm:$0xf]
        %v1063 = vld [vmem:[#allocation2 + $0x2c] sm:$0xf]
        %v1064 = vld [vmem:[#allocation2 + $0x30] sm:$0xf]
        %v1065 = vld [vmem:[#allocation2 + $0x34] sm:$0xf]
        %v1066 = vld [vmem:[#allocation2 + $0x38] sm:$0xf]
        %v1067 = vld [vmem:[#allocation2 + $0x3c] sm:$0xf]
        %v1068 = vld [vmem:[%s7] sm:$0x1]
        %v1070 = vperm.slane %v1068, 0
        %v1088 = vunpack.c.l.b16 %v1052
        %v1089 = vunpack.c.l.b16 %v1053
        %v1090 = vunpack.c.l.b16 %v1054
        %v1091 = vunpack.c.l.b16 %v1055
        %v1092 = vunpack.c.l.b16 %v1056
        %v1093 = vunpack.c.l.b16 %v1057
        %v1094 = vunpack.c.l.b16 %v1058
        %v1095 = vunpack.c.l.b16 %v1059
        %v1096 = vunpack.c.l.b16 %v1060
        %v1097 = vunpack.c.l.b16 %v1061
        %v1098 = vunpack.c.l.b16 %v1062
        %v1099 = vunpack.c.l.b16 %v1063
        %v1100 = vunpack.c.l.b16 %v1064
        %v1101 = vunpack.c.l.b16 %v1065
        %v1102 = vunpack.c.l.b16 %v1066
        %v1103 = vunpack.c.l.b16 %v1067
        %v1104 = vpack.c.b16 %v1089, %v1088
        %v1105 = vpack.c.b16 %v1091, %v1090
        %v1106 = vpack.c.b16 %v1093, %v1092
        %v1107 = vpack.c.b16 %v1095, %v1094
        %v1108 = vpack.c.b16 %v1097, %v1096
        %v1109 = vpack.c.b16 %v1099, %v1098
        %v1110 = vpack.c.b16 %v1101, %v1100
        %v1111 = vpack.c.b16 %v1103, %v1102
        %1120 = vmatpush.bf16.msra.mxu0 %v1111
        %1121 = vmatpush.bf16.msra.mxu0 %v1110
        %1122 = vmatpush.bf16.msra.mxu0 %v1109
        %1123 = vmatpush.bf16.msra.mxu0 %v1108
        %1124 = vmatpush.bf16.msra.mxu0 %v1107
        %1125 = vmatpush.bf16.msra.mxu0 %v1106
        %1126 = vmatpush.bf16.msra.mxu0 %v1105
        %1127 = vmatpush.bf16.msra.mxu0 %v1104
        %1128 = vmatmul.bf16.gmra.mxu0 %v1051
        %v1129 = vpop.f32.mrf.mxu0
        %v1130 = vadd.f32 %v1070, %v1129
        %v1131 = vpop.f32.mrf.mxu0
        %1132 = vdwg.mxu0
        %v1133 = vadd.f32 %v1130, %v582
        %v1134 = vld [vmem:[%s8] sm:$0x1]
        %v1135 = vld [vmem:[%s9] sm:$0x1]
        %1136 = vadd.xlane.f32.xlu0 %v1133
        %v1137 = vpop.xlane.xlu0 %1136
        %v1138 = vmul.f32 %v1137, 0.03125
        %v1139 = vmul.f32 %v1133, %v1133
        %1140 = vadd.xlane.f32.xlu0 %v1139
        %v1141 = vpop.xlane.xlu0 %1140
        %v1142 = vmul.f32 %v1141, 0.03125
        %v1143 = vmul.f32 %v1138, %v1138
        %v1144 = vsub.f32 %v1142, %v1143
        %v1145 = vmax.f32 %v1144, 0.0
        %v1146 = vsub.f32 %v1133, %v1138
        %v1147 = vadd.f32 %v1145, 1e-05
        %v1148 = vrsqrt.pop %v1147
        %v1149 = vmul.f32 %v1148, %v1147
        %v1150 = vmul.f32 %v1149, %v1148
        %v1151 = vmul.f32 0.5, %v1150
        %v1152 = vsub.f32 1.5, %v1151
        %v1153 = vmul.f32 %v1148, %v1152
        %vm1154 = vweird.f32 %v1147
        %vm1155 = vweird.f32 %v1148
        %vm1156 = vmor %vm1154, %vm1155
        %v1157 = vsel %vm1156, %v1148, %v1153
        %v1158 = vmul.f32 %v1146, %v1157
        %v1160 = vperm.slane %v1134, 0
        %v1162 = vmul.f32 %v1158, %v1160
        %v1164 = vperm.slane %v1135, 0
        %v1166 = vadd.f32 %v1162, %v1164
        %v1167 = vpack.c.bf16 %v1166, %v1166
        %v1168 = vld [vmem:[#allocation4] sm:$0xf]
        %v1169 = vld [vmem:[#allocation4 + $0x4] sm:$0xf]
        %v1170 = vld [vmem:[#allocation4 + $0x8] sm:$0xf]
        %v1171 = vld [vmem:[#allocation4 + $0xc] sm:$0xf]
        %v1172 = vld [vmem:[#allocation4 + $0x10] sm:$0xf]
        %v1173 = vld [vmem:[#allocation4 + $0x14] sm:$0xf]
        %v1174 = vld [vmem:[#allocation4 + $0x18] sm:$0xf]
        %v1175 = vld [vmem:[#allocation4 + $0x1c] sm:$0xf]
        %v1176 = vld [vmem:[#allocation4 + $0x20] sm:$0xf]
        %v1177 = vld [vmem:[#allocation4 + $0x24] sm:$0xf]
        %v1178 = vld [vmem:[#allocation4 + $0x28] sm:$0xf]
        %v1179 = vld [vmem:[#allocation4 + $0x2c] sm:$0xf]
        %v1180 = vld [vmem:[#allocation4 + $0x30] sm:$0xf]
        %v1181 = vld [vmem:[#allocation4 + $0x34] sm:$0xf]
        %v1182 = vld [vmem:[#allocation4 + $0x38] sm:$0xf]
        %v1183 = vld [vmem:[#allocation4 + $0x3c] sm:$0xf]
        %v1184 = vld [vmem:[%s11] sm:$0x1]
        %v1186 = vperm.slane %v1184, 0
        %v1204 = vunpack.c.l.b16 %v1168
        %v1205 = vunpack.c.l.b16 %v1169
        %v1206 = vunpack.c.l.b16 %v1170
        %v1207 = vunpack.c.l.b16 %v1171
        %v1208 = vunpack.c.l.b16 %v1172
        %v1209 = vunpack.c.l.b16 %v1173
        %v1210 = vunpack.c.l.b16 %v1174
        %v1211 = vunpack.c.l.b16 %v1175
        %v1212 = vunpack.c.l.b16 %v1176
        %v1213 = vunpack.c.l.b16 %v1177
        %v1214 = vunpack.c.l.b16 %v1178
        %v1215 = vunpack.c.l.b16 %v1179
        %v1216 = vunpack.c.l.b16 %v1180
        %v1217 = vunpack.c.l.b16 %v1181
        %v1218 = vunpack.c.l.b16 %v1182
        %v1219 = vunpack.c.l.b16 %v1183
        %v1220 = vpack.c.b16 %v1205, %v1204
        %v1221 = vpack.c.b16 %v1207, %v1206
        %v1222 = vpack.c.b16 %v1209, %v1208
        %v1223 = vpack.c.b16 %v1211, %v1210
        %v1224 = vpack.c.b16 %v1213, %v1212
        %v1225 = vpack.c.b16 %v1215, %v1214
        %v1226 = vpack.c.b16 %v1217, %v1216
        %v1227 = vpack.c.b16 %v1219, %v1218
        %1236 = vmatpush.bf16.msra.mxu0 %v1227
        %1237 = vmatpush.bf16.msra.mxu0 %v1226
        %1238 = vmatpush.bf16.msra.mxu0 %v1225
        %1239 = vmatpush.bf16.msra.mxu0 %v1224
        %1240 = vmatpush.bf16.msra.mxu0 %v1223
        %1241 = vmatpush.bf16.msra.mxu0 %v1222
        %1242 = vmatpush.bf16.msra.mxu0 %v1221
        %1243 = vmatpush.bf16.msra.mxu0 %v1220
        %1244 = vmatmul.bf16.gmra.mxu0 %v1167
        %v1245 = vpop.f32.mrf.mxu0
        %v1246 = vadd.f32 %v1186, %v1245
        %v1247 = vpop.f32.mrf.mxu0
        %1248 = vdwg.mxu0
        %v1249 = vmax.f32 %v1246, 0.0
        %v1250 = vpack.c.bf16 %v1249, %v1249
        %v1251 = vld [vmem:[#allocation6] sm:$0xf]
        %v1252 = vld [vmem:[#allocation6 + $0x4] sm:$0xf]
        %v1253 = vld [vmem:[#allocation6 + $0x8] sm:$0xf]
        %v1254 = vld [vmem:[#allocation6 + $0xc] sm:$0xf]
        %v1255 = vld [vmem:[#allocation6 + $0x10] sm:$0xf]
        %v1256 = vld [vmem:[#allocation6 + $0x14] sm:$0xf]
        %v1257 = vld [vmem:[#allocation6 + $0x18] sm:$0xf]
        %v1258 = vld [vmem:[#allocation6 + $0x1c] sm:$0xf]
        %v1259 = vld [vmem:[#allocation6 + $0x20] sm:$0xf]
        %v1260 = vld [vmem:[#allocation6 + $0x24] sm:$0xf]
        %v1261 = vld [vmem:[#allocation6 + $0x28] sm:$0xf]
        %v1262 = vld [vmem:[#allocation6 + $0x2c] sm:$0xf]
        %v1263 = vld [vmem:[#allocation6 + $0x30] sm:$0xf]
        %v1264 = vld [vmem:[#allocation6 + $0x34] sm:$0xf]
        %v1265 = vld [vmem:[#allocation6 + $0x38] sm:$0xf]
        %v1266 = vld [vmem:[#allocation6 + $0x3c] sm:$0xf]
        %v1267 = vld [vmem:[%s13] sm:$0x1]
        %v1269 = vperm.slane %v1267, 0
        %v1287 = vunpack.c.l.b16 %v1251
        %v1288 = vunpack.c.l.b16 %v1252
        %v1289 = vunpack.c.l.b16 %v1253
        %v1290 = vunpack.c.l.b16 %v1254
        %v1291 = vunpack.c.l.b16 %v1255
        %v1292 = vunpack.c.l.b16 %v1256
        %v1293 = vunpack.c.l.b16 %v1257
        %v1294 = vunpack.c.l.b16 %v1258
        %v1295 = vunpack.c.l.b16 %v1259
        %v1296 = vunpack.c.l.b16 %v1260
        %v1297 = vunpack.c.l.b16 %v1261
        %v1298 = vunpack.c.l.b16 %v1262
        %v1299 = vunpack.c.l.b16 %v1263
        %v1300 = vunpack.c.l.b16 %v1264
        %v1301 = vunpack.c.l.b16 %v1265
        %v1302 = vunpack.c.l.b16 %v1266
        %v1303 = vpack.c.b16 %v1288, %v1287
        %v1304 = vpack.c.b16 %v1290, %v1289
        %v1305 = vpack.c.b16 %v1292, %v1291
        %v1306 = vpack.c.b16 %v1294, %v1293
        %v1307 = vpack.c.b16 %v1296, %v1295
        %v1308 = vpack.c.b16 %v1298, %v1297
        %v1309 = vpack.c.b16 %v1300, %v1299
        %v1310 = vpack.c.b16 %v1302, %v1301
        %1319 = vmatpush.bf16.msra.mxu0 %v1310
        %1320 = vmatpush.bf16.msra.mxu0 %v1309
        %1321 = vmatpush.bf16.msra.mxu0 %v1308
        %1322 = vmatpush.bf16.msra.mxu0 %v1307
        %1323 = vmatpush.bf16.msra.mxu0 %v1306
        %1324 = vmatpush.bf16.msra.mxu0 %v1305
        %1325 = vmatpush.bf16.msra.mxu0 %v1304
        %1326 = vmatpush.bf16.msra.mxu0 %v1303
        %1327 = vmatmul.bf16.gmra.mxu0 %v1250
        %v1328 = vpop.f32.mrf.mxu0
        %v1329 = vadd.f32 %v1269, %v1328
        %v1330 = vpop.f32.mrf.mxu0
        %1331 = vdwg.mxu0
        %v1332 = vadd.f32 %v1329, %v1166
        %v1333 = vld [vmem:[%s14] sm:$0x1]
        %v1334 = vld [vmem:[%s15] sm:$0x1]
        %1335 = vadd.xlane.f32.xlu0 %v1332
        %v1336 = vpop.xlane.xlu0 %1335
        %v1337 = vmul.f32 %v1336, 0.03125
        %v1338 = vmul.f32 %v1332, %v1332
        %1339 = vadd.xlane.f32.xlu0 %v1338
        %v1340 = vpop.xlane.xlu0 %1339
        %v1341 = vmul.f32 %v1340, 0.03125
        %v1342 = vmul.f32 %v1337, %v1337
        %v1343 = vsub.f32 %v1341, %v1342
        %v1344 = vmax.f32 %v1343, 0.0
        %v1345 = vsub.f32 %v1332, %v1337
        %v1346 = vadd.f32 %v1344, 1e-05
        %v1347 = vrsqrt.pop %v1346
        %v1348 = vmul.f32 %v1347, %v1346
        %v1349 = vmul.f32 %v1348, %v1347
        %v1350 = vmul.f32 0.5, %v1349
        %v1351 = vsub.f32 1.5, %v1350
        %v1352 = vmul.f32 %v1347, %v1351
        %vm1353 = vweird.f32 %v1346
        %vm1354 = vweird.f32 %v1347
        %vm1355 = vmor %vm1353, %vm1354
        %v1356 = vsel %vm1355, %v1347, %v1352
        %v1357 = vmul.f32 %v1345, %v1356
        %v1359 = vperm.slane %v1333, 0
        %v1361 = vmul.f32 %v1357, %v1359
        %v1363 = vperm.slane %v1334, 0
        %v1365 = vadd.f32 %v1361, %v1363
        %1366 = vst [vmem:[%s580] sm:$0xff] %v1365
        %p1367 = scmp.lt.s32.totalorder %s29, 1
        %s1368 = scalar_select %p1367, %s29, 1
        %s1369 = smul.addr %s1368, 8
        %s1370 = scalar_lea.vmem %s16, %s1369
        // Predicated region
        $region97: #{_lambda_.6} parent=83 // pred_check
          %p1371 = pneg %p393
        $region98: #{_lambda_.6} parent=83 // pred_check_branch
          %1373 = sbr.rel (%p1371) target = $region100
        $region99: #{_lambda_.6} parent=83 // pred_region
          _
        $region100: #{_lambda_.6} parent=83 // pred_fallthru
          _
      $region84: #{_lambda_.6} parent=5 // pred_fallthru
        _
      %p1374 = scmp.le.s32.totalorder 2, %s24
      // Predicated region
      $region101: #{_lambda_.6} parent=5 // pred_check
        %p1375 = pneg %p1374
      $region102: #{_lambda_.6} parent=5 // pred_check_branch
        %1377 = sbr.rel (%p1375) target = $region104
      $region103: #{_lambda_.6} parent=5 // pred_region
        %s1378 = ssub.s32 %s24, 2
        // Predicated region
        $region105: #{_lambda_.6} parent=103 // pred_check
          %p1379 = pneg %p399
        $region106: #{_lambda_.6} parent=103 // pred_check_branch
          %1381 = sbr.rel (%p1379) target = $region108
        $region107: #{_lambda_.6} parent=103 // pred_region
          %p1382 = scmp.lt.s32.totalorder %s30, 1
          %s1383 = scalar_select %p1382, %s30, 1
          %s1384 = smul.addr %s1383, 8
          %s1385 = scalar_lea.vmem %s16, %s1384
        $region108: #{_lambda_.6} parent=103 // pred_fallthru
          _
      $region104: #{_lambda_.6} parent=5 // pred_fallthru
        _
    $region6: #{_lambda_.6} parent=1 // loop_footer
      %s28 = sadd.s32 1, %s24
    $region7: #{_lambda_.6} parent=1 // loop_footer_branch
      %23 = sbr.rel target = $region3
    $region8: #{_lambda_.6} parent=1 // loop_exit
      _
    %1386 = vsyncpa [#allocation3], 1
    %s1387 = scalar_lea.sflag [#allocation3], 1
    %1388 = vsyncpa %s1387, 1
    %1389 = vsyncpa [#allocation5], 1

// kernel: _lambda_.8
$region0: #{_lambda_.8}
  #allocation0 [shape = 'u32[]', space=smem, size = 0x4, offset = 0x4, fixed_abs, tag = 'smem constant byte address 0x4 - core index']
  #allocation1 [shape = 'u32[72,128]{1,0:T(1,128)}', space=vmem, size = 0x9000, scoped, tag = 'internal scratch']
  %s0 = inlined_call_operand.vmem [shape: f32[2,8,128], index: 0, kind: input, shape index: {}]
  %s1 = inlined_call_operand.vmem [shape: f32[2,8,128], index: 1, kind: input, shape index: {}]
  %s2 = inlined_call_operand.vmem [shape: s8[2,1,8], index: 2, kind: input, shape index: {}]
  %s3 = inlined_call_operand.vmem [shape: s8[2,1,8], index: 3, kind: input, shape index: {}]
  %s4 = inlined_call_operand.vmem [shape: bf16[128,128], index: 4, kind: input, shape index: {}]
  %s5 = inlined_call_operand.vmem [shape: f32[1,128], index: 5, kind: input, shape index: {}]
  %s6 = inlined_call_operand.vmem [shape: bf16[128,256], index: 6, kind: input, shape index: {}]
  %s7 = inlined_call_operand.vmem [shape: f32[1,256], index: 7, kind: input, shape index: {}]
  %s8 = inlined_call_operand.vmem [shape: bf16[128,128], index: 8, kind: input, shape index: {}]
  %s9 = inlined_call_operand.vmem [shape: f32[1,128], index: 9, kind: input, shape index: {}]
  %s10 = inlined_call_operand.vmem [shape: f32[1,128], index: 10, kind: input, shape index: {}]
  %s11 = inlined_call_operand.vmem [shape: f32[1,128], index: 11, kind: input, shape index: {}]
  %s12 = inlined_call_operand.vmem [shape: bf16[128,128], index: 12, kind: input, shape index: {}]
  %s13 = inlined_call_operand.vmem [shape: f32[1,128], index: 13, kind: input, shape index: {}]
  %s14 = inlined_call_operand.vmem [shape: bf16[128,256], index: 14, kind: input, shape index: {}]
  %s15 = inlined_call_operand.vmem [shape: f32[1,256], index: 15, kind: input, shape index: {}]
  %s16 = inlined_call_operand.vmem [shape: bf16[128,128], index: 16, kind: input, shape index: {}]
  %s17 = inlined_call_operand.vmem [shape: f32[1,128], index: 17, kind: input, shape index: {}]
  %s18 = inlined_call_operand.vmem [shape: f32[1,128], index: 18, kind: input, shape index: {}]
  %s19 = inlined_call_operand.vmem [shape: f32[1,128], index: 19, kind: input, shape index: {}]
  %s20 = inlined_call_operand.vmem [shape: bf16[128,128], index: 20, kind: input, shape index: {}]
  %s21 = inlined_call_operand.vmem [shape: f32[1,128], index: 21, kind: input, shape index: {}]
  %s22 = inlined_call_operand.vmem [shape: bf16[128,128], index: 22, kind: input, shape index: {}]
  %s23 = inlined_call_operand.vmem [shape: f32[1,128], index: 23, kind: input, shape index: {}]
  %s24 = inlined_call_operand.vmem [shape: f32[1,128], index: 24, kind: input, shape index: {}]
  %s25 = inlined_call_operand.vmem [shape: f32[1,128], index: 25, kind: input, shape index: {}]
  %s26 = inlined_call_operand.vmem [shape: f32[2,8,128], index: 26, kind: output, shape index: {}]
  %s27 = sld [smem:[#allocation0]]
  $region137: #{_lambda_.8} parent=0
    _
  %s29 = ssub.s32 1, %s27
  %s30 = scalar_select 0, %s29, %s27
  loop: start=0, step=1, limit=4
  $region2: #{_lambda_.8} parent=0 // loop_pre_header
    _
  $region3: #{_lambda_.8} parent=0 // loop_header
    %s32 = sphi 0, %s36
    %p33 = scmp.ge.s32.totalorder %s32, 4
    %s42 = sphi 0, %s44
    %s45 = sphi 0, %s42
    %s46 = sphi 0, %s45
    %s62 = sphi 0, %s46
    %s68 = sphi 0, %s70
    %s71 = sphi 0, %s68
    %s72 = sphi 0, %s71
    %s88 = sphi 0, %s72
    %s94 = sphi 0, %s96
    %s97 = sphi 0, %s94
    %s98 = sphi 0, %s97
    %s114 = sphi 0, %s98
    %s120 = sphi 0, %s122
    %s123 = sphi 0, %s120
    %s124 = sphi 0, %s123
    %s140 = sphi 0, %s124
    %s144 = sphi 0, %s144
    %s146 = sphi 0, %s144
    %s147 = sphi 0, %s146
    %s161 = sphi 0, %s147
    %s165 = sphi 0, %s165
    %s167 = sphi 0, %s165
    %s168 = sphi 0, %s167
    %s182 = sphi 0, %s168
    %s186 = sphi 0, %s186
    %s188 = sphi 0, %s186
    %s189 = sphi 0, %s188
    %s203 = sphi 0, %s189
    %s207 = sphi 0, %s207
    %s209 = sphi 0, %s207
    %s210 = sphi 0, %s209
    %s224 = sphi 0, %s210
    %s228 = sphi 0, %s228
    %s230 = sphi 0, %s228
    %s231 = sphi 0, %s230
    %s245 = sphi 0, %s231
    %s249 = sphi 0, %s249
    %s251 = sphi 0, %s249
    %s252 = sphi 0, %s251
    %s266 = sphi 0, %s252
    %s270 = sphi 0, %s270
    %s272 = sphi 0, %s270
    %s273 = sphi 0, %s272
    %s287 = sphi 0, %s273
    %s291 = sphi 0, %s291
    %s293 = sphi 0, %s291
    %s294 = sphi 0, %s293
    %s308 = sphi 0, %s294
    %s312 = sphi 0, %s312
    %s314 = sphi 0, %s312
    %s315 = sphi 0, %s314
    %s329 = sphi 0, %s315
    %s333 = sphi 0, %s333
    %s335 = sphi 0, %s333
    %s336 = sphi 0, %s335
    %s350 = sphi 0, %s336
    %s354 = sphi 0, %s354
    %s356 = sphi 0, %s354
    %s357 = sphi 0, %s356
    %s371 = sphi 0, %s357
    %s375 = sphi 0, %s375
    %s377 = sphi 0, %s375
    %s378 = sphi 0, %s377
    %s392 = sphi 0, %s378
    %s396 = sphi 0, %s396
    %s398 = sphi 0, %s396
    %s399 = sphi 0, %s398
    %s413 = sphi 0, %s399
    %s417 = sphi 0, %s417
    %s419 = sphi 0, %s417
    %s420 = sphi 0, %s419
    %s434 = sphi 0, %s420
    %s438 = sphi 0, %s438
    %s440 = sphi 0, %s438
    %s441 = sphi 0, %s440
    %s455 = sphi 0, %s441
    %s459 = sphi 0, %s459
    %s461 = sphi 0, %s459
    %s462 = sphi 0, %s461
    %s476 = sphi 0, %s462
    %s480 = sphi 0, %s480
    %s482 = sphi 0, %s480
    %s483 = sphi 0, %s482
    %s497 = sphi 0, %s483
    %s501 = sphi 0, %s501
    %s503 = sphi 0, %s501
    %s504 = sphi 0, %s503
    %s518 = sphi 0, %s504
    %s522 = sphi 0, %s522
    %s524 = sphi 0, %s522
    %s525 = sphi 0, %s524
    %s539 = sphi 0, %s525
    %s543 = sphi 0, %s543
    %s545 = sphi 0, %s543
    %s546 = sphi 0, %s545
    %s560 = sphi 0, %s546
    %s564 = sphi 0, %s564
    %s566 = sphi 0, %s564
    %s567 = sphi 0, %s566
    %s581 = sphi 0, %s567
    %s585 = sphi 0, %s585
    %s587 = sphi 0, %s585
    %s588 = sphi 0, %s587
    %s602 = sphi 0, %s588
    %s608 = sphi 0, %s610
    %s611 = sphi 0, %s608
    %s612 = sphi 0, %s611
    %s628 = sphi 0, %s612
  $region4: #{_lambda_.8} parent=0 // loop_header_branch
    %35 = sbr.rel (%p33) target = $region8
  $region5: #{_lambda_.8} parent=0 // loop_body
    %s37 = ssub.s32 %s32, 1
    %s38 = ssub.s32 %s32, 2
    %s39 = sadd.s32 %s32, 1
    %s40 = ssub.s32 %s32, %s39
    %p41 = scmp.eq.s32.totalorder %s40, 0
    %s43 = sadd.s32 %s42, 1
    %s44 = scalar_select %p41, %s42, %s43
    %p47 = pneg %p41
    %p48 = scmp.eq.s32.totalorder %s32, 1
    %p49 = por %p47, %p48
    %p50 = scmp.ne.s32.totalorder %s42, %s45
    %p51 = scmp.eq.s32.totalorder %s32, 0
    %p52 = por %p50, %p51
    %p53 = scmp.ne.s32.totalorder %s42, %s45
    %p54 = scmp.eq.s32.totalorder %s37, 1
    %p55 = por %p53, %p54
    %p56 = scmp.ne.s32.totalorder %s45, %s46
    %p57 = scmp.eq.s32.totalorder %s37, 0
    %p58 = por %p56, %p57
    %p59 = scmp.ne.s32.totalorder %s45, %s46
    %p60 = scmp.eq.s32.totalorder %s38, 1
    %p61 = por %p59, %p60
    %p63 = scmp.ne.s32.totalorder %s46, %s62
    %p64 = scmp.eq.s32.totalorder %s38, 0
    %p65 = por %p63, %p64
    %s66 = ssub.s32 %s32, %s39
    %p67 = scmp.eq.s32.totalorder %s66, 0
    %s69 = sadd.s32 %s68, 1
    %s70 = scalar_select %p67, %s68, %s69
    %p73 = pneg %p67
    %p74 = scmp.eq.s32.totalorder %s32, 1
    %p75 = por %p73, %p74
    %p76 = scmp.ne.s32.totalorder %s68, %s71
    %p77 = scmp.eq.s32.totalorder %s32, 0
    %p78 = por %p76, %p77
    %p79 = scmp.ne.s32.totalorder %s68, %s71
    %p80 = scmp.eq.s32.totalorder %s37, 1
    %p81 = por %p79, %p80
    %p82 = scmp.ne.s32.totalorder %s71, %s72
    %p83 = scmp.eq.s32.totalorder %s37, 0
    %p84 = por %p82, %p83
    %p85 = scmp.ne.s32.totalorder %s71, %s72
    %p86 = scmp.eq.s32.totalorder %s38, 1
    %p87 = por %p85, %p86
    %p89 = scmp.ne.s32.totalorder %s72, %s88
    %p90 = scmp.eq.s32.totalorder %s38, 0
    %p91 = por %p89, %p90
    %s92 = ssub.s32 %s32, %s39
    %p93 = scmp.eq.s32.totalorder %s92, 0
    %s95 = sadd.s32 %s94, 1
    %s96 = scalar_select %p93, %s94, %s95
    %p99 = pneg %p93
    %p100 = scmp.eq.s32.totalorder %s32, 1
    %p101 = por %p99, %p100
    %p102 = scmp.ne.s32.totalorder %s94, %s97
    %p103 = scmp.eq.s32.totalorder %s32, 0
    %p104 = por %p102, %p103
    %p105 = scmp.ne.s32.totalorder %s94, %s97
    %p106 = scmp.eq.s32.totalorder %s37, 1
    %p107 = por %p105, %p106
    %p108 = scmp.ne.s32.totalorder %s97, %s98
    %p109 = scmp.eq.s32.totalorder %s37, 0
    %p110 = por %p108, %p109
    %p111 = scmp.ne.s32.totalorder %s97, %s98
    %p112 = scmp.eq.s32.totalorder %s38, 1
    %p113 = por %p111, %p112
    %p115 = scmp.ne.s32.totalorder %s98, %s114
    %p116 = scmp.eq.s32.totalorder %s38, 0
    %p117 = por %p115, %p116
    %s118 = ssub.s32 %s32, %s39
    %p119 = scmp.eq.s32.totalorder %s118, 0
    %s121 = sadd.s32 %s120, 1
    %s122 = scalar_select %p119, %s120, %s121
    %p125 = pneg %p119
    %p126 = scmp.eq.s32.totalorder %s32, 1
    %p127 = por %p125, %p126
    %p128 = scmp.ne.s32.totalorder %s120, %s123
    %p129 = scmp.eq.s32.totalorder %s32, 0
    %p130 = por %p128, %p129
    %p131 = scmp.ne.s32.totalorder %s120, %s123
    %p132 = scmp.eq.s32.totalorder %s37, 1
    %p133 = por %p131, %p132
    %p134 = scmp.ne.s32.totalorder %s123, %s124
    %p135 = scmp.eq.s32.totalorder %s37, 0
    %p136 = por %p134, %p135
    %p137 = scmp.ne.s32.totalorder %s123, %s124
    %p138 = scmp.eq.s32.totalorder %s38, 1
    %p139 = por %p137, %p138
    %p141 = scmp.ne.s32.totalorder %s124, %s140
    %p142 = scmp.eq.s32.totalorder %s38, 0
    %p143 = por %p141, %p142
    %s145 = sadd.s32 %s144, 1
    %p148 = scmp.eq.s32.totalorder %s32, 1
    %p149 = scmp.ne.s32.totalorder %s144, %s146
    %p150 = scmp.eq.s32.totalorder %s32, 0
    %p151 = por %p149, %p150
    %p152 = scmp.ne.s32.totalorder %s144, %s146
    %p153 = scmp.eq.s32.totalorder %s37, 1
    %p154 = por %p152, %p153
    %p155 = scmp.ne.s32.totalorder %s146, %s147
    %p156 = scmp.eq.s32.totalorder %s37, 0
    %p157 = por %p155, %p156
    %p158 = scmp.ne.s32.totalorder %s146, %s147
    %p159 = scmp.eq.s32.totalorder %s38, 1
    %p160 = por %p158, %p159
    %p162 = scmp.ne.s32.totalorder %s147, %s161
    %p163 = scmp.eq.s32.totalorder %s38, 0
    %p164 = por %p162, %p163
    %s166 = sadd.s32 %s165, 1
    %p169 = scmp.eq.s32.totalorder %s32, 1
    %p170 = scmp.ne.s32.totalorder %s165, %s167
    %p171 = scmp.eq.s32.totalorder %s32, 0
    %p172 = por %p170, %p171
    %p173 = scmp.ne.s32.totalorder %s165, %s167
    %p174 = scmp.eq.s32.totalorder %s37, 1
    %p175 = por %p173, %p174
    %p176 = scmp.ne.s32.totalorder %s167, %s168
    %p177 = scmp.eq.s32.totalorder %s37, 0
    %p178 = por %p176, %p177
    %p179 = scmp.ne.s32.totalorder %s167, %s168
    %p180 = scmp.eq.s32.totalorder %s38, 1
    %p181 = por %p179, %p180
    %p183 = scmp.ne.s32.totalorder %s168, %s182
    %p184 = scmp.eq.s32.totalorder %s38, 0
    %p185 = por %p183, %p184
    %s187 = sadd.s32 %s186, 1
    %p190 = scmp.eq.s32.totalorder %s32, 1
    %p191 = scmp.ne.s32.totalorder %s186, %s188
    %p192 = scmp.eq.s32.totalorder %s32, 0
    %p193 = por %p191, %p192
    %p194 = scmp.ne.s32.totalorder %s186, %s188
    %p195 = scmp.eq.s32.totalorder %s37, 1
    %p196 = por %p194, %p195
    %p197 = scmp.ne.s32.totalorder %s188, %s189
    %p198 = scmp.eq.s32.totalorder %s37, 0
    %p199 = por %p197, %p198
    %p200 = scmp.ne.s32.totalorder %s188, %s189
    %p201 = scmp.eq.s32.totalorder %s38, 1
    %p202 = por %p200, %p201
    %p204 = scmp.ne.s32.totalorder %s189, %s203
    %p205 = scmp.eq.s32.totalorder %s38, 0
    %p206 = por %p204, %p205
    %s208 = sadd.s32 %s207, 1
    %p211 = scmp.eq.s32.totalorder %s32, 1
    %p212 = scmp.ne.s32.totalorder %s207, %s209
    %p213 = scmp.eq.s32.totalorder %s32, 0
    %p214 = por %p212, %p213
    %p215 = scmp.ne.s32.totalorder %s207, %s209
    %p216 = scmp.eq.s32.totalorder %s37, 1
    %p217 = por %p215, %p216
    %p218 = scmp.ne.s32.totalorder %s209, %s210
    %p219 = scmp.eq.s32.totalorder %s37, 0
    %p220 = por %p218, %p219
    %p221 = scmp.ne.s32.totalorder %s209, %s210
    %p222 = scmp.eq.s32.totalorder %s38, 1
    %p223 = por %p221, %p222
    %p225 = scmp.ne.s32.totalorder %s210, %s224
    %p226 = scmp.eq.s32.totalorder %s38, 0
    %p227 = por %p225, %p226
    %s229 = sadd.s32 %s228, 1
    %p232 = scmp.eq.s32.totalorder %s32, 1
    %p233 = scmp.ne.s32.totalorder %s228, %s230
    %p234 = scmp.eq.s32.totalorder %s32, 0
    %p235 = por %p233, %p234
    %p236 = scmp.ne.s32.totalorder %s228, %s230
    %p237 = scmp.eq.s32.totalorder %s37, 1
    %p238 = por %p236, %p237
    %p239 = scmp.ne.s32.totalorder %s230, %s231
    %p240 = scmp.eq.s32.totalorder %s37, 0
    %p241 = por %p239, %p240
    %p242 = scmp.ne.s32.totalorder %s230, %s231
    %p243 = scmp.eq.s32.totalorder %s38, 1
    %p244 = por %p242, %p243
    %p246 = scmp.ne.s32.totalorder %s231, %s245
    %p247 = scmp.eq.s32.totalorder %s38, 0
    %p248 = por %p246, %p247
    %s250 = sadd.s32 %s249, 1
    %p253 = scmp.eq.s32.totalorder %s32, 1
    %p254 = scmp.ne.s32.totalorder %s249, %s251
    %p255 = scmp.eq.s32.totalorder %s32, 0
    %p256 = por %p254, %p255
    %p257 = scmp.ne.s32.totalorder %s249, %s251
    %p258 = scmp.eq.s32.totalorder %s37, 1
    %p259 = por %p257, %p258
    %p260 = scmp.ne.s32.totalorder %s251, %s252
    %p261 = scmp.eq.s32.totalorder %s37, 0
    %p262 = por %p260, %p261
    %p263 = scmp.ne.s32.totalorder %s251, %s252
    %p264 = scmp.eq.s32.totalorder %s38, 1
    %p265 = por %p263, %p264
    %p267 = scmp.ne.s32.totalorder %s252, %s266
    %p268 = scmp.eq.s32.totalorder %s38, 0
    %p269 = por %p267, %p268
    %s271 = sadd.s32 %s270, 1
    %p274 = scmp.eq.s32.totalorder %s32, 1
    %p275 = scmp.ne.s32.totalorder %s270, %s272
    %p276 = scmp.eq.s32.totalorder %s32, 0
    %p277 = por %p275, %p276
    %p278 = scmp.ne.s32.totalorder %s270, %s272
    %p279 = scmp.eq.s32.totalorder %s37, 1
    %p280 = por %p278, %p279
    %p281 = scmp.ne.s32.totalorder %s272, %s273
    %p282 = scmp.eq.s32.totalorder %s37, 0
    %p283 = por %p281, %p282
    %p284 = scmp.ne.s32.totalorder %s272, %s273
    %p285 = scmp.eq.s32.totalorder %s38, 1
    %p286 = por %p284, %p285
    %p288 = scmp.ne.s32.totalorder %s273, %s287
    %p289 = scmp.eq.s32.totalorder %s38, 0
    %p290 = por %p288, %p289
    %s292 = sadd.s32 %s291, 1
    %p295 = scmp.eq.s32.totalorder %s32, 1
    %p296 = scmp.ne.s32.totalorder %s291, %s293
    %p297 = scmp.eq.s32.totalorder %s32, 0
    %p298 = por %p296, %p297
    %p299 = scmp.ne.s32.totalorder %s291, %s293
    %p300 = scmp.eq.s32.totalorder %s37, 1
    %p301 = por %p299, %p300
    %p302 = scmp.ne.s32.totalorder %s293, %s294
    %p303 = scmp.eq.s32.totalorder %s37, 0
    %p304 = por %p302, %p303
    %p305 = scmp.ne.s32.totalorder %s293, %s294
    %p306 = scmp.eq.s32.totalorder %s38, 1
    %p307 = por %p305, %p306
    %p309 = scmp.ne.s32.totalorder %s294, %s308
    %p310 = scmp.eq.s32.totalorder %s38, 0
    %p311 = por %p309, %p310
    %s313 = sadd.s32 %s312, 1
    %p316 = scmp.eq.s32.totalorder %s32, 1
    %p317 = scmp.ne.s32.totalorder %s312, %s314
    %p318 = scmp.eq.s32.totalorder %s32, 0
    %p319 = por %p317, %p318
    %p320 = scmp.ne.s32.totalorder %s312, %s314
    %p321 = scmp.eq.s32.totalorder %s37, 1
    %p322 = por %p320, %p321
    %p323 = scmp.ne.s32.totalorder %s314, %s315
    %p324 = scmp.eq.s32.totalorder %s37, 0
    %p325 = por %p323, %p324
    %p326 = scmp.ne.s32.totalorder %s314, %s315
    %p327 = scmp.eq.s32.totalorder %s38, 1
    %p328 = por %p326, %p327
    %p330 = scmp.ne.s32.totalorder %s315, %s329
    %p331 = scmp.eq.s32.totalorder %s38, 0
    %p332 = por %p330, %p331
    %s334 = sadd.s32 %s333, 1
    %p337 = scmp.eq.s32.totalorder %s32, 1
    %p338 = scmp.ne.s32.totalorder %s333, %s335
    %p339 = scmp.eq.s32.totalorder %s32, 0
    %p340 = por %p338, %p339
    %p341 = scmp.ne.s32.totalorder %s333, %s335
    %p342 = scmp.eq.s32.totalorder %s37, 1
    %p343 = por %p341, %p342
    %p344 = scmp.ne.s32.totalorder %s335, %s336
    %p345 = scmp.eq.s32.totalorder %s37, 0
    %p346 = por %p344, %p345
    %p347 = scmp.ne.s32.totalorder %s335, %s336
    %p348 = scmp.eq.s32.totalorder %s38, 1
    %p349 = por %p347, %p348
    %p351 = scmp.ne.s32.totalorder %s336, %s350
    %p352 = scmp.eq.s32.totalorder %s38, 0
    %p353 = por %p351, %p352
    %s355 = sadd.s32 %s354, 1
    %p358 = scmp.eq.s32.totalorder %s32, 1
    %p359 = scmp.ne.s32.totalorder %s354, %s356
    %p360 = scmp.eq.s32.totalorder %s32, 0
    %p361 = por %p359, %p360
    %p362 = scmp.ne.s32.totalorder %s354, %s356
    %p363 = scmp.eq.s32.totalorder %s37, 1
    %p364 = por %p362, %p363
    %p365 = scmp.ne.s32.totalorder %s356, %s357
    %p366 = scmp.eq.s32.totalorder %s37, 0
    %p367 = por %p365, %p366
    %p368 = scmp.ne.s32.totalorder %s356, %s357
    %p369 = scmp.eq.s32.totalorder %s38, 1
    %p370 = por %p368, %p369
    %p372 = scmp.ne.s32.totalorder %s357, %s371
    %p373 = scmp.eq.s32.totalorder %s38, 0
    %p374 = por %p372, %p373
    %s376 = sadd.s32 %s375, 1
    %p379 = scmp.eq.s32.totalorder %s32, 1
    %p380 = scmp.ne.s32.totalorder %s375, %s377
    %p381 = scmp.eq.s32.totalorder %s32, 0
    %p382 = por %p380, %p381
    %p383 = scmp.ne.s32.totalorder %s375, %s377
    %p384 = scmp.eq.s32.totalorder %s37, 1
    %p385 = por %p383, %p384
    %p386 = scmp.ne.s32.totalorder %s377, %s378
    %p387 = scmp.eq.s32.totalorder %s37, 0
    %p388 = por %p386, %p387
    %p389 = scmp.ne.s32.totalorder %s377, %s378
    %p390 = scmp.eq.s32.totalorder %s38, 1
    %p391 = por %p389, %p390
    %p393 = scmp.ne.s32.totalorder %s378, %s392
    %p394 = scmp.eq.s32.totalorder %s38, 0
    %p395 = por %p393, %p394
    %s397 = sadd.s32 %s396, 1
    %p400 = scmp.eq.s32.totalorder %s32, 1
    %p401 = scmp.ne.s32.totalorder %s396, %s398
    %p402 = scmp.eq.s32.totalorder %s32, 0
    %p403 = por %p401, %p402
    %p404 = scmp.ne.s32.totalorder %s396, %s398
    %p405 = scmp.eq.s32.totalorder %s37, 1
    %p406 = por %p404, %p405
    %p407 = scmp.ne.s32.totalorder %s398, %s399
    %p408 = scmp.eq.s32.totalorder %s37, 0
    %p409 = por %p407, %p408
    %p410 = scmp.ne.s32.totalorder %s398, %s399
    %p411 = scmp.eq.s32.totalorder %s38, 1
    %p412 = por %p410, %p411
    %p414 = scmp.ne.s32.totalorder %s399, %s413
    %p415 = scmp.eq.s32.totalorder %s38, 0
    %p416 = por %p414, %p415
    %s418 = sadd.s32 %s417, 1
    %p421 = scmp.eq.s32.totalorder %s32, 1
    %p422 = scmp.ne.s32.totalorder %s417, %s419
    %p423 = scmp.eq.s32.totalorder %s32, 0
    %p424 = por %p422, %p423
    %p425 = scmp.ne.s32.totalorder %s417, %s419
    %p426 = scmp.eq.s32.totalorder %s37, 1
    %p427 = por %p425, %p426
    %p428 = scmp.ne.s32.totalorder %s419, %s420
    %p429 = scmp.eq.s32.totalorder %s37, 0
    %p430 = por %p428, %p429
    %p431 = scmp.ne.s32.totalorder %s419, %s420
    %p432 = scmp.eq.s32.totalorder %s38, 1
    %p433 = por %p431, %p432
    %p435 = scmp.ne.s32.totalorder %s420, %s434
    %p436 = scmp.eq.s32.totalorder %s38, 0
    %p437 = por %p435, %p436
    %s439 = sadd.s32 %s438, 1
    %p442 = scmp.eq.s32.totalorder %s32, 1
    %p443 = scmp.ne.s32.totalorder %s438, %s440
    %p444 = scmp.eq.s32.totalorder %s32, 0
    %p445 = por %p443, %p444
    %p446 = scmp.ne.s32.totalorder %s438, %s440
    %p447 = scmp.eq.s32.totalorder %s37, 1
    %p448 = por %p446, %p447
    %p449 = scmp.ne.s32.totalorder %s440, %s441
    %p450 = scmp.eq.s32.totalorder %s37, 0
    %p451 = por %p449, %p450
    %p452 = scmp.ne.s32.totalorder %s440, %s441
    %p453 = scmp.eq.s32.totalorder %s38, 1
    %p454 = por %p452, %p453
    %p456 = scmp.ne.s32.totalorder %s441, %s455
    %p457 = scmp.eq.s32.totalorder %s38, 0
    %p458 = por %p456, %p457
    %s460 = sadd.s32 %s459, 1
    %p463 = scmp.eq.s32.totalorder %s32, 1
    %p464 = scmp.ne.s32.totalorder %s459, %s461
    %p465 = scmp.eq.s32.totalorder %s32, 0
    %p466 = por %p464, %p465
    %p467 = scmp.ne.s32.totalorder %s459, %s461
    %p468 = scmp.eq.s32.totalorder %s37, 1
    %p469 = por %p467, %p468
    %p470 = scmp.ne.s32.totalorder %s461, %s462
    %p471 = scmp.eq.s32.totalorder %s37, 0
    %p472 = por %p470, %p471
    %p473 = scmp.ne.s32.totalorder %s461, %s462
    %p474 = scmp.eq.s32.totalorder %s38, 1
    %p475 = por %p473, %p474
    %p477 = scmp.ne.s32.totalorder %s462, %s476
    %p478 = scmp.eq.s32.totalorder %s38, 0
    %p479 = por %p477, %p478
    %s481 = sadd.s32 %s480, 1
    %p484 = scmp.eq.s32.totalorder %s32, 1
    %p485 = scmp.ne.s32.totalorder %s480, %s482
    %p486 = scmp.eq.s32.totalorder %s32, 0
    %p487 = por %p485, %p486
    %p488 = scmp.ne.s32.totalorder %s480, %s482
    %p489 = scmp.eq.s32.totalorder %s37, 1
    %p490 = por %p488, %p489
    %p491 = scmp.ne.s32.totalorder %s482, %s483
    %p492 = scmp.eq.s32.totalorder %s37, 0
    %p493 = por %p491, %p492
    %p494 = scmp.ne.s32.totalorder %s482, %s483
    %p495 = scmp.eq.s32.totalorder %s38, 1
    %p496 = por %p494, %p495
    %p498 = scmp.ne.s32.totalorder %s483, %s497
    %p499 = scmp.eq.s32.totalorder %s38, 0
    %p500 = por %p498, %p499
    %s502 = sadd.s32 %s501, 1
    %p505 = scmp.eq.s32.totalorder %s32, 1
    %p506 = scmp.ne.s32.totalorder %s501, %s503
    %p507 = scmp.eq.s32.totalorder %s32, 0
    %p508 = por %p506, %p507
    %p509 = scmp.ne.s32.totalorder %s501, %s503
    %p510 = scmp.eq.s32.totalorder %s37, 1
    %p511 = por %p509, %p510
    %p512 = scmp.ne.s32.totalorder %s503, %s504
    %p513 = scmp.eq.s32.totalorder %s37, 0
    %p514 = por %p512, %p513
    %p515 = scmp.ne.s32.totalorder %s503, %s504
    %p516 = scmp.eq.s32.totalorder %s38, 1
    %p517 = por %p515, %p516
    %p519 = scmp.ne.s32.totalorder %s504, %s518
    %p520 = scmp.eq.s32.totalorder %s38, 0
    %p521 = por %p519, %p520
    %s523 = sadd.s32 %s522, 1
    %p526 = scmp.eq.s32.totalorder %s32, 1
    %p527 = scmp.ne.s32.totalorder %s522, %s524
    %p528 = scmp.eq.s32.totalorder %s32, 0
    %p529 = por %p527, %p528
    %p530 = scmp.ne.s32.totalorder %s522, %s524
    %p531 = scmp.eq.s32.totalorder %s37, 1
    %p532 = por %p530, %p531
    %p533 = scmp.ne.s32.totalorder %s524, %s525
    %p534 = scmp.eq.s32.totalorder %s37, 0
    %p535 = por %p533, %p534
    %p536 = scmp.ne.s32.totalorder %s524, %s525
    %p537 = scmp.eq.s32.totalorder %s38, 1
    %p538 = por %p536, %p537
    %p540 = scmp.ne.s32.totalorder %s525, %s539
    %p541 = scmp.eq.s32.totalorder %s38, 0
    %p542 = por %p540, %p541
    %s544 = sadd.s32 %s543, 1
    %p547 = scmp.eq.s32.totalorder %s32, 1
    %p548 = scmp.ne.s32.totalorder %s543, %s545
    %p549 = scmp.eq.s32.totalorder %s32, 0
    %p550 = por %p548, %p549
    %p551 = scmp.ne.s32.totalorder %s543, %s545
    %p552 = scmp.eq.s32.totalorder %s37, 1
    %p553 = por %p551, %p552
    %p554 = scmp.ne.s32.totalorder %s545, %s546
    %p555 = scmp.eq.s32.totalorder %s37, 0
    %p556 = por %p554, %p555
    %p557 = scmp.ne.s32.totalorder %s545, %s546
    %p558 = scmp.eq.s32.totalorder %s38, 1
    %p559 = por %p557, %p558
    %p561 = scmp.ne.s32.totalorder %s546, %s560
    %p562 = scmp.eq.s32.totalorder %s38, 0
    %p563 = por %p561, %p562
    %s565 = sadd.s32 %s564, 1
    %p568 = scmp.eq.s32.totalorder %s32, 1
    %p569 = scmp.ne.s32.totalorder %s564, %s566
    %p570 = scmp.eq.s32.totalorder %s32, 0
    %p571 = por %p569, %p570
    %p572 = scmp.ne.s32.totalorder %s564, %s566
    %p573 = scmp.eq.s32.totalorder %s37, 1
    %p574 = por %p572, %p573
    %p575 = scmp.ne.s32.totalorder %s566, %s567
    %p576 = scmp.eq.s32.totalorder %s37, 0
    %p577 = por %p575, %p576
    %p578 = scmp.ne.s32.totalorder %s566, %s567
    %p579 = scmp.eq.s32.totalorder %s38, 1
    %p580 = por %p578, %p579
    %p582 = scmp.ne.s32.totalorder %s567, %s581
    %p583 = scmp.eq.s32.totalorder %s38, 0
    %p584 = por %p582, %p583
    %s586 = sadd.s32 %s585, 1
    %p589 = scmp.eq.s32.totalorder %s32, 1
    %p590 = scmp.ne.s32.totalorder %s585, %s587
    %p591 = scmp.eq.s32.totalorder %s32, 0
    %p592 = por %p590, %p591
    %p593 = scmp.ne.s32.totalorder %s585, %s587
    %p594 = scmp.eq.s32.totalorder %s37, 1
    %p595 = por %p593, %p594
    %p596 = scmp.ne.s32.totalorder %s587, %s588
    %p597 = scmp.eq.s32.totalorder %s37, 0
    %p598 = por %p596, %p597
    %p599 = scmp.ne.s32.totalorder %s587, %s588
    %p600 = scmp.eq.s32.totalorder %s38, 1
    %p601 = por %p599, %p600
    %p603 = scmp.ne.s32.totalorder %s588, %s602
    %p604 = scmp.eq.s32.totalorder %s38, 0
    %p605 = por %p603, %p604
    %s606 = ssub.s32 %s32, %s39
    %p607 = scmp.eq.s32.totalorder %s606, 0
    %s609 = sadd.s32 %s608, 1
    %s610 = scalar_select %p607, %s608, %s609
    %p613 = pneg %p607
    %p614 = scmp.eq.s32.totalorder %s32, 1
    %p615 = por %p613, %p614
    %p616 = scmp.ne.s32.totalorder %s608, %s611
    %p617 = scmp.eq.s32.totalorder %s32, 0
    %p618 = por %p616, %p617
    %p619 = scmp.ne.s32.totalorder %s608, %s611
    %p620 = scmp.eq.s32.totalorder %s37, 1
    %p621 = por %p619, %p620
    %p622 = scmp.ne.s32.totalorder %s611, %s612
    %p623 = scmp.eq.s32.totalorder %s37, 0
    %p624 = por %p622, %p623
    %p625 = scmp.ne.s32.totalorder %s611, %s612
    %p626 = scmp.eq.s32.totalorder %s38, 1
    %p627 = por %p625, %p626
    %p629 = scmp.ne.s32.totalorder %s612, %s628
    %p630 = scmp.eq.s32.totalorder %s38, 0
    %p631 = por %p629, %p630
    %p632 = scmp.le.s32.totalorder 1, %s32
    %p633 = scmp.lt.s32.totalorder %s32, 3
    %p634 = pnand %p632, %p633
    %p635 = pneg %p634
    // Predicated region
    $region9: #{_lambda_.8} parent=5 // pred_check
      _
    $region10: #{_lambda_.8} parent=5 // pred_check_branch
      %637 = sbr.rel (%p634) target = $region12
    $region11: #{_lambda_.8} parent=5 // pred_region
      %s638 = ssub.s32 %s32, 1
      // Predicated region
      $region13: #{_lambda_.8} parent=11 // pred_check
        %p639 = pneg %p157
      $region14: #{_lambda_.8} parent=11 // pred_check_branch
        %641 = sbr.rel (%p639) target = $region16
      $region15: #{_lambda_.8} parent=11 // pred_region
        _
      $region16: #{_lambda_.8} parent=11 // pred_fallthru
        _
      // Predicated region
      $region17: #{_lambda_.8} parent=11 // pred_check
        %p642 = pneg %p178
      $region18: #{_lambda_.8} parent=11 // pred_check_branch
        %644 = sbr.rel (%p642) target = $region20
      $region19: #{_lambda_.8} parent=11 // pred_region
        _
      $region20: #{_lambda_.8} parent=11 // pred_fallthru
        _
      // Predicated region
      $region21: #{_lambda_.8} parent=11 // pred_check
        %p645 = pneg %p199
      $region22: #{_lambda_.8} parent=11 // pred_check_branch
        %647 = sbr.rel (%p645) target = $region24
      $region23: #{_lambda_.8} parent=11 // pred_region
        _
      $region24: #{_lambda_.8} parent=11 // pred_fallthru
        _
      // Predicated region
      $region25: #{_lambda_.8} parent=11 // pred_check
        %p648 = pneg %p220
      $region26: #{_lambda_.8} parent=11 // pred_check_branch
        %650 = sbr.rel (%p648) target = $region28
      $region27: #{_lambda_.8} parent=11 // pred_region
        _
      $region28: #{_lambda_.8} parent=11 // pred_fallthru
        _
      // Predicated region
      $region29: #{_lambda_.8} parent=11 // pred_check
        %p651 = pneg %p241
      $region30: #{_lambda_.8} parent=11 // pred_check_branch
        %653 = sbr.rel (%p651) target = $region32
      $region31: #{_lambda_.8} parent=11 // pred_region
        _
      $region32: #{_lambda_.8} parent=11 // pred_fallthru
        _
      // Predicated region
      $region33: #{_lambda_.8} parent=11 // pred_check
        %p654 = pneg %p262
      $region34: #{_lambda_.8} parent=11 // pred_check_branch
        %656 = sbr.rel (%p654) target = $region36
      $region35: #{_lambda_.8} parent=11 // pred_region
        _
      $region36: #{_lambda_.8} parent=11 // pred_fallthru
        _
      // Predicated region
      $region37: #{_lambda_.8} parent=11 // pred_check
        %p657 = pneg %p283
      $region38: #{_lambda_.8} parent=11 // pred_check_branch
        %659 = sbr.rel (%p657) target = $region40
      $region39: #{_lambda_.8} parent=11 // pred_region
        _
      $region40: #{_lambda_.8} parent=11 // pred_fallthru
        _
      // Predicated region
      $region41: #{_lambda_.8} parent=11 // pred_check
        %p660 = pneg %p304
      $region42: #{_lambda_.8} parent=11 // pred_check_branch
        %662 = sbr.rel (%p660) target = $region44
      $region43: #{_lambda_.8} parent=11 // pred_region
        _
      $region44: #{_lambda_.8} parent=11 // pred_fallthru
        _
      // Predicated region
      $region45: #{_lambda_.8} parent=11 // pred_check
        %p663 = pneg %p325
      $region46: #{_lambda_.8} parent=11 // pred_check_branch
        %665 = sbr.rel (%p663) target = $region48
      $region47: #{_lambda_.8} parent=11 // pred_region
        _
      $region48: #{_lambda_.8} parent=11 // pred_fallthru
        _
      // Predicated region
      $region49: #{_lambda_.8} parent=11 // pred_check
        %p666 = pneg %p346
      $region50: #{_lambda_.8} parent=11 // pred_check_branch
        %668 = sbr.rel (%p666) target = $region52
      $region51: #{_lambda_.8} parent=11 // pred_region
        _
      $region52: #{_lambda_.8} parent=11 // pred_fallthru
        _
      // Predicated region
      $region53: #{_lambda_.8} parent=11 // pred_check
        %p669 = pneg %p367
      $region54: #{_lambda_.8} parent=11 // pred_check_branch
        %671 = sbr.rel (%p669) target = $region56
      $region55: #{_lambda_.8} parent=11 // pred_region
        _
      $region56: #{_lambda_.8} parent=11 // pred_fallthru
        _
      // Predicated region
      $region57: #{_lambda_.8} parent=11 // pred_check
        %p672 = pneg %p388
      $region58: #{_lambda_.8} parent=11 // pred_check_branch
        %674 = sbr.rel (%p672) target = $region60
      $region59: #{_lambda_.8} parent=11 // pred_region
        _
      $region60: #{_lambda_.8} parent=11 // pred_fallthru
        _
      // Predicated region
      $region61: #{_lambda_.8} parent=11 // pred_check
        %p675 = pneg %p409
      $region62: #{_lambda_.8} parent=11 // pred_check_branch
        %677 = sbr.rel (%p675) target = $region64
      $region63: #{_lambda_.8} parent=11 // pred_region
        _
      $region64: #{_lambda_.8} parent=11 // pred_fallthru
        _
      // Predicated region
      $region65: #{_lambda_.8} parent=11 // pred_check
        %p678 = pneg %p430
      $region66: #{_lambda_.8} parent=11 // pred_check_branch
        %680 = sbr.rel (%p678) target = $region68
      $region67: #{_lambda_.8} parent=11 // pred_region
        _
      $region68: #{_lambda_.8} parent=11 // pred_fallthru
        _
      // Predicated region
      $region69: #{_lambda_.8} parent=11 // pred_check
        %p681 = pneg %p451
      $region70: #{_lambda_.8} parent=11 // pred_check_branch
        %683 = sbr.rel (%p681) target = $region72
      $region71: #{_lambda_.8} parent=11 // pred_region
        _
      $region72: #{_lambda_.8} parent=11 // pred_fallthru
        _
      // Predicated region
      $region73: #{_lambda_.8} parent=11 // pred_check
        %p684 = pneg %p472
      $region74: #{_lambda_.8} parent=11 // pred_check_branch
        %686 = sbr.rel (%p684) target = $region76
      $region75: #{_lambda_.8} parent=11 // pred_region
        _
      $region76: #{_lambda_.8} parent=11 // pred_fallthru
        _
      // Predicated region
      $region77: #{_lambda_.8} parent=11 // pred_check
        %p687 = pneg %p493
      $region78: #{_lambda_.8} parent=11 // pred_check_branch
        %689 = sbr.rel (%p687) target = $region80
      $region79: #{_lambda_.8} parent=11 // pred_region
        _
      $region80: #{_lambda_.8} parent=11 // pred_fallthru
        _
      // Predicated region
      $region81: #{_lambda_.8} parent=11 // pred_check
        %p690 = pneg %p514
      $region82: #{_lambda_.8} parent=11 // pred_check_branch
        %692 = sbr.rel (%p690) target = $region84
      $region83: #{_lambda_.8} parent=11 // pred_region
        _
      $region84: #{_lambda_.8} parent=11 // pred_fallthru
        _
      // Predicated region
      $region85: #{_lambda_.8} parent=11 // pred_check
        %p693 = pneg %p535
      $region86: #{_lambda_.8} parent=11 // pred_check_branch
        %695 = sbr.rel (%p693) target = $region88
      $region87: #{_lambda_.8} parent=11 // pred_region
        _
      $region88: #{_lambda_.8} parent=11 // pred_fallthru
        _
      // Predicated region
      $region89: #{_lambda_.8} parent=11 // pred_check
        %p696 = pneg %p556
      $region90: #{_lambda_.8} parent=11 // pred_check_branch
        %698 = sbr.rel (%p696) target = $region92
      $region91: #{_lambda_.8} parent=11 // pred_region
        _
      $region92: #{_lambda_.8} parent=11 // pred_fallthru
        _
      // Predicated region
      $region93: #{_lambda_.8} parent=11 // pred_check
        %p699 = pneg %p577
      $region94: #{_lambda_.8} parent=11 // pred_check_branch
        %701 = sbr.rel (%p699) target = $region96
      $region95: #{_lambda_.8} parent=11 // pred_region
        _
      $region96: #{_lambda_.8} parent=11 // pred_fallthru
        _
      // Predicated region
      $region97: #{_lambda_.8} parent=11 // pred_check
        %p702 = pneg %p598
      $region98: #{_lambda_.8} parent=11 // pred_check_branch
        %704 = sbr.rel (%p702) target = $region100
      $region99: #{_lambda_.8} parent=11 // pred_region
        _
      $region100: #{_lambda_.8} parent=11 // pred_fallthru
        _
    $region12: #{_lambda_.8} parent=5 // pred_fallthru
      _
    %p705 = scmp.lt.s32.totalorder %s32, 2
    // Predicated region
    $region101: #{_lambda_.8} parent=5 // pred_check
      %p706 = pneg %p705
    $region102: #{_lambda_.8} parent=5 // pred_check_branch
      %708 = sbr.rel (%p706) target = $region104
    $region103: #{_lambda_.8} parent=5 // pred_region
      // Predicated region
      $region105: #{_lambda_.8} parent=103 // pred_check
        %p709 = pneg %p52
      $region106: #{_lambda_.8} parent=103 // pred_check_branch
        %711 = sbr.rel (%p709) target = $region108
      $region107: #{_lambda_.8} parent=103 // pred_region
        %p712 = scmp.lt.s32.totalorder %s32, 1
        %s713 = scalar_select %p712, %s32, 1
        %s714 = smul.addr %s713, 8
        %s715 = scalar_lea.vmem %s0, %s714
      $region108: #{_lambda_.8} parent=103 // pred_fallthru
        _
      // Predicated region
      $region109: #{_lambda_.8} parent=103 // pred_check
        %p716 = pneg %p78
      $region110: #{_lambda_.8} parent=103 // pred_check_branch
        %718 = sbr.rel (%p716) target = $region112
      $region111: #{_lambda_.8} parent=103 // pred_region
        %p719 = scmp.lt.s32.totalorder %s32, 1
        %s720 = scalar_select %p719, %s32, 1
        %s721 = smul.addr %s720, 8
        %s722 = scalar_lea.vmem %s1, %s721
      $region112: #{_lambda_.8} parent=103 // pred_fallthru
        _
      // Predicated region
      $region113: #{_lambda_.8} parent=103 // pred_check
        %p723 = pneg %p104
      $region114: #{_lambda_.8} parent=103 // pred_check_branch
        %725 = sbr.rel (%p723) target = $region116
      $region115: #{_lambda_.8} parent=103 // pred_region
        %p726 = scmp.lt.s32.totalorder %s32, 1
        %s727 = scalar_select %p726, %s32, 1
        %s728 = scalar_lea.vmem %s2, %s727
      $region116: #{_lambda_.8} parent=103 // pred_fallthru
        _
      // Predicated region
      $region117: #{_lambda_.8} parent=103 // pred_check
        %p729 = pneg %p130
      $region118: #{_lambda_.8} parent=103 // pred_check_branch
        %731 = sbr.rel (%p729) target = $region120
      $region119: #{_lambda_.8} parent=103 // pred_region
        %p732 = scmp.lt.s32.totalorder %s32, 1
        %s733 = scalar_select %p732, %s32, 1
        %s734 = scalar_lea.vmem %s3, %s733
      $region120: #{_lambda_.8} parent=103 // pred_fallthru
        _
    $region104: #{_lambda_.8} parent=5 // pred_fallthru
      _
    %p735 = scmp.le.s32.totalorder 1, %s32
    %p736 = scmp.lt.s32.totalorder %s32, 3
    %p737 = pnand %p735, %p736
    %p738 = pneg %p737
    // Predicated region
    $region121: #{_lambda_.8} parent=5 // pred_check
      _
    $region122: #{_lambda_.8} parent=5 // pred_check_branch
      %740 = sbr.rel (%p737) target = $region124
    $region123: #{_lambda_.8} parent=5 // pred_region
      %s741 = ssub.s32 %s32, 1
      %p742 = scmp.lt.s32.totalorder %s37, 1
      %s743 = scalar_select %p742, %s37, 1
      %s744 = smul.addr %s743, 8
      %s745 = scalar_lea.vmem %s0, %s744
      %p746 = pneg %p58
      %p747 = pneg %p55
      %p748 = scmp.lt.s32.totalorder %s37, 1
      %s749 = scalar_select %p748, %s37, 1
      %s750 = smul.addr %s749, 8
      %s751 = scalar_lea.vmem %s1, %s750
      %p752 = pneg %p84
      %p753 = pneg %p81
      %p754 = scmp.lt.s32.totalorder %s37, 1
      %s755 = scalar_select %p754, %s37, 1
      %s756 = scalar_lea.vmem %s2, %s755
      %p757 = pneg %p110
      %p758 = pneg %p107
      %p759 = scmp.lt.s32.totalorder %s37, 1
      %s760 = scalar_select %p759, %s37, 1
      %s761 = scalar_lea.vmem %s3, %s760
      %p762 = pneg %p136
      %p763 = pneg %p133
      %p764 = pneg %p157
      %p765 = pneg %p154
      %p766 = pneg %p178
      %p767 = pneg %p175
      %p768 = pneg %p199
      %p769 = pneg %p196
      %p770 = pneg %p220
      %p771 = pneg %p217
      %p772 = pneg %p241
      %p773 = pneg %p238
      %p774 = pneg %p262
      %p775 = pneg %p259
      %p776 = pneg %p283
      %p777 = pneg %p280
      %p778 = pneg %p304
      %p779 = pneg %p301
      %p780 = pneg %p325
      %p781 = pneg %p322
      %p782 = pneg %p346
      %p783 = pneg %p343
      %p784 = pneg %p367
      %p785 = pneg %p364
      %p786 = pneg %p388
      %p787 = pneg %p385
      %p788 = pneg %p409
      %p789 = pneg %p406
      %p790 = pneg %p430
      %p791 = pneg %p427
      %p792 = pneg %p451
      %p793 = pneg %p448
      %p794 = pneg %p472
      %p795 = pneg %p469
      %p796 = pneg %p493
      %p797 = pneg %p490
      %p798 = pneg %p514
      %p799 = pneg %p511
      %p800 = pneg %p535
      %p801 = pneg %p532
      %p802 = pneg %p556
      %p803 = pneg %p553
      %p804 = pneg %p577
      %p805 = pneg %p574
      %p806 = pneg %p598
      %p807 = pneg %p595
      %p808 = pneg %p624
      %p809 = pneg %p621
      %p810 = scmp.lt.s32.totalorder %s37, 1
      %s811 = scalar_select %p810, %s37, 1
      %s812 = smul.addr %s811, 8
      %s813 = scalar_lea.vmem %s26, %s812
      %p814 = scmp.lt.s32.totalorder %s37, 1
      %s815 = scalar_select %p814, %s37, 1
      %s816 = smul.addr %s815, 8
      %s817 = scalar_lea.vmem %s0, %s816
      %p818 = scmp.lt.s32.totalorder %s37, 1
      %s819 = scalar_select %p818, %s37, 1
      %s820 = smul.addr %s819, 8
      %s821 = scalar_lea.vmem %s1, %s820
      %p822 = scmp.lt.s32.totalorder %s37, 1
      %s823 = scalar_select %p822, %s37, 1
      %s824 = scalar_lea.vmem %s2, %s823
      %p825 = scmp.lt.s32.totalorder %s37, 1
      %s826 = scalar_select %p825, %s37, 1
      %s827 = scalar_lea.vmem %s3, %s826
      %p828 = scmp.lt.s32.totalorder %s37, 1
      %s829 = scalar_select %p828, %s37, 1
      %s830 = smul.addr %s829, 8
      %s831 = scalar_lea.vmem %s26, %s830
      %v833 = vld [vmem:[%s817] sm:$0xff]
      %v834 = vld [vmem:[%s821] sm:$0xff]
      %v835 = vld [vmem:[%s824] sm:$0x1]
      %v836 = vunpack.c.0.s8 %v835
      %v837 = vcvt.s32.f32 %v836
      %v838 = vlaneseq
      %v839 = vshrl.u32 %v838, 7
      %v840 = vlaneseq
      %v841 = vand.u32 %v840, 127
      %vm842 = vcmp.ge.s32.totalorder %v839, %v841
      %v843 = vsel %vm842, 1.0, 0.0
      %v844 = vperm.slane %v837, 0
      %v845 = vmul.f32 %v843, %v844
      %v846 = vsub.f32 1.0, %v845
      %v847 = vmul.f32 %v846, -1e+09
      %v848 = vpack.c.bf16 %v833, %v833
      %v849 = vld [vmem:[%s4] sm:$0xf]
      %v850 = vld [vmem:[%s4 + $0x4] sm:$0xf]
      %v851 = vld [vmem:[%s4 + $0x8] sm:$0xf]
      %v852 = vld [vmem:[%s4 + $0xc] sm:$0xf]
      %v853 = vld [vmem:[%s4 + $0x10] sm:$0xf]
      %v854 = vld [vmem:[%s4 + $0x14] sm:$0xf]
      %v855 = vld [vmem:[%s4 + $0x18] sm:$0xf]
      %v856 = vld [vmem:[%s4 + $0x1c] sm:$0xf]
      %v857 = vld [vmem:[%s4 + $0x20] sm:$0xf]
      %v858 = vld [vmem:[%s4 + $0x24] sm:$0xf]
      %v859 = vld [vmem:[%s4 + $0x28] sm:$0xf]
      %v860 = vld [vmem:[%s4 + $0x2c] sm:$0xf]
      %v861 = vld [vmem:[%s4 + $0x30] sm:$0xf]
      %v862 = vld [vmem:[%s4 + $0x34] sm:$0xf]
      %v863 = vld [vmem:[%s4 + $0x38] sm:$0xf]
      %v864 = vld [vmem:[%s4 + $0x3c] sm:$0xf]
      %v865 = vld [vmem:[%s5] sm:$0x1]
      %v867 = vperm.slane %v865, 0
      %v885 = vunpack.c.l.b16 %v849
      %v886 = vunpack.c.l.b16 %v850
      %v887 = vunpack.c.l.b16 %v851
      %v888 = vunpack.c.l.b16 %v852
      %v889 = vunpack.c.l.b16 %v853
      %v890 = vunpack.c.l.b16 %v854
      %v891 = vunpack.c.l.b16 %v855
      %v892 = vunpack.c.l.b16 %v856
      %v893 = vunpack.c.l.b16 %v857
      %v894 = vunpack.c.l.b16 %v858
      %v895 = vunpack.c.l.b16 %v859
      %v896 = vunpack.c.l.b16 %v860
      %v897 = vunpack.c.l.b16 %v861
      %v898 = vunpack.c.l.b16 %v862
      %v899 = vunpack.c.l.b16 %v863
      %v900 = vunpack.c.l.b16 %v864
      %v901 = vpack.c.b16 %v886, %v885
      %v902 = vpack.c.b16 %v888, %v887
      %v903 = vpack.c.b16 %v890, %v889
      %v904 = vpack.c.b16 %v892, %v891
      %v905 = vpack.c.b16 %v894, %v893
      %v906 = vpack.c.b16 %v896, %v895
      %v907 = vpack.c.b16 %v898, %v897
      %v908 = vpack.c.b16 %v900, %v899
      %917 = vmatpush.bf16.msra.mxu0 %v908
      %918 = vmatpush.bf16.msra.mxu0 %v907
      %919 = vmatpush.bf16.msra.mxu0 %v906
      %920 = vmatpush.bf16.msra.mxu0 %v905
      %921 = vmatpush.bf16.msra.mxu0 %v904
      %922 = vmatpush.bf16.msra.mxu0 %v903
      %923 = vmatpush.bf16.msra.mxu0 %v902
      %924 = vmatpush.bf16.msra.mxu0 %v901
      %925 = vmatmul.bf16.gmra.mxu0 %v848
      %v926 = vpop.f32.mrf.mxu0
      %v927 = vadd.f32 %v867, %v926
      %v928 = vpop.f32.mrf.mxu0
      %929 = vdwg.mxu0
      %v930 = vld [vmem:[%s6] sm:$0xff]
      %v931 = vld [vmem:[%s6 + $0x8] sm:$0xff]
      %v932 = vld [vmem:[%s6 + $0x10] sm:$0xff]
      %v933 = vld [vmem:[%s6 + $0x18] sm:$0xff]
      %v934 = vld [vmem:[%s6 + $0x20] sm:$0xff]
      %v935 = vld [vmem:[%s6 + $0x28] sm:$0xff]
      %v936 = vld [vmem:[%s6 + $0x30] sm:$0xff]
      %v937 = vld [vmem:[%s6 + $0x38] sm:$0xff]
      %v938 = vld [vmem:[%s6 + $0x40] sm:$0xff]
      %v939 = vld [vmem:[%s6 + $0x48] sm:$0xff]
      %v940 = vld [vmem:[%s6 + $0x50] sm:$0xff]
      %v941 = vld [vmem:[%s6 + $0x58] sm:$0xff]
      %v942 = vld [vmem:[%s6 + $0x60] sm:$0xff]
      %v943 = vld [vmem:[%s6 + $0x68] sm:$0xff]
      %v944 = vld [vmem:[%s6 + $0x70] sm:$0xff]
      %v945 = vld [vmem:[%s6 + $0x78] sm:$0xff]
      %v946 = vld [vmem:[%s7] sm:$0x3]
      %v948 = vperm.slane %v946, 0
      %v949 = vperm.slane %v946, 1
      %v968 = vunpack.c.l.b16 %v930
      %v969 = vunpack.c.h.b16 %v930
      %v970 = vunpack.c.l.b16 %v931
      %v971 = vunpack.c.h.b16 %v931
      %v972 = vunpack.c.l.b16 %v932
      %v973 = vunpack.c.h.b16 %v932
      %v974 = vunpack.c.l.b16 %v933
      %v975 = vunpack.c.h.b16 %v933
      %v976 = vunpack.c.l.b16 %v934
      %v977 = vunpack.c.h.b16 %v934
      %v978 = vunpack.c.l.b16 %v935
      %v979 = vunpack.c.h.b16 %v935
      %v980 = vunpack.c.l.b16 %v936
      %v981 = vunpack.c.h.b16 %v936
      %v982 = vunpack.c.l.b16 %v937
      %v983 = vunpack.c.h.b16 %v937
      %v984 = vunpack.c.l.b16 %v938
      %v985 = vunpack.c.h.b16 %v938
      %v986 = vunpack.c.l.b16 %v939
      %v987 = vunpack.c.h.b16 %v939
      %v988 = vunpack.c.l.b16 %v940
      %v989 = vunpack.c.h.b16 %v940
      %v990 = vunpack.c.l.b16 %v941
      %v991 = vunpack.c.h.b16 %v941
      %v992 = vunpack.c.l.b16 %v942
      %v993 = vunpack.c.h.b16 %v942
      %v994 = vunpack.c.l.b16 %v943
      %v995 = vunpack.c.h.b16 %v943
      %v996 = vunpack.c.l.b16 %v944
      %v997 = vunpack.c.h.b16 %v944
      %v998 = vunpack.c.l.b16 %v945
      %v999 = vunpack.c.h.b16 %v945
      %v1000 = vpack.c.b16 %v970, %v968
      %v1001 = vpack.c.b16 %v971, %v969
      %v1002 = vpack.c.b16 %v974, %v972
      %v1003 = vpack.c.b16 %v975, %v973
      %v1004 = vpack.c.b16 %v978, %v976
      %v1005 = vpack.c.b16 %v979, %v977
      %v1006 = vpack.c.b16 %v982, %v980
      %v1007 = vpack.c.b16 %v983, %v981
      %v1008 = vpack.c.b16 %v986, %v984
      %v1009 = vpack.c.b16 %v987, %v985
      %v1010 = vpack.c.b16 %v990, %v988
      %v1011 = vpack.c.b16 %v991, %v989
      %v1012 = vpack.c.b16 %v994, %v992
      %v1013 = vpack.c.b16 %v995, %v993
      %v1014 = vpack.c.b16 %v998, %v996
      %v1015 = vpack.c.b16 %v999, %v997
      %1032 = vmatpush.bf16.msra.mxu0 %v1014
      %1033 = vmatpush.bf16.msra.mxu0 %v1012
      %1034 = vmatpush.bf16.msra.mxu0 %v1010
      %1035 = vmatpush.bf16.msra.mxu0 %v1008
      %1036 = vmatpush.bf16.msra.mxu0 %v1006
      %1037 = vmatpush.bf16.msra.mxu0 %v1004
      %1038 = vmatpush.bf16.msra.mxu0 %v1002
      %1039 = vmatpush.bf16.msra.mxu0 %v1000
      %1040 = vmatmul.bf16.gmra.mxu0 %v848
      %v1041 = vpop.f32.mrf.mxu0
      %v1042 = vadd.f32 %v948, %v1041
      %v1043 = vpop.f32.mrf.mxu0
      %1044 = vdwg.mxu0
      %1045 = vmatpush.bf16.msra.mxu0 %v1015
      %1046 = vmatpush.bf16.msra.mxu0 %v1013
      %1047 = vmatpush.bf16.msra.mxu0 %v1011
      %1048 = vmatpush.bf16.msra.mxu0 %v1009
      %1049 = vmatpush.bf16.msra.mxu0 %v1007
      %1050 = vmatpush.bf16.msra.mxu0 %v1005
      %1051 = vmatpush.bf16.msra.mxu0 %v1003
      %1052 = vmatpush.bf16.msra.mxu0 %v1001
      %1053 = vmatmul.bf16.gmra.mxu0 %v848
      %v1054 = vpop.f32.mrf.mxu0
      %v1055 = vadd.f32 %v949, %v1054
      %v1056 = vpop.f32.mrf.mxu0
      %1057 = vdwg.mxu0
      %v1058 = vpack.c.bf16 %v927, %v927
      %v1059 = vpack.c.bf16 %v1042, %v1042
      %v1060 = vpack.c.bf16 %v1055, %v1055
      %1062 = vrot.lane.b32.xlu0 %v1058, 96
      %v1063 = vpop.permute.xlu0 %1062
      %1064 = vrot.lane.b32.xlu0 %v1058, 64
      %v1065 = vpop.permute.xlu0 %1064
      %1066 = vrot.lane.b32.xlu0 %v1058, 32
      %v1067 = vpop.permute.xlu0 %1066
      %1069 = vrot.lane.b32.xlu0 %v1059, 96
      %v1070 = vpop.permute.xlu0 %1069
      %1071 = vrot.lane.b32.xlu0 %v1059, 64
      %v1072 = vpop.permute.xlu0 %1071
      %1073 = vrot.lane.b32.xlu0 %v1059, 32
      %v1074 = vpop.permute.xlu0 %1073
      %1076 = vrot.lane.b32.xlu0 %v1060, 96
      %v1077 = vpop.permute.xlu0 %1076
      %1078 = vrot.lane.b32.xlu0 %v1060, 64
      %v1079 = vpop.permute.xlu0 %1078
      %1080 = vrot.lane.b32.xlu0 %v1060, 32
      %v1081 = vpop.permute.xlu0 %1080
      %vm1082 = vcmask 261120
      %v1084 = vsel %vm1082, %v1058, 0
      %v1087 = vsel %vm1082, %v1059, 0
      %1089 = vmatpush.bf16.xpose.msra.mxu0 0
      %1090 = vmatpush.bf16.xpose.msra.mxu0 0
      %1091 = vmatpush.bf16.xpose.msra.mxu0 0
      %1092 = vmatpush.bf16.xpose.msra.mxu0 0
      %1093 = vmatpush.bf16.xpose.msra.mxu0 0
      %1094 = vmatpush.bf16.xpose.msra.mxu0 0
      %1095 = vmatpush.bf16.xpose.msra.mxu0 0
      %1096 = vmatpush.bf16.xpose.msra.mxu0 %v1087
      %1097 = vmatmul.bf16.gmra.mxu0 %v1084
      %v1098 = vpop.f32.mrf.mxu0
      %v1099 = vadd.f32 0.0, %v1098
      %v1100 = vpop.f32.mrf.mxu0
      %1101 = vdwg.mxu0
      %v1103 = vsel %vm1082, %v1063, 0
      %v1106 = vsel %vm1082, %v1070, 0
      %1108 = vmatpush.bf16.xpose.msra.mxu0 0
      %1109 = vmatpush.bf16.xpose.msra.mxu0 0
      %1110 = vmatpush.bf16.xpose.msra.mxu0 0
      %1111 = vmatpush.bf16.xpose.msra.mxu0 0
      %1112 = vmatpush.bf16.xpose.msra.mxu0 0
      %1113 = vmatpush.bf16.xpose.msra.mxu0 0
      %1114 = vmatpush.bf16.xpose.msra.mxu0 0
      %1115 = vmatpush.bf16.xpose.msra.mxu0 %v1106
      %1116 = vmatmul.bf16.gmra.mxu0 %v1103
      %v1117 = vpop.f32.mrf.mxu0
      %v1118 = vadd.f32 0.0, %v1117
      %v1119 = vpop.f32.mrf.mxu0
      %1120 = vdwg.mxu0
      %v1122 = vsel %vm1082, %v1065, 0
      %v1125 = vsel %vm1082, %v1072, 0
      %1127 = vmatpush.bf16.xpose.msra.mxu0 0
      %1128 = vmatpush.bf16.xpose.msra.mxu0 0
      %1129 = vmatpush.bf16.xpose.msra.mxu0 0
      %1130 = vmatpush.bf16.xpose.msra.mxu0 0
      %1131 = vmatpush.bf16.xpose.msra.mxu0 0
      %1132 = vmatpush.bf16.xpose.msra.mxu0 0
      %1133 = vmatpush.bf16.xpose.msra.mxu0 0
      %1134 = vmatpush.bf16.xpose.msra.mxu0 %v1125
      %1135 = vmatmul.bf16.gmra.mxu0 %v1122
      %v1136 = vpop.f32.mrf.mxu0
      %v1137 = vadd.f32 0.0, %v1136
      %v1138 = vpop.f32.mrf.mxu0
      %1139 = vdwg.mxu0
      %v1141 = vsel %vm1082, %v1067, 0
      %v1144 = vsel %vm1082, %v1074, 0
      %1146 = vmatpush.bf16.xpose.msra.mxu0 0
      %1147 = vmatpush.bf16.xpose.msra.mxu0 0
      %1148 = vmatpush.bf16.xpose.msra.mxu0 0
      %1149 = vmatpush.bf16.xpose.msra.mxu0 0
      %1150 = vmatpush.bf16.xpose.msra.mxu0 0
      %1151 = vmatpush.bf16.xpose.msra.mxu0 0
      %1152 = vmatpush.bf16.xpose.msra.mxu0 0
      %1153 = vmatpush.bf16.xpose.msra.mxu0 %v1144
      %1154 = vmatmul.bf16.gmra.mxu0 %v1141
      %v1155 = vpop.f32.mrf.mxu0
      %v1156 = vadd.f32 0.0, %v1155
      %v1157 = vpop.f32.mrf.mxu0
      %1158 = vdwg.mxu0
      %v1159 = vmul.f32 %v1099, 0.35355338
      %v1160 = vmul.f32 %v1118, 0.35355338
      %v1161 = vmul.f32 %v1137, 0.35355338
      %v1162 = vmul.f32 %v1156, 0.35355338
      %v1163 = vadd.f32 %v1159, %v847
      %v1164 = vadd.f32 %v1160, %v847
      %v1165 = vadd.f32 %v1161, %v847
      %v1166 = vadd.f32 %v1162, %v847
      %vm1167 = vcmask 64512
      %v1168 = vsel %vm1167, %v1163, -inf
      %1169 = vmax.xlane.f32.xlu0 %v1168
      %v1170 = vpop.xlane.xlu0 %1169
      %v1171 = vsel %vm1167, %v1164, -inf
      %1172 = vmax.xlane.f32.xlu0 %v1171
      %v1173 = vpop.xlane.xlu0 %1172
      %v1174 = vsel %vm1167, %v1165, -inf
      %1175 = vmax.xlane.f32.xlu0 %v1174
      %v1176 = vpop.xlane.xlu0 %1175
      %v1177 = vsel %vm1167, %v1166, -inf
      %1178 = vmax.xlane.f32.xlu0 %v1177
      %v1179 = vpop.xlane.xlu0 %1178
      %v1180 = vsub.f32 %v1163, %v1170
      %v1181 = vsub.f32 %v1164, %v1173
      %v1182 = vsub.f32 %v1165, %v1176
      %v1183 = vsub.f32 %v1166, %v1179
      %v1184 = vmul.f32 %v1180, 1.442695
      %v1185 = vpow.pop %v1184
      %v1186 = vmul.f32 %v1181, 1.442695
      %v1187 = vpow.pop %v1186
      %v1188 = vmul.f32 %v1182, 1.442695
      %v1189 = vpow.pop %v1188
      %v1190 = vmul.f32 %v1183, 1.442695
      %v1191 = vpow.pop %v1190
      %v1192 = vsel %vm1167, %v1185, 0.0
      %1193 = vadd.xlane.f32.xlu0 %v1192
      %v1194 = vpop.xlane.xlu0 %1193
      %v1195 = vsel %vm1167, %v1187, 0.0
      %1196 = vadd.xlane.f32.xlu0 %v1195
      %v1197 = vpop.xlane.xlu0 %1196
      %v1198 = vsel %vm1167, %v1189, 0.0
      %1199 = vadd.xlane.f32.xlu0 %v1198
      %v1200 = vpop.xlane.xlu0 %1199
      %v1201 = vsel %vm1167, %v1191, 0.0
      %1202 = vadd.xlane.f32.xlu0 %v1201
      %v1203 = vpop.xlane.xlu0 %1202
      %v1204 = vrcp.pop %v1194
      %v1205 = vrcp.pop %v1197
      %v1206 = vrcp.pop %v1200
      %v1207 = vrcp.pop %v1203
      %v1208 = vmul.f32 %v1185, %v1204
      %v1209 = vmul.f32 %v1187, %v1205
      %v1210 = vmul.f32 %v1189, %v1206
      %v1211 = vmul.f32 %v1191, %v1207
      %v1212 = vpack.c.bf16 %v1208, %v1208
      %v1213 = vpack.c.bf16 %v1209, %v1209
      %v1214 = vpack.c.bf16 %v1210, %v1210
      %v1215 = vpack.c.bf16 %v1211, %v1211
      %v1217 = vsel %vm1167, %v1212, 0
      %vm1219 = vcmask 1043456
      %v1221 = vsel %vm1219, %v1060, 0
      %1223 = vmatpush.bf16.msra.mxu0 0
      %1224 = vmatpush.bf16.msra.mxu0 0
      %1225 = vmatpush.bf16.msra.mxu0 0
      %1226 = vmatpush.bf16.msra.mxu0 0
      %1227 = vmatpush.bf16.msra.mxu0 0
      %1228 = vmatpush.bf16.msra.mxu0 0
      %1229 = vmatpush.bf16.msra.mxu0 0
      %1230 = vmatpush.bf16.msra.mxu0 %v1221
      %1231 = vmatmul.bf16.gmra.mxu0 %v1217
      %v1232 = vpop.f32.mrf.mxu0
      %v1233 = vadd.f32 0.0, %v1232
      %v1234 = vpop.f32.mrf.mxu0
      %1235 = vdwg.mxu0
      %v1237 = vsel %vm1167, %v1213, 0
      %v1240 = vsel %vm1219, %v1077, 0
      %1242 = vmatpush.bf16.msra.mxu0 0
      %1243 = vmatpush.bf16.msra.mxu0 0
      %1244 = vmatpush.bf16.msra.mxu0 0
      %1245 = vmatpush.bf16.msra.mxu0 0
      %1246 = vmatpush.bf16.msra.mxu0 0
      %1247 = vmatpush.bf16.msra.mxu0 0
      %1248 = vmatpush.bf16.msra.mxu0 0
      %1249 = vmatpush.bf16.msra.mxu0 %v1240
      %1250 = vmatmul.bf16.gmra.mxu0 %v1237
      %v1251 = vpop.f32.mrf.mxu0
      %v1252 = vadd.f32 0.0, %v1251
      %v1253 = vpop.f32.mrf.mxu0
      %1254 = vdwg.mxu0
      %v1256 = vsel %vm1167, %v1214, 0
      %v1259 = vsel %vm1219, %v1079, 0
      %1261 = vmatpush.bf16.msra.mxu0 0
      %1262 = vmatpush.bf16.msra.mxu0 0
      %1263 = vmatpush.bf16.msra.mxu0 0
      %1264 = vmatpush.bf16.msra.mxu0 0
      %1265 = vmatpush.bf16.msra.mxu0 0
      %1266 = vmatpush.bf16.msra.mxu0 0
      %1267 = vmatpush.bf16.msra.mxu0 0
      %1268 = vmatpush.bf16.msra.mxu0 %v1259
      %1269 = vmatmul.bf16.gmra.mxu0 %v1256
      %v1270 = vpop.f32.mrf.mxu0
      %v1271 = vadd.f32 0.0, %v1270
      %v1272 = vpop.f32.mrf.mxu0
      %1273 = vdwg.mxu0
      %v1275 = vsel %vm1167, %v1215, 0
      %v1278 = vsel %vm1219, %v1081, 0
      %1280 = vmatpush.bf16.msra.mxu0 0
      %1281 = vmatpush.bf16.msra.mxu0 0
      %1282 = vmatpush.bf16.msra.mxu0 0
      %1283 = vmatpush.bf16.msra.mxu0 0
      %1284 = vmatpush.bf16.msra.mxu0 0
      %1285 = vmatpush.bf16.msra.mxu0 0
      %1286 = vmatpush.bf16.msra.mxu0 0
      %1287 = vmatpush.bf16.msra.mxu0 %v1278
      %1288 = vmatmul.bf16.gmra.mxu0 %v1275
      %v1289 = vpop.f32.mrf.mxu0
      %v1290 = vadd.f32 0.0, %v1289
      %v1291 = vpop.f32.mrf.mxu0
      %1292 = vdwg.mxu0
      %1294 = vrot.lane.b32.xlu0 %v1252, 32
      %v1295 = vpop.permute.xlu0 %1294
      %1298 = vrot.lane.b32.xlu0 %v1271, 64
      %v1299 = vpop.permute.xlu0 %1298
      %1302 = vrot.lane.b32.xlu0 %v1290, 96
      %v1303 = vpop.permute.xlu0 %1302
      %v1305 = vsel %vm1082, %v1233, %v1295
      %vm1306 = vcmask 523264
      %v1307 = vsel %vm1306, %v1305, %v1299
      %vm1308 = vcmask 785408
      %v1309 = vsel %vm1308, %v1307, %v1303
      %v1310 = vpack.c.bf16 %v1309, %v1309
      %v1311 = vld [vmem:[%s8] sm:$0xf]
      %v1312 = vld [vmem:[%s8 + $0x4] sm:$0xf]
      %v1313 = vld [vmem:[%s8 + $0x8] sm:$0xf]
      %v1314 = vld [vmem:[%s8 + $0xc] sm:$0xf]
      %v1315 = vld [vmem:[%s8 + $0x10] sm:$0xf]
      %v1316 = vld [vmem:[%s8 + $0x14] sm:$0xf]
      %v1317 = vld [vmem:[%s8 + $0x18] sm:$0xf]
      %v1318 = vld [vmem:[%s8 + $0x1c] sm:$0xf]
      %v1319 = vld [vmem:[%s8 + $0x20] sm:$0xf]
      %v1320 = vld [vmem:[%s8 + $0x24] sm:$0xf]
      %v1321 = vld [vmem:[%s8 + $0x28] sm:$0xf]
      %v1322 = vld [vmem:[%s8 + $0x2c] sm:$0xf]
      %v1323 = vld [vmem:[%s8 + $0x30] sm:$0xf]
      %v1324 = vld [vmem:[%s8 + $0x34] sm:$0xf]
      %v1325 = vld [vmem:[%s8 + $0x38] sm:$0xf]
      %v1326 = vld [vmem:[%s8 + $0x3c] sm:$0xf]
      %v1327 = vld [vmem:[%s9] sm:$0x1]
      %v1329 = vperm.slane %v1327, 0
      %v1347 = vunpack.c.l.b16 %v1311
      %v1348 = vunpack.c.l.b16 %v1312
      %v1349 = vunpack.c.l.b16 %v1313
      %v1350 = vunpack.c.l.b16 %v1314
      %v1351 = vunpack.c.l.b16 %v1315
      %v1352 = vunpack.c.l.b16 %v1316
      %v1353 = vunpack.c.l.b16 %v1317
      %v1354 = vunpack.c.l.b16 %v1318
      %v1355 = vunpack.c.l.b16 %v1319
      %v1356 = vunpack.c.l.b16 %v1320
      %v1357 = vunpack.c.l.b16 %v1321
      %v1358 = vunpack.c.l.b16 %v1322
      %v1359 = vunpack.c.l.b16 %v1323
      %v1360 = vunpack.c.l.b16 %v1324
      %v1361 = vunpack.c.l.b16 %v1325
      %v1362 = vunpack.c.l.b16 %v1326
      %v1363 = vpack.c.b16 %v1348, %v1347
      %v1364 = vpack.c.b16 %v1350, %v1349
      %v1365 = vpack.c.b16 %v1352, %v1351
      %v1366 = vpack.c.b16 %v1354, %v1353
      %v1367 = vpack.c.b16 %v1356, %v1355
      %v1368 = vpack.c.b16 %v1358, %v1357
      %v1369 = vpack.c.b16 %v1360, %v1359
      %v1370 = vpack.c.b16 %v1362, %v1361
      %1379 = vmatpush.bf16.msra.mxu0 %v1370
      %1380 = vmatpush.bf16.msra.mxu0 %v1369
      %1381 = vmatpush.bf16.msra.mxu0 %v1368
      %1382 = vmatpush.bf16.msra.mxu0 %v1367
      %1383 = vmatpush.bf16.msra.mxu0 %v1366
      %1384 = vmatpush.bf16.msra.mxu0 %v1365
      %1385 = vmatpush.bf16.msra.mxu0 %v1364
      %1386 = vmatpush.bf16.msra.mxu0 %v1363
      %1387 = vmatmul.bf16.gmra.mxu0 %v1310
      %v1388 = vpop.f32.mrf.mxu0
      %v1389 = vadd.f32 %v1329, %v1388
      %v1390 = vpop.f32.mrf.mxu0
      %1391 = vdwg.mxu0
      %v1392 = vadd.f32 %v1389, %v833
      %v1393 = vld [vmem:[%s10] sm:$0x1]
      %v1394 = vld [vmem:[%s11] sm:$0x1]
      %1395 = vadd.xlane.f32.xlu0 %v1392
      %v1396 = vpop.xlane.xlu0 %1395
      %v1397 = vmul.f32 %v1396, 0.03125
      %v1398 = vmul.f32 %v1392, %v1392
      %1399 = vadd.xlane.f32.xlu0 %v1398
      %v1400 = vpop.xlane.xlu0 %1399
      %v1401 = vmul.f32 %v1400, 0.03125
      %v1402 = vmul.f32 %v1397, %v1397
      %v1403 = vsub.f32 %v1401, %v1402
      %v1404 = vmax.f32 %v1403, 0.0
      %v1405 = vsub.f32 %v1392, %v1397
      %v1406 = vadd.f32 %v1404, 1e-05
      %v1407 = vrsqrt.pop %v1406
      %v1408 = vmul.f32 %v1407, %v1406
      %v1409 = vmul.f32 %v1408, %v1407
      %v1410 = vmul.f32 0.5, %v1409
      %v1411 = vsub.f32 1.5, %v1410
      %v1412 = vmul.f32 %v1407, %v1411
      %vm1413 = vweird.f32 %v1406
      %vm1414 = vweird.f32 %v1407
      %vm1415 = vmor %vm1413, %vm1414
      %v1416 = vsel %vm1415, %v1407, %v1412
      %v1417 = vmul.f32 %v1405, %v1416
      %v1419 = vperm.slane %v1393, 0
      %v1421 = vmul.f32 %v1417, %v1419
      %v1423 = vperm.slane %v1394, 0
      %v1425 = vadd.f32 %v1421, %v1423
      %v1426 = vld [vmem:[%s827] sm:$0x1]
      %v1427 = vunpack.c.0.s8 %v1426
      %v1428 = vcvt.s32.f32 %v1427
      %v1429 = vsub.f32 1.0, %v1428
      %v1430 = vmul.f32 %v1429, -1e+09
      %v1431 = vpack.c.bf16 %v1425, %v1425
      %v1432 = vld [vmem:[%s12] sm:$0xf]
      %v1433 = vld [vmem:[%s12 + $0x4] sm:$0xf]
      %v1434 = vld [vmem:[%s12 + $0x8] sm:$0xf]
      %v1435 = vld [vmem:[%s12 + $0xc] sm:$0xf]
      %v1436 = vld [vmem:[%s12 + $0x10] sm:$0xf]
      %v1437 = vld [vmem:[%s12 + $0x14] sm:$0xf]
      %v1438 = vld [vmem:[%s12 + $0x18] sm:$0xf]
      %v1439 = vld [vmem:[%s12 + $0x1c] sm:$0xf]
      %v1440 = vld [vmem:[%s12 + $0x20] sm:$0xf]
      %v1441 = vld [vmem:[%s12 + $0x24] sm:$0xf]
      %v1442 = vld [vmem:[%s12 + $0x28] sm:$0xf]
      %v1443 = vld [vmem:[%s12 + $0x2c] sm:$0xf]
      %v1444 = vld [vmem:[%s12 + $0x30] sm:$0xf]
      %v1445 = vld [vmem:[%s12 + $0x34] sm:$0xf]
      %v1446 = vld [vmem:[%s12 + $0x38] sm:$0xf]
      %v1447 = vld [vmem:[%s12 + $0x3c] sm:$0xf]
      %v1448 = vld [vmem:[%s13] sm:$0x1]
      %v1450 = vperm.slane %v1448, 0
      %v1468 = vunpack.c.l.b16 %v1432
      %v1469 = vunpack.c.l.b16 %v1433
      %v1470 = vunpack.c.l.b16 %v1434
      %v1471 = vunpack.c.l.b16 %v1435
      %v1472 = vunpack.c.l.b16 %v1436
      %v1473 = vunpack.c.l.b16 %v1437
      %v1474 = vunpack.c.l.b16 %v1438
      %v1475 = vunpack.c.l.b16 %v1439
      %v1476 = vunpack.c.l.b16 %v1440
      %v1477 = vunpack.c.l.b16 %v1441
      %v1478 = vunpack.c.l.b16 %v1442
      %v1479 = vunpack.c.l.b16 %v1443
      %v1480 = vunpack.c.l.b16 %v1444
      %v1481 = vunpack.c.l.b16 %v1445
      %v1482 = vunpack.c.l.b16 %v1446
      %v1483 = vunpack.c.l.b16 %v1447
      %v1484 = vpack.c.b16 %v1469, %v1468
      %v1485 = vpack.c.b16 %v1471, %v1470
      %v1486 = vpack.c.b16 %v1473, %v1472
      %v1487 = vpack.c.b16 %v1475, %v1474
      %v1488 = vpack.c.b16 %v1477, %v1476
      %v1489 = vpack.c.b16 %v1479, %v1478
      %v1490 = vpack.c.b16 %v1481, %v1480
      %v1491 = vpack.c.b16 %v1483, %v1482
      %1500 = vmatpush.bf16.msra.mxu0 %v1491
      %1501 = vmatpush.bf16.msra.mxu0 %v1490
      %1502 = vmatpush.bf16.msra.mxu0 %v1489
      %1503 = vmatpush.bf16.msra.mxu0 %v1488
      %1504 = vmatpush.bf16.msra.mxu0 %v1487
      %1505 = vmatpush.bf16.msra.mxu0 %v1486
      %1506 = vmatpush.bf16.msra.mxu0 %v1485
      %1507 = vmatpush.bf16.msra.mxu0 %v1484
      %1508 = vmatmul.bf16.gmra.mxu0 %v1431
      %v1509 = vpop.f32.mrf.mxu0
      %v1510 = vadd.f32 %v1450, %v1509
      %v1511 = vpop.f32.mrf.mxu0
      %1512 = vdwg.mxu0
      %v1513 = vpack.c.bf16 %v834, %v834
      %v1514 = vld [vmem:[%s14] sm:$0xff]
      %v1515 = vld [vmem:[%s14 + $0x8] sm:$0xff]
      %v1516 = vld [vmem:[%s14 + $0x10] sm:$0xff]
      %v1517 = vld [vmem:[%s14 + $0x18] sm:$0xff]
      %v1518 = vld [vmem:[%s14 + $0x20] sm:$0xff]
      %v1519 = vld [vmem:[%s14 + $0x28] sm:$0xff]
      %v1520 = vld [vmem:[%s14 + $0x30] sm:$0xff]
      %v1521 = vld [vmem:[%s14 + $0x38] sm:$0xff]
      %v1522 = vld [vmem:[%s14 + $0x40] sm:$0xff]
      %v1523 = vld [vmem:[%s14 + $0x48] sm:$0xff]
      %v1524 = vld [vmem:[%s14 + $0x50] sm:$0xff]
      %v1525 = vld [vmem:[%s14 + $0x58] sm:$0xff]
      %v1526 = vld [vmem:[%s14 + $0x60] sm:$0xff]
      %v1527 = vld [vmem:[%s14 + $0x68] sm:$0xff]
      %v1528 = vld [vmem:[%s14 + $0x70] sm:$0xff]
      %v1529 = vld [vmem:[%s14 + $0x78] sm:$0xff]
      %v1530 = vld [vmem:[%s15] sm:$0x3]
      %v1532 = vperm.slane %v1530, 0
      %v1533 = vperm.slane %v1530, 1
      %v1552 = vunpack.c.l.b16 %v1514
      %v1553 = vunpack.c.h.b16 %v1514
      %v1554 = vunpack.c.l.b16 %v1515
      %v1555 = vunpack.c.h.b16 %v1515
      %v1556 = vunpack.c.l.b16 %v1516
      %v1557 = vunpack.c.h.b16 %v1516
      %v1558 = vunpack.c.l.b16 %v1517
      %v1559 = vunpack.c.h.b16 %v1517
      %v1560 = vunpack.c.l.b16 %v1518
      %v1561 = vunpack.c.h.b16 %v1518
      %v1562 = vunpack.c.l.b16 %v1519
      %v1563 = vunpack.c.h.b16 %v1519
      %v1564 = vunpack.c.l.b16 %v1520
      %v1565 = vunpack.c.h.b16 %v1520
      %v1566 = vunpack.c.l.b16 %v1521
      %v1567 = vunpack.c.h.b16 %v1521
      %v1568 = vunpack.c.l.b16 %v1522
      %v1569 = vunpack.c.h.b16 %v1522
      %v1570 = vunpack.c.l.b16 %v1523
      %v1571 = vunpack.c.h.b16 %v1523
      %v1572 = vunpack.c.l.b16 %v1524
      %v1573 = vunpack.c.h.b16 %v1524
      %v1574 = vunpack.c.l.b16 %v1525
      %v1575 = vunpack.c.h.b16 %v1525
      %v1576 = vunpack.c.l.b16 %v1526
      %v1577 = vunpack.c.h.b16 %v1526
      %v1578 = vunpack.c.l.b16 %v1527
      %v1579 = vunpack.c.h.b16 %v1527
      %v1580 = vunpack.c.l.b16 %v1528
      %v1581 = vunpack.c.h.b16 %v1528
      %v1582 = vunpack.c.l.b16 %v1529
      %v1583 = vunpack.c.h.b16 %v1529
      %v1584 = vpack.c.b16 %v1554, %v1552
      %v1585 = vpack.c.b16 %v1555, %v1553
      %v1586 = vpack.c.b16 %v1558, %v1556
      %v1587 = vpack.c.b16 %v1559, %v1557
      %v1588 = vpack.c.b16 %v1562, %v1560
      %v1589 = vpack.c.b16 %v1563, %v1561
      %v1590 = vpack.c.b16 %v1566, %v1564
      %v1591 = vpack.c.b16 %v1567, %v1565
      %v1592 = vpack.c.b16 %v1570, %v1568
      %v1593 = vpack.c.b16 %v1571, %v1569
      %v1594 = vpack.c.b16 %v1574, %v1572
      %v1595 = vpack.c.b16 %v1575, %v1573
      %v1596 = vpack.c.b16 %v1578, %v1576
      %v1597 = vpack.c.b16 %v1579, %v1577
      %v1598 = vpack.c.b16 %v1582, %v1580
      %v1599 = vpack.c.b16 %v1583, %v1581
      %1616 = vmatpush.bf16.msra.mxu0 %v1598
      %1617 = vmatpush.bf16.msra.mxu0 %v1596
      %1618 = vmatpush.bf16.msra.mxu0 %v1594
      %1619 = vmatpush.bf16.msra.mxu0 %v1592
      %1620 = vmatpush.bf16.msra.mxu0 %v1590
      %1621 = vmatpush.bf16.msra.mxu0 %v1588
      %1622 = vmatpush.bf16.msra.mxu0 %v1586
      %1623 = vmatpush.bf16.msra.mxu0 %v1584
      %1624 = vmatmul.bf16.gmra.mxu0 %v1513
      %v1625 = vpop.f32.mrf.mxu0
      %v1626 = vadd.f32 %v1532, %v1625
      %v1627 = vpop.f32.mrf.mxu0
      %1628 = vdwg.mxu0
      %1629 = vmatpush.bf16.msra.mxu0 %v1599
      %1630 = vmatpush.bf16.msra.mxu0 %v1597
      %1631 = vmatpush.bf16.msra.mxu0 %v1595
      %1632 = vmatpush.bf16.msra.mxu0 %v1593
      %1633 = vmatpush.bf16.msra.mxu0 %v1591
      %1634 = vmatpush.bf16.msra.mxu0 %v1589
      %1635 = vmatpush.bf16.msra.mxu0 %v1587
      %1636 = vmatpush.bf16.msra.mxu0 %v1585
      %1637 = vmatmul.bf16.gmra.mxu0 %v1513
      %v1638 = vpop.f32.mrf.mxu0
      %v1639 = vadd.f32 %v1533, %v1638
      %v1640 = vpop.f32.mrf.mxu0
      %1641 = vdwg.mxu0
      %v1642 = vpack.c.bf16 %v1510, %v1510
      %v1643 = vpack.c.bf16 %v1626, %v1626
      %v1644 = vpack.c.bf16 %v1639, %v1639
      %1646 = vrot.lane.b32.xlu0 %v1642, 96
      %v1647 = vpop.permute.xlu0 %1646
      %1648 = vrot.lane.b32.xlu0 %v1642, 64
      %v1649 = vpop.permute.xlu0 %1648
      %1650 = vrot.lane.b32.xlu0 %v1642, 32
      %v1651 = vpop.permute.xlu0 %1650
      %1653 = vrot.lane.b32.xlu0 %v1643, 96
      %v1654 = vpop.permute.xlu0 %1653
      %1655 = vrot.lane.b32.xlu0 %v1643, 64
      %v1656 = vpop.permute.xlu0 %1655
      %1657 = vrot.lane.b32.xlu0 %v1643, 32
      %v1658 = vpop.permute.xlu0 %1657
      %1660 = vrot.lane.b32.xlu0 %v1644, 96
      %v1661 = vpop.permute.xlu0 %1660
      %1662 = vrot.lane.b32.xlu0 %v1644, 64
      %v1663 = vpop.permute.xlu0 %1662
      %1664 = vrot.lane.b32.xlu0 %v1644, 32
      %v1665 = vpop.permute.xlu0 %1664
      %v1667 = vsel %vm1082, %v1642, 0
      %v1670 = vsel %vm1082, %v1643, 0
      %1672 = vmatpush.bf16.xpose.msra.mxu0 0
      %1673 = vmatpush.bf16.xpose.msra.mxu0 0
      %1674 = vmatpush.bf16.xpose.msra.mxu0 0
      %1675 = vmatpush.bf16.xpose.msra.mxu0 0
      %1676 = vmatpush.bf16.xpose.msra.mxu0 0
      %1677 = vmatpush.bf16.xpose.msra.mxu0 0
      %1678 = vmatpush.bf16.xpose.msra.mxu0 0
      %1679 = vmatpush.bf16.xpose.msra.mxu0 %v1670
      %1680 = vmatmul.bf16.gmra.mxu0 %v1667
      %v1681 = vpop.f32.mrf.mxu0
      %v1682 = vadd.f32 0.0, %v1681
      %v1683 = vpop.f32.mrf.mxu0
      %1684 = vdwg.mxu0
      %v1686 = vsel %vm1082, %v1647, 0
      %v1689 = vsel %vm1082, %v1654, 0
      %1691 = vmatpush.bf16.xpose.msra.mxu0 0
      %1692 = vmatpush.bf16.xpose.msra.mxu0 0
      %1693 = vmatpush.bf16.xpose.msra.mxu0 0
      %1694 = vmatpush.bf16.xpose.msra.mxu0 0
      %1695 = vmatpush.bf16.xpose.msra.mxu0 0
      %1696 = vmatpush.bf16.xpose.msra.mxu0 0
      %1697 = vmatpush.bf16.xpose.msra.mxu0 0
      %1698 = vmatpush.bf16.xpose.msra.mxu0 %v1689
      %1699 = vmatmul.bf16.gmra.mxu0 %v1686
      %v1700 = vpop.f32.mrf.mxu0
      %v1701 = vadd.f32 0.0, %v1700
      %v1702 = vpop.f32.mrf.mxu0
      %1703 = vdwg.mxu0
      %v1705 = vsel %vm1082, %v1649, 0
      %v1708 = vsel %vm1082, %v1656, 0
      %1710 = vmatpush.bf16.xpose.msra.mxu0 0
      %1711 = vmatpush.bf16.xpose.msra.mxu0 0
      %1712 = vmatpush.bf16.xpose.msra.mxu0 0
      %1713 = vmatpush.bf16.xpose.msra.mxu0 0
      %1714 = vmatpush.bf16.xpose.msra.mxu0 0
      %1715 = vmatpush.bf16.xpose.msra.mxu0 0
      %1716 = vmatpush.bf16.xpose.msra.mxu0 0
      %1717 = vmatpush.bf16.xpose.msra.mxu0 %v1708
      %1718 = vmatmul.bf16.gmra.mxu0 %v1705
      %v1719 = vpop.f32.mrf.mxu0
      %v1720 = vadd.f32 0.0, %v1719
      %v1721 = vpop.f32.mrf.mxu0
      %1722 = vdwg.mxu0
      %v1724 = vsel %vm1082, %v1651, 0
      %v1727 = vsel %vm1082, %v1658, 0
      %1729 = vmatpush.bf16.xpose.msra.mxu0 0
      %1730 = vmatpush.bf16.xpose.msra.mxu0 0
      %1731 = vmatpush.bf16.xpose.msra.mxu0 0
      %1732 = vmatpush.bf16.xpose.msra.mxu0 0
      %1733 = vmatpush.bf16.xpose.msra.mxu0 0
      %1734 = vmatpush.bf16.xpose.msra.mxu0 0
      %1735 = vmatpush.bf16.xpose.msra.mxu0 0
      %1736 = vmatpush.bf16.xpose.msra.mxu0 %v1727
      %1737 = vmatmul.bf16.gmra.mxu0 %v1724
      %v1738 = vpop.f32.mrf.mxu0
      %v1739 = vadd.f32 0.0, %v1738
      %v1740 = vpop.f32.mrf.mxu0
      %1741 = vdwg.mxu0
      %v1742 = vmul.f32 %v1682, 0.35355338
      %v1743 = vmul.f32 %v1701, 0.35355338
      %v1744 = vmul.f32 %v1720, 0.35355338
      %v1745 = vmul.f32 %v1739, 0.35355338
      %v1746 = vperm.slane %v1430, 0
      %v1747 = vadd.f32 %v1742, %v1746
      %v1748 = vadd.f32 %v1743, %v1746
      %v1749 = vadd.f32 %v1744, %v1746
      %v1750 = vadd.f32 %v1745, %v1746
      %v1751 = vsel %vm1167, %v1747, -inf
      %1752 = vmax.xlane.f32.xlu0 %v1751
      %v1753 = vpop.xlane.xlu0 %1752
      %v1754 = vsel %vm1167, %v1748, -inf
      %1755 = vmax.xlane.f32.xlu0 %v1754
      %v1756 = vpop.xlane.xlu0 %1755
      %v1757 = vsel %vm1167, %v1749, -inf
      %1758 = vmax.xlane.f32.xlu0 %v1757
      %v1759 = vpop.xlane.xlu0 %1758
      %v1760 = vsel %vm1167, %v1750, -inf
      %1761 = vmax.xlane.f32.xlu0 %v1760
      %v1762 = vpop.xlane.xlu0 %1761
      %v1763 = vsub.f32 %v1747, %v1753
      %v1764 = vsub.f32 %v1748, %v1756
      %v1765 = vsub.f32 %v1749, %v1759
      %v1766 = vsub.f32 %v1750, %v1762
      %v1767 = vmul.f32 %v1763, 1.442695
      %v1768 = vpow.pop %v1767
      %v1769 = vmul.f32 %v1764, 1.442695
      %v1770 = vpow.pop %v1769
      %v1771 = vmul.f32 %v1765, 1.442695
      %v1772 = vpow.pop %v1771
      %v1773 = vmul.f32 %v1766, 1.442695
      %v1774 = vpow.pop %v1773
      %v1775 = vsel %vm1167, %v1768, 0.0
      %1776 = vadd.xlane.f32.xlu0 %v1775
      %v1777 = vpop.xlane.xlu0 %1776
      %v1778 = vsel %vm1167, %v1770, 0.0
      %1779 = vadd.xlane.f32.xlu0 %v1778
      %v1780 = vpop.xlane.xlu0 %1779
      %v1781 = vsel %vm1167, %v1772, 0.0
      %1782 = vadd.xlane.f32.xlu0 %v1781
      %v1783 = vpop.xlane.xlu0 %1782
      %v1784 = vsel %vm1167, %v1774, 0.0
      %1785 = vadd.xlane.f32.xlu0 %v1784
      %v1786 = vpop.xlane.xlu0 %1785
      %v1787 = vrcp.pop %v1777
      %v1788 = vrcp.pop %v1780
      %v1789 = vrcp.pop %v1783
      %v1790 = vrcp.pop %v1786
      %v1791 = vmul.f32 %v1768, %v1787
      %v1792 = vmul.f32 %v1770, %v1788
      %v1793 = vmul.f32 %v1772, %v1789
      %v1794 = vmul.f32 %v1774, %v1790
      %v1795 = vpack.c.bf16 %v1791, %v1791
      %v1796 = vpack.c.bf16 %v1792, %v1792
      %v1797 = vpack.c.bf16 %v1793, %v1793
      %v1798 = vpack.c.bf16 %v1794, %v1794
      %v1800 = vsel %vm1167, %v1795, 0
      %v1803 = vsel %vm1219, %v1644, 0
      %1805 = vmatpush.bf16.msra.mxu0 0
      %1806 = vmatpush.bf16.msra.mxu0 0
      %1807 = vmatpush.bf16.msra.mxu0 0
      %1808 = vmatpush.bf16.msra.mxu0 0
      %1809 = vmatpush.bf16.msra.mxu0 0
      %1810 = vmatpush.bf16.msra.mxu0 0
      %1811 = vmatpush.bf16.msra.mxu0 0
      %1812 = vmatpush.bf16.msra.mxu0 %v1803
      %1813 = vmatmul.bf16.gmra.mxu0 %v1800
      %v1814 = vpop.f32.mrf.mxu0
      %v1815 = vadd.f32 0.0, %v1814
      %v1816 = vpop.f32.mrf.mxu0
      %1817 = vdwg.mxu0
      %v1819 = vsel %vm1167, %v1796, 0
      %v1822 = vsel %vm1219, %v1661, 0
      %1824 = vmatpush.bf16.msra.mxu0 0
      %1825 = vmatpush.bf16.msra.mxu0 0
      %1826 = vmatpush.bf16.msra.mxu0 0
      %1827 = vmatpush.bf16.msra.mxu0 0
      %1828 = vmatpush.bf16.msra.mxu0 0
      %1829 = vmatpush.bf16.msra.mxu0 0
      %1830 = vmatpush.bf16.msra.mxu0 0
      %1831 = vmatpush.bf16.msra.mxu0 %v1822
      %1832 = vmatmul.bf16.gmra.mxu0 %v1819
      %v1833 = vpop.f32.mrf.mxu0
      %v1834 = vadd.f32 0.0, %v1833
      %v1835 = vpop.f32.mrf.mxu0
      %1836 = vdwg.mxu0
      %v1838 = vsel %vm1167, %v1797, 0
      %v1841 = vsel %vm1219, %v1663, 0
      %1843 = vmatpush.bf16.msra.mxu0 0
      %1844 = vmatpush.bf16.msra.mxu0 0
      %1845 = vmatpush.bf16.msra.mxu0 0
      %1846 = vmatpush.bf16.msra.mxu0 0
      %1847 = vmatpush.bf16.msra.mxu0 0
      %1848 = vmatpush.bf16.msra.mxu0 0
      %1849 = vmatpush.bf16.msra.mxu0 0
      %1850 = vmatpush.bf16.msra.mxu0 %v1841
      %1851 = vmatmul.bf16.gmra.mxu0 %v1838
      %v1852 = vpop.f32.mrf.mxu0
      %v1853 = vadd.f32 0.0, %v1852
      %v1854 = vpop.f32.mrf.mxu0
      %1855 = vdwg.mxu0
      %v1857 = vsel %vm1167, %v1798, 0
      %v1860 = vsel %vm1219, %v1665, 0
      %1862 = vmatpush.bf16.msra.mxu0 0
      %1863 = vmatpush.bf16.msra.mxu0 0
      %1864 = vmatpush.bf16.msra.mxu0 0
      %1865 = vmatpush.bf16.msra.mxu0 0
      %1866 = vmatpush.bf16.msra.mxu0 0
      %1867 = vmatpush.bf16.msra.mxu0 0
      %1868 = vmatpush.bf16.msra.mxu0 0
      %1869 = vmatpush.bf16.msra.mxu0 %v1860
      %1870 = vmatmul.bf16.gmra.mxu0 %v1857
      %v1871 = vpop.f32.mrf.mxu0
      %v1872 = vadd.f32 0.0, %v1871
      %v1873 = vpop.f32.mrf.mxu0
      %1874 = vdwg.mxu0
      %1876 = vrot.lane.b32.xlu0 %v1834, 32
      %v1877 = vpop.permute.xlu0 %1876
      %1880 = vrot.lane.b32.xlu0 %v1853, 64
      %v1881 = vpop.permute.xlu0 %1880
      %1884 = vrot.lane.b32.xlu0 %v1872, 96
      %v1885 = vpop.permute.xlu0 %1884
      %v1887 = vsel %vm1082, %v1815, %v1877
      %v1888 = vsel %vm1306, %v1887, %v1881
      %v1889 = vsel %vm1308, %v1888, %v1885
      %v1890 = vpack.c.bf16 %v1889, %v1889
      %v1891 = vld [vmem:[%s16] sm:$0xf]
      %v1892 = vld [vmem:[%s16 + $0x4] sm:$0xf]
      %v1893 = vld [vmem:[%s16 + $0x8] sm:$0xf]
      %v1894 = vld [vmem:[%s16 + $0xc] sm:$0xf]
      %v1895 = vld [vmem:[%s16 + $0x10] sm:$0xf]
      %v1896 = vld [vmem:[%s16 + $0x14] sm:$0xf]
      %v1897 = vld [vmem:[%s16 + $0x18] sm:$0xf]
      %v1898 = vld [vmem:[%s16 + $0x1c] sm:$0xf]
      %v1899 = vld [vmem:[%s16 + $0x20] sm:$0xf]
      %v1900 = vld [vmem:[%s16 + $0x24] sm:$0xf]
      %v1901 = vld [vmem:[%s16 + $0x28] sm:$0xf]
      %v1902 = vld [vmem:[%s16 + $0x2c] sm:$0xf]
      %v1903 = vld [vmem:[%s16 + $0x30] sm:$0xf]
      %v1904 = vld [vmem:[%s16 + $0x34] sm:$0xf]
      %v1905 = vld [vmem:[%s16 + $0x38] sm:$0xf]
      %v1906 = vld [vmem:[%s16 + $0x3c] sm:$0xf]
      %v1907 = vld [vmem:[%s17] sm:$0x1]
      %v1909 = vperm.slane %v1907, 0
      %v1927 = vunpack.c.l.b16 %v1891
      %v1928 = vunpack.c.l.b16 %v1892
      %v1929 = vunpack.c.l.b16 %v1893
      %v1930 = vunpack.c.l.b16 %v1894
      %v1931 = vunpack.c.l.b16 %v1895
      %v1932 = vunpack.c.l.b16 %v1896
      %v1933 = vunpack.c.l.b16 %v1897
      %v1934 = vunpack.c.l.b16 %v1898
      %v1935 = vunpack.c.l.b16 %v1899
      %v1936 = vunpack.c.l.b16 %v1900
      %v1937 = vunpack.c.l.b16 %v1901
      %v1938 = vunpack.c.l.b16 %v1902
      %v1939 = vunpack.c.l.b16 %v1903
      %v1940 = vunpack.c.l.b16 %v1904
      %v1941 = vunpack.c.l.b16 %v1905
      %v1942 = vunpack.c.l.b16 %v1906
      %v1943 = vpack.c.b16 %v1928, %v1927
      %v1944 = vpack.c.b16 %v1930, %v1929
      %v1945 = vpack.c.b16 %v1932, %v1931
      %v1946 = vpack.c.b16 %v1934, %v1933
      %v1947 = vpack.c.b16 %v1936, %v1935
      %v1948 = vpack.c.b16 %v1938, %v1937
      %v1949 = vpack.c.b16 %v1940, %v1939
      %v1950 = vpack.c.b16 %v1942, %v1941
      %1959 = vmatpush.bf16.msra.mxu0 %v1950
      %1960 = vmatpush.bf16.msra.mxu0 %v1949
      %1961 = vmatpush.bf16.msra.mxu0 %v1948
      %1962 = vmatpush.bf16.msra.mxu0 %v1947
      %1963 = vmatpush.bf16.msra.mxu0 %v1946
      %1964 = vmatpush.bf16.msra.mxu0 %v1945
      %1965 = vmatpush.bf16.msra.mxu0 %v1944
      %1966 = vmatpush.bf16.msra.mxu0 %v1943
      %1967 = vmatmul.bf16.gmra.mxu0 %v1890
      %v1968 = vpop.f32.mrf.mxu0
      %v1969 = vadd.f32 %v1909, %v1968
      %v1970 = vpop.f32.mrf.mxu0
      %1971 = vdwg.mxu0
      %v1972 = vadd.f32 %v1969, %v1425
      %v1973 = vld [vmem:[%s18] sm:$0x1]
      %v1974 = vld [vmem:[%s19] sm:$0x1]
      %1975 = vadd.xlane.f32.xlu0 %v1972
      %v1976 = vpop.xlane.xlu0 %1975
      %v1977 = vmul.f32 %v1976, 0.03125
      %v1978 = vmul.f32 %v1972, %v1972
      %1979 = vadd.xlane.f32.xlu0 %v1978
      %v1980 = vpop.xlane.xlu0 %1979
      %v1981 = vmul.f32 %v1980, 0.03125
      %v1982 = vmul.f32 %v1977, %v1977
      %v1983 = vsub.f32 %v1981, %v1982
      %v1984 = vmax.f32 %v1983, 0.0
      %v1985 = vsub.f32 %v1972, %v1977
      %v1986 = vadd.f32 %v1984, 1e-05
      %v1987 = vrsqrt.pop %v1986
      %v1988 = vmul.f32 %v1987, %v1986
      %v1989 = vmul.f32 %v1988, %v1987
      %v1990 = vmul.f32 0.5, %v1989
      %v1991 = vsub.f32 1.5, %v1990
      %v1992 = vmul.f32 %v1987, %v1991
      %vm1993 = vweird.f32 %v1986
      %vm1994 = vweird.f32 %v1987
      %vm1995 = vmor %vm1993, %vm1994
      %v1996 = vsel %vm1995, %v1987, %v1992
      %v1997 = vmul.f32 %v1985, %v1996
      %v1999 = vperm.slane %v1973, 0
      %v2001 = vmul.f32 %v1997, %v1999
      %v2003 = vperm.slane %v1974, 0
      %v2005 = vadd.f32 %v2001, %v2003
      %v2006 = vpack.c.bf16 %v2005, %v2005
      %v2007 = vld [vmem:[%s20] sm:$0xf]
      %v2008 = vld [vmem:[%s20 + $0x4] sm:$0xf]
      %v2009 = vld [vmem:[%s20 + $0x8] sm:$0xf]
      %v2010 = vld [vmem:[%s20 + $0xc] sm:$0xf]
      %v2011 = vld [vmem:[%s20 + $0x10] sm:$0xf]
      %v2012 = vld [vmem:[%s20 + $0x14] sm:$0xf]
      %v2013 = vld [vmem:[%s20 + $0x18] sm:$0xf]
      %v2014 = vld [vmem:[%s20 + $0x1c] sm:$0xf]
      %v2015 = vld [vmem:[%s20 + $0x20] sm:$0xf]
      %v2016 = vld [vmem:[%s20 + $0x24] sm:$0xf]
      %v2017 = vld [vmem:[%s20 + $0x28] sm:$0xf]
      %v2018 = vld [vmem:[%s20 + $0x2c] sm:$0xf]
      %v2019 = vld [vmem:[%s20 + $0x30] sm:$0xf]
      %v2020 = vld [vmem:[%s20 + $0x34] sm:$0xf]
      %v2021 = vld [vmem:[%s20 + $0x38] sm:$0xf]
      %v2022 = vld [vmem:[%s20 + $0x3c] sm:$0xf]
      %v2023 = vld [vmem:[%s21] sm:$0x1]
      %v2025 = vperm.slane %v2023, 0
      %v2043 = vunpack.c.l.b16 %v2007
      %v2044 = vunpack.c.l.b16 %v2008
      %v2045 = vunpack.c.l.b16 %v2009
      %v2046 = vunpack.c.l.b16 %v2010
      %v2047 = vunpack.c.l.b16 %v2011
      %v2048 = vunpack.c.l.b16 %v2012
      %v2049 = vunpack.c.l.b16 %v2013
      %v2050 = vunpack.c.l.b16 %v2014
      %v2051 = vunpack.c.l.b16 %v2015
      %v2052 = vunpack.c.l.b16 %v2016
      %v2053 = vunpack.c.l.b16 %v2017
      %v2054 = vunpack.c.l.b16 %v2018
      %v2055 = vunpack.c.l.b16 %v2019
      %v2056 = vunpack.c.l.b16 %v2020
      %v2057 = vunpack.c.l.b16 %v2021
      %v2058 = vunpack.c.l.b16 %v2022
      %v2059 = vpack.c.b16 %v2044, %v2043
      %v2060 = vpack.c.b16 %v2046, %v2045
      %v2061 = vpack.c.b16 %v2048, %v2047
      %v2062 = vpack.c.b16 %v2050, %v2049
      %v2063 = vpack.c.b16 %v2052, %v2051
      %v2064 = vpack.c.b16 %v2054, %v2053
      %v2065 = vpack.c.b16 %v2056, %v2055
      %v2066 = vpack.c.b16 %v2058, %v2057
      %2075 = vmatpush.bf16.msra.mxu0 %v2066
      %2076 = vmatpush.bf16.msra.mxu0 %v2065
      %2077 = vmatpush.bf16.msra.mxu0 %v2064
      %2078 = vmatpush.bf16.msra.mxu0 %v2063
      %2079 = vmatpush.bf16.msra.mxu0 %v2062
      %2080 = vmatpush.bf16.msra.mxu0 %v2061
      %2081 = vmatpush.bf16.msra.mxu0 %v2060
      %2082 = vmatpush.bf16.msra.mxu0 %v2059
      %2083 = vmatmul.bf16.gmra.mxu0 %v2006
      %v2084 = vpop.f32.mrf.mxu0
      %v2085 = vadd.f32 %v2025, %v2084
      %v2086 = vpop.f32.mrf.mxu0
      %2087 = vdwg.mxu0
      %v2088 = vmax.f32 %v2085, 0.0
      %v2089 = vpack.c.bf16 %v2088, %v2088
      %v2090 = vld [vmem:[%s22] sm:$0xf]
      %v2091 = vld [vmem:[%s22 + $0x4] sm:$0xf]
      %v2092 = vld [vmem:[%s22 + $0x8] sm:$0xf]
      %v2093 = vld [vmem:[%s22 + $0xc] sm:$0xf]
      %v2094 = vld [vmem:[%s22 + $0x10] sm:$0xf]
      %v2095 = vld [vmem:[%s22 + $0x14] sm:$0xf]
      %v2096 = vld [vmem:[%s22 + $0x18] sm:$0xf]
      %v2097 = vld [vmem:[%s22 + $0x1c] sm:$0xf]
      %v2098 = vld [vmem:[%s22 + $0x20] sm:$0xf]
      %v2099 = vld [vmem:[%s22 + $0x24] sm:$0xf]
      %v2100 = vld [vmem:[%s22 + $0x28] sm:$0xf]
      %v2101 = vld [vmem:[%s22 + $0x2c] sm:$0xf]
      %v2102 = vld [vmem:[%s22 + $0x30] sm:$0xf]
      %v2103 = vld [vmem:[%s22 + $0x34] sm:$0xf]
      %v2104 = vld [vmem:[%s22 + $0x38] sm:$0xf]
      %v2105 = vld [vmem:[%s22 + $0x3c] sm:$0xf]
      %v2106 = vld [vmem:[%s23] sm:$0x1]
      %v2108 = vperm.slane %v2106, 0
      %v2126 = vunpack.c.l.b16 %v2090
      %v2127 = vunpack.c.l.b16 %v2091
      %v2128 = vunpack.c.l.b16 %v2092
      %v2129 = vunpack.c.l.b16 %v2093
      %v2130 = vunpack.c.l.b16 %v2094
      %v2131 = vunpack.c.l.b16 %v2095
      %v2132 = vunpack.c.l.b16 %v2096
      %v2133 = vunpack.c.l.b16 %v2097
      %v2134 = vunpack.c.l.b16 %v2098
      %v2135 = vunpack.c.l.b16 %v2099
      %v2136 = vunpack.c.l.b16 %v2100
      %v2137 = vunpack.c.l.b16 %v2101
      %v2138 = vunpack.c.l.b16 %v2102
      %v2139 = vunpack.c.l.b16 %v2103
      %v2140 = vunpack.c.l.b16 %v2104
      %v2141 = vunpack.c.l.b16 %v2105
      %v2142 = vpack.c.b16 %v2127, %v2126
      %v2143 = vpack.c.b16 %v2129, %v2128
      %v2144 = vpack.c.b16 %v2131, %v2130
      %v2145 = vpack.c.b16 %v2133, %v2132
      %v2146 = vpack.c.b16 %v2135, %v2134
      %v2147 = vpack.c.b16 %v2137, %v2136
      %v2148 = vpack.c.b16 %v2139, %v2138
      %v2149 = vpack.c.b16 %v2141, %v2140
      %2158 = vmatpush.bf16.msra.mxu0 %v2149
      %2159 = vmatpush.bf16.msra.mxu0 %v2148
      %2160 = vmatpush.bf16.msra.mxu0 %v2147
      %2161 = vmatpush.bf16.msra.mxu0 %v2146
      %2162 = vmatpush.bf16.msra.mxu0 %v2145
      %2163 = vmatpush.bf16.msra.mxu0 %v2144
      %2164 = vmatpush.bf16.msra.mxu0 %v2143
      %2165 = vmatpush.bf16.msra.mxu0 %v2142
      %2166 = vmatmul.bf16.gmra.mxu0 %v2089
      %v2167 = vpop.f32.mrf.mxu0
      %v2168 = vadd.f32 %v2108, %v2167
      %v2169 = vpop.f32.mrf.mxu0
      %2170 = vdwg.mxu0
      %v2171 = vadd.f32 %v2168, %v2005
      %v2172 = vld [vmem:[%s24] sm:$0x1]
      %v2173 = vld [vmem:[%s25] sm:$0x1]
      %2174 = vadd.xlane.f32.xlu0 %v2171
      %v2175 = vpop.xlane.xlu0 %2174
      %v2176 = vmul.f32 %v2175, 0.03125
      %v2177 = vmul.f32 %v2171, %v2171
      %2178 = vadd.xlane.f32.xlu0 %v2177
      %v2179 = vpop.xlane.xlu0 %2178
      %v2180 = vmul.f32 %v2179, 0.03125
      %v2181 = vmul.f32 %v2176, %v2176
      %v2182 = vsub.f32 %v2180, %v2181
      %v2183 = vmax.f32 %v2182, 0.0
      %v2184 = vsub.f32 %v2171, %v2176
      %v2185 = vadd.f32 %v2183, 1e-05
      %v2186 = vrsqrt.pop %v2185
      %v2187 = vmul.f32 %v2186, %v2185
      %v2188 = vmul.f32 %v2187, %v2186
      %v2189 = vmul.f32 0.5, %v2188
      %v2190 = vsub.f32 1.5, %v2189
      %v2191 = vmul.f32 %v2186, %v2190
      %vm2192 = vweird.f32 %v2185
      %vm2193 = vweird.f32 %v2186
      %vm2194 = vmor %vm2192, %vm2193
      %v2195 = vsel %vm2194, %v2186, %v2191
      %v2196 = vmul.f32 %v2184, %v2195
      %v2198 = vperm.slane %v2172, 0
      %v2200 = vmul.f32 %v2196, %v2198
      %v2202 = vperm.slane %v2173, 0
      %v2204 = vadd.f32 %v2200, %v2202
      %2205 = vst [vmem:[%s831] sm:$0xff] %v2204
      %p2206 = scmp.lt.s32.totalorder %s37, 1
      %s2207 = scalar_select %p2206, %s37, 1
      %s2208 = smul.addr %s2207, 8
      %s2209 = scalar_lea.vmem %s26, %s2208
      // Predicated region
      $region125: #{_lambda_.8} parent=123 // pred_check
        %p2210 = pneg %p621
      $region126: #{_lambda_.8} parent=123 // pred_check_branch
        %2212 = sbr.rel (%p2210) target = $region128
      $region127: #{_lambda_.8} parent=123 // pred_region
        _
      $region128: #{_lambda_.8} parent=123 // pred_fallthru
        _
    $region124: #{_lambda_.8} parent=5 // pred_fallthru
      _
    %p2213 = scmp.le.s32.totalorder 2, %s32
    // Predicated region
    $region129: #{_lambda_.8} parent=5 // pred_check
      %p2214 = pneg %p2213
    $region130: #{_lambda_.8} parent=5 // pred_check_branch
      %2216 = sbr.rel (%p2214) target = $region132
    $region131: #{_lambda_.8} parent=5 // pred_region
      %s2217 = ssub.s32 %s32, 2
      // Predicated region
      $region133: #{_lambda_.8} parent=131 // pred_check
        %p2218 = pneg %p627
      $region134: #{_lambda_.8} parent=131 // pred_check_branch
        %2220 = sbr.rel (%p2218) target = $region136
      $region135: #{_lambda_.8} parent=131 // pred_region
        %p2221 = scmp.lt.s32.totalorder %s38, 1
        %s2222 = scalar_select %p2221, %s38, 1
        %s2223 = smul.addr %s2222, 8
        %s2224 = scalar_lea.vmem %s26, %s2223
      $region136: #{_lambda_.8} parent=131 // pred_fallthru
        _
    $region132: #{_lambda_.8} parent=5 // pred_fallthru
      _
  $region6: #{_lambda_.8} parent=0 // loop_footer
    %s36 = sadd.s32 1, %s32
  $region7: #{_lambda_.8} parent=0 // loop_footer_branch
    %31 = sbr.rel target = $region3
  $region8: #{_lambda_.8} parent=0 // loop_exit
    _

// kernel: _lambda_.7
$region0: #{_lambda_.7}
  #allocation0 [shape = 'u32[]', space=smem, size = 0x4, offset = 0x4, fixed_abs, tag = 'smem constant byte address 0x4 - core index']
  #allocation1 [shape = 'u32[72,128]{1,0:T(1,128)}', space=vmem, size = 0x9000, scoped, tag = 'internal scratch']
  %s0 = inlined_call_operand.vmem [shape: f32[2,8,128], index: 0, kind: input, shape index: {}]
  %s1 = inlined_call_operand.vmem [shape: f32[2,8,128], index: 1, kind: input, shape index: {}]
  %s2 = inlined_call_operand.vmem [shape: s8[2,1,8], index: 2, kind: input, shape index: {}]
  %s3 = inlined_call_operand.vmem [shape: s8[2,1,8], index: 3, kind: input, shape index: {}]
  %s4 = inlined_call_operand.vmem [shape: bf16[128,128], index: 4, kind: input, shape index: {}]
  %s5 = inlined_call_operand.vmem [shape: f32[1,128], index: 5, kind: input, shape index: {}]
  %s6 = inlined_call_operand.vmem [shape: bf16[128,256], index: 6, kind: input, shape index: {}]
  %s7 = inlined_call_operand.vmem [shape: f32[1,256], index: 7, kind: input, shape index: {}]
  %s8 = inlined_call_operand.vmem [shape: bf16[128,128], index: 8, kind: input, shape index: {}]
  %s9 = inlined_call_operand.hbm [shape: f32[1,128], index: 9, kind: input, shape index: {}]
  %s10 = inlined_call_operand.hbm [shape: f32[1,128], index: 10, kind: input, shape index: {}]
  %s11 = inlined_call_operand.hbm [shape: f32[1,128], index: 11, kind: input, shape index: {}]
  %s12 = inlined_call_operand.vmem [shape: bf16[128,128], index: 12, kind: input, shape index: {}]
  %s13 = inlined_call_operand.hbm [shape: f32[1,128], index: 13, kind: input, shape index: {}]
  %s14 = inlined_call_operand.vmem [shape: bf16[128,256], index: 14, kind: input, shape index: {}]
  %s15 = inlined_call_operand.vmem [shape: f32[1,256], index: 15, kind: input, shape index: {}]
  %s16 = inlined_call_operand.vmem [shape: bf16[128,128], index: 16, kind: input, shape index: {}]
  %s17 = inlined_call_operand.hbm [shape: f32[1,128], index: 17, kind: input, shape index: {}]
  %s18 = inlined_call_operand.hbm [shape: f32[1,128], index: 18, kind: input, shape index: {}]
  %s19 = inlined_call_operand.hbm [shape: f32[1,128], index: 19, kind: input, shape index: {}]
  %s20 = inlined_call_operand.vmem [shape: bf16[128,128], index: 20, kind: input, shape index: {}]
  %s21 = inlined_call_operand.hbm [shape: f32[1,128], index: 21, kind: input, shape index: {}]
  %s22 = inlined_call_operand.vmem [shape: bf16[128,128], index: 22, kind: input, shape index: {}]
  %s23 = inlined_call_operand.hbm [shape: f32[1,128], index: 23, kind: input, shape index: {}]
  %s24 = inlined_call_operand.hbm [shape: f32[1,128], index: 24, kind: input, shape index: {}]
  %s25 = inlined_call_operand.hbm [shape: f32[1,128], index: 25, kind: input, shape index: {}]
  %s26 = inlined_call_operand.vmem [shape: f32[2,8,128], index: 26, kind: output, shape index: {}]
  %s27 = sld [smem:[#allocation0]]
  $region181: #{_lambda_.7} parent=0
    _
  %s29 = ssub.s32 1, %s27
  %s30 = scalar_select 0, %s29, %s27
  $region1: #{_lambda_.7} parent=0
    #allocation2 [shape = 'u8[512]{0}', space=vmem, size = 0x400, scoped, tag = 'input window, operand 9, single buffered']
    #allocation3 [shape = 's32[2]{0}', space=sflag, size = 0x8, scoped, tag = 'scoped memory for _lambda_.7']
    #allocation4 [shape = 'u8[512]{0}', space=vmem, size = 0x400, scoped, tag = 'input window, operand 10, single buffered']
    #allocation5 [shape = 's32[1]{0}', space=sflag, size = 0x4, scoped, tag = 'scoped memory for _lambda_.7']
    #allocation6 [shape = 'u8[512]{0}', space=vmem, size = 0x400, scoped, tag = 'input window, operand 11, single buffered']
    #allocation7 [shape = 'u8[512]{0}', space=vmem, size = 0x400, scoped, tag = 'input window, operand 13, single buffered']
    #allocation8 [shape = 's32[1]{0}', space=sflag, size = 0x4, scoped, tag = 'scoped memory for _lambda_.7']
    #allocation9 [shape = 'u8[512]{0}', space=vmem, size = 0x400, scoped, tag = 'input window, operand 17, single buffered']
    #allocation10 [shape = 'u8[512]{0}', space=vmem, size = 0x400, scoped, tag = 'input window, operand 18, single buffered']
    #allocation11 [shape = 's32[1]{0}', space=sflag, size = 0x4, scoped, tag = 'scoped memory for _lambda_.7']
    #allocation12 [shape = 'u8[512]{0}', space=vmem, size = 0x400, scoped, tag = 'input window, operand 19, single buffered']
    #allocation13 [shape = 'u8[512]{0}', space=vmem, size = 0x400, scoped, tag = 'input window, operand 21, single buffered']
    #allocation14 [shape = 's32[1]{0}', space=sflag, size = 0x4, scoped, tag = 'scoped memory for _lambda_.7']
    #allocation15 [shape = 'u8[512]{0}', space=vmem, size = 0x400, scoped, tag = 'input window, operand 23, single buffered']
    #allocation16 [shape = 'u8[512]{0}', space=vmem, size = 0x400, scoped, tag = 'input window, operand 24, single buffered']
    #allocation17 [shape = 's32[1]{0}', space=sflag, size = 0x4, scoped, tag = 'scoped memory for _lambda_.7']
    #allocation18 [shape = 'u8[512]{0}', space=vmem, size = 0x400, scoped, tag = 'input window, operand 25, single buffered']
    %31 = vsyncpa [#allocation3], 0
    %32 = vsyncpa [#allocation5], 0
    %33 = vsyncpa [#allocation8], 0
    %34 = vsyncpa [#allocation11], 0
    %35 = vsyncpa [#allocation14], 0
    %36 = vsyncpa [#allocation17], 0
    loop: start=0, step=1, limit=4
    $region2: #{_lambda_.7} parent=1 // loop_pre_header
      _
    $region3: #{_lambda_.7} parent=1 // loop_header
      %s38 = sphi 0, %s42
      %p39 = scmp.ge.s32.totalorder %s38, 4
      %s48 = sphi 0, %s50
      %s51 = sphi 0, %s48
      %s52 = sphi 0, %s51
      %s68 = sphi 0, %s52
      %s74 = sphi 0, %s76
      %s77 = sphi 0, %s74
      %s78 = sphi 0, %s77
      %s94 = sphi 0, %s78
      %s100 = sphi 0, %s102
      %s103 = sphi 0, %s100
      %s104 = sphi 0, %s103
      %s120 = sphi 0, %s104
      %s126 = sphi 0, %s128
      %s129 = sphi 0, %s126
      %s130 = sphi 0, %s129
      %s146 = sphi 0, %s130
      %s150 = sphi 0, %s150
      %s152 = sphi 0, %s150
      %s153 = sphi 0, %s152
      %s167 = sphi 0, %s153
      %s171 = sphi 0, %s171
      %s173 = sphi 0, %s171
      %s174 = sphi 0, %s173
      %s188 = sphi 0, %s174
      %s192 = sphi 0, %s192
      %s194 = sphi 0, %s192
      %s195 = sphi 0, %s194
      %s209 = sphi 0, %s195
      %s213 = sphi 0, %s213
      %s215 = sphi 0, %s213
      %s216 = sphi 0, %s215
      %s230 = sphi 0, %s216
      %s234 = sphi 0, %s234
      %s236 = sphi 0, %s234
      %s237 = sphi 0, %s236
      %s251 = sphi 0, %s237
      %s255 = sphi 0, %s255
      %s257 = sphi 0, %s255
      %s258 = sphi 0, %s257
      %s272 = sphi 0, %s258
      %s276 = sphi 0, %s276
      %s278 = sphi 0, %s276
      %s279 = sphi 0, %s278
      %s293 = sphi 0, %s279
      %s297 = sphi 0, %s297
      %s299 = sphi 0, %s297
      %s300 = sphi 0, %s299
      %s314 = sphi 0, %s300
      %s318 = sphi 0, %s318
      %s320 = sphi 0, %s318
      %s321 = sphi 0, %s320
      %s335 = sphi 0, %s321
      %s339 = sphi 0, %s339
      %s341 = sphi 0, %s339
      %s342 = sphi 0, %s341
      %s356 = sphi 0, %s342
      %s360 = sphi 0, %s360
      %s362 = sphi 0, %s360
      %s363 = sphi 0, %s362
      %s377 = sphi 0, %s363
      %s381 = sphi 0, %s381
      %s383 = sphi 0, %s381
      %s384 = sphi 0, %s383
      %s398 = sphi 0, %s384
      %s402 = sphi 0, %s402
      %s404 = sphi 0, %s402
      %s405 = sphi 0, %s404
      %s419 = sphi 0, %s405
      %s423 = sphi 0, %s423
      %s425 = sphi 0, %s423
      %s426 = sphi 0, %s425
      %s440 = sphi 0, %s426
      %s444 = sphi 0, %s444
      %s446 = sphi 0, %s444
      %s447 = sphi 0, %s446
      %s461 = sphi 0, %s447
      %s465 = sphi 0, %s465
      %s467 = sphi 0, %s465
      %s468 = sphi 0, %s467
      %s482 = sphi 0, %s468
      %s486 = sphi 0, %s486
      %s488 = sphi 0, %s486
      %s489 = sphi 0, %s488
      %s503 = sphi 0, %s489
      %s507 = sphi 0, %s507
      %s509 = sphi 0, %s507
      %s510 = sphi 0, %s509
      %s524 = sphi 0, %s510
      %s528 = sphi 0, %s528
      %s530 = sphi 0, %s528
      %s531 = sphi 0, %s530
      %s545 = sphi 0, %s531
      %s549 = sphi 0, %s549
      %s551 = sphi 0, %s549
      %s552 = sphi 0, %s551
      %s566 = sphi 0, %s552
      %s570 = sphi 0, %s570
      %s572 = sphi 0, %s570
      %s573 = sphi 0, %s572
      %s587 = sphi 0, %s573
      %s591 = sphi 0, %s591
      %s593 = sphi 0, %s591
      %s594 = sphi 0, %s593
      %s608 = sphi 0, %s594
      %s614 = sphi 0, %s616
      %s617 = sphi 0, %s614
      %s618 = sphi 0, %s617
      %s634 = sphi 0, %s618
    $region4: #{_lambda_.7} parent=1 // loop_header_branch
      %41 = sbr.rel (%p39) target = $region8
    $region5: #{_lambda_.7} parent=1 // loop_body
      %s43 = ssub.s32 %s38, 1
      %s44 = ssub.s32 %s38, 2
      %s45 = sadd.s32 %s38, 1
      %s46 = ssub.s32 %s38, %s45
      %p47 = scmp.eq.s32.totalorder %s46, 0
      %s49 = sadd.s32 %s48, 1
      %s50 = scalar_select %p47, %s48, %s49
      %p53 = pneg %p47
      %p54 = scmp.eq.s32.totalorder %s38, 1
      %p55 = por %p53, %p54
      %p56 = scmp.ne.s32.totalorder %s48, %s51
      %p57 = scmp.eq.s32.totalorder %s38, 0
      %p58 = por %p56, %p57
      %p59 = scmp.ne.s32.totalorder %s48, %s51
      %p60 = scmp.eq.s32.totalorder %s43, 1
      %p61 = por %p59, %p60
      %p62 = scmp.ne.s32.totalorder %s51, %s52
      %p63 = scmp.eq.s32.totalorder %s43, 0
      %p64 = por %p62, %p63
      %p65 = scmp.ne.s32.totalorder %s51, %s52
      %p66 = scmp.eq.s32.totalorder %s44, 1
      %p67 = por %p65, %p66
      %p69 = scmp.ne.s32.totalorder %s52, %s68
      %p70 = scmp.eq.s32.totalorder %s44, 0
      %p71 = por %p69, %p70
      %s72 = ssub.s32 %s38, %s45
      %p73 = scmp.eq.s32.totalorder %s72, 0
      %s75 = sadd.s32 %s74, 1
      %s76 = scalar_select %p73, %s74, %s75
      %p79 = pneg %p73
      %p80 = scmp.eq.s32.totalorder %s38, 1
      %p81 = por %p79, %p80
      %p82 = scmp.ne.s32.totalorder %s74, %s77
      %p83 = scmp.eq.s32.totalorder %s38, 0
      %p84 = por %p82, %p83
      %p85 = scmp.ne.s32.totalorder %s74, %s77
      %p86 = scmp.eq.s32.totalorder %s43, 1
      %p87 = por %p85, %p86
      %p88 = scmp.ne.s32.totalorder %s77, %s78
      %p89 = scmp.eq.s32.totalorder %s43, 0
      %p90 = por %p88, %p89
      %p91 = scmp.ne.s32.totalorder %s77, %s78
      %p92 = scmp.eq.s32.totalorder %s44, 1
      %p93 = por %p91, %p92
      %p95 = scmp.ne.s32.totalorder %s78, %s94
      %p96 = scmp.eq.s32.totalorder %s44, 0
      %p97 = por %p95, %p96
      %s98 = ssub.s32 %s38, %s45
      %p99 = scmp.eq.s32.totalorder %s98, 0
      %s101 = sadd.s32 %s100, 1
      %s102 = scalar_select %p99, %s100, %s101
      %p105 = pneg %p99
      %p106 = scmp.eq.s32.totalorder %s38, 1
      %p107 = por %p105, %p106
      %p108 = scmp.ne.s32.totalorder %s100, %s103
      %p109 = scmp.eq.s32.totalorder %s38, 0
      %p110 = por %p108, %p109
      %p111 = scmp.ne.s32.totalorder %s100, %s103
      %p112 = scmp.eq.s32.totalorder %s43, 1
      %p113 = por %p111, %p112
      %p114 = scmp.ne.s32.totalorder %s103, %s104
      %p115 = scmp.eq.s32.totalorder %s43, 0
      %p116 = por %p114, %p115
      %p117 = scmp.ne.s32.totalorder %s103, %s104
      %p118 = scmp.eq.s32.totalorder %s44, 1
      %p119 = por %p117, %p118
      %p121 = scmp.ne.s32.totalorder %s104, %s120
      %p122 = scmp.eq.s32.totalorder %s44, 0
      %p123 = por %p121, %p122
      %s124 = ssub.s32 %s38, %s45
      %p125 = scmp.eq.s32.totalorder %s124, 0
      %s127 = sadd.s32 %s126, 1
      %s128 = scalar_select %p125, %s126, %s127
      %p131 = pneg %p125
      %p132 = scmp.eq.s32.totalorder %s38, 1
      %p133 = por %p131, %p132
      %p134 = scmp.ne.s32.totalorder %s126, %s129
      %p135 = scmp.eq.s32.totalorder %s38, 0
      %p136 = por %p134, %p135
      %p137 = scmp.ne.s32.totalorder %s126, %s129
      %p138 = scmp.eq.s32.totalorder %s43, 1
      %p139 = por %p137, %p138
      %p140 = scmp.ne.s32.totalorder %s129, %s130
      %p141 = scmp.eq.s32.totalorder %s43, 0
      %p142 = por %p140, %p141
      %p143 = scmp.ne.s32.totalorder %s129, %s130
      %p144 = scmp.eq.s32.totalorder %s44, 1
      %p145 = por %p143, %p144
      %p147 = scmp.ne.s32.totalorder %s130, %s146
      %p148 = scmp.eq.s32.totalorder %s44, 0
      %p149 = por %p147, %p148
      %s151 = sadd.s32 %s150, 1
      %p154 = scmp.eq.s32.totalorder %s38, 1
      %p155 = scmp.ne.s32.totalorder %s150, %s152
      %p156 = scmp.eq.s32.totalorder %s38, 0
      %p157 = por %p155, %p156
      %p158 = scmp.ne.s32.totalorder %s150, %s152
      %p159 = scmp.eq.s32.totalorder %s43, 1
      %p160 = por %p158, %p159
      %p161 = scmp.ne.s32.totalorder %s152, %s153
      %p162 = scmp.eq.s32.totalorder %s43, 0
      %p163 = por %p161, %p162
      %p164 = scmp.ne.s32.totalorder %s152, %s153
      %p165 = scmp.eq.s32.totalorder %s44, 1
      %p166 = por %p164, %p165
      %p168 = scmp.ne.s32.totalorder %s153, %s167
      %p169 = scmp.eq.s32.totalorder %s44, 0
      %p170 = por %p168, %p169
      %s172 = sadd.s32 %s171, 1
      %p175 = scmp.eq.s32.totalorder %s38, 1
      %p176 = scmp.ne.s32.totalorder %s171, %s173
      %p177 = scmp.eq.s32.totalorder %s38, 0
      %p178 = por %p176, %p177
      %p179 = scmp.ne.s32.totalorder %s171, %s173
      %p180 = scmp.eq.s32.totalorder %s43, 1
      %p181 = por %p179, %p180
      %p182 = scmp.ne.s32.totalorder %s173, %s174
      %p183 = scmp.eq.s32.totalorder %s43, 0
      %p184 = por %p182, %p183
      %p185 = scmp.ne.s32.totalorder %s173, %s174
      %p186 = scmp.eq.s32.totalorder %s44, 1
      %p187 = por %p185, %p186
      %p189 = scmp.ne.s32.totalorder %s174, %s188
      %p190 = scmp.eq.s32.totalorder %s44, 0
      %p191 = por %p189, %p190
      %s193 = sadd.s32 %s192, 1
      %p196 = scmp.eq.s32.totalorder %s38, 1
      %p197 = scmp.ne.s32.totalorder %s192, %s194
      %p198 = scmp.eq.s32.totalorder %s38, 0
      %p199 = por %p197, %p198
      %p200 = scmp.ne.s32.totalorder %s192, %s194
      %p201 = scmp.eq.s32.totalorder %s43, 1
      %p202 = por %p200, %p201
      %p203 = scmp.ne.s32.totalorder %s194, %s195
      %p204 = scmp.eq.s32.totalorder %s43, 0
      %p205 = por %p203, %p204
      %p206 = scmp.ne.s32.totalorder %s194, %s195
      %p207 = scmp.eq.s32.totalorder %s44, 1
      %p208 = por %p206, %p207
      %p210 = scmp.ne.s32.totalorder %s195, %s209
      %p211 = scmp.eq.s32.totalorder %s44, 0
      %p212 = por %p210, %p211
      %s214 = sadd.s32 %s213, 1
      %p217 = scmp.eq.s32.totalorder %s38, 1
      %p218 = scmp.ne.s32.totalorder %s213, %s215
      %p219 = scmp.eq.s32.totalorder %s38, 0
      %p220 = por %p218, %p219
      %p221 = scmp.ne.s32.totalorder %s213, %s215
      %p222 = scmp.eq.s32.totalorder %s43, 1
      %p223 = por %p221, %p222
      %p224 = scmp.ne.s32.totalorder %s215, %s216
      %p225 = scmp.eq.s32.totalorder %s43, 0
      %p226 = por %p224, %p225
      %p227 = scmp.ne.s32.totalorder %s215, %s216
      %p228 = scmp.eq.s32.totalorder %s44, 1
      %p229 = por %p227, %p228
      %p231 = scmp.ne.s32.totalorder %s216, %s230
      %p232 = scmp.eq.s32.totalorder %s44, 0
      %p233 = por %p231, %p232
      %s235 = sadd.s32 %s234, 1
      %p238 = scmp.eq.s32.totalorder %s38, 1
      %p239 = scmp.ne.s32.totalorder %s234, %s236
      %p240 = scmp.eq.s32.totalorder %s38, 0
      %p241 = por %p239, %p240
      %p242 = scmp.ne.s32.totalorder %s234, %s236
      %p243 = scmp.eq.s32.totalorder %s43, 1
      %p244 = por %p242, %p243
      %p245 = scmp.ne.s32.totalorder %s236, %s237
      %p246 = scmp.eq.s32.totalorder %s43, 0
      %p247 = por %p245, %p246
      %p248 = scmp.ne.s32.totalorder %s236, %s237
      %p249 = scmp.eq.s32.totalorder %s44, 1
      %p250 = por %p248, %p249
      %p252 = scmp.ne.s32.totalorder %s237, %s251
      %p253 = scmp.eq.s32.totalorder %s44, 0
      %p254 = por %p252, %p253
      %s256 = sadd.s32 %s255, 1
      %p259 = scmp.eq.s32.totalorder %s38, 1
      %p260 = scmp.ne.s32.totalorder %s255, %s257
      %p261 = scmp.eq.s32.totalorder %s38, 0
      %p262 = por %p260, %p261
      %p263 = scmp.ne.s32.totalorder %s255, %s257
      %p264 = scmp.eq.s32.totalorder %s43, 1
      %p265 = por %p263, %p264
      %p266 = scmp.ne.s32.totalorder %s257, %s258
      %p267 = scmp.eq.s32.totalorder %s43, 0
      %p268 = por %p266, %p267
      %p269 = scmp.ne.s32.totalorder %s257, %s258
      %p270 = scmp.eq.s32.totalorder %s44, 1
      %p271 = por %p269, %p270
      %p273 = scmp.ne.s32.totalorder %s258, %s272
      %p274 = scmp.eq.s32.totalorder %s44, 0
      %p275 = por %p273, %p274
      %s277 = sadd.s32 %s276, 1
      %p280 = scmp.eq.s32.totalorder %s38, 1
      %p281 = scmp.ne.s32.totalorder %s276, %s278
      %p282 = scmp.eq.s32.totalorder %s38, 0
      %p283 = por %p281, %p282
      %p284 = scmp.ne.s32.totalorder %s276, %s278
      %p285 = scmp.eq.s32.totalorder %s43, 1
      %p286 = por %p284, %p285
      %p287 = scmp.ne.s32.totalorder %s278, %s279
      %p288 = scmp.eq.s32.totalorder %s43, 0
      %p289 = por %p287, %p288
      %p290 = scmp.ne.s32.totalorder %s278, %s279
      %p291 = scmp.eq.s32.totalorder %s44, 1
      %p292 = por %p290, %p291
      %p294 = scmp.ne.s32.totalorder %s279, %s293
      %p295 = scmp.eq.s32.totalorder %s44, 0
      %p296 = por %p294, %p295
      %s298 = sadd.s32 %s297, 1
      %p301 = scmp.eq.s32.totalorder %s38, 1
      %p302 = scmp.ne.s32.totalorder %s297, %s299
      %p303 = scmp.eq.s32.totalorder %s38, 0
      %p304 = por %p302, %p303
      %p305 = scmp.ne.s32.totalorder %s297, %s299
      %p306 = scmp.eq.s32.totalorder %s43, 1
      %p307 = por %p305, %p306
      %p308 = scmp.ne.s32.totalorder %s299, %s300
      %p309 = scmp.eq.s32.totalorder %s43, 0
      %p310 = por %p308, %p309
      %p311 = scmp.ne.s32.totalorder %s299, %s300
      %p312 = scmp.eq.s32.totalorder %s44, 1
      %p313 = por %p311, %p312
      %p315 = scmp.ne.s32.totalorder %s300, %s314
      %p316 = scmp.eq.s32.totalorder %s44, 0
      %p317 = por %p315, %p316
      %s319 = sadd.s32 %s318, 1
      %p322 = scmp.eq.s32.totalorder %s38, 1
      %p323 = scmp.ne.s32.totalorder %s318, %s320
      %p324 = scmp.eq.s32.totalorder %s38, 0
      %p325 = por %p323, %p324
      %p326 = scmp.ne.s32.totalorder %s318, %s320
      %p327 = scmp.eq.s32.totalorder %s43, 1
      %p328 = por %p326, %p327
      %p329 = scmp.ne.s32.totalorder %s320, %s321
      %p330 = scmp.eq.s32.totalorder %s43, 0
      %p331 = por %p329, %p330
      %p332 = scmp.ne.s32.totalorder %s320, %s321
      %p333 = scmp.eq.s32.totalorder %s44, 1
      %p334 = por %p332, %p333
      %p336 = scmp.ne.s32.totalorder %s321, %s335
      %p337 = scmp.eq.s32.totalorder %s44, 0
      %p338 = por %p336, %p337
      %s340 = sadd.s32 %s339, 1
      %p343 = scmp.eq.s32.totalorder %s38, 1
      %p344 = scmp.ne.s32.totalorder %s339, %s341
      %p345 = scmp.eq.s32.totalorder %s38, 0
      %p346 = por %p344, %p345
      %p347 = scmp.ne.s32.totalorder %s339, %s341
      %p348 = scmp.eq.s32.totalorder %s43, 1
      %p349 = por %p347, %p348
      %p350 = scmp.ne.s32.totalorder %s341, %s342
      %p351 = scmp.eq.s32.totalorder %s43, 0
      %p352 = por %p350, %p351
      %p353 = scmp.ne.s32.totalorder %s341, %s342
      %p354 = scmp.eq.s32.totalorder %s44, 1
      %p355 = por %p353, %p354
      %p357 = scmp.ne.s32.totalorder %s342, %s356
      %p358 = scmp.eq.s32.totalorder %s44, 0
      %p359 = por %p357, %p358
      %s361 = sadd.s32 %s360, 1
      %p364 = scmp.eq.s32.totalorder %s38, 1
      %p365 = scmp.ne.s32.totalorder %s360, %s362
      %p366 = scmp.eq.s32.totalorder %s38, 0
      %p367 = por %p365, %p366
      %p368 = scmp.ne.s32.totalorder %s360, %s362
      %p369 = scmp.eq.s32.totalorder %s43, 1
      %p370 = por %p368, %p369
      %p371 = scmp.ne.s32.totalorder %s362, %s363
      %p372 = scmp.eq.s32.totalorder %s43, 0
      %p373 = por %p371, %p372
      %p374 = scmp.ne.s32.totalorder %s362, %s363
      %p375 = scmp.eq.s32.totalorder %s44, 1
      %p376 = por %p374, %p375
      %p378 = scmp.ne.s32.totalorder %s363, %s377
      %p379 = scmp.eq.s32.totalorder %s44, 0
      %p380 = por %p378, %p379
      %s382 = sadd.s32 %s381, 1
      %p385 = scmp.eq.s32.totalorder %s38, 1
      %p386 = scmp.ne.s32.totalorder %s381, %s383
      %p387 = scmp.eq.s32.totalorder %s38, 0
      %p388 = por %p386, %p387
      %p389 = scmp.ne.s32.totalorder %s381, %s383
      %p390 = scmp.eq.s32.totalorder %s43, 1
      %p391 = por %p389, %p390
      %p392 = scmp.ne.s32.totalorder %s383, %s384
      %p393 = scmp.eq.s32.totalorder %s43, 0
      %p394 = por %p392, %p393
      %p395 = scmp.ne.s32.totalorder %s383, %s384
      %p396 = scmp.eq.s32.totalorder %s44, 1
      %p397 = por %p395, %p396
      %p399 = scmp.ne.s32.totalorder %s384, %s398
      %p400 = scmp.eq.s32.totalorder %s44, 0
      %p401 = por %p399, %p400
      %s403 = sadd.s32 %s402, 1
      %p406 = scmp.eq.s32.totalorder %s38, 1
      %p407 = scmp.ne.s32.totalorder %s402, %s404
      %p408 = scmp.eq.s32.totalorder %s38, 0
      %p409 = por %p407, %p408
      %p410 = scmp.ne.s32.totalorder %s402, %s404
      %p411 = scmp.eq.s32.totalorder %s43, 1
      %p412 = por %p410, %p411
      %p413 = scmp.ne.s32.totalorder %s404, %s405
      %p414 = scmp.eq.s32.totalorder %s43, 0
      %p415 = por %p413, %p414
      %p416 = scmp.ne.s32.totalorder %s404, %s405
      %p417 = scmp.eq.s32.totalorder %s44, 1
      %p418 = por %p416, %p417
      %p420 = scmp.ne.s32.totalorder %s405, %s419
      %p421 = scmp.eq.s32.totalorder %s44, 0
      %p422 = por %p420, %p421
      %s424 = sadd.s32 %s423, 1
      %p427 = scmp.eq.s32.totalorder %s38, 1
      %p428 = scmp.ne.s32.totalorder %s423, %s425
      %p429 = scmp.eq.s32.totalorder %s38, 0
      %p430 = por %p428, %p429
      %p431 = scmp.ne.s32.totalorder %s423, %s425
      %p432 = scmp.eq.s32.totalorder %s43, 1
      %p433 = por %p431, %p432
      %p434 = scmp.ne.s32.totalorder %s425, %s426
      %p435 = scmp.eq.s32.totalorder %s43, 0
      %p436 = por %p434, %p435
      %p437 = scmp.ne.s32.totalorder %s425, %s426
      %p438 = scmp.eq.s32.totalorder %s44, 1
      %p439 = por %p437, %p438
      %p441 = scmp.ne.s32.totalorder %s426, %s440
      %p442 = scmp.eq.s32.totalorder %s44, 0
      %p443 = por %p441, %p442
      %s445 = sadd.s32 %s444, 1
      %p448 = scmp.eq.s32.totalorder %s38, 1
      %p449 = scmp.ne.s32.totalorder %s444, %s446
      %p450 = scmp.eq.s32.totalorder %s38, 0
      %p451 = por %p449, %p450
      %p452 = scmp.ne.s32.totalorder %s444, %s446
      %p453 = scmp.eq.s32.totalorder %s43, 1
      %p454 = por %p452, %p453
      %p455 = scmp.ne.s32.totalorder %s446, %s447
      %p456 = scmp.eq.s32.totalorder %s43, 0
      %p457 = por %p455, %p456
      %p458 = scmp.ne.s32.totalorder %s446, %s447
      %p459 = scmp.eq.s32.totalorder %s44, 1
      %p460 = por %p458, %p459
      %p462 = scmp.ne.s32.totalorder %s447, %s461
      %p463 = scmp.eq.s32.totalorder %s44, 0
      %p464 = por %p462, %p463
      %s466 = sadd.s32 %s465, 1
      %p469 = scmp.eq.s32.totalorder %s38, 1
      %p470 = scmp.ne.s32.totalorder %s465, %s467
      %p471 = scmp.eq.s32.totalorder %s38, 0
      %p472 = por %p470, %p471
      %p473 = scmp.ne.s32.totalorder %s465, %s467
      %p474 = scmp.eq.s32.totalorder %s43, 1
      %p475 = por %p473, %p474
      %p476 = scmp.ne.s32.totalorder %s467, %s468
      %p477 = scmp.eq.s32.totalorder %s43, 0
      %p478 = por %p476, %p477
      %p479 = scmp.ne.s32.totalorder %s467, %s468
      %p480 = scmp.eq.s32.totalorder %s44, 1
      %p481 = por %p479, %p480
      %p483 = scmp.ne.s32.totalorder %s468, %s482
      %p484 = scmp.eq.s32.totalorder %s44, 0
      %p485 = por %p483, %p484
      %s487 = sadd.s32 %s486, 1
      %p490 = scmp.eq.s32.totalorder %s38, 1
      %p491 = scmp.ne.s32.totalorder %s486, %s488
      %p492 = scmp.eq.s32.totalorder %s38, 0
      %p493 = por %p491, %p492
      %p494 = scmp.ne.s32.totalorder %s486, %s488
      %p495 = scmp.eq.s32.totalorder %s43, 1
      %p496 = por %p494, %p495
      %p497 = scmp.ne.s32.totalorder %s488, %s489
      %p498 = scmp.eq.s32.totalorder %s43, 0
      %p499 = por %p497, %p498
      %p500 = scmp.ne.s32.totalorder %s488, %s489
      %p501 = scmp.eq.s32.totalorder %s44, 1
      %p502 = por %p500, %p501
      %p504 = scmp.ne.s32.totalorder %s489, %s503
      %p505 = scmp.eq.s32.totalorder %s44, 0
      %p506 = por %p504, %p505
      %s508 = sadd.s32 %s507, 1
      %p511 = scmp.eq.s32.totalorder %s38, 1
      %p512 = scmp.ne.s32.totalorder %s507, %s509
      %p513 = scmp.eq.s32.totalorder %s38, 0
      %p514 = por %p512, %p513
      %p515 = scmp.ne.s32.totalorder %s507, %s509
      %p516 = scmp.eq.s32.totalorder %s43, 1
      %p517 = por %p515, %p516
      %p518 = scmp.ne.s32.totalorder %s509, %s510
      %p519 = scmp.eq.s32.totalorder %s43, 0
      %p520 = por %p518, %p519
      %p521 = scmp.ne.s32.totalorder %s509, %s510
      %p522 = scmp.eq.s32.totalorder %s44, 1
      %p523 = por %p521, %p522
      %p525 = scmp.ne.s32.totalorder %s510, %s524
      %p526 = scmp.eq.s32.totalorder %s44, 0
      %p527 = por %p525, %p526
      %s529 = sadd.s32 %s528, 1
      %p532 = scmp.eq.s32.totalorder %s38, 1
      %p533 = scmp.ne.s32.totalorder %s528, %s530
      %p534 = scmp.eq.s32.totalorder %s38, 0
      %p535 = por %p533, %p534
      %p536 = scmp.ne.s32.totalorder %s528, %s530
      %p537 = scmp.eq.s32.totalorder %s43, 1
      %p538 = por %p536, %p537
      %p539 = scmp.ne.s32.totalorder %s530, %s531
      %p540 = scmp.eq.s32.totalorder %s43, 0
      %p541 = por %p539, %p540
      %p542 = scmp.ne.s32.totalorder %s530, %s531
      %p543 = scmp.eq.s32.totalorder %s44, 1
      %p544 = por %p542, %p543
      %p546 = scmp.ne.s32.totalorder %s531, %s545
      %p547 = scmp.eq.s32.totalorder %s44, 0
      %p548 = por %p546, %p547
      %s550 = sadd.s32 %s549, 1
      %p553 = scmp.eq.s32.totalorder %s38, 1
      %p554 = scmp.ne.s32.totalorder %s549, %s551
      %p555 = scmp.eq.s32.totalorder %s38, 0
      %p556 = por %p554, %p555
      %p557 = scmp.ne.s32.totalorder %s549, %s551
      %p558 = scmp.eq.s32.totalorder %s43, 1
      %p559 = por %p557, %p558
      %p560 = scmp.ne.s32.totalorder %s551, %s552
      %p561 = scmp.eq.s32.totalorder %s43, 0
      %p562 = por %p560, %p561
      %p563 = scmp.ne.s32.totalorder %s551, %s552
      %p564 = scmp.eq.s32.totalorder %s44, 1
      %p565 = por %p563, %p564
      %p567 = scmp.ne.s32.totalorder %s552, %s566
      %p568 = scmp.eq.s32.totalorder %s44, 0
      %p569 = por %p567, %p568
      %s571 = sadd.s32 %s570, 1
      %p574 = scmp.eq.s32.totalorder %s38, 1
      %p575 = scmp.ne.s32.totalorder %s570, %s572
      %p576 = scmp.eq.s32.totalorder %s38, 0
      %p577 = por %p575, %p576
      %p578 = scmp.ne.s32.totalorder %s570, %s572
      %p579 = scmp.eq.s32.totalorder %s43, 1
      %p580 = por %p578, %p579
      %p581 = scmp.ne.s32.totalorder %s572, %s573
      %p582 = scmp.eq.s32.totalorder %s43, 0
      %p583 = por %p581, %p582
      %p584 = scmp.ne.s32.totalorder %s572, %s573
      %p585 = scmp.eq.s32.totalorder %s44, 1
      %p586 = por %p584, %p585
      %p588 = scmp.ne.s32.totalorder %s573, %s587
      %p589 = scmp.eq.s32.totalorder %s44, 0
      %p590 = por %p588, %p589
      %s592 = sadd.s32 %s591, 1
      %p595 = scmp.eq.s32.totalorder %s38, 1
      %p596 = scmp.ne.s32.totalorder %s591, %s593
      %p597 = scmp.eq.s32.totalorder %s38, 0
      %p598 = por %p596, %p597
      %p599 = scmp.ne.s32.totalorder %s591, %s593
      %p600 = scmp.eq.s32.totalorder %s43, 1
      %p601 = por %p599, %p600
      %p602 = scmp.ne.s32.totalorder %s593, %s594
      %p603 = scmp.eq.s32.totalorder %s43, 0
      %p604 = por %p602, %p603
      %p605 = scmp.ne.s32.totalorder %s593, %s594
      %p606 = scmp.eq.s32.totalorder %s44, 1
      %p607 = por %p605, %p606
      %p609 = scmp.ne.s32.totalorder %s594, %s608
      %p610 = scmp.eq.s32.totalorder %s44, 0
      %p611 = por %p609, %p610
      %s612 = ssub.s32 %s38, %s45
      %p613 = scmp.eq.s32.totalorder %s612, 0
      %s615 = sadd.s32 %s614, 1
      %s616 = scalar_select %p613, %s614, %s615
      %p619 = pneg %p613
      %p620 = scmp.eq.s32.totalorder %s38, 1
      %p621 = por %p619, %p620
      %p622 = scmp.ne.s32.totalorder %s614, %s617
      %p623 = scmp.eq.s32.totalorder %s38, 0
      %p624 = por %p622, %p623
      %p625 = scmp.ne.s32.totalorder %s614, %s617
      %p626 = scmp.eq.s32.totalorder %s43, 1
      %p627 = por %p625, %p626
      %p628 = scmp.ne.s32.totalorder %s617, %s618
      %p629 = scmp.eq.s32.totalorder %s43, 0
      %p630 = por %p628, %p629
      %p631 = scmp.ne.s32.totalorder %s617, %s618
      %p632 = scmp.eq.s32.totalorder %s44, 1
      %p633 = por %p631, %p632
      %p635 = scmp.ne.s32.totalorder %s618, %s634
      %p636 = scmp.eq.s32.totalorder %s44, 0
      %p637 = por %p635, %p636
      %p638 = scmp.le.s32.totalorder 1, %s38
      %p639 = scmp.lt.s32.totalorder %s38, 3
      %p640 = pnand %p638, %p639
      %p641 = pneg %p640
      // Predicated region
      $region9: #{_lambda_.7} parent=5 // pred_check
        _
      $region10: #{_lambda_.7} parent=5 // pred_check_branch
        %643 = sbr.rel (%p640) target = $region12
      $region11: #{_lambda_.7} parent=5 // pred_region
        %s644 = ssub.s32 %s38, 1
        // Predicated region
        $region13: #{_lambda_.7} parent=11 // pred_check
          %p645 = pneg %p163
        $region14: #{_lambda_.7} parent=11 // pred_check_branch
          %647 = sbr.rel (%p645) target = $region16
        $region15: #{_lambda_.7} parent=11 // pred_region
          _
        $region16: #{_lambda_.7} parent=11 // pred_fallthru
          _
        // Predicated region
        $region17: #{_lambda_.7} parent=11 // pred_check
          %p648 = pneg %p184
        $region18: #{_lambda_.7} parent=11 // pred_check_branch
          %650 = sbr.rel (%p648) target = $region20
        $region19: #{_lambda_.7} parent=11 // pred_region
          _
        $region20: #{_lambda_.7} parent=11 // pred_fallthru
          _
        // Predicated region
        $region21: #{_lambda_.7} parent=11 // pred_check
          %p651 = pneg %p205
        $region22: #{_lambda_.7} parent=11 // pred_check_branch
          %653 = sbr.rel (%p651) target = $region24
        $region23: #{_lambda_.7} parent=11 // pred_region
          _
        $region24: #{_lambda_.7} parent=11 // pred_fallthru
          _
        // Predicated region
        $region25: #{_lambda_.7} parent=11 // pred_check
          %p654 = pneg %p226
        $region26: #{_lambda_.7} parent=11 // pred_check_branch
          %656 = sbr.rel (%p654) target = $region28
        $region27: #{_lambda_.7} parent=11 // pred_region
          _
        $region28: #{_lambda_.7} parent=11 // pred_fallthru
          _
        // Predicated region
        $region29: #{_lambda_.7} parent=11 // pred_check
          %p657 = pneg %p247
        $region30: #{_lambda_.7} parent=11 // pred_check_branch
          %659 = sbr.rel (%p657) target = $region32
        $region31: #{_lambda_.7} parent=11 // pred_region
          _
        $region32: #{_lambda_.7} parent=11 // pred_fallthru
          _
        // Predicated region
        $region33: #{_lambda_.7} parent=11 // pred_check
          %p660 = pneg %p268
        $region34: #{_lambda_.7} parent=11 // pred_check_branch
          %662 = sbr.rel (%p660) target = $region36
        $region35: #{_lambda_.7} parent=11 // pred_region
          %664 = vsyncadd [#allocation3], 0
          %s666 = sshll.u32 %s9, 4
          %s667 = int_to_ptr.hbm [resolvable:$true] %s666
          %s668 = sshll.u32 [#allocation2], 4
          %s669 = int_to_ptr.vmem [resolvable:$true] %s668
          %671 = dma.hbm_to_vmem [thread:$0]  %s667, 16, %s669, [#allocation3]
        $region36: #{_lambda_.7} parent=11 // pred_fallthru
          _
        // Predicated region
        $region37: #{_lambda_.7} parent=11 // pred_check
          %p672 = pneg %p289
        $region38: #{_lambda_.7} parent=11 // pred_check_branch
          %674 = sbr.rel (%p672) target = $region40
        $region39: #{_lambda_.7} parent=11 // pred_region
          %676 = vsyncadd [#allocation5], 0
          %s678 = sshll.u32 %s10, 4
          %s679 = int_to_ptr.hbm [resolvable:$true] %s678
          %s680 = sshll.u32 [#allocation4], 4
          %s681 = int_to_ptr.vmem [resolvable:$true] %s680
          %683 = dma.hbm_to_vmem [thread:$0]  %s679, 16, %s681, [#allocation5]
        $region40: #{_lambda_.7} parent=11 // pred_fallthru
          _
        // Predicated region
        $region41: #{_lambda_.7} parent=11 // pred_check
          %p684 = pneg %p310
        $region42: #{_lambda_.7} parent=11 // pred_check_branch
          %686 = sbr.rel (%p684) target = $region44
        $region43: #{_lambda_.7} parent=11 // pred_region
          %688 = vsyncadd [#allocation5], 0
          %s690 = sshll.u32 %s11, 4
          %s691 = int_to_ptr.hbm [resolvable:$true] %s690
          %s692 = sshll.u32 [#allocation6], 4
          %s693 = int_to_ptr.vmem [resolvable:$true] %s692
          %695 = dma.hbm_to_vmem [thread:$0]  %s691, 16, %s693, [#allocation5]
        $region44: #{_lambda_.7} parent=11 // pred_fallthru
          _
        // Predicated region
        $region45: #{_lambda_.7} parent=11 // pred_check
          %p696 = pneg %p331
        $region46: #{_lambda_.7} parent=11 // pred_check_branch
          %698 = sbr.rel (%p696) target = $region48
        $region47: #{_lambda_.7} parent=11 // pred_region
          _
        $region48: #{_lambda_.7} parent=11 // pred_fallthru
          _
        // Predicated region
        $region49: #{_lambda_.7} parent=11 // pred_check
          %p699 = pneg %p352
        $region50: #{_lambda_.7} parent=11 // pred_check_branch
          %701 = sbr.rel (%p699) target = $region52
        $region51: #{_lambda_.7} parent=11 // pred_region
          %703 = vsyncadd [#allocation8], 0
          %s705 = sshll.u32 %s13, 4
          %s706 = int_to_ptr.hbm [resolvable:$true] %s705
          %s707 = sshll.u32 [#allocation7], 4
          %s708 = int_to_ptr.vmem [resolvable:$true] %s707
          %710 = dma.hbm_to_vmem [thread:$0]  %s706, 16, %s708, [#allocation8]
        $region52: #{_lambda_.7} parent=11 // pred_fallthru
          _
        // Predicated region
        $region53: #{_lambda_.7} parent=11 // pred_check
          %p711 = pneg %p373
        $region54: #{_lambda_.7} parent=11 // pred_check_branch
          %713 = sbr.rel (%p711) target = $region56
        $region55: #{_lambda_.7} parent=11 // pred_region
          _
        $region56: #{_lambda_.7} parent=11 // pred_fallthru
          _
        // Predicated region
        $region57: #{_lambda_.7} parent=11 // pred_check
          %p714 = pneg %p394
        $region58: #{_lambda_.7} parent=11 // pred_check_branch
          %716 = sbr.rel (%p714) target = $region60
        $region59: #{_lambda_.7} parent=11 // pred_region
          _
        $region60: #{_lambda_.7} parent=11 // pred_fallthru
          _
        // Predicated region
        $region61: #{_lambda_.7} parent=11 // pred_check
          %p717 = pneg %p415
        $region62: #{_lambda_.7} parent=11 // pred_check_branch
          %719 = sbr.rel (%p717) target = $region64
        $region63: #{_lambda_.7} parent=11 // pred_region
          _
        $region64: #{_lambda_.7} parent=11 // pred_fallthru
          _
        // Predicated region
        $region65: #{_lambda_.7} parent=11 // pred_check
          %p720 = pneg %p436
        $region66: #{_lambda_.7} parent=11 // pred_check_branch
          %722 = sbr.rel (%p720) target = $region68
        $region67: #{_lambda_.7} parent=11 // pred_region
          %724 = vsyncadd [#allocation8], 0
          %s726 = sshll.u32 %s17, 4
          %s727 = int_to_ptr.hbm [resolvable:$true] %s726
          %s728 = sshll.u32 [#allocation9], 4
          %s729 = int_to_ptr.vmem [resolvable:$true] %s728
          %731 = dma.hbm_to_vmem [thread:$0]  %s727, 16, %s729, [#allocation8]
        $region68: #{_lambda_.7} parent=11 // pred_fallthru
          _
        // Predicated region
        $region69: #{_lambda_.7} parent=11 // pred_check
          %p732 = pneg %p457
        $region70: #{_lambda_.7} parent=11 // pred_check_branch
          %734 = sbr.rel (%p732) target = $region72
        $region71: #{_lambda_.7} parent=11 // pred_region
          %736 = vsyncadd [#allocation11], 0
          %s738 = sshll.u32 %s18, 4
          %s739 = int_to_ptr.hbm [resolvable:$true] %s738
          %s740 = sshll.u32 [#allocation10], 4
          %s741 = int_to_ptr.vmem [resolvable:$true] %s740
          %743 = dma.hbm_to_vmem [thread:$0]  %s739, 16, %s741, [#allocation11]
        $region72: #{_lambda_.7} parent=11 // pred_fallthru
          _
        // Predicated region
        $region73: #{_lambda_.7} parent=11 // pred_check
          %p744 = pneg %p478
        $region74: #{_lambda_.7} parent=11 // pred_check_branch
          %746 = sbr.rel (%p744) target = $region76
        $region75: #{_lambda_.7} parent=11 // pred_region
          %748 = vsyncadd [#allocation11], 0
          %s750 = sshll.u32 %s19, 4
          %s751 = int_to_ptr.hbm [resolvable:$true] %s750
          %s752 = sshll.u32 [#allocation12], 4
          %s753 = int_to_ptr.vmem [resolvable:$true] %s752
          %755 = dma.hbm_to_vmem [thread:$0]  %s751, 16, %s753, [#allocation11]
        $region76: #{_lambda_.7} parent=11 // pred_fallthru
          _
        // Predicated region
        $region77: #{_lambda_.7} parent=11 // pred_check
          %p756 = pneg %p499
        $region78: #{_lambda_.7} parent=11 // pred_check_branch
          %758 = sbr.rel (%p756) target = $region80
        $region79: #{_lambda_.7} parent=11 // pred_region
          _
        $region80: #{_lambda_.7} parent=11 // pred_fallthru
          _
        // Predicated region
        $region81: #{_lambda_.7} parent=11 // pred_check
          %p759 = pneg %p520
        $region82: #{_lambda_.7} parent=11 // pred_check_branch
          %761 = sbr.rel (%p759) target = $region84
        $region83: #{_lambda_.7} parent=11 // pred_region
          %763 = vsyncadd [#allocation14], 0
          %s765 = sshll.u32 %s21, 4
          %s766 = int_to_ptr.hbm [resolvable:$true] %s765
          %s767 = sshll.u32 [#allocation13], 4
          %s768 = int_to_ptr.vmem [resolvable:$true] %s767
          %770 = dma.hbm_to_vmem [thread:$0]  %s766, 16, %s768, [#allocation14]
        $region84: #{_lambda_.7} parent=11 // pred_fallthru
          _
        // Predicated region
        $region85: #{_lambda_.7} parent=11 // pred_check
          %p771 = pneg %p541
        $region86: #{_lambda_.7} parent=11 // pred_check_branch
          %773 = sbr.rel (%p771) target = $region88
        $region87: #{_lambda_.7} parent=11 // pred_region
          _
        $region88: #{_lambda_.7} parent=11 // pred_fallthru
          _
        // Predicated region
        $region89: #{_lambda_.7} parent=11 // pred_check
          %p774 = pneg %p562
        $region90: #{_lambda_.7} parent=11 // pred_check_branch
          %776 = sbr.rel (%p774) target = $region92
        $region91: #{_lambda_.7} parent=11 // pred_region
          %778 = vsyncadd [#allocation14], 0
          %s780 = sshll.u32 %s23, 4
          %s781 = int_to_ptr.hbm [resolvable:$true] %s780
          %s782 = sshll.u32 [#allocation15], 4
          %s783 = int_to_ptr.vmem [resolvable:$true] %s782
          %785 = dma.hbm_to_vmem [thread:$0]  %s781, 16, %s783, [#allocation14]
        $region92: #{_lambda_.7} parent=11 // pred_fallthru
          _
        // Predicated region
        $region93: #{_lambda_.7} parent=11 // pred_check
          %p786 = pneg %p583
        $region94: #{_lambda_.7} parent=11 // pred_check_branch
          %788 = sbr.rel (%p786) target = $region96
        $region95: #{_lambda_.7} parent=11 // pred_region
          %790 = vsyncadd [#allocation17], 0
          %s792 = sshll.u32 %s24, 4
          %s793 = int_to_ptr.hbm [resolvable:$true] %s792
          %s794 = sshll.u32 [#allocation16], 4
          %s795 = int_to_ptr.vmem [resolvable:$true] %s794
          %797 = dma.hbm_to_vmem [thread:$0]  %s793, 16, %s795, [#allocation17]
        $region96: #{_lambda_.7} parent=11 // pred_fallthru
          _
        // Predicated region
        $region97: #{_lambda_.7} parent=11 // pred_check
          %p798 = pneg %p604
        $region98: #{_lambda_.7} parent=11 // pred_check_branch
          %800 = sbr.rel (%p798) target = $region100
        $region99: #{_lambda_.7} parent=11 // pred_region
          %802 = vsyncadd [#allocation17], 0
          %s804 = sshll.u32 %s25, 4
          %s805 = int_to_ptr.hbm [resolvable:$true] %s804
          %s806 = sshll.u32 [#allocation18], 4
          %s807 = int_to_ptr.vmem [resolvable:$true] %s806
          %809 = dma.hbm_to_vmem [thread:$0]  %s805, 16, %s807, [#allocation17]
        $region100: #{_lambda_.7} parent=11 // pred_fallthru
          _
      $region12: #{_lambda_.7} parent=5 // pred_fallthru
        _
      %p810 = scmp.lt.s32.totalorder %s38, 2
      // Predicated region
      $region101: #{_lambda_.7} parent=5 // pred_check
        %p811 = pneg %p810
      $region102: #{_lambda_.7} parent=5 // pred_check_branch
        %813 = sbr.rel (%p811) target = $region104
      $region103: #{_lambda_.7} parent=5 // pred_region
        // Predicated region
        $region105: #{_lambda_.7} parent=103 // pred_check
          %p814 = pneg %p58
        $region106: #{_lambda_.7} parent=103 // pred_check_branch
          %816 = sbr.rel (%p814) target = $region108
        $region107: #{_lambda_.7} parent=103 // pred_region
          %p817 = scmp.lt.s32.totalorder %s38, 1
          %s818 = scalar_select %p817, %s38, 1
          %s819 = smul.addr %s818, 8
          %s820 = scalar_lea.vmem %s0, %s819
        $region108: #{_lambda_.7} parent=103 // pred_fallthru
          _
        // Predicated region
        $region109: #{_lambda_.7} parent=103 // pred_check
          %p821 = pneg %p84
        $region110: #{_lambda_.7} parent=103 // pred_check_branch
          %823 = sbr.rel (%p821) target = $region112
        $region111: #{_lambda_.7} parent=103 // pred_region
          %p824 = scmp.lt.s32.totalorder %s38, 1
          %s825 = scalar_select %p824, %s38, 1
          %s826 = smul.addr %s825, 8
          %s827 = scalar_lea.vmem %s1, %s826
        $region112: #{_lambda_.7} parent=103 // pred_fallthru
          _
        // Predicated region
        $region113: #{_lambda_.7} parent=103 // pred_check
          %p828 = pneg %p110
        $region114: #{_lambda_.7} parent=103 // pred_check_branch
          %830 = sbr.rel (%p828) target = $region116
        $region115: #{_lambda_.7} parent=103 // pred_region
          %p831 = scmp.lt.s32.totalorder %s38, 1
          %s832 = scalar_select %p831, %s38, 1
          %s833 = scalar_lea.vmem %s2, %s832
        $region116: #{_lambda_.7} parent=103 // pred_fallthru
          _
        // Predicated region
        $region117: #{_lambda_.7} parent=103 // pred_check
          %p834 = pneg %p136
        $region118: #{_lambda_.7} parent=103 // pred_check_branch
          %836 = sbr.rel (%p834) target = $region120
        $region119: #{_lambda_.7} parent=103 // pred_region
          %p837 = scmp.lt.s32.totalorder %s38, 1
          %s838 = scalar_select %p837, %s38, 1
          %s839 = scalar_lea.vmem %s3, %s838
        $region120: #{_lambda_.7} parent=103 // pred_fallthru
          _
      $region104: #{_lambda_.7} parent=5 // pred_fallthru
        _
      %p840 = scmp.le.s32.totalorder 1, %s38
      %p841 = scmp.lt.s32.totalorder %s38, 3
      %p842 = pnand %p840, %p841
      %p843 = pneg %p842
      // Predicated region
      $region121: #{_lambda_.7} parent=5 // pred_check
        _
      $region122: #{_lambda_.7} parent=5 // pred_check_branch
        %845 = sbr.rel (%p842) target = $region124
      $region123: #{_lambda_.7} parent=5 // pred_region
        %s846 = ssub.s32 %s38, 1
        // Predicated region
        $region125: #{_lambda_.7} parent=123 // pred_check
          %p847 = pneg %p268
        $region126: #{_lambda_.7} parent=123 // pred_check_branch
          %849 = sbr.rel (%p847) target = $region128
        $region127: #{_lambda_.7} parent=123 // pred_region
          %851 = dma.done [#allocation3], 16
        $region128: #{_lambda_.7} parent=123 // pred_fallthru
          _
        // Predicated region
        $region129: #{_lambda_.7} parent=123 // pred_check
          %p852 = pneg %p289
        $region130: #{_lambda_.7} parent=123 // pred_check_branch
          %854 = sbr.rel (%p852) target = $region132
        $region131: #{_lambda_.7} parent=123 // pred_region
          %856 = dma.done [#allocation5], 16
        $region132: #{_lambda_.7} parent=123 // pred_fallthru
          _
        // Predicated region
        $region133: #{_lambda_.7} parent=123 // pred_check
          %p857 = pneg %p310
        $region134: #{_lambda_.7} parent=123 // pred_check_branch
          %859 = sbr.rel (%p857) target = $region136
        $region135: #{_lambda_.7} parent=123 // pred_region
          %861 = dma.done [#allocation5], 16
        $region136: #{_lambda_.7} parent=123 // pred_fallthru
          _
        // Predicated region
        $region137: #{_lambda_.7} parent=123 // pred_check
          %p862 = pneg %p352
        $region138: #{_lambda_.7} parent=123 // pred_check_branch
          %864 = sbr.rel (%p862) target = $region140
        $region139: #{_lambda_.7} parent=123 // pred_region
          %866 = dma.done [#allocation8], 16
        $region140: #{_lambda_.7} parent=123 // pred_fallthru
          _
        // Predicated region
        $region141: #{_lambda_.7} parent=123 // pred_check
          %p867 = pneg %p436
        $region142: #{_lambda_.7} parent=123 // pred_check_branch
          %869 = sbr.rel (%p867) target = $region144
        $region143: #{_lambda_.7} parent=123 // pred_region
          %871 = dma.done [#allocation8], 16
        $region144: #{_lambda_.7} parent=123 // pred_fallthru
          _
        // Predicated region
        $region145: #{_lambda_.7} parent=123 // pred_check
          %p872 = pneg %p457
        $region146: #{_lambda_.7} parent=123 // pred_check_branch
          %874 = sbr.rel (%p872) target = $region148
        $region147: #{_lambda_.7} parent=123 // pred_region
          %876 = dma.done [#allocation11], 16
        $region148: #{_lambda_.7} parent=123 // pred_fallthru
          _
        // Predicated region
        $region149: #{_lambda_.7} parent=123 // pred_check
          %p877 = pneg %p478
        $region150: #{_lambda_.7} parent=123 // pred_check_branch
          %879 = sbr.rel (%p877) target = $region152
        $region151: #{_lambda_.7} parent=123 // pred_region
          %881 = dma.done [#allocation11], 16
        $region152: #{_lambda_.7} parent=123 // pred_fallthru
          _
        // Predicated region
        $region153: #{_lambda_.7} parent=123 // pred_check
          %p882 = pneg %p520
        $region154: #{_lambda_.7} parent=123 // pred_check_branch
          %884 = sbr.rel (%p882) target = $region156
        $region155: #{_lambda_.7} parent=123 // pred_region
          %886 = dma.done [#allocation14], 16
        $region156: #{_lambda_.7} parent=123 // pred_fallthru
          _
        // Predicated region
        $region157: #{_lambda_.7} parent=123 // pred_check
          %p887 = pneg %p562
        $region158: #{_lambda_.7} parent=123 // pred_check_branch
          %889 = sbr.rel (%p887) target = $region160
        $region159: #{_lambda_.7} parent=123 // pred_region
          %891 = dma.done [#allocation14], 16
        $region160: #{_lambda_.7} parent=123 // pred_fallthru
          _
        // Predicated region
        $region161: #{_lambda_.7} parent=123 // pred_check
          %p892 = pneg %p583
        $region162: #{_lambda_.7} parent=123 // pred_check_branch
          %894 = sbr.rel (%p892) target = $region164
        $region163: #{_lambda_.7} parent=123 // pred_region
          %896 = dma.done [#allocation17], 16
        $region164: #{_lambda_.7} parent=123 // pred_fallthru
          _
        // Predicated region
        $region165: #{_lambda_.7} parent=123 // pred_check
          %p897 = pneg %p604
        $region166: #{_lambda_.7} parent=123 // pred_check_branch
          %899 = sbr.rel (%p897) target = $region168
        $region167: #{_lambda_.7} parent=123 // pred_region
          %901 = dma.done [#allocation17], 16
        $region168: #{_lambda_.7} parent=123 // pred_fallthru
          _
        %p902 = scmp.lt.s32.totalorder %s43, 1
        %s903 = scalar_select %p902, %s43, 1
        %s904 = smul.addr %s903, 8
        %s905 = scalar_lea.vmem %s0, %s904
        %p906 = pneg %p64
        %p907 = pneg %p61
        %p908 = scmp.lt.s32.totalorder %s43, 1
        %s909 = scalar_select %p908, %s43, 1
        %s910 = smul.addr %s909, 8
        %s911 = scalar_lea.vmem %s1, %s910
        %p912 = pneg %p90
        %p913 = pneg %p87
        %p914 = scmp.lt.s32.totalorder %s43, 1
        %s915 = scalar_select %p914, %s43, 1
        %s916 = scalar_lea.vmem %s2, %s915
        %p917 = pneg %p116
        %p918 = pneg %p113
        %p919 = scmp.lt.s32.totalorder %s43, 1
        %s920 = scalar_select %p919, %s43, 1
        %s921 = scalar_lea.vmem %s3, %s920
        %p922 = pneg %p142
        %p923 = pneg %p139
        %p924 = pneg %p163
        %p925 = pneg %p160
        %p926 = pneg %p184
        %p927 = pneg %p181
        %p928 = pneg %p205
        %p929 = pneg %p202
        %p930 = pneg %p226
        %p931 = pneg %p223
        %p932 = pneg %p247
        %p933 = pneg %p244
        %p934 = pneg %p268
        %p935 = pneg %p265
        %p936 = pneg %p289
        %p937 = pneg %p286
        %p938 = pneg %p310
        %p939 = pneg %p307
        %p940 = pneg %p331
        %p941 = pneg %p328
        %p942 = pneg %p352
        %p943 = pneg %p349
        %p944 = pneg %p373
        %p945 = pneg %p370
        %p946 = pneg %p394
        %p947 = pneg %p391
        %p948 = pneg %p415
        %p949 = pneg %p412
        %p950 = pneg %p436
        %p951 = pneg %p433
        %p952 = pneg %p457
        %p953 = pneg %p454
        %p954 = pneg %p478
        %p955 = pneg %p475
        %p956 = pneg %p499
        %p957 = pneg %p496
        %p958 = pneg %p520
        %p959 = pneg %p517
        %p960 = pneg %p541
        %p961 = pneg %p538
        %p962 = pneg %p562
        %p963 = pneg %p559
        %p964 = pneg %p583
        %p965 = pneg %p580
        %p966 = pneg %p604
        %p967 = pneg %p601
        %p968 = pneg %p630
        %p969 = pneg %p627
        %p970 = scmp.lt.s32.totalorder %s43, 1
        %s971 = scalar_select %p970, %s43, 1
        %s972 = smul.addr %s971, 8
        %s973 = scalar_lea.vmem %s26, %s972
        %p974 = scmp.lt.s32.totalorder %s43, 1
        %s975 = scalar_select %p974, %s43, 1
        %s976 = smul.addr %s975, 8
        %s977 = scalar_lea.vmem %s0, %s976
        %p978 = scmp.lt.s32.totalorder %s43, 1
        %s979 = scalar_select %p978, %s43, 1
        %s980 = smul.addr %s979, 8
        %s981 = scalar_lea.vmem %s1, %s980
        %p982 = scmp.lt.s32.totalorder %s43, 1
        %s983 = scalar_select %p982, %s43, 1
        %s984 = scalar_lea.vmem %s2, %s983
        %p985 = scmp.lt.s32.totalorder %s43, 1
        %s986 = scalar_select %p985, %s43, 1
        %s987 = scalar_lea.vmem %s3, %s986
        %p988 = scmp.lt.s32.totalorder %s43, 1
        %s989 = scalar_select %p988, %s43, 1
        %s990 = smul.addr %s989, 8
        %s991 = scalar_lea.vmem %s26, %s990
        %v993 = vld [vmem:[%s977] sm:$0xff]
        %v994 = vld [vmem:[%s981] sm:$0xff]
        %v995 = vld [vmem:[%s984] sm:$0x1]
        %v996 = vunpack.c.0.s8 %v995
        %v997 = vcvt.s32.f32 %v996
        %v998 = vlaneseq
        %v999 = vshrl.u32 %v998, 7
        %v1000 = vlaneseq
        %v1001 = vand.u32 %v1000, 127
        %vm1002 = vcmp.ge.s32.totalorder %v999, %v1001
        %v1003 = vsel %vm1002, 1.0, 0.0
        %v1004 = vperm.slane %v997, 0
        %v1005 = vmul.f32 %v1003, %v1004
        %v1006 = vsub.f32 1.0, %v1005
        %v1007 = vmul.f32 %v1006, -1e+09
        %v1008 = vpack.c.bf16 %v993, %v993
        %v1009 = vld [vmem:[%s4] sm:$0xf]
        %v1010 = vld [vmem:[%s4 + $0x4] sm:$0xf]
        %v1011 = vld [vmem:[%s4 + $0x8] sm:$0xf]
        %v1012 = vld [vmem:[%s4 + $0xc] sm:$0xf]
        %v1013 = vld [vmem:[%s4 + $0x10] sm:$0xf]
        %v1014 = vld [vmem:[%s4 + $0x14] sm:$0xf]
        %v1015 = vld [vmem:[%s4 + $0x18] sm:$0xf]
        %v1016 = vld [vmem:[%s4 + $0x1c] sm:$0xf]
        %v1017 = vld [vmem:[%s4 + $0x20] sm:$0xf]
        %v1018 = vld [vmem:[%s4 + $0x24] sm:$0xf]
        %v1019 = vld [vmem:[%s4 + $0x28] sm:$0xf]
        %v1020 = vld [vmem:[%s4 + $0x2c] sm:$0xf]
        %v1021 = vld [vmem:[%s4 + $0x30] sm:$0xf]
        %v1022 = vld [vmem:[%s4 + $0x34] sm:$0xf]
        %v1023 = vld [vmem:[%s4 + $0x38] sm:$0xf]
        %v1024 = vld [vmem:[%s4 + $0x3c] sm:$0xf]
        %v1025 = vld [vmem:[%s5] sm:$0x1]
        %v1027 = vperm.slane %v1025, 0
        %v1045 = vunpack.c.l.b16 %v1009
        %v1046 = vunpack.c.l.b16 %v1010
        %v1047 = vunpack.c.l.b16 %v1011
        %v1048 = vunpack.c.l.b16 %v1012
        %v1049 = vunpack.c.l.b16 %v1013
        %v1050 = vunpack.c.l.b16 %v1014
        %v1051 = vunpack.c.l.b16 %v1015
        %v1052 = vunpack.c.l.b16 %v1016
        %v1053 = vunpack.c.l.b16 %v1017
        %v1054 = vunpack.c.l.b16 %v1018
        %v1055 = vunpack.c.l.b16 %v1019
        %v1056 = vunpack.c.l.b16 %v1020
        %v1057 = vunpack.c.l.b16 %v1021
        %v1058 = vunpack.c.l.b16 %v1022
        %v1059 = vunpack.c.l.b16 %v1023
        %v1060 = vunpack.c.l.b16 %v1024
        %v1061 = vpack.c.b16 %v1046, %v1045
        %v1062 = vpack.c.b16 %v1048, %v1047
        %v1063 = vpack.c.b16 %v1050, %v1049
        %v1064 = vpack.c.b16 %v1052, %v1051
        %v1065 = vpack.c.b16 %v1054, %v1053
        %v1066 = vpack.c.b16 %v1056, %v1055
        %v1067 = vpack.c.b16 %v1058, %v1057
        %v1068 = vpack.c.b16 %v1060, %v1059
        %1077 = vmatpush.bf16.msra.mxu0 %v1068
        %1078 = vmatpush.bf16.msra.mxu0 %v1067
        %1079 = vmatpush.bf16.msra.mxu0 %v1066
        %1080 = vmatpush.bf16.msra.mxu0 %v1065
        %1081 = vmatpush.bf16.msra.mxu0 %v1064
        %1082 = vmatpush.bf16.msra.mxu0 %v1063
        %1083 = vmatpush.bf16.msra.mxu0 %v1062
        %1084 = vmatpush.bf16.msra.mxu0 %v1061
        %1085 = vmatmul.bf16.gmra.mxu0 %v1008
        %v1086 = vpop.f32.mrf.mxu0
        %v1087 = vadd.f32 %v1027, %v1086
        %v1088 = vpop.f32.mrf.mxu0
        %1089 = vdwg.mxu0
        %v1090 = vld [vmem:[%s6] sm:$0xff]
        %v1091 = vld [vmem:[%s6 + $0x8] sm:$0xff]
        %v1092 = vld [vmem:[%s6 + $0x10] sm:$0xff]
        %v1093 = vld [vmem:[%s6 + $0x18] sm:$0xff]
        %v1094 = vld [vmem:[%s6 + $0x20] sm:$0xff]
        %v1095 = vld [vmem:[%s6 + $0x28] sm:$0xff]
        %v1096 = vld [vmem:[%s6 + $0x30] sm:$0xff]
        %v1097 = vld [vmem:[%s6 + $0x38] sm:$0xff]
        %v1098 = vld [vmem:[%s6 + $0x40] sm:$0xff]
        %v1099 = vld [vmem:[%s6 + $0x48] sm:$0xff]
        %v1100 = vld [vmem:[%s6 + $0x50] sm:$0xff]
        %v1101 = vld [vmem:[%s6 + $0x58] sm:$0xff]
        %v1102 = vld [vmem:[%s6 + $0x60] sm:$0xff]
        %v1103 = vld [vmem:[%s6 + $0x68] sm:$0xff]
        %v1104 = vld [vmem:[%s6 + $0x70] sm:$0xff]
        %v1105 = vld [vmem:[%s6 + $0x78] sm:$0xff]
        %v1106 = vld [vmem:[%s7] sm:$0x3]
        %v1108 = vperm.slane %v1106, 0
        %v1109 = vperm.slane %v1106, 1
        %v1128 = vunpack.c.l.b16 %v1090
        %v1129 = vunpack.c.h.b16 %v1090
        %v1130 = vunpack.c.l.b16 %v1091
        %v1131 = vunpack.c.h.b16 %v1091
        %v1132 = vunpack.c.l.b16 %v1092
        %v1133 = vunpack.c.h.b16 %v1092
        %v1134 = vunpack.c.l.b16 %v1093
        %v1135 = vunpack.c.h.b16 %v1093
        %v1136 = vunpack.c.l.b16 %v1094
        %v1137 = vunpack.c.h.b16 %v1094
        %v1138 = vunpack.c.l.b16 %v1095
        %v1139 = vunpack.c.h.b16 %v1095
        %v1140 = vunpack.c.l.b16 %v1096
        %v1141 = vunpack.c.h.b16 %v1096
        %v1142 = vunpack.c.l.b16 %v1097
        %v1143 = vunpack.c.h.b16 %v1097
        %v1144 = vunpack.c.l.b16 %v1098
        %v1145 = vunpack.c.h.b16 %v1098
        %v1146 = vunpack.c.l.b16 %v1099
        %v1147 = vunpack.c.h.b16 %v1099
        %v1148 = vunpack.c.l.b16 %v1100
        %v1149 = vunpack.c.h.b16 %v1100
        %v1150 = vunpack.c.l.b16 %v1101
        %v1151 = vunpack.c.h.b16 %v1101
        %v1152 = vunpack.c.l.b16 %v1102
        %v1153 = vunpack.c.h.b16 %v1102
        %v1154 = vunpack.c.l.b16 %v1103
        %v1155 = vunpack.c.h.b16 %v1103
        %v1156 = vunpack.c.l.b16 %v1104
        %v1157 = vunpack.c.h.b16 %v1104
        %v1158 = vunpack.c.l.b16 %v1105
        %v1159 = vunpack.c.h.b16 %v1105
        %v1160 = vpack.c.b16 %v1130, %v1128
        %v1161 = vpack.c.b16 %v1131, %v1129
        %v1162 = vpack.c.b16 %v1134, %v1132
        %v1163 = vpack.c.b16 %v1135, %v1133
        %v1164 = vpack.c.b16 %v1138, %v1136
        %v1165 = vpack.c.b16 %v1139, %v1137
        %v1166 = vpack.c.b16 %v1142, %v1140
        %v1167 = vpack.c.b16 %v1143, %v1141
        %v1168 = vpack.c.b16 %v1146, %v1144
        %v1169 = vpack.c.b16 %v1147, %v1145
        %v1170 = vpack.c.b16 %v1150, %v1148
        %v1171 = vpack.c.b16 %v1151, %v1149
        %v1172 = vpack.c.b16 %v1154, %v1152
        %v1173 = vpack.c.b16 %v1155, %v1153
        %v1174 = vpack.c.b16 %v1158, %v1156
        %v1175 = vpack.c.b16 %v1159, %v1157
        %1192 = vmatpush.bf16.msra.mxu0 %v1174
        %1193 = vmatpush.bf16.msra.mxu0 %v1172
        %1194 = vmatpush.bf16.msra.mxu0 %v1170
        %1195 = vmatpush.bf16.msra.mxu0 %v1168
        %1196 = vmatpush.bf16.msra.mxu0 %v1166
        %1197 = vmatpush.bf16.msra.mxu0 %v1164
        %1198 = vmatpush.bf16.msra.mxu0 %v1162
        %1199 = vmatpush.bf16.msra.mxu0 %v1160
        %1200 = vmatmul.bf16.gmra.mxu0 %v1008
        %v1201 = vpop.f32.mrf.mxu0
        %v1202 = vadd.f32 %v1108, %v1201
        %v1203 = vpop.f32.mrf.mxu0
        %1204 = vdwg.mxu0
        %1205 = vmatpush.bf16.msra.mxu0 %v1175
        %1206 = vmatpush.bf16.msra.mxu0 %v1173
        %1207 = vmatpush.bf16.msra.mxu0 %v1171
        %1208 = vmatpush.bf16.msra.mxu0 %v1169
        %1209 = vmatpush.bf16.msra.mxu0 %v1167
        %1210 = vmatpush.bf16.msra.mxu0 %v1165
        %1211 = vmatpush.bf16.msra.mxu0 %v1163
        %1212 = vmatpush.bf16.msra.mxu0 %v1161
        %1213 = vmatmul.bf16.gmra.mxu0 %v1008
        %v1214 = vpop.f32.mrf.mxu0
        %v1215 = vadd.f32 %v1109, %v1214
        %v1216 = vpop.f32.mrf.mxu0
        %1217 = vdwg.mxu0
        %v1218 = vpack.c.bf16 %v1087, %v1087
        %v1219 = vpack.c.bf16 %v1202, %v1202
        %v1220 = vpack.c.bf16 %v1215, %v1215
        %1222 = vrot.lane.b32.xlu0 %v1218, 96
        %v1223 = vpop.permute.xlu0 %1222
        %1224 = vrot.lane.b32.xlu0 %v1218, 64
        %v1225 = vpop.permute.xlu0 %1224
        %1226 = vrot.lane.b32.xlu0 %v1218, 32
        %v1227 = vpop.permute.xlu0 %1226
        %1229 = vrot.lane.b32.xlu0 %v1219, 96
        %v1230 = vpop.permute.xlu0 %1229
        %1231 = vrot.lane.b32.xlu0 %v1219, 64
        %v1232 = vpop.permute.xlu0 %1231
        %1233 = vrot.lane.b32.xlu0 %v1219, 32
        %v1234 = vpop.permute.xlu0 %1233
        %1236 = vrot.lane.b32.xlu0 %v1220, 96
        %v1237 = vpop.permute.xlu0 %1236
        %1238 = vrot.lane.b32.xlu0 %v1220, 64
        %v1239 = vpop.permute.xlu0 %1238
        %1240 = vrot.lane.b32.xlu0 %v1220, 32
        %v1241 = vpop.permute.xlu0 %1240
        %vm1242 = vcmask 261120
        %v1244 = vsel %vm1242, %v1218, 0
        %v1247 = vsel %vm1242, %v1219, 0
        %1249 = vmatpush.bf16.xpose.msra.mxu0 0
        %1250 = vmatpush.bf16.xpose.msra.mxu0 0
        %1251 = vmatpush.bf16.xpose.msra.mxu0 0
        %1252 = vmatpush.bf16.xpose.msra.mxu0 0
        %1253 = vmatpush.bf16.xpose.msra.mxu0 0
        %1254 = vmatpush.bf16.xpose.msra.mxu0 0
        %1255 = vmatpush.bf16.xpose.msra.mxu0 0
        %1256 = vmatpush.bf16.xpose.msra.mxu0 %v1247
        %1257 = vmatmul.bf16.gmra.mxu0 %v1244
        %v1258 = vpop.f32.mrf.mxu0
        %v1259 = vadd.f32 0.0, %v1258
        %v1260 = vpop.f32.mrf.mxu0
        %1261 = vdwg.mxu0
        %v1263 = vsel %vm1242, %v1223, 0
        %v1266 = vsel %vm1242, %v1230, 0
        %1268 = vmatpush.bf16.xpose.msra.mxu0 0
        %1269 = vmatpush.bf16.xpose.msra.mxu0 0
        %1270 = vmatpush.bf16.xpose.msra.mxu0 0
        %1271 = vmatpush.bf16.xpose.msra.mxu0 0
        %1272 = vmatpush.bf16.xpose.msra.mxu0 0
        %1273 = vmatpush.bf16.xpose.msra.mxu0 0
        %1274 = vmatpush.bf16.xpose.msra.mxu0 0
        %1275 = vmatpush.bf16.xpose.msra.mxu0 %v1266
        %1276 = vmatmul.bf16.gmra.mxu0 %v1263
        %v1277 = vpop.f32.mrf.mxu0
        %v1278 = vadd.f32 0.0, %v1277
        %v1279 = vpop.f32.mrf.mxu0
        %1280 = vdwg.mxu0
        %v1282 = vsel %vm1242, %v1225, 0
        %v1285 = vsel %vm1242, %v1232, 0
        %1287 = vmatpush.bf16.xpose.msra.mxu0 0
        %1288 = vmatpush.bf16.xpose.msra.mxu0 0
        %1289 = vmatpush.bf16.xpose.msra.mxu0 0
        %1290 = vmatpush.bf16.xpose.msra.mxu0 0
        %1291 = vmatpush.bf16.xpose.msra.mxu0 0
        %1292 = vmatpush.bf16.xpose.msra.mxu0 0
        %1293 = vmatpush.bf16.xpose.msra.mxu0 0
        %1294 = vmatpush.bf16.xpose.msra.mxu0 %v1285
        %1295 = vmatmul.bf16.gmra.mxu0 %v1282
        %v1296 = vpop.f32.mrf.mxu0
        %v1297 = vadd.f32 0.0, %v1296
        %v1298 = vpop.f32.mrf.mxu0
        %1299 = vdwg.mxu0
        %v1301 = vsel %vm1242, %v1227, 0
        %v1304 = vsel %vm1242, %v1234, 0
        %1306 = vmatpush.bf16.xpose.msra.mxu0 0
        %1307 = vmatpush.bf16.xpose.msra.mxu0 0
        %1308 = vmatpush.bf16.xpose.msra.mxu0 0
        %1309 = vmatpush.bf16.xpose.msra.mxu0 0
        %1310 = vmatpush.bf16.xpose.msra.mxu0 0
        %1311 = vmatpush.bf16.xpose.msra.mxu0 0
        %1312 = vmatpush.bf16.xpose.msra.mxu0 0
        %1313 = vmatpush.bf16.xpose.msra.mxu0 %v1304
        %1314 = vmatmul.bf16.gmra.mxu0 %v1301
        %v1315 = vpop.f32.mrf.mxu0
        %v1316 = vadd.f32 0.0, %v1315
        %v1317 = vpop.f32.mrf.mxu0
        %1318 = vdwg.mxu0
        %v1319 = vmul.f32 %v1259, 0.35355338
        %v1320 = vmul.f32 %v1278, 0.35355338
        %v1321 = vmul.f32 %v1297, 0.35355338
        %v1322 = vmul.f32 %v1316, 0.35355338
        %v1323 = vadd.f32 %v1319, %v1007
        %v1324 = vadd.f32 %v1320, %v1007
        %v1325 = vadd.f32 %v1321, %v1007
        %v1326 = vadd.f32 %v1322, %v1007
        %vm1327 = vcmask 64512
        %v1328 = vsel %vm1327, %v1323, -inf
        %1329 = vmax.xlane.f32.xlu0 %v1328
        %v1330 = vpop.xlane.xlu0 %1329
        %v1331 = vsel %vm1327, %v1324, -inf
        %1332 = vmax.xlane.f32.xlu0 %v1331
        %v1333 = vpop.xlane.xlu0 %1332
        %v1334 = vsel %vm1327, %v1325, -inf
        %1335 = vmax.xlane.f32.xlu0 %v1334
        %v1336 = vpop.xlane.xlu0 %1335
        %v1337 = vsel %vm1327, %v1326, -inf
        %1338 = vmax.xlane.f32.xlu0 %v1337
        %v1339 = vpop.xlane.xlu0 %1338
        %v1340 = vsub.f32 %v1323, %v1330
        %v1341 = vsub.f32 %v1324, %v1333
        %v1342 = vsub.f32 %v1325, %v1336
        %v1343 = vsub.f32 %v1326, %v1339
        %v1344 = vmul.f32 %v1340, 1.442695
        %v1345 = vpow.pop %v1344
        %v1346 = vmul.f32 %v1341, 1.442695
        %v1347 = vpow.pop %v1346
        %v1348 = vmul.f32 %v1342, 1.442695
        %v1349 = vpow.pop %v1348
        %v1350 = vmul.f32 %v1343, 1.442695
        %v1351 = vpow.pop %v1350
        %v1352 = vsel %vm1327, %v1345, 0.0
        %1353 = vadd.xlane.f32.xlu0 %v1352
        %v1354 = vpop.xlane.xlu0 %1353
        %v1355 = vsel %vm1327, %v1347, 0.0
        %1356 = vadd.xlane.f32.xlu0 %v1355
        %v1357 = vpop.xlane.xlu0 %1356
        %v1358 = vsel %vm1327, %v1349, 0.0
        %1359 = vadd.xlane.f32.xlu0 %v1358
        %v1360 = vpop.xlane.xlu0 %1359
        %v1361 = vsel %vm1327, %v1351, 0.0
        %1362 = vadd.xlane.f32.xlu0 %v1361
        %v1363 = vpop.xlane.xlu0 %1362
        %v1364 = vrcp.pop %v1354
        %v1365 = vrcp.pop %v1357
        %v1366 = vrcp.pop %v1360
        %v1367 = vrcp.pop %v1363
        %v1368 = vmul.f32 %v1345, %v1364
        %v1369 = vmul.f32 %v1347, %v1365
        %v1370 = vmul.f32 %v1349, %v1366
        %v1371 = vmul.f32 %v1351, %v1367
        %v1372 = vpack.c.bf16 %v1368, %v1368
        %v1373 = vpack.c.bf16 %v1369, %v1369
        %v1374 = vpack.c.bf16 %v1370, %v1370
        %v1375 = vpack.c.bf16 %v1371, %v1371
        %v1377 = vsel %vm1327, %v1372, 0
        %vm1379 = vcmask 1043456
        %v1381 = vsel %vm1379, %v1220, 0
        %1383 = vmatpush.bf16.msra.mxu0 0
        %1384 = vmatpush.bf16.msra.mxu0 0
        %1385 = vmatpush.bf16.msra.mxu0 0
        %1386 = vmatpush.bf16.msra.mxu0 0
        %1387 = vmatpush.bf16.msra.mxu0 0
        %1388 = vmatpush.bf16.msra.mxu0 0
        %1389 = vmatpush.bf16.msra.mxu0 0
        %1390 = vmatpush.bf16.msra.mxu0 %v1381
        %1391 = vmatmul.bf16.gmra.mxu0 %v1377
        %v1392 = vpop.f32.mrf.mxu0
        %v1393 = vadd.f32 0.0, %v1392
        %v1394 = vpop.f32.mrf.mxu0
        %1395 = vdwg.mxu0
        %v1397 = vsel %vm1327, %v1373, 0
        %v1400 = vsel %vm1379, %v1237, 0
        %1402 = vmatpush.bf16.msra.mxu0 0
        %1403 = vmatpush.bf16.msra.mxu0 0
        %1404 = vmatpush.bf16.msra.mxu0 0
        %1405 = vmatpush.bf16.msra.mxu0 0
        %1406 = vmatpush.bf16.msra.mxu0 0
        %1407 = vmatpush.bf16.msra.mxu0 0
        %1408 = vmatpush.bf16.msra.mxu0 0
        %1409 = vmatpush.bf16.msra.mxu0 %v1400
        %1410 = vmatmul.bf16.gmra.mxu0 %v1397
        %v1411 = vpop.f32.mrf.mxu0
        %v1412 = vadd.f32 0.0, %v1411
        %v1413 = vpop.f32.mrf.mxu0
        %1414 = vdwg.mxu0
        %v1416 = vsel %vm1327, %v1374, 0
        %v1419 = vsel %vm1379, %v1239, 0
        %1421 = vmatpush.bf16.msra.mxu0 0
        %1422 = vmatpush.bf16.msra.mxu0 0
        %1423 = vmatpush.bf16.msra.mxu0 0
        %1424 = vmatpush.bf16.msra.mxu0 0
        %1425 = vmatpush.bf16.msra.mxu0 0
        %1426 = vmatpush.bf16.msra.mxu0 0
        %1427 = vmatpush.bf16.msra.mxu0 0
        %1428 = vmatpush.bf16.msra.mxu0 %v1419
        %1429 = vmatmul.bf16.gmra.mxu0 %v1416
        %v1430 = vpop.f32.mrf.mxu0
        %v1431 = vadd.f32 0.0, %v1430
        %v1432 = vpop.f32.mrf.mxu0
        %1433 = vdwg.mxu0
        %v1435 = vsel %vm1327, %v1375, 0
        %v1438 = vsel %vm1379, %v1241, 0
        %1440 = vmatpush.bf16.msra.mxu0 0
        %1441 = vmatpush.bf16.msra.mxu0 0
        %1442 = vmatpush.bf16.msra.mxu0 0
        %1443 = vmatpush.bf16.msra.mxu0 0
        %1444 = vmatpush.bf16.msra.mxu0 0
        %1445 = vmatpush.bf16.msra.mxu0 0
        %1446 = vmatpush.bf16.msra.mxu0 0
        %1447 = vmatpush.bf16.msra.mxu0 %v1438
        %1448 = vmatmul.bf16.gmra.mxu0 %v1435
        %v1449 = vpop.f32.mrf.mxu0
        %v1450 = vadd.f32 0.0, %v1449
        %v1451 = vpop.f32.mrf.mxu0
        %1452 = vdwg.mxu0
        %1454 = vrot.lane.b32.xlu0 %v1412, 32
        %v1455 = vpop.permute.xlu0 %1454
        %1458 = vrot.lane.b32.xlu0 %v1431, 64
        %v1459 = vpop.permute.xlu0 %1458
        %1462 = vrot.lane.b32.xlu0 %v1450, 96
        %v1463 = vpop.permute.xlu0 %1462
        %v1465 = vsel %vm1242, %v1393, %v1455
        %vm1466 = vcmask 523264
        %v1467 = vsel %vm1466, %v1465, %v1459
        %vm1468 = vcmask 785408
        %v1469 = vsel %vm1468, %v1467, %v1463
        %v1470 = vpack.c.bf16 %v1469, %v1469
        %v1471 = vld [vmem:[%s8] sm:$0xf]
        %v1472 = vld [vmem:[%s8 + $0x4] sm:$0xf]
        %v1473 = vld [vmem:[%s8 + $0x8] sm:$0xf]
        %v1474 = vld [vmem:[%s8 + $0xc] sm:$0xf]
        %v1475 = vld [vmem:[%s8 + $0x10] sm:$0xf]
        %v1476 = vld [vmem:[%s8 + $0x14] sm:$0xf]
        %v1477 = vld [vmem:[%s8 + $0x18] sm:$0xf]
        %v1478 = vld [vmem:[%s8 + $0x1c] sm:$0xf]
        %v1479 = vld [vmem:[%s8 + $0x20] sm:$0xf]
        %v1480 = vld [vmem:[%s8 + $0x24] sm:$0xf]
        %v1481 = vld [vmem:[%s8 + $0x28] sm:$0xf]
        %v1482 = vld [vmem:[%s8 + $0x2c] sm:$0xf]
        %v1483 = vld [vmem:[%s8 + $0x30] sm:$0xf]
        %v1484 = vld [vmem:[%s8 + $0x34] sm:$0xf]
        %v1485 = vld [vmem:[%s8 + $0x38] sm:$0xf]
        %v1486 = vld [vmem:[%s8 + $0x3c] sm:$0xf]
        %v1487 = vld [vmem:[#allocation2] sm:$0x1]
        %v1489 = vperm.slane %v1487, 0
        %v1507 = vunpack.c.l.b16 %v1471
        %v1508 = vunpack.c.l.b16 %v1472
        %v1509 = vunpack.c.l.b16 %v1473
        %v1510 = vunpack.c.l.b16 %v1474
        %v1511 = vunpack.c.l.b16 %v1475
        %v1512 = vunpack.c.l.b16 %v1476
        %v1513 = vunpack.c.l.b16 %v1477
        %v1514 = vunpack.c.l.b16 %v1478
        %v1515 = vunpack.c.l.b16 %v1479
        %v1516 = vunpack.c.l.b16 %v1480
        %v1517 = vunpack.c.l.b16 %v1481
        %v1518 = vunpack.c.l.b16 %v1482
        %v1519 = vunpack.c.l.b16 %v1483
        %v1520 = vunpack.c.l.b16 %v1484
        %v1521 = vunpack.c.l.b16 %v1485
        %v1522 = vunpack.c.l.b16 %v1486
        %v1523 = vpack.c.b16 %v1508, %v1507
        %v1524 = vpack.c.b16 %v1510, %v1509
        %v1525 = vpack.c.b16 %v1512, %v1511
        %v1526 = vpack.c.b16 %v1514, %v1513
        %v1527 = vpack.c.b16 %v1516, %v1515
        %v1528 = vpack.c.b16 %v1518, %v1517
        %v1529 = vpack.c.b16 %v1520, %v1519
        %v1530 = vpack.c.b16 %v1522, %v1521
        %1539 = vmatpush.bf16.msra.mxu0 %v1530
        %1540 = vmatpush.bf16.msra.mxu0 %v1529
        %1541 = vmatpush.bf16.msra.mxu0 %v1528
        %1542 = vmatpush.bf16.msra.mxu0 %v1527
        %1543 = vmatpush.bf16.msra.mxu0 %v1526
        %1544 = vmatpush.bf16.msra.mxu0 %v1525
        %1545 = vmatpush.bf16.msra.mxu0 %v1524
        %1546 = vmatpush.bf16.msra.mxu0 %v1523
        %1547 = vmatmul.bf16.gmra.mxu0 %v1470
        %v1548 = vpop.f32.mrf.mxu0
        %v1549 = vadd.f32 %v1489, %v1548
        %v1550 = vpop.f32.mrf.mxu0
        %1551 = vdwg.mxu0
        %v1552 = vadd.f32 %v1549, %v993
        %v1553 = vld [vmem:[#allocation4] sm:$0x1]
        %v1554 = vld [vmem:[#allocation6] sm:$0x1]
        %1555 = vadd.xlane.f32.xlu0 %v1552
        %v1556 = vpop.xlane.xlu0 %1555
        %v1557 = vmul.f32 %v1556, 0.03125
        %v1558 = vmul.f32 %v1552, %v1552
        %1559 = vadd.xlane.f32.xlu0 %v1558
        %v1560 = vpop.xlane.xlu0 %1559
        %v1561 = vmul.f32 %v1560, 0.03125
        %v1562 = vmul.f32 %v1557, %v1557
        %v1563 = vsub.f32 %v1561, %v1562
        %v1564 = vmax.f32 %v1563, 0.0
        %v1565 = vsub.f32 %v1552, %v1557
        %v1566 = vadd.f32 %v1564, 1e-05
        %v1567 = vrsqrt.pop %v1566
        %v1568 = vmul.f32 %v1567, %v1566
        %v1569 = vmul.f32 %v1568, %v1567
        %v1570 = vmul.f32 0.5, %v1569
        %v1571 = vsub.f32 1.5, %v1570
        %v1572 = vmul.f32 %v1567, %v1571
        %vm1573 = vweird.f32 %v1566
        %vm1574 = vweird.f32 %v1567
        %vm1575 = vmor %vm1573, %vm1574
        %v1576 = vsel %vm1575, %v1567, %v1572
        %v1577 = vmul.f32 %v1565, %v1576
        %v1579 = vperm.slane %v1553, 0
        %v1581 = vmul.f32 %v1577, %v1579
        %v1583 = vperm.slane %v1554, 0
        %v1585 = vadd.f32 %v1581, %v1583
        %v1586 = vld [vmem:[%s987] sm:$0x1]
        %v1587 = vunpack.c.0.s8 %v1586
        %v1588 = vcvt.s32.f32 %v1587
        %v1589 = vsub.f32 1.0, %v1588
        %v1590 = vmul.f32 %v1589, -1e+09
        %v1591 = vpack.c.bf16 %v1585, %v1585
        %v1592 = vld [vmem:[%s12] sm:$0xf]
        %v1593 = vld [vmem:[%s12 + $0x4] sm:$0xf]
        %v1594 = vld [vmem:[%s12 + $0x8] sm:$0xf]
        %v1595 = vld [vmem:[%s12 + $0xc] sm:$0xf]
        %v1596 = vld [vmem:[%s12 + $0x10] sm:$0xf]
        %v1597 = vld [vmem:[%s12 + $0x14] sm:$0xf]
        %v1598 = vld [vmem:[%s12 + $0x18] sm:$0xf]
        %v1599 = vld [vmem:[%s12 + $0x1c] sm:$0xf]
        %v1600 = vld [vmem:[%s12 + $0x20] sm:$0xf]
        %v1601 = vld [vmem:[%s12 + $0x24] sm:$0xf]
        %v1602 = vld [vmem:[%s12 + $0x28] sm:$0xf]
        %v1603 = vld [vmem:[%s12 + $0x2c] sm:$0xf]
        %v1604 = vld [vmem:[%s12 + $0x30] sm:$0xf]
        %v1605 = vld [vmem:[%s12 + $0x34] sm:$0xf]
        %v1606 = vld [vmem:[%s12 + $0x38] sm:$0xf]
        %v1607 = vld [vmem:[%s12 + $0x3c] sm:$0xf]
        %v1608 = vld [vmem:[#allocation7] sm:$0x1]
        %v1610 = vperm.slane %v1608, 0
        %v1628 = vunpack.c.l.b16 %v1592
        %v1629 = vunpack.c.l.b16 %v1593
        %v1630 = vunpack.c.l.b16 %v1594
        %v1631 = vunpack.c.l.b16 %v1595
        %v1632 = vunpack.c.l.b16 %v1596
        %v1633 = vunpack.c.l.b16 %v1597
        %v1634 = vunpack.c.l.b16 %v1598
        %v1635 = vunpack.c.l.b16 %v1599
        %v1636 = vunpack.c.l.b16 %v1600
        %v1637 = vunpack.c.l.b16 %v1601
        %v1638 = vunpack.c.l.b16 %v1602
        %v1639 = vunpack.c.l.b16 %v1603
        %v1640 = vunpack.c.l.b16 %v1604
        %v1641 = vunpack.c.l.b16 %v1605
        %v1642 = vunpack.c.l.b16 %v1606
        %v1643 = vunpack.c.l.b16 %v1607
        %v1644 = vpack.c.b16 %v1629, %v1628
        %v1645 = vpack.c.b16 %v1631, %v1630
        %v1646 = vpack.c.b16 %v1633, %v1632
        %v1647 = vpack.c.b16 %v1635, %v1634
        %v1648 = vpack.c.b16 %v1637, %v1636
        %v1649 = vpack.c.b16 %v1639, %v1638
        %v1650 = vpack.c.b16 %v1641, %v1640
        %v1651 = vpack.c.b16 %v1643, %v1642
        %1660 = vmatpush.bf16.msra.mxu0 %v1651
        %1661 = vmatpush.bf16.msra.mxu0 %v1650
        %1662 = vmatpush.bf16.msra.mxu0 %v1649
        %1663 = vmatpush.bf16.msra.mxu0 %v1648
        %1664 = vmatpush.bf16.msra.mxu0 %v1647
        %1665 = vmatpush.bf16.msra.mxu0 %v1646
        %1666 = vmatpush.bf16.msra.mxu0 %v1645
        %1667 = vmatpush.bf16.msra.mxu0 %v1644
        %1668 = vmatmul.bf16.gmra.mxu0 %v1591
        %v1669 = vpop.f32.mrf.mxu0
        %v1670 = vadd.f32 %v1610, %v1669
        %v1671 = vpop.f32.mrf.mxu0
        %1672 = vdwg.mxu0
        %v1673 = vpack.c.bf16 %v994, %v994
        %v1674 = vld [vmem:[%s14] sm:$0xff]
        %v1675 = vld [vmem:[%s14 + $0x8] sm:$0xff]
        %v1676 = vld [vmem:[%s14 + $0x10] sm:$0xff]
        %v1677 = vld [vmem:[%s14 + $0x18] sm:$0xff]
        %v1678 = vld [vmem:[%s14 + $0x20] sm:$0xff]
        %v1679 = vld [vmem:[%s14 + $0x28] sm:$0xff]
        %v1680 = vld [vmem:[%s14 + $0x30] sm:$0xff]
        %v1681 = vld [vmem:[%s14 + $0x38] sm:$0xff]
        %v1682 = vld [vmem:[%s14 + $0x40] sm:$0xff]
        %v1683 = vld [vmem:[%s14 + $0x48] sm:$0xff]
        %v1684 = vld [vmem:[%s14 + $0x50] sm:$0xff]
        %v1685 = vld [vmem:[%s14 + $0x58] sm:$0xff]
        %v1686 = vld [vmem:[%s14 + $0x60] sm:$0xff]
        %v1687 = vld [vmem:[%s14 + $0x68] sm:$0xff]
        %v1688 = vld [vmem:[%s14 + $0x70] sm:$0xff]
        %v1689 = vld [vmem:[%s14 + $0x78] sm:$0xff]
        %v1690 = vld [vmem:[%s15] sm:$0x3]
        %v1692 = vperm.slane %v1690, 0
        %v1693 = vperm.slane %v1690, 1
        %v1712 = vunpack.c.l.b16 %v1674
        %v1713 = vunpack.c.h.b16 %v1674
        %v1714 = vunpack.c.l.b16 %v1675
        %v1715 = vunpack.c.h.b16 %v1675
        %v1716 = vunpack.c.l.b16 %v1676
        %v1717 = vunpack.c.h.b16 %v1676
        %v1718 = vunpack.c.l.b16 %v1677
        %v1719 = vunpack.c.h.b16 %v1677
        %v1720 = vunpack.c.l.b16 %v1678
        %v1721 = vunpack.c.h.b16 %v1678
        %v1722 = vunpack.c.l.b16 %v1679
        %v1723 = vunpack.c.h.b16 %v1679
        %v1724 = vunpack.c.l.b16 %v1680
        %v1725 = vunpack.c.h.b16 %v1680
        %v1726 = vunpack.c.l.b16 %v1681
        %v1727 = vunpack.c.h.b16 %v1681
        %v1728 = vunpack.c.l.b16 %v1682
        %v1729 = vunpack.c.h.b16 %v1682
        %v1730 = vunpack.c.l.b16 %v1683
        %v1731 = vunpack.c.h.b16 %v1683
        %v1732 = vunpack.c.l.b16 %v1684
        %v1733 = vunpack.c.h.b16 %v1684
        %v1734 = vunpack.c.l.b16 %v1685
        %v1735 = vunpack.c.h.b16 %v1685
        %v1736 = vunpack.c.l.b16 %v1686
        %v1737 = vunpack.c.h.b16 %v1686
        %v1738 = vunpack.c.l.b16 %v1687
        %v1739 = vunpack.c.h.b16 %v1687
        %v1740 = vunpack.c.l.b16 %v1688
        %v1741 = vunpack.c.h.b16 %v1688
        %v1742 = vunpack.c.l.b16 %v1689
        %v1743 = vunpack.c.h.b16 %v1689
        %v1744 = vpack.c.b16 %v1714, %v1712
        %v1745 = vpack.c.b16 %v1715, %v1713
        %v1746 = vpack.c.b16 %v1718, %v1716
        %v1747 = vpack.c.b16 %v1719, %v1717
        %v1748 = vpack.c.b16 %v1722, %v1720
        %v1749 = vpack.c.b16 %v1723, %v1721
        %v1750 = vpack.c.b16 %v1726, %v1724
        %v1751 = vpack.c.b16 %v1727, %v1725
        %v1752 = vpack.c.b16 %v1730, %v1728
        %v1753 = vpack.c.b16 %v1731, %v1729
        %v1754 = vpack.c.b16 %v1734, %v1732
        %v1755 = vpack.c.b16 %v1735, %v1733
        %v1756 = vpack.c.b16 %v1738, %v1736
        %v1757 = vpack.c.b16 %v1739, %v1737
        %v1758 = vpack.c.b16 %v1742, %v1740
        %v1759 = vpack.c.b16 %v1743, %v1741
        %1776 = vmatpush.bf16.msra.mxu0 %v1758
        %1777 = vmatpush.bf16.msra.mxu0 %v1756
        %1778 = vmatpush.bf16.msra.mxu0 %v1754
        %1779 = vmatpush.bf16.msra.mxu0 %v1752
        %1780 = vmatpush.bf16.msra.mxu0 %v1750
        %1781 = vmatpush.bf16.msra.mxu0 %v1748
        %1782 = vmatpush.bf16.msra.mxu0 %v1746
        %1783 = vmatpush.bf16.msra.mxu0 %v1744
        %1784 = vmatmul.bf16.gmra.mxu0 %v1673
        %v1785 = vpop.f32.mrf.mxu0
        %v1786 = vadd.f32 %v1692, %v1785
        %v1787 = vpop.f32.mrf.mxu0
        %1788 = vdwg.mxu0
        %1789 = vmatpush.bf16.msra.mxu0 %v1759
        %1790 = vmatpush.bf16.msra.mxu0 %v1757
        %1791 = vmatpush.bf16.msra.mxu0 %v1755
        %1792 = vmatpush.bf16.msra.mxu0 %v1753
        %1793 = vmatpush.bf16.msra.mxu0 %v1751
        %1794 = vmatpush.bf16.msra.mxu0 %v1749
        %1795 = vmatpush.bf16.msra.mxu0 %v1747
        %1796 = vmatpush.bf16.msra.mxu0 %v1745
        %1797 = vmatmul.bf16.gmra.mxu0 %v1673
        %v1798 = vpop.f32.mrf.mxu0
        %v1799 = vadd.f32 %v1693, %v1798
        %v1800 = vpop.f32.mrf.mxu0
        %1801 = vdwg.mxu0
        %v1802 = vpack.c.bf16 %v1670, %v1670
        %v1803 = vpack.c.bf16 %v1786, %v1786
        %v1804 = vpack.c.bf16 %v1799, %v1799
        %1806 = vrot.lane.b32.xlu0 %v1802, 96
        %v1807 = vpop.permute.xlu0 %1806
        %1808 = vrot.lane.b32.xlu0 %v1802, 64
        %v1809 = vpop.permute.xlu0 %1808
        %1810 = vrot.lane.b32.xlu0 %v1802, 32
        %v1811 = vpop.permute.xlu0 %1810
        %1813 = vrot.lane.b32.xlu0 %v1803, 96
        %v1814 = vpop.permute.xlu0 %1813
        %1815 = vrot.lane.b32.xlu0 %v1803, 64
        %v1816 = vpop.permute.xlu0 %1815
        %1817 = vrot.lane.b32.xlu0 %v1803, 32
        %v1818 = vpop.permute.xlu0 %1817
        %1820 = vrot.lane.b32.xlu0 %v1804, 96
        %v1821 = vpop.permute.xlu0 %1820
        %1822 = vrot.lane.b32.xlu0 %v1804, 64
        %v1823 = vpop.permute.xlu0 %1822
        %1824 = vrot.lane.b32.xlu0 %v1804, 32
        %v1825 = vpop.permute.xlu0 %1824
        %v1827 = vsel %vm1242, %v1802, 0
        %v1830 = vsel %vm1242, %v1803, 0
        %1832 = vmatpush.bf16.xpose.msra.mxu0 0
        %1833 = vmatpush.bf16.xpose.msra.mxu0 0
        %1834 = vmatpush.bf16.xpose.msra.mxu0 0
        %1835 = vmatpush.bf16.xpose.msra.mxu0 0
        %1836 = vmatpush.bf16.xpose.msra.mxu0 0
        %1837 = vmatpush.bf16.xpose.msra.mxu0 0
        %1838 = vmatpush.bf16.xpose.msra.mxu0 0
        %1839 = vmatpush.bf16.xpose.msra.mxu0 %v1830
        %1840 = vmatmul.bf16.gmra.mxu0 %v1827
        %v1841 = vpop.f32.mrf.mxu0
        %v1842 = vadd.f32 0.0, %v1841
        %v1843 = vpop.f32.mrf.mxu0
        %1844 = vdwg.mxu0
        %v1846 = vsel %vm1242, %v1807, 0
        %v1849 = vsel %vm1242, %v1814, 0
        %1851 = vmatpush.bf16.xpose.msra.mxu0 0
        %1852 = vmatpush.bf16.xpose.msra.mxu0 0
        %1853 = vmatpush.bf16.xpose.msra.mxu0 0
        %1854 = vmatpush.bf16.xpose.msra.mxu0 0
        %1855 = vmatpush.bf16.xpose.msra.mxu0 0
        %1856 = vmatpush.bf16.xpose.msra.mxu0 0
        %1857 = vmatpush.bf16.xpose.msra.mxu0 0
        %1858 = vmatpush.bf16.xpose.msra.mxu0 %v1849
        %1859 = vmatmul.bf16.gmra.mxu0 %v1846
        %v1860 = vpop.f32.mrf.mxu0
        %v1861 = vadd.f32 0.0, %v1860
        %v1862 = vpop.f32.mrf.mxu0
        %1863 = vdwg.mxu0
        %v1865 = vsel %vm1242, %v1809, 0
        %v1868 = vsel %vm1242, %v1816, 0
        %1870 = vmatpush.bf16.xpose.msra.mxu0 0
        %1871 = vmatpush.bf16.xpose.msra.mxu0 0
        %1872 = vmatpush.bf16.xpose.msra.mxu0 0
        %1873 = vmatpush.bf16.xpose.msra.mxu0 0
        %1874 = vmatpush.bf16.xpose.msra.mxu0 0
        %1875 = vmatpush.bf16.xpose.msra.mxu0 0
        %1876 = vmatpush.bf16.xpose.msra.mxu0 0
        %1877 = vmatpush.bf16.xpose.msra.mxu0 %v1868
        %1878 = vmatmul.bf16.gmra.mxu0 %v1865
        %v1879 = vpop.f32.mrf.mxu0
        %v1880 = vadd.f32 0.0, %v1879
        %v1881 = vpop.f32.mrf.mxu0
        %1882 = vdwg.mxu0
        %v1884 = vsel %vm1242, %v1811, 0
        %v1887 = vsel %vm1242, %v1818, 0
        %1889 = vmatpush.bf16.xpose.msra.mxu0 0
        %1890 = vmatpush.bf16.xpose.msra.mxu0 0
        %1891 = vmatpush.bf16.xpose.msra.mxu0 0
        %1892 = vmatpush.bf16.xpose.msra.mxu0 0
        %1893 = vmatpush.bf16.xpose.msra.mxu0 0
        %1894 = vmatpush.bf16.xpose.msra.mxu0 0
        %1895 = vmatpush.bf16.xpose.msra.mxu0 0
        %1896 = vmatpush.bf16.xpose.msra.mxu0 %v1887
        %1897 = vmatmul.bf16.gmra.mxu0 %v1884
        %v1898 = vpop.f32.mrf.mxu0
        %v1899 = vadd.f32 0.0, %v1898
        %v1900 = vpop.f32.mrf.mxu0
        %1901 = vdwg.mxu0
        %v1902 = vmul.f32 %v1842, 0.35355338
        %v1903 = vmul.f32 %v1861, 0.35355338
        %v1904 = vmul.f32 %v1880, 0.35355338
        %v1905 = vmul.f32 %v1899, 0.35355338
        %v1906 = vperm.slane %v1590, 0
        %v1907 = vadd.f32 %v1902, %v1906
        %v1908 = vadd.f32 %v1903, %v1906
        %v1909 = vadd.f32 %v1904, %v1906
        %v1910 = vadd.f32 %v1905, %v1906
        %v1911 = vsel %vm1327, %v1907, -inf
        %1912 = vmax.xlane.f32.xlu0 %v1911
        %v1913 = vpop.xlane.xlu0 %1912
        %v1914 = vsel %vm1327, %v1908, -inf
        %1915 = vmax.xlane.f32.xlu0 %v1914
        %v1916 = vpop.xlane.xlu0 %1915
        %v1917 = vsel %vm1327, %v1909, -inf
        %1918 = vmax.xlane.f32.xlu0 %v1917
        %v1919 = vpop.xlane.xlu0 %1918
        %v1920 = vsel %vm1327, %v1910, -inf
        %1921 = vmax.xlane.f32.xlu0 %v1920
        %v1922 = vpop.xlane.xlu0 %1921
        %v1923 = vsub.f32 %v1907, %v1913
        %v1924 = vsub.f32 %v1908, %v1916
        %v1925 = vsub.f32 %v1909, %v1919
        %v1926 = vsub.f32 %v1910, %v1922
        %v1927 = vmul.f32 %v1923, 1.442695
        %v1928 = vpow.pop %v1927
        %v1929 = vmul.f32 %v1924, 1.442695
        %v1930 = vpow.pop %v1929
        %v1931 = vmul.f32 %v1925, 1.442695
        %v1932 = vpow.pop %v1931
        %v1933 = vmul.f32 %v1926, 1.442695
        %v1934 = vpow.pop %v1933
        %v1935 = vsel %vm1327, %v1928, 0.0
        %1936 = vadd.xlane.f32.xlu0 %v1935
        %v1937 = vpop.xlane.xlu0 %1936
        %v1938 = vsel %vm1327, %v1930, 0.0
        %1939 = vadd.xlane.f32.xlu0 %v1938
        %v1940 = vpop.xlane.xlu0 %1939
        %v1941 = vsel %vm1327, %v1932, 0.0
        %1942 = vadd.xlane.f32.xlu0 %v1941
        %v1943 = vpop.xlane.xlu0 %1942
        %v1944 = vsel %vm1327, %v1934, 0.0
        %1945 = vadd.xlane.f32.xlu0 %v1944
        %v1946 = vpop.xlane.xlu0 %1945
        %v1947 = vrcp.pop %v1937
        %v1948 = vrcp.pop %v1940
        %v1949 = vrcp.pop %v1943
        %v1950 = vrcp.pop %v1946
        %v1951 = vmul.f32 %v1928, %v1947
        %v1952 = vmul.f32 %v1930, %v1948
        %v1953 = vmul.f32 %v1932, %v1949
        %v1954 = vmul.f32 %v1934, %v1950
        %v1955 = vpack.c.bf16 %v1951, %v1951
        %v1956 = vpack.c.bf16 %v1952, %v1952
        %v1957 = vpack.c.bf16 %v1953, %v1953
        %v1958 = vpack.c.bf16 %v1954, %v1954
        %v1960 = vsel %vm1327, %v1955, 0
        %v1963 = vsel %vm1379, %v1804, 0
        %1965 = vmatpush.bf16.msra.mxu0 0
        %1966 = vmatpush.bf16.msra.mxu0 0
        %1967 = vmatpush.bf16.msra.mxu0 0
        %1968 = vmatpush.bf16.msra.mxu0 0
        %1969 = vmatpush.bf16.msra.mxu0 0
        %1970 = vmatpush.bf16.msra.mxu0 0
        %1971 = vmatpush.bf16.msra.mxu0 0
        %1972 = vmatpush.bf16.msra.mxu0 %v1963
        %1973 = vmatmul.bf16.gmra.mxu0 %v1960
        %v1974 = vpop.f32.mrf.mxu0
        %v1975 = vadd.f32 0.0, %v1974
        %v1976 = vpop.f32.mrf.mxu0
        %1977 = vdwg.mxu0
        %v1979 = vsel %vm1327, %v1956, 0
        %v1982 = vsel %vm1379, %v1821, 0
        %1984 = vmatpush.bf16.msra.mxu0 0
        %1985 = vmatpush.bf16.msra.mxu0 0
        %1986 = vmatpush.bf16.msra.mxu0 0
        %1987 = vmatpush.bf16.msra.mxu0 0
        %1988 = vmatpush.bf16.msra.mxu0 0
        %1989 = vmatpush.bf16.msra.mxu0 0
        %1990 = vmatpush.bf16.msra.mxu0 0
        %1991 = vmatpush.bf16.msra.mxu0 %v1982
        %1992 = vmatmul.bf16.gmra.mxu0 %v1979
        %v1993 = vpop.f32.mrf.mxu0
        %v1994 = vadd.f32 0.0, %v1993
        %v1995 = vpop.f32.mrf.mxu0
        %1996 = vdwg.mxu0
        %v1998 = vsel %vm1327, %v1957, 0
        %v2001 = vsel %vm1379, %v1823, 0
        %2003 = vmatpush.bf16.msra.mxu0 0
        %2004 = vmatpush.bf16.msra.mxu0 0
        %2005 = vmatpush.bf16.msra.mxu0 0
        %2006 = vmatpush.bf16.msra.mxu0 0
        %2007 = vmatpush.bf16.msra.mxu0 0
        %2008 = vmatpush.bf16.msra.mxu0 0
        %2009 = vmatpush.bf16.msra.mxu0 0
        %2010 = vmatpush.bf16.msra.mxu0 %v2001
        %2011 = vmatmul.bf16.gmra.mxu0 %v1998
        %v2012 = vpop.f32.mrf.mxu0
        %v2013 = vadd.f32 0.0, %v2012
        %v2014 = vpop.f32.mrf.mxu0
        %2015 = vdwg.mxu0
        %v2017 = vsel %vm1327, %v1958, 0
        %v2020 = vsel %vm1379, %v1825, 0
        %2022 = vmatpush.bf16.msra.mxu0 0
        %2023 = vmatpush.bf16.msra.mxu0 0
        %2024 = vmatpush.bf16.msra.mxu0 0
        %2025 = vmatpush.bf16.msra.mxu0 0
        %2026 = vmatpush.bf16.msra.mxu0 0
        %2027 = vmatpush.bf16.msra.mxu0 0
        %2028 = vmatpush.bf16.msra.mxu0 0
        %2029 = vmatpush.bf16.msra.mxu0 %v2020
        %2030 = vmatmul.bf16.gmra.mxu0 %v2017
        %v2031 = vpop.f32.mrf.mxu0
        %v2032 = vadd.f32 0.0, %v2031
        %v2033 = vpop.f32.mrf.mxu0
        %2034 = vdwg.mxu0
        %2036 = vrot.lane.b32.xlu0 %v1994, 32
        %v2037 = vpop.permute.xlu0 %2036
        %2040 = vrot.lane.b32.xlu0 %v2013, 64
        %v2041 = vpop.permute.xlu0 %2040
        %2044 = vrot.lane.b32.xlu0 %v2032, 96
        %v2045 = vpop.permute.xlu0 %2044
        %v2047 = vsel %vm1242, %v1975, %v2037
        %v2048 = vsel %vm1466, %v2047, %v2041
        %v2049 = vsel %vm1468, %v2048, %v2045
        %v2050 = vpack.c.bf16 %v2049, %v2049
        %v2051 = vld [vmem:[%s16] sm:$0xf]
        %v2052 = vld [vmem:[%s16 + $0x4] sm:$0xf]
        %v2053 = vld [vmem:[%s16 + $0x8] sm:$0xf]
        %v2054 = vld [vmem:[%s16 + $0xc] sm:$0xf]
        %v2055 = vld [vmem:[%s16 + $0x10] sm:$0xf]
        %v2056 = vld [vmem:[%s16 + $0x14] sm:$0xf]
        %v2057 = vld [vmem:[%s16 + $0x18] sm:$0xf]
        %v2058 = vld [vmem:[%s16 + $0x1c] sm:$0xf]
        %v2059 = vld [vmem:[%s16 + $0x20] sm:$0xf]
        %v2060 = vld [vmem:[%s16 + $0x24] sm:$0xf]
        %v2061 = vld [vmem:[%s16 + $0x28] sm:$0xf]
        %v2062 = vld [vmem:[%s16 + $0x2c] sm:$0xf]
        %v2063 = vld [vmem:[%s16 + $0x30] sm:$0xf]
        %v2064 = vld [vmem:[%s16 + $0x34] sm:$0xf]
        %v2065 = vld [vmem:[%s16 + $0x38] sm:$0xf]
        %v2066 = vld [vmem:[%s16 + $0x3c] sm:$0xf]
        %v2067 = vld [vmem:[#allocation9] sm:$0x1]
        %v2069 = vperm.slane %v2067, 0
        %v2087 = vunpack.c.l.b16 %v2051
        %v2088 = vunpack.c.l.b16 %v2052
        %v2089 = vunpack.c.l.b16 %v2053
        %v2090 = vunpack.c.l.b16 %v2054
        %v2091 = vunpack.c.l.b16 %v2055
        %v2092 = vunpack.c.l.b16 %v2056
        %v2093 = vunpack.c.l.b16 %v2057
        %v2094 = vunpack.c.l.b16 %v2058
        %v2095 = vunpack.c.l.b16 %v2059
        %v2096 = vunpack.c.l.b16 %v2060
        %v2097 = vunpack.c.l.b16 %v2061
        %v2098 = vunpack.c.l.b16 %v2062
        %v2099 = vunpack.c.l.b16 %v2063
        %v2100 = vunpack.c.l.b16 %v2064
        %v2101 = vunpack.c.l.b16 %v2065
        %v2102 = vunpack.c.l.b16 %v2066
        %v2103 = vpack.c.b16 %v2088, %v2087
        %v2104 = vpack.c.b16 %v2090, %v2089
        %v2105 = vpack.c.b16 %v2092, %v2091
        %v2106 = vpack.c.b16 %v2094, %v2093
        %v2107 = vpack.c.b16 %v2096, %v2095
        %v2108 = vpack.c.b16 %v2098, %v2097
        %v2109 = vpack.c.b16 %v2100, %v2099
        %v2110 = vpack.c.b16 %v2102, %v2101
        %2119 = vmatpush.bf16.msra.mxu0 %v2110
        %2120 = vmatpush.bf16.msra.mxu0 %v2109
        %2121 = vmatpush.bf16.msra.mxu0 %v2108
        %2122 = vmatpush.bf16.msra.mxu0 %v2107
        %2123 = vmatpush.bf16.msra.mxu0 %v2106
        %2124 = vmatpush.bf16.msra.mxu0 %v2105
        %2125 = vmatpush.bf16.msra.mxu0 %v2104
        %2126 = vmatpush.bf16.msra.mxu0 %v2103
        %2127 = vmatmul.bf16.gmra.mxu0 %v2050
        %v2128 = vpop.f32.mrf.mxu0
        %v2129 = vadd.f32 %v2069, %v2128
        %v2130 = vpop.f32.mrf.mxu0
        %2131 = vdwg.mxu0
        %v2132 = vadd.f32 %v2129, %v1585
        %v2133 = vld [vmem:[#allocation10] sm:$0x1]
        %v2134 = vld [vmem:[#allocation12] sm:$0x1]
        %2135 = vadd.xlane.f32.xlu0 %v2132
        %v2136 = vpop.xlane.xlu0 %2135
        %v2137 = vmul.f32 %v2136, 0.03125
        %v2138 = vmul.f32 %v2132, %v2132
        %2139 = vadd.xlane.f32.xlu0 %v2138
        %v2140 = vpop.xlane.xlu0 %2139
        %v2141 = vmul.f32 %v2140, 0.03125
        %v2142 = vmul.f32 %v2137, %v2137
        %v2143 = vsub.f32 %v2141, %v2142
        %v2144 = vmax.f32 %v2143, 0.0
        %v2145 = vsub.f32 %v2132, %v2137
        %v2146 = vadd.f32 %v2144, 1e-05
        %v2147 = vrsqrt.pop %v2146
        %v2148 = vmul.f32 %v2147, %v2146
        %v2149 = vmul.f32 %v2148, %v2147
        %v2150 = vmul.f32 0.5, %v2149
        %v2151 = vsub.f32 1.5, %v2150
        %v2152 = vmul.f32 %v2147, %v2151
        %vm2153 = vweird.f32 %v2146
        %vm2154 = vweird.f32 %v2147
        %vm2155 = vmor %vm2153, %vm2154
        %v2156 = vsel %vm2155, %v2147, %v2152
        %v2157 = vmul.f32 %v2145, %v2156
        %v2159 = vperm.slane %v2133, 0
        %v2161 = vmul.f32 %v2157, %v2159
        %v2163 = vperm.slane %v2134, 0
        %v2165 = vadd.f32 %v2161, %v2163
        %v2166 = vpack.c.bf16 %v2165, %v2165
        %v2167 = vld [vmem:[%s20] sm:$0xf]
        %v2168 = vld [vmem:[%s20 + $0x4] sm:$0xf]
        %v2169 = vld [vmem:[%s20 + $0x8] sm:$0xf]
        %v2170 = vld [vmem:[%s20 + $0xc] sm:$0xf]
        %v2171 = vld [vmem:[%s20 + $0x10] sm:$0xf]
        %v2172 = vld [vmem:[%s20 + $0x14] sm:$0xf]
        %v2173 = vld [vmem:[%s20 + $0x18] sm:$0xf]
        %v2174 = vld [vmem:[%s20 + $0x1c] sm:$0xf]
        %v2175 = vld [vmem:[%s20 + $0x20] sm:$0xf]
        %v2176 = vld [vmem:[%s20 + $0x24] sm:$0xf]
        %v2177 = vld [vmem:[%s20 + $0x28] sm:$0xf]
        %v2178 = vld [vmem:[%s20 + $0x2c] sm:$0xf]
        %v2179 = vld [vmem:[%s20 + $0x30] sm:$0xf]
        %v2180 = vld [vmem:[%s20 + $0x34] sm:$0xf]
        %v2181 = vld [vmem:[%s20 + $0x38] sm:$0xf]
        %v2182 = vld [vmem:[%s20 + $0x3c] sm:$0xf]
        %v2183 = vld [vmem:[#allocation13] sm:$0x1]
        %v2185 = vperm.slane %v2183, 0
        %v2203 = vunpack.c.l.b16 %v2167
        %v2204 = vunpack.c.l.b16 %v2168
        %v2205 = vunpack.c.l.b16 %v2169
        %v2206 = vunpack.c.l.b16 %v2170
        %v2207 = vunpack.c.l.b16 %v2171
        %v2208 = vunpack.c.l.b16 %v2172
        %v2209 = vunpack.c.l.b16 %v2173
        %v2210 = vunpack.c.l.b16 %v2174
        %v2211 = vunpack.c.l.b16 %v2175
        %v2212 = vunpack.c.l.b16 %v2176
        %v2213 = vunpack.c.l.b16 %v2177
        %v2214 = vunpack.c.l.b16 %v2178
        %v2215 = vunpack.c.l.b16 %v2179
        %v2216 = vunpack.c.l.b16 %v2180
        %v2217 = vunpack.c.l.b16 %v2181
        %v2218 = vunpack.c.l.b16 %v2182
        %v2219 = vpack.c.b16 %v2204, %v2203
        %v2220 = vpack.c.b16 %v2206, %v2205
        %v2221 = vpack.c.b16 %v2208, %v2207
        %v2222 = vpack.c.b16 %v2210, %v2209
        %v2223 = vpack.c.b16 %v2212, %v2211
        %v2224 = vpack.c.b16 %v2214, %v2213
        %v2225 = vpack.c.b16 %v2216, %v2215
        %v2226 = vpack.c.b16 %v2218, %v2217
        %2235 = vmatpush.bf16.msra.mxu0 %v2226
        %2236 = vmatpush.bf16.msra.mxu0 %v2225
        %2237 = vmatpush.bf16.msra.mxu0 %v2224
        %2238 = vmatpush.bf16.msra.mxu0 %v2223
        %2239 = vmatpush.bf16.msra.mxu0 %v2222
        %2240 = vmatpush.bf16.msra.mxu0 %v2221
        %2241 = vmatpush.bf16.msra.mxu0 %v2220
        %2242 = vmatpush.bf16.msra.mxu0 %v2219
        %2243 = vmatmul.bf16.gmra.mxu0 %v2166
        %v2244 = vpop.f32.mrf.mxu0
        %v2245 = vadd.f32 %v2185, %v2244
        %v2246 = vpop.f32.mrf.mxu0
        %2247 = vdwg.mxu0
        %v2248 = vmax.f32 %v2245, 0.0
        %v2249 = vpack.c.bf16 %v2248, %v2248
        %v2250 = vld [vmem:[%s22] sm:$0xf]
        %v2251 = vld [vmem:[%s22 + $0x4] sm:$0xf]
        %v2252 = vld [vmem:[%s22 + $0x8] sm:$0xf]
        %v2253 = vld [vmem:[%s22 + $0xc] sm:$0xf]
        %v2254 = vld [vmem:[%s22 + $0x10] sm:$0xf]
        %v2255 = vld [vmem:[%s22 + $0x14] sm:$0xf]
        %v2256 = vld [vmem:[%s22 + $0x18] sm:$0xf]
        %v2257 = vld [vmem:[%s22 + $0x1c] sm:$0xf]
        %v2258 = vld [vmem:[%s22 + $0x20] sm:$0xf]
        %v2259 = vld [vmem:[%s22 + $0x24] sm:$0xf]
        %v2260 = vld [vmem:[%s22 + $0x28] sm:$0xf]
        %v2261 = vld [vmem:[%s22 + $0x2c] sm:$0xf]
        %v2262 = vld [vmem:[%s22 + $0x30] sm:$0xf]
        %v2263 = vld [vmem:[%s22 + $0x34] sm:$0xf]
        %v2264 = vld [vmem:[%s22 + $0x38] sm:$0xf]
        %v2265 = vld [vmem:[%s22 + $0x3c] sm:$0xf]
        %v2266 = vld [vmem:[#allocation15] sm:$0x1]
        %v2268 = vperm.slane %v2266, 0
        %v2286 = vunpack.c.l.b16 %v2250
        %v2287 = vunpack.c.l.b16 %v2251
        %v2288 = vunpack.c.l.b16 %v2252
        %v2289 = vunpack.c.l.b16 %v2253
        %v2290 = vunpack.c.l.b16 %v2254
        %v2291 = vunpack.c.l.b16 %v2255
        %v2292 = vunpack.c.l.b16 %v2256
        %v2293 = vunpack.c.l.b16 %v2257
        %v2294 = vunpack.c.l.b16 %v2258
        %v2295 = vunpack.c.l.b16 %v2259
        %v2296 = vunpack.c.l.b16 %v2260
        %v2297 = vunpack.c.l.b16 %v2261
        %v2298 = vunpack.c.l.b16 %v2262
        %v2299 = vunpack.c.l.b16 %v2263
        %v2300 = vunpack.c.l.b16 %v2264
        %v2301 = vunpack.c.l.b16 %v2265
        %v2302 = vpack.c.b16 %v2287, %v2286
        %v2303 = vpack.c.b16 %v2289, %v2288
        %v2304 = vpack.c.b16 %v2291, %v2290
        %v2305 = vpack.c.b16 %v2293, %v2292
        %v2306 = vpack.c.b16 %v2295, %v2294
        %v2307 = vpack.c.b16 %v2297, %v2296
        %v2308 = vpack.c.b16 %v2299, %v2298
        %v2309 = vpack.c.b16 %v2301, %v2300
        %2318 = vmatpush.bf16.msra.mxu0 %v2309
        %2319 = vmatpush.bf16.msra.mxu0 %v2308
        %2320 = vmatpush.bf16.msra.mxu0 %v2307
        %2321 = vmatpush.bf16.msra.mxu0 %v2306
        %2322 = vmatpush.bf16.msra.mxu0 %v2305
        %2323 = vmatpush.bf16.msra.mxu0 %v2304
        %2324 = vmatpush.bf16.msra.mxu0 %v2303
        %2325 = vmatpush.bf16.msra.mxu0 %v2302
        %2326 = vmatmul.bf16.gmra.mxu0 %v2249
        %v2327 = vpop.f32.mrf.mxu0
        %v2328 = vadd.f32 %v2268, %v2327
        %v2329 = vpop.f32.mrf.mxu0
        %2330 = vdwg.mxu0
        %v2331 = vadd.f32 %v2328, %v2165
        %v2332 = vld [vmem:[#allocation16] sm:$0x1]
        %v2333 = vld [vmem:[#allocation18] sm:$0x1]
        %2334 = vadd.xlane.f32.xlu0 %v2331
        %v2335 = vpop.xlane.xlu0 %2334
        %v2336 = vmul.f32 %v2335, 0.03125
        %v2337 = vmul.f32 %v2331, %v2331
        %2338 = vadd.xlane.f32.xlu0 %v2337
        %v2339 = vpop.xlane.xlu0 %2338
        %v2340 = vmul.f32 %v2339, 0.03125
        %v2341 = vmul.f32 %v2336, %v2336
        %v2342 = vsub.f32 %v2340, %v2341
        %v2343 = vmax.f32 %v2342, 0.0
        %v2344 = vsub.f32 %v2331, %v2336
        %v2345 = vadd.f32 %v2343, 1e-05
        %v2346 = vrsqrt.pop %v2345
        %v2347 = vmul.f32 %v2346, %v2345
        %v2348 = vmul.f32 %v2347, %v2346
        %v2349 = vmul.f32 0.5, %v2348
        %v2350 = vsub.f32 1.5, %v2349
        %v2351 = vmul.f32 %v2346, %v2350
        %vm2352 = vweird.f32 %v2345
        %vm2353 = vweird.f32 %v2346
        %vm2354 = vmor %vm2352, %vm2353
        %v2355 = vsel %vm2354, %v2346, %v2351
        %v2356 = vmul.f32 %v2344, %v2355
        %v2358 = vperm.slane %v2332, 0
        %v2360 = vmul.f32 %v2356, %v2358
        %v2362 = vperm.slane %v2333, 0
        %v2364 = vadd.f32 %v2360, %v2362
        %2365 = vst [vmem:[%s991] sm:$0xff] %v2364
        %p2366 = scmp.lt.s32.totalorder %s43, 1
        %s2367 = scalar_select %p2366, %s43, 1
        %s2368 = smul.addr %s2367, 8
        %s2369 = scalar_lea.vmem %s26, %s2368
        // Predicated region
        $region169: #{_lambda_.7} parent=123 // pred_check
          %p2370 = pneg %p627
        $region170: #{_lambda_.7} parent=123 // pred_check_branch
          %2372 = sbr.rel (%p2370) target = $region172
        $region171: #{_lambda_.7} parent=123 // pred_region
          _
        $region172: #{_lambda_.7} parent=123 // pred_fallthru
          _
      $region124: #{_lambda_.7} parent=5 // pred_fallthru
        _
      %p2373 = scmp.le.s32.totalorder 2, %s38
      // Predicated region
      $region173: #{_lambda_.7} parent=5 // pred_check
        %p2374 = pneg %p2373
      $region174: #{_lambda_.7} parent=5 // pred_check_branch
        %2376 = sbr.rel (%p2374) target = $region176
      $region175: #{_lambda_.7} parent=5 // pred_region
        %s2377 = ssub.s32 %s38, 2
        // Predicated region
        $region177: #{_lambda_.7} parent=175 // pred_check
          %p2378 = pneg %p633
        $region178: #{_lambda_.7} parent=175 // pred_check_branch
          %2380 = sbr.rel (%p2378) target = $region180
        $region179: #{_lambda_.7} parent=175 // pred_region
          %p2381 = scmp.lt.s32.totalorder %s44, 1
          %s2382 = scalar_select %p2381, %s44, 1
          %s2383 = smul.addr %s2382, 8
          %s2384 = scalar_lea.vmem %s26, %s2383
        $region180: #{_lambda_.7} parent=175 // pred_fallthru
          _
      $region176: #{_lambda_.7} parent=5 // pred_fallthru
        _
    $region6: #{_lambda_.7} parent=1 // loop_footer
      %s42 = sadd.s32 1, %s38
    $region7: #{_lambda_.7} parent=1 // loop_footer_branch
      %37 = sbr.rel target = $region3
    $region8: #{_lambda_.7} parent=1 // loop_exit
      _
    %2385 = vsyncpa [#allocation3], 1
    %s2386 = scalar_lea.sflag [#allocation3], 1
    %2387 = vsyncpa %s2386, 1
    %2388 = vsyncpa [#allocation5], 1
    %2389 = vsyncpa [#allocation8], 1
    %2390 = vsyncpa [#allocation11], 1
    %2391 = vsyncpa [#allocation14], 1
    %2392 = vsyncpa [#allocation17], 1

// kernel: _lambda_.9
$region0: #{_lambda_.9}
  #allocation0 [shape = 'u32[]', space=smem, size = 0x4, offset = 0x4, fixed_abs, tag = 'smem constant byte address 0x4 - core index']
  #allocation1 [shape = 'u32[72,128]{1,0:T(1,128)}', space=vmem, size = 0x9000, scoped, tag = 'internal scratch']
  %s0 = inlined_call_operand.vmem [shape: f32[2,8,128], index: 0, kind: input, shape index: {}]
  %s1 = inlined_call_operand.vmem [shape: bf16[128,128], index: 1, kind: input, shape index: {}]
  %s2 = inlined_call_operand.vmem [shape: f32[1,128], index: 2, kind: input, shape index: {}]
  %s3 = inlined_call_operand.hbm [shape: f32[2,8,128], index: 3, kind: output, shape index: {}]
  %s4 = sld [smem:[#allocation0]]
  $region45: #{_lambda_.9} parent=0
    _
  %s6 = ssub.s32 1, %s4
  %s7 = scalar_select 0, %s6, %s4
  $region1: #{_lambda_.9} parent=0
    #allocation2 [shape = 'u8[8192]{0}', space=vmem, size = 0x2000, scoped, tag = 'output window, operand 0']
    #allocation3 [shape = 's32[2]{0}', space=sflag, size = 0x8, scoped, tag = 'scoped memory for _lambda_.9']
    %8 = vsyncpa [#allocation3], 0
    %s9 = scalar_lea.sflag [#allocation3], 1
    %10 = vsyncpa %s9, 0
    loop: start=0, step=1, limit=4
    $region2: #{_lambda_.9} parent=1 // loop_pre_header
      _
    $region3: #{_lambda_.9} parent=1 // loop_header
      %s12 = sphi 0, %s16
      %p13 = scmp.ge.s32.totalorder %s12, 4
      %s22 = sphi 0, %s24
      %s25 = sphi 0, %s22
      %s26 = sphi 0, %s25
      %s42 = sphi 0, %s26
      %s46 = sphi 0, %s46
      %s48 = sphi 0, %s46
      %s49 = sphi 0, %s48
      %s63 = sphi 0, %s49
      %s67 = sphi 0, %s67
      %s69 = sphi 0, %s67
      %s70 = sphi 0, %s69
      %s84 = sphi 0, %s70
      %s90 = sphi 0, %s92
      %s93 = sphi 0, %s90
      %s94 = sphi 0, %s93
      %s110 = sphi 0, %s94
    $region4: #{_lambda_.9} parent=1 // loop_header_branch
      %15 = sbr.rel (%p13) target = $region8
    $region5: #{_lambda_.9} parent=1 // loop_body
      %s17 = ssub.s32 %s12, 1
      %s18 = ssub.s32 %s12, 2
      %s19 = sadd.s32 %s12, 1
      %s20 = ssub.s32 %s12, %s19
      %p21 = scmp.eq.s32.totalorder %s20, 0
      %s23 = sadd.s32 %s22, 1
      %s24 = scalar_select %p21, %s22, %s23
      %p27 = pneg %p21
      %p28 = scmp.eq.s32.totalorder %s12, 1
      %p29 = por %p27, %p28
      %p30 = scmp.ne.s32.totalorder %s22, %s25
      %p31 = scmp.eq.s32.totalorder %s12, 0
      %p32 = por %p30, %p31
      %p33 = scmp.ne.s32.totalorder %s22, %s25
      %p34 = scmp.eq.s32.totalorder %s17, 1
      %p35 = por %p33, %p34
      %p36 = scmp.ne.s32.totalorder %s25, %s26
      %p37 = scmp.eq.s32.totalorder %s17, 0
      %p38 = por %p36, %p37
      %p39 = scmp.ne.s32.totalorder %s25, %s26
      %p40 = scmp.eq.s32.totalorder %s18, 1
      %p41 = por %p39, %p40
      %p43 = scmp.ne.s32.totalorder %s26, %s42
      %p44 = scmp.eq.s32.totalorder %s18, 0
      %p45 = por %p43, %p44
      %s47 = sadd.s32 %s46, 1
      %p50 = scmp.eq.s32.totalorder %s12, 1
      %p51 = scmp.ne.s32.totalorder %s46, %s48
      %p52 = scmp.eq.s32.totalorder %s12, 0
      %p53 = por %p51, %p52
      %p54 = scmp.ne.s32.totalorder %s46, %s48
      %p55 = scmp.eq.s32.totalorder %s17, 1
      %p56 = por %p54, %p55
      %p57 = scmp.ne.s32.totalorder %s48, %s49
      %p58 = scmp.eq.s32.totalorder %s17, 0
      %p59 = por %p57, %p58
      %p60 = scmp.ne.s32.totalorder %s48, %s49
      %p61 = scmp.eq.s32.totalorder %s18, 1
      %p62 = por %p60, %p61
      %p64 = scmp.ne.s32.totalorder %s49, %s63
      %p65 = scmp.eq.s32.totalorder %s18, 0
      %p66 = por %p64, %p65
      %s68 = sadd.s32 %s67, 1
      %p71 = scmp.eq.s32.totalorder %s12, 1
      %p72 = scmp.ne.s32.totalorder %s67, %s69
      %p73 = scmp.eq.s32.totalorder %s12, 0
      %p74 = por %p72, %p73
      %p75 = scmp.ne.s32.totalorder %s67, %s69
      %p76 = scmp.eq.s32.totalorder %s17, 1
      %p77 = por %p75, %p76
      %p78 = scmp.ne.s32.totalorder %s69, %s70
      %p79 = scmp.eq.s32.totalorder %s17, 0
      %p80 = por %p78, %p79
      %p81 = scmp.ne.s32.totalorder %s69, %s70
      %p82 = scmp.eq.s32.totalorder %s18, 1
      %p83 = por %p81, %p82
      %p85 = scmp.ne.s32.totalorder %s70, %s84
      %p86 = scmp.eq.s32.totalorder %s18, 0
      %p87 = por %p85, %p86
      %s88 = ssub.s32 %s12, %s19
      %p89 = scmp.eq.s32.totalorder %s88, 0
      %s91 = sadd.s32 %s90, 1
      %s92 = scalar_select %p89, %s90, %s91
      %p95 = pneg %p89
      %p96 = scmp.eq.s32.totalorder %s12, 1
      %p97 = por %p95, %p96
      %p98 = scmp.ne.s32.totalorder %s90, %s93
      %p99 = scmp.eq.s32.totalorder %s12, 0
      %p100 = por %p98, %p99
      %p101 = scmp.ne.s32.totalorder %s90, %s93
      %p102 = scmp.eq.s32.totalorder %s17, 1
      %p103 = por %p101, %p102
      %p104 = scmp.ne.s32.totalorder %s93, %s94
      %p105 = scmp.eq.s32.totalorder %s17, 0
      %p106 = por %p104, %p105
      %p107 = scmp.ne.s32.totalorder %s93, %s94
      %p108 = scmp.eq.s32.totalorder %s18, 1
      %p109 = por %p107, %p108
      %p111 = scmp.ne.s32.totalorder %s94, %s110
      %p112 = scmp.eq.s32.totalorder %s18, 0
      %p113 = por %p111, %p112
      %p114 = scmp.le.s32.totalorder 1, %s12
      %p115 = scmp.lt.s32.totalorder %s12, 3
      %p116 = pnand %p114, %p115
      %p117 = pneg %p116
      // Predicated region
      $region9: #{_lambda_.9} parent=5 // pred_check
        _
      $region10: #{_lambda_.9} parent=5 // pred_check_branch
        %119 = sbr.rel (%p116) target = $region12
      $region11: #{_lambda_.9} parent=5 // pred_region
        %s120 = ssub.s32 %s12, 1
        // Predicated region
        $region13: #{_lambda_.9} parent=11 // pred_check
          %p121 = pneg %p59
        $region14: #{_lambda_.9} parent=11 // pred_check_branch
          %123 = sbr.rel (%p121) target = $region16
        $region15: #{_lambda_.9} parent=11 // pred_region
          _
        $region16: #{_lambda_.9} parent=11 // pred_fallthru
          _
        // Predicated region
        $region17: #{_lambda_.9} parent=11 // pred_check
          %p124 = pneg %p80
        $region18: #{_lambda_.9} parent=11 // pred_check_branch
          %126 = sbr.rel (%p124) target = $region20
        $region19: #{_lambda_.9} parent=11 // pred_region
          _
        $region20: #{_lambda_.9} parent=11 // pred_fallthru
          _
      $region12: #{_lambda_.9} parent=5 // pred_fallthru
        _
      %p127 = scmp.lt.s32.totalorder %s12, 2
      // Predicated region
      $region21: #{_lambda_.9} parent=5 // pred_check
        %p128 = pneg %p127
      $region22: #{_lambda_.9} parent=5 // pred_check_branch
        %130 = sbr.rel (%p128) target = $region24
      $region23: #{_lambda_.9} parent=5 // pred_region
        // Predicated region
        $region25: #{_lambda_.9} parent=23 // pred_check
          %p131 = pneg %p32
        $region26: #{_lambda_.9} parent=23 // pred_check_branch
          %133 = sbr.rel (%p131) target = $region28
        $region27: #{_lambda_.9} parent=23 // pred_region
          %p134 = scmp.lt.s32.totalorder %s12, 1
          %s135 = scalar_select %p134, %s12, 1
          %s136 = smul.addr %s135, 8
          %s137 = scalar_lea.vmem %s0, %s136
        $region28: #{_lambda_.9} parent=23 // pred_fallthru
          _
      $region24: #{_lambda_.9} parent=5 // pred_fallthru
        _
      %p138 = scmp.le.s32.totalorder 1, %s12
      %p139 = scmp.lt.s32.totalorder %s12, 3
      %p140 = pnand %p138, %p139
      %p141 = pneg %p140
      // Predicated region
      $region29: #{_lambda_.9} parent=5 // pred_check
        _
      $region30: #{_lambda_.9} parent=5 // pred_check_branch
        %143 = sbr.rel (%p140) target = $region32
      $region31: #{_lambda_.9} parent=5 // pred_region
        %s144 = ssub.s32 %s12, 1
        %p145 = scmp.lt.s32.totalorder %s17, 1
        %s146 = scalar_select %p145, %s17, 1
        %s147 = smul.addr %s146, 8
        %s148 = scalar_lea.vmem %s0, %s147
        %p149 = pneg %p38
        %p150 = pneg %p35
        %p151 = pneg %p59
        %p152 = pneg %p56
        %p153 = pneg %p80
        %p154 = pneg %p77
        %p155 = pneg %p106
        %p156 = pneg %p103
        %s157 = sand.u32 %s93, 1
        %s158 = scalar_lea.sflag [#allocation3], %s157
        %s159 = sand.u32 %s93, 1
        %s160 = smul.addr %s159, 8
        %s161 = scalar_lea.vmem [#allocation2], %s160
        %p162 = scmp.lt.s32.totalorder %s17, 1
        %s163 = scalar_select %p162, %s17, 1
        %s164 = smul.addr %s163, 8
        %s165 = scalar_lea.vmem %s0, %s164
        %v166 = vld [vmem:[%s165] sm:$0xff]
        %v167 = vpack.c.bf16 %v166, %v166
        %v168 = vld [vmem:[%s1] sm:$0xf]
        %v169 = vld [vmem:[%s1 + $0x4] sm:$0xf]
        %v170 = vld [vmem:[%s1 + $0x8] sm:$0xf]
        %v171 = vld [vmem:[%s1 + $0xc] sm:$0xf]
        %v172 = vld [vmem:[%s1 + $0x10] sm:$0xf]
        %v173 = vld [vmem:[%s1 + $0x14] sm:$0xf]
        %v174 = vld [vmem:[%s1 + $0x18] sm:$0xf]
        %v175 = vld [vmem:[%s1 + $0x1c] sm:$0xf]
        %v176 = vld [vmem:[%s1 + $0x20] sm:$0xf]
        %v177 = vld [vmem:[%s1 + $0x24] sm:$0xf]
        %v178 = vld [vmem:[%s1 + $0x28] sm:$0xf]
        %v179 = vld [vmem:[%s1 + $0x2c] sm:$0xf]
        %v180 = vld [vmem:[%s1 + $0x30] sm:$0xf]
        %v181 = vld [vmem:[%s1 + $0x34] sm:$0xf]
        %v182 = vld [vmem:[%s1 + $0x38] sm:$0xf]
        %v183 = vld [vmem:[%s1 + $0x3c] sm:$0xf]
        %v184 = vld [vmem:[%s2] sm:$0x1]
        %v186 = vperm.slane %v184, 0
        %v204 = vunpack.c.l.b16 %v168
        %v205 = vunpack.c.l.b16 %v169
        %v206 = vunpack.c.l.b16 %v170
        %v207 = vunpack.c.l.b16 %v171
        %v208 = vunpack.c.l.b16 %v172
        %v209 = vunpack.c.l.b16 %v173
        %v210 = vunpack.c.l.b16 %v174
        %v211 = vunpack.c.l.b16 %v175
        %v212 = vunpack.c.l.b16 %v176
        %v213 = vunpack.c.l.b16 %v177
        %v214 = vunpack.c.l.b16 %v178
        %v215 = vunpack.c.l.b16 %v179
        %v216 = vunpack.c.l.b16 %v180
        %v217 = vunpack.c.l.b16 %v181
        %v218 = vunpack.c.l.b16 %v182
        %v219 = vunpack.c.l.b16 %v183
        %v220 = vpack.c.b16 %v205, %v204
        %v221 = vpack.c.b16 %v207, %v206
        %v222 = vpack.c.b16 %v209, %v208
        %v223 = vpack.c.b16 %v211, %v210
        %v224 = vpack.c.b16 %v213, %v212
        %v225 = vpack.c.b16 %v215, %v214
        %v226 = vpack.c.b16 %v217, %v216
        %v227 = vpack.c.b16 %v219, %v218
        %236 = vmatpush.bf16.msra.mxu0 %v227
        %237 = vmatpush.bf16.msra.mxu0 %v226
        %238 = vmatpush.bf16.msra.mxu0 %v225
        %239 = vmatpush.bf16.msra.mxu0 %v224
        %240 = vmatpush.bf16.msra.mxu0 %v223
        %241 = vmatpush.bf16.msra.mxu0 %v222
        %242 = vmatpush.bf16.msra.mxu0 %v221
        %243 = vmatpush.bf16.msra.mxu0 %v220
        %244 = vmatmul.bf16.gmra.mxu0 %v167
        %v245 = vpop.f32.mrf.mxu0
        %v246 = vadd.f32 %v186, %v245
        %v247 = vpop.f32.mrf.mxu0
        %248 = vdwg.mxu0
        %249 = vst [vmem:[%s161] sm:$0xff] %v246
        %s250 = sand.u32 %s93, 1
        %s251 = scalar_lea.sflag [#allocation3], %s250
        %s252 = sand.u32 %s93, 1
        %s253 = smul.addr %s252, 8
        %s254 = scalar_lea.vmem [#allocation2], %s253
        // Predicated region
        $region33: #{_lambda_.9} parent=31 // pred_check
          %p255 = pneg %p103
        $region34: #{_lambda_.9} parent=31 // pred_check_branch
          %257 = sbr.rel (%p255) target = $region36
        $region35: #{_lambda_.9} parent=31 // pred_region
          %259 = vsyncadd %s251, 0
          %s260 = smul.addr %s17, 8
          %s261 = scalar_lea.hbm %s3, %s260
          %s263 = sshll.u32 %s254, 4
          %s264 = int_to_ptr.vmem [resolvable:$true] %s263
          %s265 = sshll.u32 %s261, 4
          %s266 = int_to_ptr.hbm [resolvable:$true] %s265
          %268 = dma.vmem_to_hbm [thread:$0]  %s264, 128, %s266, %s251
        $region36: #{_lambda_.9} parent=31 // pred_fallthru
          _
      $region32: #{_lambda_.9} parent=5 // pred_fallthru
        _
      %p269 = scmp.le.s32.totalorder 2, %s12
      // Predicated region
      $region37: #{_lambda_.9} parent=5 // pred_check
        %p270 = pneg %p269
      $region38: #{_lambda_.9} parent=5 // pred_check_branch
        %272 = sbr.rel (%p270) target = $region40
      $region39: #{_lambda_.9} parent=5 // pred_region
        %s273 = ssub.s32 %s12, 2
        // Predicated region
        $region41: #{_lambda_.9} parent=39 // pred_check
          %p274 = pneg %p109
        $region42: #{_lambda_.9} parent=39 // pred_check_branch
          %276 = sbr.rel (%p274) target = $region44
        $region43: #{_lambda_.9} parent=39 // pred_region
          %s277 = sand.u32 %s94, 1
          %s278 = scalar_lea.sflag [#allocation3], %s277
          %s279 = sand.u32 %s94, 1
          %s280 = smul.addr %s279, 8
          %s281 = scalar_lea.vmem [#allocation2], %s280
          %283 = dma.done %s278, 128
        $region44: #{_lambda_.9} parent=39 // pred_fallthru
          _
      $region40: #{_lambda_.9} parent=5 // pred_fallthru
        _
    $region6: #{_lambda_.9} parent=1 // loop_footer
      %s16 = sadd.s32 1, %s12
    $region7: #{_lambda_.9} parent=1 // loop_footer_branch
      %11 = sbr.rel target = $region3
    $region8: #{_lambda_.9} parent=1 // loop_exit
      _
    %284 = vsyncpa [#allocation3], 1
    %s285 = scalar_lea.sflag [#allocation3], 1
    %286 = vsyncpa %s285, 1

</llo_original>
